<compile_context>
chip_gen: v7x
topology: tpu7x:2x2x1
jax: 0.10.0
libtpu: 0.0.40
codegen_flags: <defaults>
</compile_context>

<pallas_src>
import jax
import jax.numpy as jnp
from jax.experimental import pallas as pl
from jax.experimental.pallas import tpu as pltpu

EPS = 1e-5
LANES = 128
# Working set is ~2-3 MiB; 32 MiB scoped limit is safe on v5e/v6e (128 MiB
# physical) and v7x (64 MiB physical).
VMEM_LIMIT = 32 * 1024 * 1024


# ----------------------------------------------------------------------------
# Kernel A: bn1 + ReLU + BasicBlock1 (C->C, stride 1), fully fused.
# One grid step per batch image; per-tap MXU accumulation from a zero-halo
# VMEM scratch (no im2col).
# ----------------------------------------------------------------------------
def make_block1_kernel(h, w):
    hw = h * w

    def kernel(x_ref, bn_s, bn_b, w1, s1, b1, w2, s2, b2, o_ref, apad, mpad):
        cp = x_ref.shape[-1]

        # ---- bn1 + relu prologue; write into zero-halo padded scratch ----
        a = jnp.maximum(x_ref[...] * bn_s[...] + bn_b[...], 0.0)   # (h,w,cp) f32
        apad[...] = jnp.zeros_like(apad)
        apad[1:h + 1, 1:w + 1, :] = a

        # ---- conv1 (3x3, stride 1): per-tap bf16 MXU matmuls, f32 acc ----
        acc = jnp.zeros((hw, cp), jnp.float32)
        for t in range(9):
            di, dj = divmod(t, 3)
            v = apad[di:di + h, dj:dj + w, :].reshape(hw, cp)
            acc = acc + jnp.dot(v.astype(jnp.bfloat16), w1[t],
                                preferred_element_type=jnp.float32)
        y = jnp.maximum(acc * s1[...] + b1[...], 0.0)              # f32 epilogue
        mpad[...] = jnp.zeros_like(mpad)
        mpad[1:h + 1, 1:w + 1, :] = y.reshape(h, w, cp)

        # ---- conv2 (3x3) + BN + identity residual + relu ----
        acc2 = jnp.zeros((hw, cp), jnp.float32)
        for t in range(9):
            di, dj = divmod(t, 3)
            v = mpad[di:di + h, dj:dj + w, :].reshape(hw, cp)
            acc2 = acc2 + jnp.dot(v.astype(jnp.bfloat16), w2[t],
                                  preferred_element_type=jnp.float32)
        resid = apad[1:h + 1, 1:w + 1, :].reshape(hw, cp)          # relu(bn1(x))
        z = jnp.maximum(acc2 * s2[...] + b2[...] + resid, 0.0)
        o_ref[...] = z.reshape(h, w, cp).astype(jnp.bfloat16)      # bf16 handoff

    return kernel


# ----------------------------------------------------------------------------
# Kernel B: BasicBlock2 (C->2C, stride 2) + fused 1x1 downsample + fused
# global average pool.  Stride-2 conv taps read contiguous slices of the four
# row/col parity planes (pre-split in the wrapper), so no strided VMEM access.
# ----------------------------------------------------------------------------
def make_block2_pool_kernel(h2, w2):
    hw = h2 * w2

    def kernel(p00, p01, p10, p11, w1, s1, b1, w2r, s2, b2, wd, sd, bd,
               o_ref, mpad):
        cp = p00.shape[-1]
        planes = (p00, p01, p10, p11)

        # ---- conv1 (3x3, stride 2) via parity planes ----
        acc = jnp.zeros((hw, cp), jnp.float32)
        for t in range(9):
            ta, tb = divmod(t, 3)          # tap offsets ta-1, tb-1 in {-1,0,1}
            pa, r0 = (1, 0) if ta == 0 else ((0, 1) if ta == 1 else (1, 1))
            pb, c0 = (1, 0) if tb == 0 else ((0, 1) if tb == 1 else (1, 1))
            v = planes[pa * 2 + pb][r0:r0 + h2, c0:c0 + w2, :].reshape(hw, cp)
            acc = acc + jnp.dot(v.astype(jnp.bfloat16), w1[t],
                                preferred_element_type=jnp.float32)
        y = jnp.maximum(acc * s1[...] + b1[...], 0.0)

        # ---- conv2 (3x3, stride 1) ----
        mpad[...] = jnp.zeros_like(mpad)
        mpad[1:h2 + 1, 1:w2 + 1, :] = y.reshape(h2, w2, cp)
        acc2 = jnp.zeros((hw, cp), jnp.float32)
        for t in range(9):
            di, dj = divmod(t, 3)
            v = mpad[di:di + h2, dj:dj + w2, :].reshape(hw, cp)
            acc2 = acc2 + jnp.dot(v.astype(jnp.bfloat16), w2r[t],
                                  preferred_element_type=jnp.float32)
        z = acc2 * s2[...] + b2[...]

        # ---- fused 1x1 stride-2 downsample shortcut (+ its folded BN) ----
        idv = p00[1:h2 + 1, 1:w2 + 1, :].reshape(hw, cp)   # x[2i, 2j, :]
        ident = jnp.dot(idv.astype(jnp.bfloat16), wd[...],
                        preferred_element_type=jnp.float32)
        ident = ident * sd[...] + bd[...]

        # ---- residual add + relu + fused global average pool ----
        out = jnp.maximum(z + ident, 0.0)                  # (hw, cp) f32
        m = jnp.mean(out, axis=0, keepdims=True)           # (1, cp)
        o_ref[...] = jnp.broadcast_to(m, o_ref.shape)      # lane-dense block

    return kernel


# ----------------------------------------------------------------------------
# pallas_call wrappers
# ----------------------------------------------------------------------------
def _affine_spec():
    return pl.BlockSpec((1, LANES), lambda b: (0, 0))


def block1_forward(x_p, pp, h, w):
    n = x_p.shape[0]
    cp = LANES
    flops = 2 * n * h * w * cp * cp * 18
    bytes_acc = int(x_p.size * 4 + 2 * 9 * cp * cp * 2 + 6 * cp * 4
                    + n * h * w * cp * 2)
    return pl.pallas_call(
        make_block1_kernel(h, w),
        grid=(n,),
        out_shape=jax.ShapeDtypeStruct((n, h, w, cp), jnp.bfloat16),
        in_specs=[
            pl.BlockSpec((None, h, w, cp), lambda b: (b, 0, 0, 0)),
            _affine_spec(), _affine_spec(),
            pl.BlockSpec((9, cp, cp), lambda b: (0, 0, 0)),
            _affine_spec(), _affine_spec(),
            pl.BlockSpec((9, cp, cp), lambda b: (0, 0, 0)),
            _affine_spec(), _affine_spec(),
        ],
        out_specs=pl.BlockSpec((None, h, w, cp), lambda b: (b, 0, 0, 0)),
        scratch_shapes=[pltpu.VMEM((h + 2, w + 2, cp), jnp.float32),
                        pltpu.VMEM((h + 2, w + 2, cp), jnp.float32)],
        compiler_params=pltpu.CompilerParams(
            dimension_semantics=("parallel",),
            vmem_limit_bytes=VMEM_LIMIT),
        cost_estimate=pl.CostEstimate(flops=flops, transcendentals=0,
                                      bytes_accessed=bytes_acc),
    )(x_p, pp["bn1_s"], pp["bn1_b"],
      pp["b1_w1"], pp["b1_s1"], pp["b1_b1"],
      pp["b1_w2"], pp["b1_s2"], pp["b1_b2"])


def block2_pool_forward(planes, pp, h2, w2):
    n = planes[0].shape[0]
    cp = LANES
    plane_spec = pl.BlockSpec((None, h2 + 1, w2 + 1, cp), lambda b: (b, 0, 0, 0))
    flops = 2 * n * h2 * w2 * cp * cp * 19
    bytes_acc = int(sum(pz.size for pz in planes) * 4
                    + (2 * 9 + 1) * cp * cp * 2 + 6 * cp * 4 + n * 8 * cp * 4)
    return pl.pallas_call(
        make_block2_pool_kernel(h2, w2),
        grid=(n,),
        out_shape=jax.ShapeDtypeStruct((n, 8, cp), jnp.float32),
        in_specs=[plane_spec, plane_spec, plane_spec, plane_spec,
                  pl.BlockSpec((9, cp, cp), lambda b: (0, 0, 0)),
                  _affine_spec(), _affine_spec(),
                  pl.BlockSpec((9, cp, cp), lambda b: (0, 0, 0)),
                  _affine_spec(), _affine_spec(),
                  pl.BlockSpec((cp, cp), lambda b: (0, 0)),
                  _affine_spec(), _affine_spec()],
        out_specs=pl.BlockSpec((None, 8, cp), lambda b: (b, 0, 0)),
        scratch_shapes=[pltpu.VMEM((h2 + 2, w2 + 2, cp), jnp.float32)],
        compiler_params=pltpu.CompilerParams(
            dimension_semantics=("parallel",),
            vmem_limit_bytes=VMEM_LIMIT),
        cost_estimate=pl.CostEstimate(flops=flops, transcendentals=0,
                                      bytes_accessed=bytes_acc),
    )(*planes,
      pp["b2_w1"], pp["b2_s1"], pp["b2_b1"],
      pp["b2_w2"], pp["b2_s2"], pp["b2_b2"],
      pp["b2_wd"], pp["b2_sd"], pp["b2_bd"])


# ----------------------------------------------------------------------------
# Forward pass (mirrors self.resnet = Sequential(children()[1:-1]))
# ----------------------------------------------------------------------------
def image_encoder_forward(x_nchw, pp):
    n, c, h, w = x_nchw.shape
    c_out = 2 * c
    assert h % 2 == 0 and w % 16 == 0, "lane/sublane-friendly shapes assumed"

    # NCHW -> NHWC, channel-pad to 128 lanes once (stays lane-dense throughout)
    x = jnp.transpose(x_nchw, (0, 2, 3, 1)).astype(jnp.float32)
    x_p = jnp.pad(x, ((0, 0), (0, 0), (0, 0), (0, LANES - c)))

    # Kernel A: bn1 + relu + BasicBlock1 (bf16, lane-padded activation out)
    y1 = block1_forward(x_p, pp, h, w)                      # (N,H,W,128) bf16

    # Row/col parity split (+ 1-pixel leading zero halo) so block2's stride-2
    # 3x3 conv is contiguous per-tap slices in VMEM (no strided access, no
    # im2col slab).  Total bytes equal y1 itself.
    h2, w2 = h // 2, w // 2
    planes = []
    for ph in (0, 1):
        for pw_ in (0, 1):
            pz = y1[:, ph::2, pw_::2, :].astype(jnp.float32)
            planes.append(jnp.pad(pz, ((0, 0), (1, 0), (1, 0), (0, 0))))

    # Kernel B: BasicBlock2 + 1x1 downsample + global average pool fused
    pooled = block2_pool_forward(planes, pp, h2, w2)        # (N, 8, 128) f32

    # AdaptiveAvgPool2d(1) result in NCHW convention
    return pooled[:, 0, :c_out][:, :, None, None]


# ----------------------------------------------------------------------------
# Parameter init (deterministic, synthetic — no checkpoint load) + preparation
# ----------------------------------------------------------------------------
def _fold_bn(key, c):
    k1, k2, k3, k4 = jax.random.split(key, 4)
    gamma = 1.0 + 0.1 * jax.random.normal(k1, (c,), jnp.float32)
    beta = 0.1 * jax.random.normal(k2, (c,), jnp.float32)
    mean = 0.1 * jax.random.normal(k3, (c,), jnp.float32)
    var = jnp.abs(jax.random.normal(k4, (c,), jnp.float32)) + 0.5
    scale = gamma / jnp.sqrt(var + EPS)
    bias = beta - mean * scale
    return scale, bias


def _conv_w(key, k, cin, cout):
    w = jax.random.normal(key, (k, k, cin, cout), jnp.float32)   # HWIO
    return w * (1.0 / jnp.sqrt(float(k * k * cin)))


def init_params(key, c=4):
    ks = jax.random.split(key, 12)
    c2 = 2 * c
    p = {}
    p["bn1_s"], p["bn1_b"] = _fold_bn(ks[0], c)
    p["b1_w1"] = _conv_w(ks[1], 3, c, c)
    p["b1_s1"], p["b1_b1"] = _fold_bn(ks[2], c)
    p["b1_w2"] = _conv_w(ks[3], 3, c, c)
    p["b1_s2"], p["b1_b2"] = _fold_bn(ks[4], c)
    p["b2_w1"] = _conv_w(ks[5], 3, c, c2)
    p["b2_s1"], p["b2_b1"] = _fold_bn(ks[6], c2)
    p["b2_w2"] = _conv_w(ks[7], 3, c2, c2)
    p["b2_s2"], p["b2_b2"] = _fold_bn(ks[8], c2)
    p["b2_wd"] = _conv_w(ks[9], 1, c, c2)
    p["b2_sd"], p["b2_bd"] = _fold_bn(ks[10], c2)
    return p


def prepare_params(p):
    """One-time (outside jit): pad channels to 128 lanes, cast MXU weights to
    bf16, reshape conv kernels to per-tap (k*k, Cin_pad, Cout_pad)."""
    cp = LANES

    def pad_w(w):
        k = w.shape[0]
        wp = jnp.pad(w, ((0, 0), (0, 0),
                         (0, cp - w.shape[2]), (0, cp - w.shape[3])))
        return wp.reshape(k * k, cp, cp).astype(jnp.bfloat16)

    def pad_v(v):
        return jnp.pad(v, (0, cp - v.shape[0])).reshape(1, cp).astype(jnp.float32)

    pp = {"bn1_s": pad_v(p["bn1_s"]), "bn1_b": pad_v(p["bn1_b"]),
          "b1_w1": pad_w(p["b1_w1"]), "b1_s1": pad_v(p["b1_s1"]),
          "b1_b1": pad_v(p["b1_b1"]),
          "b1_w2": pad_w(p["b1_w2"]), "b1_s2": pad_v(p["b1_s2"]),
          "b1_b2": pad_v(p["b1_b2"]),
          "b2_w1": pad_w(p["b2_w1"]), "b2_s1": pad_v(p["b2_s1"]),
          "b2_b1": pad_v(p["b2_b1"]),
          "b2_w2": pad_w(p["b2_w2"]), "b2_s2": pad_v(p["b2_s2"]),
          "b2_b2": pad_v(p["b2_b2"]),
          "b2_wd": pad_w(p["b2_wd"])[0],                    # (128,128) bf16
          "b2_sd": pad_v(p["b2_sd"]), "b2_bd": pad_v(p["b2_bd"])}
    return pp


# ----------------------------------------------------------------------------
# Pure-JAX f32 reference (same graph) for a relaxed numerical check
# ----------------------------------------------------------------------------
def reference_forward(x_nchw, p):
    x = jnp.transpose(x_nchw, (0, 2, 3, 1)).astype(jnp.float32)
    dn = ("NHWC", "HWIO", "NHWC")
    hi = jax.lax.Precision.HIGHEST

    def conv_bn(v, wk, sk, bk, stride, pad):
        y = jax.lax.conv_general_dilated(
            v, p[wk], (stride, stride), [(pad, pad), (pad, pad)],
            dimension_numbers=dn, precision=hi)
        return y * p[sk] + p[bk]

    x = jnp.maximum(x * p["bn1_s"] + p["bn1_b"], 0.0)
    out = jnp.maximum(conv_bn(x, "b1_w1", "b1_s1", "b1_b1", 1, 1), 0.0)
    x = jnp.maximum(conv_bn(out, "b1_w2", "b1_s2", "b1_b2", 1, 1) + x, 0.0)
    ident = conv_bn(x, "b2_wd", "b2_sd", "b2_bd", 2, 0)
    out = jnp.maximum(conv_bn(x, "b2_w1", "b2_s1", "b2_b1", 2, 1), 0.0)
    out = jnp.maximum(conv_bn(out, "b2_w2", "b2_s2", "b2_b2", 1, 1) + ident, 0.0)
    pooled = jnp.mean(out, axis=(1, 2))
    return pooled[:, :, None, None]


# ----------------------------------------------------------------------------
if __name__ == "__main__":
    key = jax.random.PRNGKey(0)
    kx, kp = jax.random.split(key)

    N, C, H, W = 2, 4, 16, 16
    x = jax.random.normal(kx, (N, C, H, W), jnp.float32)
    params = init_params(kp, c=C)
    pparams = prepare_params(params)

    out = jax.block_until_ready(jax.jit(image_encoder_forward)(x, pparams))

    assert out.shape == (N, 2 * C, 1, 1), out.shape
    assert out.dtype == jnp.float32

    # bf16 MXU operands -> compare against f32 reference with relaxed tolerance
    ref = jax.block_until_ready(jax.jit(reference_forward)(x, params))
    err = float(jnp.max(jnp.abs(out - ref)))
    tol = 0.05 + 0.05 * float(jnp.max(jnp.abs(ref)))
    assert err < tol, f"max abs err {err} (tol {tol})"

    print("KERNEL_OK")
</pallas_src>

<mosaic_0001>
module attributes {stable_mosaic.version = 11 : i64} {
  func.func @kernel(%arg0: i32, %arg1: memref<1x16x16x128xf32, #tpu.memory_space<vmem>>, %arg2: memref<1x128xf32, #tpu.memory_space<vmem>>, %arg3: memref<1x128xf32, #tpu.memory_space<vmem>>, %arg4: memref<9x128x128xbf16, #tpu.memory_space<vmem>>, %arg5: memref<1x128xf32, #tpu.memory_space<vmem>>, %arg6: memref<1x128xf32, #tpu.memory_space<vmem>>, %arg7: memref<9x128x128xbf16, #tpu.memory_space<vmem>>, %arg8: memref<1x128xf32, #tpu.memory_space<vmem>>, %arg9: memref<1x128xf32, #tpu.memory_space<vmem>>, %arg10: memref<1x16x16x128xbf16, #tpu.memory_space<vmem>>, %arg11: memref<18x18x128xf32, #tpu.memory_space<vmem>>, %arg12: memref<18x18x128xf32, #tpu.memory_space<vmem>>) attributes {dimension_semantics = [#tpu.dimension_semantics<parallel>], iteration_bounds = array<i64: 2>, scalar_prefetch = 0 : i64, scratch_operands = 2 : i64, tpu.core_type = #tpu.core_type<tc>, window_params = [{transform_indices = @transform_0, window_bounds = array<i64: 1, 16, 16, 128>}, {pipeline_mode = #tpu.pipeline_mode<synchronous>, transform_indices = @transform_1, window_bounds = array<i64: 1, 128>}, {pipeline_mode = #tpu.pipeline_mode<synchronous>, transform_indices = @transform_2, window_bounds = array<i64: 1, 128>}, {pipeline_mode = #tpu.pipeline_mode<synchronous>, transform_indices = @transform_3, window_bounds = array<i64: 9, 128, 128>}, {pipeline_mode = #tpu.pipeline_mode<synchronous>, transform_indices = @transform_4, window_bounds = array<i64: 1, 128>}, {pipeline_mode = #tpu.pipeline_mode<synchronous>, transform_indices = @transform_5, window_bounds = array<i64: 1, 128>}, {pipeline_mode = #tpu.pipeline_mode<synchronous>, transform_indices = @transform_6, window_bounds = array<i64: 9, 128, 128>}, {pipeline_mode = #tpu.pipeline_mode<synchronous>, transform_indices = @transform_7, window_bounds = array<i64: 1, 128>}, {pipeline_mode = #tpu.pipeline_mode<synchronous>, transform_indices = @transform_8, window_bounds = array<i64: 1, 128>}, {transform_indices = @transform_9, window_bounds = array<i64: 1, 16, 16, 128>}]} {
    %c0 = arith.constant 0 : index
    %c0_0 = arith.constant 0 : index
    %c0_1 = arith.constant 0 : index
    %c0_2 = arith.constant 0 : index
    %0 = vector.load %arg1[%c0, %c0_0, %c0_1, %c0_2] : memref<1x16x16x128xf32, #tpu.memory_space<vmem>>, vector<1x16x16x128xf32>
    %1 = vector.shape_cast %0 : vector<1x16x16x128xf32> to vector<16x16x128xf32>
    %c0_3 = arith.constant 0 : index
    %c0_4 = arith.constant 0 : index
    %2 = vector.load %arg2[%c0_3, %c0_4] : memref<1x128xf32, #tpu.memory_space<vmem>>, vector<1x128xf32>
    %3 = vector.shape_cast %2 : vector<1x128xf32> to vector<1x1x128xf32>
    %4 = vector.broadcast %3 : vector<1x1x128xf32> to vector<16x16x128xf32>
    %5 = arith.mulf %1, %4 : vector<16x16x128xf32>
    %c0_5 = arith.constant 0 : index
    %c0_6 = arith.constant 0 : index
    %6 = vector.load %arg3[%c0_5, %c0_6] : memref<1x128xf32, #tpu.memory_space<vmem>>, vector<1x128xf32>
    %7 = vector.shape_cast %6 : vector<1x128xf32> to vector<1x1x128xf32>
    %8 = vector.broadcast %7 : vector<1x1x128xf32> to vector<16x16x128xf32>
    %9 = arith.addf %5, %8 : vector<16x16x128xf32>
    %cst = arith.constant 0.000000e+00 : f32
    %10 = vector.broadcast %cst : f32 to vector<16x16x128xf32>
    %11 = arith.maximumf %9, %10 : vector<16x16x128xf32>
    %cst_7 = arith.constant 0.000000e+00 : f32
    %12 = vector.broadcast %cst_7 : f32 to vector<18x18x128xf32>
    %c0_8 = arith.constant 0 : index
    %c0_9 = arith.constant 0 : index
    %c0_10 = arith.constant 0 : index
    %13 = vector.load %arg11[%c0_8, %c0_9, %c0_10] : memref<18x18x128xf32, #tpu.memory_space<vmem>>, vector<18x18x128xf32>
    tpu.vector_store %arg11[%c0_8, %c0_9, %c0_10], %12 {strides = array<i32>} : memref<18x18x128xf32, #tpu.memory_space<vmem>>, vector<18x18x128xf32>,
    %c1 = arith.constant 1 : index
    %c1_11 = arith.constant 1 : index
    %c0_12 = arith.constant 0 : index
    %14 = vector.load %arg11[%c1, %c1_11, %c0_12] : memref<18x18x128xf32, #tpu.memory_space<vmem>>, vector<16x16x128xf32>
    tpu.vector_store %arg11[%c1, %c1_11, %c0_12], %11 {strides = array<i32>} : memref<18x18x128xf32, #tpu.memory_space<vmem>>, vector<16x16x128xf32>,
    %cst_13 = arith.constant 0.000000e+00 : f32
    %15 = vector.broadcast %cst_13 : f32 to vector<256x128xf32>
    %c0_14 = arith.constant 0 : index
    %c0_15 = arith.constant 0 : index
    %c0_16 = arith.constant 0 : index
    %16 = vector.load %arg11[%c0_14, %c0_15, %c0_16] : memref<18x18x128xf32, #tpu.memory_space<vmem>>, vector<16x16x128xf32>
    %17 = vector.shape_cast %16 : vector<16x16x128xf32> to vector<256x128xf32>
    %18 = arith.truncf %17 : vector<256x128xf32> to vector<256x128xbf16>
    %c0_17 = arith.constant 0 : index
    %c0_18 = arith.constant 0 : index
    %c0_19 = arith.constant 0 : index
    %19 = vector.load %arg4[%c0_17, %c0_18, %c0_19] : memref<9x128x128xbf16, #tpu.memory_space<vmem>>, vector<1x128x128xbf16>
    %20 = vector.shape_cast %19 : vector<1x128x128xbf16> to vector<128x128xbf16>
    %cst_20 = arith.constant dense<0.000000e+00> : vector<256x128xf32>
    %21 = tpu.matmul %18, %20, %cst_20 {dimension_numbers = #tpu.dot_dimension_numbers<[1], [0], [0], [1], [0, 0, 1, 1], [], []>} : vector<256x128xbf16>, vector<128x128xbf16>, vector<256x128xf32> -> vector<256x128xf32>
    %22 = arith.addf %15, %21 : vector<256x128xf32>
    %c0_21 = arith.constant 0 : index
    %c1_22 = arith.constant 1 : index
    %c0_23 = arith.constant 0 : index
    %23 = vector.load %arg11[%c0_21, %c1_22, %c0_23] : memref<18x18x128xf32, #tpu.memory_space<vmem>>, vector<16x16x128xf32>
    %24 = vector.shape_cast %23 : vector<16x16x128xf32> to vector<256x128xf32>
    %25 = arith.truncf %24 : vector<256x128xf32> to vector<256x128xbf16>
    %c1_24 = arith.constant 1 : index
    %c0_25 = arith.constant 0 : index
    %c0_26 = arith.constant 0 : index
    %26 = vector.load %arg4[%c1_24, %c0_25, %c0_26] : memref<9x128x128xbf16, #tpu.memory_space<vmem>>, vector<1x128x128xbf16>
    %27 = vector.shape_cast %26 : vector<1x128x128xbf16> to vector<128x128xbf16>
    %cst_27 = arith.constant dense<0.000000e+00> : vector<256x128xf32>
    %28 = tpu.matmul %25, %27, %cst_27 {dimension_numbers = #tpu.dot_dimension_numbers<[1], [0], [0], [1], [0, 0, 1, 1], [], []>} : vector<256x128xbf16>, vector<128x128xbf16>, vector<256x128xf32> -> vector<256x128xf32>
    %29 = arith.addf %22, %28 : vector<256x128xf32>
    %c0_28 = arith.constant 0 : index
    %c2 = arith.constant 2 : index
    %c0_29 = arith.constant 0 : index
    %30 = vector.load %arg11[%c0_28, %c2, %c0_29] : memref<18x18x128xf32, #tpu.memory_space<vmem>>, vector<16x16x128xf32>
    %31 = vector.shape_cast %30 : vector<16x16x128xf32> to vector<256x128xf32>
    %32 = arith.truncf %31 : vector<256x128xf32> to vector<256x128xbf16>
    %c2_30 = arith.constant 2 : index
    %c0_31 = arith.constant 0 : index
    %c0_32 = arith.constant 0 : index
    %33 = vector.load %arg4[%c2_30, %c0_31, %c0_32] : memref<9x128x128xbf16, #tpu.memory_space<vmem>>, vector<1x128x128xbf16>
    %34 = vector.shape_cast %33 : vector<1x128x128xbf16> to vector<128x128xbf16>
    %cst_33 = arith.constant dense<0.000000e+00> : vector<256x128xf32>
    %35 = tpu.matmul %32, %34, %cst_33 {dimension_numbers = #tpu.dot_dimension_numbers<[1], [0], [0], [1], [0, 0, 1, 1], [], []>} : vector<256x128xbf16>, vector<128x128xbf16>, vector<256x128xf32> -> vector<256x128xf32>
    %36 = arith.addf %29, %35 : vector<256x128xf32>
    %c1_34 = arith.constant 1 : index
    %c0_35 = arith.constant 0 : index
    %c0_36 = arith.constant 0 : index
    %37 = vector.load %arg11[%c1_34, %c0_35, %c0_36] : memref<18x18x128xf32, #tpu.memory_space<vmem>>, vector<16x16x128xf32>
    %38 = vector.shape_cast %37 : vector<16x16x128xf32> to vector<256x128xf32>
    %39 = arith.truncf %38 : vector<256x128xf32> to vector<256x128xbf16>
    %c3 = arith.constant 3 : index
    %c0_37 = arith.constant 0 : index
    %c0_38 = arith.constant 0 : index
    %40 = vector.load %arg4[%c3, %c0_37, %c0_38] : memref<9x128x128xbf16, #tpu.memory_space<vmem>>, vector<1x128x128xbf16>
    %41 = vector.shape_cast %40 : vector<1x128x128xbf16> to vector<128x128xbf16>
    %cst_39 = arith.constant dense<0.000000e+00> : vector<256x128xf32>
    %42 = tpu.matmul %39, %41, %cst_39 {dimension_numbers = #tpu.dot_dimension_numbers<[1], [0], [0], [1], [0, 0, 1, 1], [], []>} : vector<256x128xbf16>, vector<128x128xbf16>, vector<256x128xf32> -> vector<256x128xf32>
    %43 = arith.addf %36, %42 : vector<256x128xf32>
    %c1_40 = arith.constant 1 : index
    %c1_41 = arith.constant 1 : index
    %c0_42 = arith.constant 0 : index
    %44 = vector.load %arg11[%c1_40, %c1_41, %c0_42] : memref<18x18x128xf32, #tpu.memory_space<vmem>>, vector<16x16x128xf32>
    %45 = vector.shape_cast %44 : vector<16x16x128xf32> to vector<256x128xf32>
    %46 = arith.truncf %45 : vector<256x128xf32> to vector<256x128xbf16>
    %c4 = arith.constant 4 : index
    %c0_43 = arith.constant 0 : index
    %c0_44 = arith.constant 0 : index
    %47 = vector.load %arg4[%c4, %c0_43, %c0_44] : memref<9x128x128xbf16, #tpu.memory_space<vmem>>, vector<1x128x128xbf16>
    %48 = vector.shape_cast %47 : vector<1x128x128xbf16> to vector<128x128xbf16>
    %cst_45 = arith.constant dense<0.000000e+00> : vector<256x128xf32>
    %49 = tpu.matmul %46, %48, %cst_45 {dimension_numbers = #tpu.dot_dimension_numbers<[1], [0], [0], [1], [0, 0, 1, 1], [], []>} : vector<256x128xbf16>, vector<128x128xbf16>, vector<256x128xf32> -> vector<256x128xf32>
    %50 = arith.addf %43, %49 : vector<256x128xf32>
    %c1_46 = arith.constant 1 : index
    %c2_47 = arith.constant 2 : index
    %c0_48 = arith.constant 0 : index
    %51 = vector.load %arg11[%c1_46, %c2_47, %c0_48] : memref<18x18x128xf32, #tpu.memory_space<vmem>>, vector<16x16x128xf32>
    %52 = vector.shape_cast %51 : vector<16x16x128xf32> to vector<256x128xf32>
    %53 = arith.truncf %52 : vector<256x128xf32> to vector<256x128xbf16>
    %c5 = arith.constant 5 : index
    %c0_49 = arith.constant 0 : index
    %c0_50 = arith.constant 0 : index
    %54 = vector.load %arg4[%c5, %c0_49, %c0_50] : memref<9x128x128xbf16, #tpu.memory_space<vmem>>, vector<1x128x128xbf16>
    %55 = vector.shape_cast %54 : vector<1x128x128xbf16> to vector<128x128xbf16>
    %cst_51 = arith.constant dense<0.000000e+00> : vector<256x128xf32>
    %56 = tpu.matmul %53, %55, %cst_51 {dimension_numbers = #tpu.dot_dimension_numbers<[1], [0], [0], [1], [0, 0, 1, 1], [], []>} : vector<256x128xbf16>, vector<128x128xbf16>, vector<256x128xf32> -> vector<256x128xf32>
    %57 = arith.addf %50, %56 : vector<256x128xf32>
    %c2_52 = arith.constant 2 : index
    %c0_53 = arith.constant 0 : index
    %c0_54 = arith.constant 0 : index
    %58 = vector.load %arg11[%c2_52, %c0_53, %c0_54] : memref<18x18x128xf32, #tpu.memory_space<vmem>>, vector<16x16x128xf32>
    %59 = vector.shape_cast %58 : vector<16x16x128xf32> to vector<256x128xf32>
    %60 = arith.truncf %59 : vector<256x128xf32> to vector<256x128xbf16>
    %c6 = arith.constant 6 : index
    %c0_55 = arith.constant 0 : index
    %c0_56 = arith.constant 0 : index
    %61 = vector.load %arg4[%c6, %c0_55, %c0_56] : memref<9x128x128xbf16, #tpu.memory_space<vmem>>, vector<1x128x128xbf16>
    %62 = vector.shape_cast %61 : vector<1x128x128xbf16> to vector<128x128xbf16>
    %cst_57 = arith.constant dense<0.000000e+00> : vector<256x128xf32>
    %63 = tpu.matmul %60, %62, %cst_57 {dimension_numbers = #tpu.dot_dimension_numbers<[1], [0], [0], [1], [0, 0, 1, 1], [], []>} : vector<256x128xbf16>, vector<128x128xbf16>, vector<256x128xf32> -> vector<256x128xf32>
    %64 = arith.addf %57, %63 : vector<256x128xf32>
    %c2_58 = arith.constant 2 : index
    %c1_59 = arith.constant 1 : index
    %c0_60 = arith.constant 0 : index
    %65 = vector.load %arg11[%c2_58, %c1_59, %c0_60] : memref<18x18x128xf32, #tpu.memory_space<vmem>>, vector<16x16x128xf32>
    %66 = vector.shape_cast %65 : vector<16x16x128xf32> to vector<256x128xf32>
    %67 = arith.truncf %66 : vector<256x128xf32> to vector<256x128xbf16>
    %c7 = arith.constant 7 : index
    %c0_61 = arith.constant 0 : index
    %c0_62 = arith.constant 0 : index
    %68 = vector.load %arg4[%c7, %c0_61, %c0_62] : memref<9x128x128xbf16, #tpu.memory_space<vmem>>, vector<1x128x128xbf16>
    %69 = vector.shape_cast %68 : vector<1x128x128xbf16> to vector<128x128xbf16>
    %cst_63 = arith.constant dense<0.000000e+00> : vector<256x128xf32>
    %70 = tpu.matmul %67, %69, %cst_63 {dimension_numbers = #tpu.dot_dimension_numbers<[1], [0], [0], [1], [0, 0, 1, 1], [], []>} : vector<256x128xbf16>, vector<128x128xbf16>, vector<256x128xf32> -> vector<256x128xf32>
    %71 = arith.addf %64, %70 : vector<256x128xf32>
    %c2_64 = arith.constant 2 : index
    %c2_65 = arith.constant 2 : index
    %c0_66 = arith.constant 0 : index
    %72 = vector.load %arg11[%c2_64, %c2_65, %c0_66] : memref<18x18x128xf32, #tpu.memory_space<vmem>>, vector<16x16x128xf32>
    %73 = vector.shape_cast %72 : vector<16x16x128xf32> to vector<256x128xf32>
    %74 = arith.truncf %73 : vector<256x128xf32> to vector<256x128xbf16>
    %c8 = arith.constant 8 : index
    %c0_67 = arith.constant 0 : index
    %c0_68 = arith.constant 0 : index
    %75 = vector.load %arg4[%c8, %c0_67, %c0_68] : memref<9x128x128xbf16, #tpu.memory_space<vmem>>, vector<1x128x128xbf16>
    %76 = vector.shape_cast %75 : vector<1x128x128xbf16> to vector<128x128xbf16>
    %cst_69 = arith.constant dense<0.000000e+00> : vector<256x128xf32>
    %77 = tpu.matmul %74, %76, %cst_69 {dimension_numbers = #tpu.dot_dimension_numbers<[1], [0], [0], [1], [0, 0, 1, 1], [], []>} : vector<256x128xbf16>, vector<128x128xbf16>, vector<256x128xf32> -> vector<256x128xf32>
    %78 = arith.addf %71, %77 : vector<256x128xf32>
    %c0_70 = arith.constant 0 : index
    %c0_71 = arith.constant 0 : index
    %79 = vector.load %arg5[%c0_70, %c0_71] : memref<1x128xf32, #tpu.memory_space<vmem>>, vector<1x128xf32>
    %80 = vector.broadcast %79 : vector<1x128xf32> to vector<256x128xf32>
    %81 = arith.mulf %78, %80 : vector<256x128xf32>
    %c0_72 = arith.constant 0 : index
    %c0_73 = arith.constant 0 : index
    %82 = vector.load %arg6[%c0_72, %c0_73] : memref<1x128xf32, #tpu.memory_space<vmem>>, vector<1x128xf32>
    %83 = vector.broadcast %82 : vector<1x128xf32> to vector<256x128xf32>
    %84 = arith.addf %81, %83 : vector<256x128xf32>
    %cst_74 = arith.constant 0.000000e+00 : f32
    %85 = vector.broadcast %cst_74 : f32 to vector<256x128xf32>
    %86 = arith.maximumf %84, %85 : vector<256x128xf32>
    %cst_75 = arith.constant 0.000000e+00 : f32
    %87 = vector.broadcast %cst_75 : f32 to vector<18x18x128xf32>
    %c0_76 = arith.constant 0 : index
    %c0_77 = arith.constant 0 : index
    %c0_78 = arith.constant 0 : index
    %88 = vector.load %arg12[%c0_76, %c0_77, %c0_78] : memref<18x18x128xf32, #tpu.memory_space<vmem>>, vector<18x18x128xf32>
    tpu.vector_store %arg12[%c0_76, %c0_77, %c0_78], %87 {strides = array<i32>} : memref<18x18x128xf32, #tpu.memory_space<vmem>>, vector<18x18x128xf32>,
    %89 = vector.shape_cast %86 : vector<256x128xf32> to vector<16x16x128xf32>
    %c1_79 = arith.constant 1 : index
    %c1_80 = arith.constant 1 : index
    %c0_81 = arith.constant 0 : index
    %90 = vector.load %arg12[%c1_79, %c1_80, %c0_81] : memref<18x18x128xf32, #tpu.memory_space<vmem>>, vector<16x16x128xf32>
    tpu.vector_store %arg12[%c1_79, %c1_80, %c0_81], %89 {strides = array<i32>} : memref<18x18x128xf32, #tpu.memory_space<vmem>>, vector<16x16x128xf32>,
    %cst_82 = arith.constant 0.000000e+00 : f32
    %91 = vector.broadcast %cst_82 : f32 to vector<256x128xf32>
    %c0_83 = arith.constant 0 : index
    %c0_84 = arith.constant 0 : index
    %c0_85 = arith.constant 0 : index
    %92 = vector.load %arg12[%c0_83, %c0_84, %c0_85] : memref<18x18x128xf32, #tpu.memory_space<vmem>>, vector<16x16x128xf32>
    %93 = vector.shape_cast %92 : vector<16x16x128xf32> to vector<256x128xf32>
    %94 = arith.truncf %93 : vector<256x128xf32> to vector<256x128xbf16>
    %c0_86 = arith.constant 0 : index
    %c0_87 = arith.constant 0 : index
    %c0_88 = arith.constant 0 : index
    %95 = vector.load %arg7[%c0_86, %c0_87, %c0_88] : memref<9x128x128xbf16, #tpu.memory_space<vmem>>, vector<1x128x128xbf16>
    %96 = vector.shape_cast %95 : vector<1x128x128xbf16> to vector<128x128xbf16>
    %cst_89 = arith.constant dense<0.000000e+00> : vector<256x128xf32>
    %97 = tpu.matmul %94, %96, %cst_89 {dimension_numbers = #tpu.dot_dimension_numbers<[1], [0], [0], [1], [0, 0, 1, 1], [], []>} : vector<256x128xbf16>, vector<128x128xbf16>, vector<256x128xf32> -> vector<256x128xf32>
    %98 = arith.addf %91, %97 : vector<256x128xf32>
    %c0_90 = arith.constant 0 : index
    %c1_91 = arith.constant 1 : index
    %c0_92 = arith.constant 0 : index
    %99 = vector.load %arg12[%c0_90, %c1_91, %c0_92] : memref<18x18x128xf32, #tpu.memory_space<vmem>>, vector<16x16x128xf32>
    %100 = vector.shape_cast %99 : vector<16x16x128xf32> to vector<256x128xf32>
    %101 = arith.truncf %100 : vector<256x128xf32> to vector<256x128xbf16>
    %c1_93 = arith.constant 1 : index
    %c0_94 = arith.constant 0 : index
    %c0_95 = arith.constant 0 : index
    %102 = vector.load %arg7[%c1_93, %c0_94, %c0_95] : memref<9x128x128xbf16, #tpu.memory_space<vmem>>, vector<1x128x128xbf16>
    %103 = vector.shape_cast %102 : vector<1x128x128xbf16> to vector<128x128xbf16>
    %cst_96 = arith.constant dense<0.000000e+00> : vector<256x128xf32>
    %104 = tpu.matmul %101, %103, %cst_96 {dimension_numbers = #tpu.dot_dimension_numbers<[1], [0], [0], [1], [0, 0, 1, 1], [], []>} : vector<256x128xbf16>, vector<128x128xbf16>, vector<256x128xf32> -> vector<256x128xf32>
    %105 = arith.addf %98, %104 : vector<256x128xf32>
    %c0_97 = arith.constant 0 : index
    %c2_98 = arith.constant 2 : index
    %c0_99 = arith.constant 0 : index
    %106 = vector.load %arg12[%c0_97, %c2_98, %c0_99] : memref<18x18x128xf32, #tpu.memory_space<vmem>>, vector<16x16x128xf32>
    %107 = vector.shape_cast %106 : vector<16x16x128xf32> to vector<256x128xf32>
    %108 = arith.truncf %107 : vector<256x128xf32> to vector<256x128xbf16>
    %c2_100 = arith.constant 2 : index
    %c0_101 = arith.constant 0 : index
    %c0_102 = arith.constant 0 : index
    %109 = vector.load %arg7[%c2_100, %c0_101, %c0_102] : memref<9x128x128xbf16, #tpu.memory_space<vmem>>, vector<1x128x128xbf16>
    %110 = vector.shape_cast %109 : vector<1x128x128xbf16> to vector<128x128xbf16>
    %cst_103 = arith.constant dense<0.000000e+00> : vector<256x128xf32>
    %111 = tpu.matmul %108, %110, %cst_103 {dimension_numbers = #tpu.dot_dimension_numbers<[1], [0], [0], [1], [0, 0, 1, 1], [], []>} : vector<256x128xbf16>, vector<128x128xbf16>, vector<256x128xf32> -> vector<256x128xf32>
    %112 = arith.addf %105, %111 : vector<256x128xf32>
    %c1_104 = arith.constant 1 : index
    %c0_105 = arith.constant 0 : index
    %c0_106 = arith.constant 0 : index
    %113 = vector.load %arg12[%c1_104, %c0_105, %c0_106] : memref<18x18x128xf32, #tpu.memory_space<vmem>>, vector<16x16x128xf32>
    %114 = vector.shape_cast %113 : vector<16x16x128xf32> to vector<256x128xf32>
    %115 = arith.truncf %114 : vector<256x128xf32> to vector<256x128xbf16>
    %c3_107 = arith.constant 3 : index
    %c0_108 = arith.constant 0 : index
    %c0_109 = arith.constant 0 : index
    %116 = vector.load %arg7[%c3_107, %c0_108, %c0_109] : memref<9x128x128xbf16, #tpu.memory_space<vmem>>, vector<1x128x128xbf16>
    %117 = vector.shape_cast %116 : vector<1x128x128xbf16> to vector<128x128xbf16>
    %cst_110 = arith.constant dense<0.000000e+00> : vector<256x128xf32>
    %118 = tpu.matmul %115, %117, %cst_110 {dimension_numbers = #tpu.dot_dimension_numbers<[1], [0], [0], [1], [0, 0, 1, 1], [], []>} : vector<256x128xbf16>, vector<128x128xbf16>, vector<256x128xf32> -> vector<256x128xf32>
    %119 = arith.addf %112, %118 : vector<256x128xf32>
    %c1_111 = arith.constant 1 : index
    %c1_112 = arith.constant 1 : index
    %c0_113 = arith.constant 0 : index
    %120 = vector.load %arg12[%c1_111, %c1_112, %c0_113] : memref<18x18x128xf32, #tpu.memory_space<vmem>>, vector<16x16x128xf32>
    %121 = vector.shape_cast %120 : vector<16x16x128xf32> to vector<256x128xf32>
    %122 = arith.truncf %121 : vector<256x128xf32> to vector<256x128xbf16>
    %c4_114 = arith.constant 4 : index
    %c0_115 = arith.constant 0 : index
    %c0_116 = arith.constant 0 : index
    %123 = vector.load %arg7[%c4_114, %c0_115, %c0_116] : memref<9x128x128xbf16, #tpu.memory_space<vmem>>, vector<1x128x128xbf16>
    %124 = vector.shape_cast %123 : vector<1x128x128xbf16> to vector<128x128xbf16>
    %cst_117 = arith.constant dense<0.000000e+00> : vector<256x128xf32>
    %125 = tpu.matmul %122, %124, %cst_117 {dimension_numbers = #tpu.dot_dimension_numbers<[1], [0], [0], [1], [0, 0, 1, 1], [], []>} : vector<256x128xbf16>, vector<128x128xbf16>, vector<256x128xf32> -> vector<256x128xf32>
    %126 = arith.addf %119, %125 : vector<256x128xf32>
    %c1_118 = arith.constant 1 : index
    %c2_119 = arith.constant 2 : index
    %c0_120 = arith.constant 0 : index
    %127 = vector.load %arg12[%c1_118, %c2_119, %c0_120] : memref<18x18x128xf32, #tpu.memory_space<vmem>>, vector<16x16x128xf32>
    %128 = vector.shape_cast %127 : vector<16x16x128xf32> to vector<256x128xf32>
    %129 = arith.truncf %128 : vector<256x128xf32> to vector<256x128xbf16>
    %c5_121 = arith.constant 5 : index
    %c0_122 = arith.constant 0 : index
    %c0_123 = arith.constant 0 : index
    %130 = vector.load %arg7[%c5_121, %c0_122, %c0_123] : memref<9x128x128xbf16, #tpu.memory_space<vmem>>, vector<1x128x128xbf16>
    %131 = vector.shape_cast %130 : vector<1x128x128xbf16> to vector<128x128xbf16>
    %cst_124 = arith.constant dense<0.000000e+00> : vector<256x128xf32>
    %132 = tpu.matmul %129, %131, %cst_124 {dimension_numbers = #tpu.dot_dimension_numbers<[1], [0], [0], [1], [0, 0, 1, 1], [], []>} : vector<256x128xbf16>, vector<128x128xbf16>, vector<256x128xf32> -> vector<256x128xf32>
    %133 = arith.addf %126, %132 : vector<256x128xf32>
    %c2_125 = arith.constant 2 : index
    %c0_126 = arith.constant 0 : index
    %c0_127 = arith.constant 0 : index
    %134 = vector.load %arg12[%c2_125, %c0_126, %c0_127] : memref<18x18x128xf32, #tpu.memory_space<vmem>>, vector<16x16x128xf32>
    %135 = vector.shape_cast %134 : vector<16x16x128xf32> to vector<256x128xf32>
    %136 = arith.truncf %135 : vector<256x128xf32> to vector<256x128xbf16>
    %c6_128 = arith.constant 6 : index
    %c0_129 = arith.constant 0 : index
    %c0_130 = arith.constant 0 : index
    %137 = vector.load %arg7[%c6_128, %c0_129, %c0_130] : memref<9x128x128xbf16, #tpu.memory_space<vmem>>, vector<1x128x128xbf16>
    %138 = vector.shape_cast %137 : vector<1x128x128xbf16> to vector<128x128xbf16>
    %cst_131 = arith.constant dense<0.000000e+00> : vector<256x128xf32>
    %139 = tpu.matmul %136, %138, %cst_131 {dimension_numbers = #tpu.dot_dimension_numbers<[1], [0], [0], [1], [0, 0, 1, 1], [], []>} : vector<256x128xbf16>, vector<128x128xbf16>, vector<256x128xf32> -> vector<256x128xf32>
    %140 = arith.addf %133, %139 : vector<256x128xf32>
    %c2_132 = arith.constant 2 : index
    %c1_133 = arith.constant 1 : index
    %c0_134 = arith.constant 0 : index
    %141 = vector.load %arg12[%c2_132, %c1_133, %c0_134] : memref<18x18x128xf32, #tpu.memory_space<vmem>>, vector<16x16x128xf32>
    %142 = vector.shape_cast %141 : vector<16x16x128xf32> to vector<256x128xf32>
    %143 = arith.truncf %142 : vector<256x128xf32> to vector<256x128xbf16>
    %c7_135 = arith.constant 7 : index
    %c0_136 = arith.constant 0 : index
    %c0_137 = arith.constant 0 : index
    %144 = vector.load %arg7[%c7_135, %c0_136, %c0_137] : memref<9x128x128xbf16, #tpu.memory_space<vmem>>, vector<1x128x128xbf16>
    %145 = vector.shape_cast %144 : vector<1x128x128xbf16> to vector<128x128xbf16>
    %cst_138 = arith.constant dense<0.000000e+00> : vector<256x128xf32>
    %146 = tpu.matmul %143, %145, %cst_138 {dimension_numbers = #tpu.dot_dimension_numbers<[1], [0], [0], [1], [0, 0, 1, 1], [], []>} : vector<256x128xbf16>, vector<128x128xbf16>, vector<256x128xf32> -> vector<256x128xf32>
    %147 = arith.addf %140, %146 : vector<256x128xf32>
    %c2_139 = arith.constant 2 : index
    %c2_140 = arith.constant 2 : index
    %c0_141 = arith.constant 0 : index
    %148 = vector.load %arg12[%c2_139, %c2_140, %c0_141] : memref<18x18x128xf32, #tpu.memory_space<vmem>>, vector<16x16x128xf32>
    %149 = vector.shape_cast %148 : vector<16x16x128xf32> to vector<256x128xf32>
    %150 = arith.truncf %149 : vector<256x128xf32> to vector<256x128xbf16>
    %c8_142 = arith.constant 8 : index
    %c0_143 = arith.constant 0 : index
    %c0_144 = arith.constant 0 : index
    %151 = vector.load %arg7[%c8_142, %c0_143, %c0_144] : memref<9x128x128xbf16, #tpu.memory_space<vmem>>, vector<1x128x128xbf16>
    %152 = vector.shape_cast %151 : vector<1x128x128xbf16> to vector<128x128xbf16>
    %cst_145 = arith.constant dense<0.000000e+00> : vector<256x128xf32>
    %153 = tpu.matmul %150, %152, %cst_145 {dimension_numbers = #tpu.dot_dimension_numbers<[1], [0], [0], [1], [0, 0, 1, 1], [], []>} : vector<256x128xbf16>, vector<128x128xbf16>, vector<256x128xf32> -> vector<256x128xf32>
    %154 = arith.addf %147, %153 : vector<256x128xf32>
    %c1_146 = arith.constant 1 : index
    %c1_147 = arith.constant 1 : index
    %c0_148 = arith.constant 0 : index
    %155 = vector.load %arg11[%c1_146, %c1_147, %c0_148] : memref<18x18x128xf32, #tpu.memory_space<vmem>>, vector<16x16x128xf32>
    %156 = vector.shape_cast %155 : vector<16x16x128xf32> to vector<256x128xf32>
    %c0_149 = arith.constant 0 : index
    %c0_150 = arith.constant 0 : index
    %157 = vector.load %arg8[%c0_149, %c0_150] : memref<1x128xf32, #tpu.memory_space<vmem>>, vector<1x128xf32>
    %158 = vector.broadcast %157 : vector<1x128xf32> to vector<256x128xf32>
    %159 = arith.mulf %154, %158 : vector<256x128xf32>
    %c0_151 = arith.constant 0 : index
    %c0_152 = arith.constant 0 : index
    %160 = vector.load %arg9[%c0_151, %c0_152] : memref<1x128xf32, #tpu.memory_space<vmem>>, vector<1x128xf32>
    %161 = vector.broadcast %160 : vector<1x128xf32> to vector<256x128xf32>
    %162 = arith.addf %159, %161 : vector<256x128xf32>
    %163 = arith.addf %162, %156 : vector<256x128xf32>
    %cst_153 = arith.constant 0.000000e+00 : f32
    %164 = vector.broadcast %cst_153 : f32 to vector<256x128xf32>
    %165 = arith.maximumf %163, %164 : vector<256x128xf32>
    %166 = vector.shape_cast %165 : vector<256x128xf32> to vector<16x16x128xf32>
    %167 = arith.truncf %166 : vector<16x16x128xf32> to vector<16x16x128xbf16>
    %c0_154 = arith.constant 0 : index
    %c0_155 = arith.constant 0 : index
    %c0_156 = arith.constant 0 : index
    %c0_157 = arith.constant 0 : index
    %168 = vector.load %arg10[%c0_154, %c0_155, %c0_156, %c0_157] : memref<1x16x16x128xbf16, #tpu.memory_space<vmem>>, vector<1x16x16x128xbf16>
    %169 = vector.shape_cast %168 : vector<1x16x16x128xbf16> to vector<16x16x128xbf16>
    %170 = vector.shape_cast %167 : vector<16x16x128xbf16> to vector<1x16x16x128xbf16>
    tpu.vector_store %arg10[%c0_154, %c0_155, %c0_156, %c0_157], %170 {strides = array<i32>} : memref<1x16x16x128xbf16, #tpu.memory_space<vmem>>, vector<1x16x16x128xbf16>,
    return
  }
  func.func @transform_0(%arg0: i32) -> (i32, i32, i32, i32) {
    %c0_i32 = arith.constant 0 : i32
    %c0_i32_0 = arith.constant 0 : i32
    %c0_i32_1 = arith.constant 0 : i32
    %c0_i32_2 = arith.constant 0 : i32
    return %arg0, %c0_i32, %c0_i32_0, %c0_i32_1 : i32, i32, i32, i32
  }
  func.func @transform_1(%arg0: i32) -> (i32, i32) {
    %c0_i32 = arith.constant 0 : i32
    %c0_i32_0 = arith.constant 0 : i32
    %c0_i32_1 = arith.constant 0 : i32
    return %c0_i32, %c0_i32_0 : i32, i32
  }
  func.func @transform_2(%arg0: i32) -> (i32, i32) {
    %c0_i32 = arith.constant 0 : i32
    %c0_i32_0 = arith.constant 0 : i32
    %c0_i32_1 = arith.constant 0 : i32
    return %c0_i32, %c0_i32_0 : i32, i32
  }
  func.func @transform_3(%arg0: i32) -> (i32, i32, i32) {
    %c0_i32 = arith.constant 0 : i32
    %c0_i32_0 = arith.constant 0 : i32
    %c0_i32_1 = arith.constant 0 : i32
    %c0_i32_2 = arith.constant 0 : i32
    return %c0_i32, %c0_i32_0, %c0_i32_1 : i32, i32, i32
  }
  func.func @transform_4(%arg0: i32) -> (i32, i32) {
    %c0_i32 = arith.constant 0 : i32
    %c0_i32_0 = arith.constant 0 : i32
    %c0_i32_1 = arith.constant 0 : i32
    return %c0_i32, %c0_i32_0 : i32, i32
  }
  func.func @transform_5(%arg0: i32) -> (i32, i32) {
    %c0_i32 = arith.constant 0 : i32
    %c0_i32_0 = arith.constant 0 : i32
    %c0_i32_1 = arith.constant 0 : i32
    return %c0_i32, %c0_i32_0 : i32, i32
  }
  func.func @transform_6(%arg0: i32) -> (i32, i32, i32) {
    %c0_i32 = arith.constant 0 : i32
    %c0_i32_0 = arith.constant 0 : i32
    %c0_i32_1 = arith.constant 0 : i32
    %c0_i32_2 = arith.constant 0 : i32
    return %c0_i32, %c0_i32_0, %c0_i32_1 : i32, i32, i32
  }
  func.func @transform_7(%arg0: i32) -> (i32, i32) {
    %c0_i32 = arith.constant 0 : i32
    %c0_i32_0 = arith.constant 0 : i32
    %c0_i32_1 = arith.constant 0 : i32
    return %c0_i32, %c0_i32_0 : i32, i32
  }
  func.func @transform_8(%arg0: i32) -> (i32, i32) {
    %c0_i32 = arith.constant 0 : i32
    %c0_i32_0 = arith.constant 0 : i32
    %c0_i32_1 = arith.constant 0 : i32
    return %c0_i32, %c0_i32_0 : i32, i32
  }
  func.func @transform_9(%arg0: i32) -> (i32, i32, i32, i32) {
    %c0_i32 = arith.constant 0 : i32
    %c0_i32_0 = arith.constant 0 : i32
    %c0_i32_1 = arith.constant 0 : i32
    %c0_i32_2 = arith.constant 0 : i32
    return %arg0, %c0_i32, %c0_i32_0, %c0_i32_1 : i32, i32, i32, i32
  }
}

module attributes {stable_mosaic.version = 11 : i64} {
  func.func @kernel(%arg0: i32, %arg1: memref<1x9x9x128xf32, #tpu.memory_space<vmem>>, %arg2: memref<1x9x9x128xf32, #tpu.memory_space<vmem>>, %arg3: memref<1x9x9x128xf32, #tpu.memory_space<vmem>>, %arg4: memref<1x9x9x128xf32, #tpu.memory_space<vmem>>, %arg5: memref<9x128x128xbf16, #tpu.memory_space<vmem>>, %arg6: memref<1x128xf32, #tpu.memory_space<vmem>>, %arg7: memref<1x128xf32, #tpu.memory_space<vmem>>, %arg8: memref<9x128x128xbf16, #tpu.memory_space<vmem>>, %arg9: memref<1x128xf32, #tpu.memory_space<vmem>>, %arg10: memref<1x128xf32, #tpu.memory_space<vmem>>, %arg11: memref<128x128xbf16, #tpu.memory_space<vmem>>, %arg12: memref<1x128xf32, #tpu.memory_space<vmem>>, %arg13: memref<1x128xf32, #tpu.memory_space<vmem>>, %arg14: memref<1x8x128xf32, #tpu.memory_space<vmem>>, %arg15: memref<10x10x128xf32, #tpu.memory_space<vmem>>) attributes {dimension_semantics = [#tpu.dimension_semantics<parallel>], iteration_bounds = array<i64: 2>, scalar_prefetch = 0 : i64, scratch_operands = 1 : i64, tpu.core_type = #tpu.core_type<tc>, window_params = [{transform_indices = @transform_0, window_bounds = array<i64: 1, 9, 9, 128>}, {transform_indices = @transform_1, window_bounds = array<i64: 1, 9, 9, 128>}, {transform_indices = @transform_2, window_bounds = array<i64: 1, 9, 9, 128>}, {transform_indices = @transform_3, window_bounds = array<i64: 1, 9, 9, 128>}, {pipeline_mode = #tpu.pipeline_mode<synchronous>, transform_indices = @transform_4, window_bounds = array<i64: 9, 128, 128>}, {pipeline_mode = #tpu.pipeline_mode<synchronous>, transform_indices = @transform_5, window_bounds = array<i64: 1, 128>}, {pipeline_mode = #tpu.pipeline_mode<synchronous>, transform_indices = @transform_6, window_bounds = array<i64: 1, 128>}, {pipeline_mode = #tpu.pipeline_mode<synchronous>, transform_indices = @transform_7, window_bounds = array<i64: 9, 128, 128>}, {pipeline_mode = #tpu.pipeline_mode<synchronous>, transform_indices = @transform_8, window_bounds = array<i64: 1, 128>}, {pipeline_mode = #tpu.pipeline_mode<synchronous>, transform_indices = @transform_9, window_bounds = array<i64: 1, 128>}, {pipeline_mode = #tpu.pipeline_mode<synchronous>, transform_indices = @transform_10, window_bounds = array<i64: 128, 128>}, {pipeline_mode = #tpu.pipeline_mode<synchronous>, transform_indices = @transform_11, window_bounds = array<i64: 1, 128>}, {pipeline_mode = #tpu.pipeline_mode<synchronous>, transform_indices = @transform_12, window_bounds = array<i64: 1, 128>}, {transform_indices = @transform_13, window_bounds = array<i64: 1, 8, 128>}]} {
    %cst = arith.constant 0.000000e+00 : f32
    %0 = vector.broadcast %cst : f32 to vector<64x128xf32>
    %c0 = arith.constant 0 : index
    %c0_0 = arith.constant 0 : index
    %c0_1 = arith.constant 0 : index
    %c0_2 = arith.constant 0 : index
    %1 = vector.load %arg4[%c0, %c0_0, %c0_1, %c0_2] : memref<1x9x9x128xf32, #tpu.memory_space<vmem>>, vector<1x8x8x128xf32>
    %2 = vector.shape_cast %1 : vector<1x8x8x128xf32> to vector<8x8x128xf32>
    %3 = vector.shape_cast %2 : vector<8x8x128xf32> to vector<64x128xf32>
    %4 = arith.truncf %3 : vector<64x128xf32> to vector<64x128xbf16>
    %c0_3 = arith.constant 0 : index
    %c0_4 = arith.constant 0 : index
    %c0_5 = arith.constant 0 : index
    %5 = vector.load %arg5[%c0_3, %c0_4, %c0_5] : memref<9x128x128xbf16, #tpu.memory_space<vmem>>, vector<1x128x128xbf16>
    %6 = vector.shape_cast %5 : vector<1x128x128xbf16> to vector<128x128xbf16>
    %cst_6 = arith.constant dense<0.000000e+00> : vector<64x128xf32>
    %7 = tpu.matmul %4, %6, %cst_6 {dimension_numbers = #tpu.dot_dimension_numbers<[1], [0], [0], [1], [0, 0, 1, 1], [], []>} : vector<64x128xbf16>, vector<128x128xbf16>, vector<64x128xf32> -> vector<64x128xf32>
    %8 = arith.addf %0, %7 : vector<64x128xf32>
    %c0_7 = arith.constant 0 : index
    %c0_8 = arith.constant 0 : index
    %c1 = arith.constant 1 : index
    %c0_9 = arith.constant 0 : index
    %9 = vector.load %arg3[%c0_7, %c0_8, %c1, %c0_9] : memref<1x9x9x128xf32, #tpu.memory_space<vmem>>, vector<1x8x8x128xf32>
    %10 = vector.shape_cast %9 : vector<1x8x8x128xf32> to vector<8x8x128xf32>
    %11 = vector.shape_cast %10 : vector<8x8x128xf32> to vector<64x128xf32>
    %12 = arith.truncf %11 : vector<64x128xf32> to vector<64x128xbf16>
    %c1_10 = arith.constant 1 : index
    %c0_11 = arith.constant 0 : index
    %c0_12 = arith.constant 0 : index
    %13 = vector.load %arg5[%c1_10, %c0_11, %c0_12] : memref<9x128x128xbf16, #tpu.memory_space<vmem>>, vector<1x128x128xbf16>
    %14 = vector.shape_cast %13 : vector<1x128x128xbf16> to vector<128x128xbf16>
    %cst_13 = arith.constant dense<0.000000e+00> : vector<64x128xf32>
    %15 = tpu.matmul %12, %14, %cst_13 {dimension_numbers = #tpu.dot_dimension_numbers<[1], [0], [0], [1], [0, 0, 1, 1], [], []>} : vector<64x128xbf16>, vector<128x128xbf16>, vector<64x128xf32> -> vector<64x128xf32>
    %16 = arith.addf %8, %15 : vector<64x128xf32>
    %c0_14 = arith.constant 0 : index
    %c0_15 = arith.constant 0 : index
    %c1_16 = arith.constant 1 : index
    %c0_17 = arith.constant 0 : index
    %17 = vector.load %arg4[%c0_14, %c0_15, %c1_16, %c0_17] : memref<1x9x9x128xf32, #tpu.memory_space<vmem>>, vector<1x8x8x128xf32>
    %18 = vector.shape_cast %17 : vector<1x8x8x128xf32> to vector<8x8x128xf32>
    %19 = vector.shape_cast %18 : vector<8x8x128xf32> to vector<64x128xf32>
    %20 = arith.truncf %19 : vector<64x128xf32> to vector<64x128xbf16>
    %c2 = arith.constant 2 : index
    %c0_18 = arith.constant 0 : index
    %c0_19 = arith.constant 0 : index
    %21 = vector.load %arg5[%c2, %c0_18, %c0_19] : memref<9x128x128xbf16, #tpu.memory_space<vmem>>, vector<1x128x128xbf16>
    %22 = vector.shape_cast %21 : vector<1x128x128xbf16> to vector<128x128xbf16>
    %cst_20 = arith.constant dense<0.000000e+00> : vector<64x128xf32>
    %23 = tpu.matmul %20, %22, %cst_20 {dimension_numbers = #tpu.dot_dimension_numbers<[1], [0], [0], [1], [0, 0, 1, 1], [], []>} : vector<64x128xbf16>, vector<128x128xbf16>, vector<64x128xf32> -> vector<64x128xf32>
    %24 = arith.addf %16, %23 : vector<64x128xf32>
    %c0_21 = arith.constant 0 : index
    %c1_22 = arith.constant 1 : index
    %c0_23 = arith.constant 0 : index
    %c0_24 = arith.constant 0 : index
    %25 = vector.load %arg2[%c0_21, %c1_22, %c0_23, %c0_24] : memref<1x9x9x128xf32, #tpu.memory_space<vmem>>, vector<1x8x8x128xf32>
    %26 = vector.shape_cast %25 : vector<1x8x8x128xf32> to vector<8x8x128xf32>
    %27 = vector.shape_cast %26 : vector<8x8x128xf32> to vector<64x128xf32>
    %28 = arith.truncf %27 : vector<64x128xf32> to vector<64x128xbf16>
    %c3 = arith.constant 3 : index
    %c0_25 = arith.constant 0 : index
    %c0_26 = arith.constant 0 : index
    %29 = vector.load %arg5[%c3, %c0_25, %c0_26] : memref<9x128x128xbf16, #tpu.memory_space<vmem>>, vector<1x128x128xbf16>
    %30 = vector.shape_cast %29 : vector<1x128x128xbf16> to vector<128x128xbf16>
    %cst_27 = arith.constant dense<0.000000e+00> : vector<64x128xf32>
    %31 = tpu.matmul %28, %30, %cst_27 {dimension_numbers = #tpu.dot_dimension_numbers<[1], [0], [0], [1], [0, 0, 1, 1], [], []>} : vector<64x128xbf16>, vector<128x128xbf16>, vector<64x128xf32> -> vector<64x128xf32>
    %32 = arith.addf %24, %31 : vector<64x128xf32>
    %c0_28 = arith.constant 0 : index
    %c1_29 = arith.constant 1 : index
    %c1_30 = arith.constant 1 : index
    %c0_31 = arith.constant 0 : index
    %33 = vector.load %arg1[%c0_28, %c1_29, %c1_30, %c0_31] : memref<1x9x9x128xf32, #tpu.memory_space<vmem>>, vector<1x8x8x128xf32>
    %34 = vector.shape_cast %33 : vector<1x8x8x128xf32> to vector<8x8x128xf32>
    %35 = vector.shape_cast %34 : vector<8x8x128xf32> to vector<64x128xf32>
    %36 = arith.truncf %35 : vector<64x128xf32> to vector<64x128xbf16>
    %c4 = arith.constant 4 : index
    %c0_32 = arith.constant 0 : index
    %c0_33 = arith.constant 0 : index
    %37 = vector.load %arg5[%c4, %c0_32, %c0_33] : memref<9x128x128xbf16, #tpu.memory_space<vmem>>, vector<1x128x128xbf16>
    %38 = vector.shape_cast %37 : vector<1x128x128xbf16> to vector<128x128xbf16>
    %cst_34 = arith.constant dense<0.000000e+00> : vector<64x128xf32>
    %39 = tpu.matmul %36, %38, %cst_34 {dimension_numbers = #tpu.dot_dimension_numbers<[1], [0], [0], [1], [0, 0, 1, 1], [], []>} : vector<64x128xbf16>, vector<128x128xbf16>, vector<64x128xf32> -> vector<64x128xf32>
    %40 = arith.addf %32, %39 : vector<64x128xf32>
    %c0_35 = arith.constant 0 : index
    %c1_36 = arith.constant 1 : index
    %c1_37 = arith.constant 1 : index
    %c0_38 = arith.constant 0 : index
    %41 = vector.load %arg2[%c0_35, %c1_36, %c1_37, %c0_38] : memref<1x9x9x128xf32, #tpu.memory_space<vmem>>, vector<1x8x8x128xf32>
    %42 = vector.shape_cast %41 : vector<1x8x8x128xf32> to vector<8x8x128xf32>
    %43 = vector.shape_cast %42 : vector<8x8x128xf32> to vector<64x128xf32>
    %44 = arith.truncf %43 : vector<64x128xf32> to vector<64x128xbf16>
    %c5 = arith.constant 5 : index
    %c0_39 = arith.constant 0 : index
    %c0_40 = arith.constant 0 : index
    %45 = vector.load %arg5[%c5, %c0_39, %c0_40] : memref<9x128x128xbf16, #tpu.memory_space<vmem>>, vector<1x128x128xbf16>
    %46 = vector.shape_cast %45 : vector<1x128x128xbf16> to vector<128x128xbf16>
    %cst_41 = arith.constant dense<0.000000e+00> : vector<64x128xf32>
    %47 = tpu.matmul %44, %46, %cst_41 {dimension_numbers = #tpu.dot_dimension_numbers<[1], [0], [0], [1], [0, 0, 1, 1], [], []>} : vector<64x128xbf16>, vector<128x128xbf16>, vector<64x128xf32> -> vector<64x128xf32>
    %48 = arith.addf %40, %47 : vector<64x128xf32>
    %c0_42 = arith.constant 0 : index
    %c1_43 = arith.constant 1 : index
    %c0_44 = arith.constant 0 : index
    %c0_45 = arith.constant 0 : index
    %49 = vector.load %arg4[%c0_42, %c1_43, %c0_44, %c0_45] : memref<1x9x9x128xf32, #tpu.memory_space<vmem>>, vector<1x8x8x128xf32>
    %50 = vector.shape_cast %49 : vector<1x8x8x128xf32> to vector<8x8x128xf32>
    %51 = vector.shape_cast %50 : vector<8x8x128xf32> to vector<64x128xf32>
    %52 = arith.truncf %51 : vector<64x128xf32> to vector<64x128xbf16>
    %c6 = arith.constant 6 : index
    %c0_46 = arith.constant 0 : index
    %c0_47 = arith.constant 0 : index
    %53 = vector.load %arg5[%c6, %c0_46, %c0_47] : memref<9x128x128xbf16, #tpu.memory_space<vmem>>, vector<1x128x128xbf16>
    %54 = vector.shape_cast %53 : vector<1x128x128xbf16> to vector<128x128xbf16>
    %cst_48 = arith.constant dense<0.000000e+00> : vector<64x128xf32>
    %55 = tpu.matmul %52, %54, %cst_48 {dimension_numbers = #tpu.dot_dimension_numbers<[1], [0], [0], [1], [0, 0, 1, 1], [], []>} : vector<64x128xbf16>, vector<128x128xbf16>, vector<64x128xf32> -> vector<64x128xf32>
    %56 = arith.addf %48, %55 : vector<64x128xf32>
    %c0_49 = arith.constant 0 : index
    %c1_50 = arith.constant 1 : index
    %c1_51 = arith.constant 1 : index
    %c0_52 = arith.constant 0 : index
    %57 = vector.load %arg3[%c0_49, %c1_50, %c1_51, %c0_52] : memref<1x9x9x128xf32, #tpu.memory_space<vmem>>, vector<1x8x8x128xf32>
    %58 = vector.shape_cast %57 : vector<1x8x8x128xf32> to vector<8x8x128xf32>
    %59 = vector.shape_cast %58 : vector<8x8x128xf32> to vector<64x128xf32>
    %60 = arith.truncf %59 : vector<64x128xf32> to vector<64x128xbf16>
    %c7 = arith.constant 7 : index
    %c0_53 = arith.constant 0 : index
    %c0_54 = arith.constant 0 : index
    %61 = vector.load %arg5[%c7, %c0_53, %c0_54] : memref<9x128x128xbf16, #tpu.memory_space<vmem>>, vector<1x128x128xbf16>
    %62 = vector.shape_cast %61 : vector<1x128x128xbf16> to vector<128x128xbf16>
    %cst_55 = arith.constant dense<0.000000e+00> : vector<64x128xf32>
    %63 = tpu.matmul %60, %62, %cst_55 {dimension_numbers = #tpu.dot_dimension_numbers<[1], [0], [0], [1], [0, 0, 1, 1], [], []>} : vector<64x128xbf16>, vector<128x128xbf16>, vector<64x128xf32> -> vector<64x128xf32>
    %64 = arith.addf %56, %63 : vector<64x128xf32>
    %c0_56 = arith.constant 0 : index
    %c1_57 = arith.constant 1 : index
    %c1_58 = arith.constant 1 : index
    %c0_59 = arith.constant 0 : index
    %65 = vector.load %arg4[%c0_56, %c1_57, %c1_58, %c0_59] : memref<1x9x9x128xf32, #tpu.memory_space<vmem>>, vector<1x8x8x128xf32>
    %66 = vector.shape_cast %65 : vector<1x8x8x128xf32> to vector<8x8x128xf32>
    %67 = vector.shape_cast %66 : vector<8x8x128xf32> to vector<64x128xf32>
    %68 = arith.truncf %67 : vector<64x128xf32> to vector<64x128xbf16>
    %c8 = arith.constant 8 : index
    %c0_60 = arith.constant 0 : index
    %c0_61 = arith.constant 0 : index
    %69 = vector.load %arg5[%c8, %c0_60, %c0_61] : memref<9x128x128xbf16, #tpu.memory_space<vmem>>, vector<1x128x128xbf16>
    %70 = vector.shape_cast %69 : vector<1x128x128xbf16> to vector<128x128xbf16>
    %cst_62 = arith.constant dense<0.000000e+00> : vector<64x128xf32>
    %71 = tpu.matmul %68, %70, %cst_62 {dimension_numbers = #tpu.dot_dimension_numbers<[1], [0], [0], [1], [0, 0, 1, 1], [], []>} : vector<64x128xbf16>, vector<128x128xbf16>, vector<64x128xf32> -> vector<64x128xf32>
    %72 = arith.addf %64, %71 : vector<64x128xf32>
    %c0_63 = arith.constant 0 : index
    %c0_64 = arith.constant 0 : index
    %73 = vector.load %arg6[%c0_63, %c0_64] : memref<1x128xf32, #tpu.memory_space<vmem>>, vector<1x128xf32>
    %74 = vector.broadcast %73 : vector<1x128xf32> to vector<64x128xf32>
    %75 = arith.mulf %72, %74 : vector<64x128xf32>
    %c0_65 = arith.constant 0 : index
    %c0_66 = arith.constant 0 : index
    %76 = vector.load %arg7[%c0_65, %c0_66] : memref<1x128xf32, #tpu.memory_space<vmem>>, vector<1x128xf32>
    %77 = vector.broadcast %76 : vector<1x128xf32> to vector<64x128xf32>
    %78 = arith.addf %75, %77 : vector<64x128xf32>
    %cst_67 = arith.constant 0.000000e+00 : f32
    %79 = vector.broadcast %cst_67 : f32 to vector<64x128xf32>
    %80 = arith.maximumf %78, %79 : vector<64x128xf32>
    %cst_68 = arith.constant 0.000000e+00 : f32
    %81 = vector.broadcast %cst_68 : f32 to vector<10x10x128xf32>
    %c0_69 = arith.constant 0 : index
    %c0_70 = arith.constant 0 : index
    %c0_71 = arith.constant 0 : index
    %82 = vector.load %arg15[%c0_69, %c0_70, %c0_71] : memref<10x10x128xf32, #tpu.memory_space<vmem>>, vector<10x10x128xf32>
    tpu.vector_store %arg15[%c0_69, %c0_70, %c0_71], %81 {strides = array<i32>} : memref<10x10x128xf32, #tpu.memory_space<vmem>>, vector<10x10x128xf32>,
    %83 = vector.shape_cast %80 : vector<64x128xf32> to vector<8x8x128xf32>
    %c1_72 = arith.constant 1 : index
    %c1_73 = arith.constant 1 : index
    %c0_74 = arith.constant 0 : index
    %84 = vector.load %arg15[%c1_72, %c1_73, %c0_74] : memref<10x10x128xf32, #tpu.memory_space<vmem>>, vector<8x8x128xf32>
    tpu.vector_store %arg15[%c1_72, %c1_73, %c0_74], %83 {strides = array<i32>} : memref<10x10x128xf32, #tpu.memory_space<vmem>>, vector<8x8x128xf32>,
    %cst_75 = arith.constant 0.000000e+00 : f32
    %85 = vector.broadcast %cst_75 : f32 to vector<64x128xf32>
    %c0_76 = arith.constant 0 : index
    %c0_77 = arith.constant 0 : index
    %c0_78 = arith.constant 0 : index
    %86 = vector.load %arg15[%c0_76, %c0_77, %c0_78] : memref<10x10x128xf32, #tpu.memory_space<vmem>>, vector<8x8x128xf32>
    %87 = vector.shape_cast %86 : vector<8x8x128xf32> to vector<64x128xf32>
    %88 = arith.truncf %87 : vector<64x128xf32> to vector<64x128xbf16>
    %c0_79 = arith.constant 0 : index
    %c0_80 = arith.constant 0 : index
    %c0_81 = arith.constant 0 : index
    %89 = vector.load %arg8[%c0_79, %c0_80, %c0_81] : memref<9x128x128xbf16, #tpu.memory_space<vmem>>, vector<1x128x128xbf16>
    %90 = vector.shape_cast %89 : vector<1x128x128xbf16> to vector<128x128xbf16>
    %cst_82 = arith.constant dense<0.000000e+00> : vector<64x128xf32>
    %91 = tpu.matmul %88, %90, %cst_82 {dimension_numbers = #tpu.dot_dimension_numbers<[1], [0], [0], [1], [0, 0, 1, 1], [], []>} : vector<64x128xbf16>, vector<128x128xbf16>, vector<64x128xf32> -> vector<64x128xf32>
    %92 = arith.addf %85, %91 : vector<64x128xf32>
    %c0_83 = arith.constant 0 : index
    %c1_84 = arith.constant 1 : index
    %c0_85 = arith.constant 0 : index
    %93 = vector.load %arg15[%c0_83, %c1_84, %c0_85] : memref<10x10x128xf32, #tpu.memory_space<vmem>>, vector<8x8x128xf32>
    %94 = vector.shape_cast %93 : vector<8x8x128xf32> to vector<64x128xf32>
    %95 = arith.truncf %94 : vector<64x128xf32> to vector<64x128xbf16>
    %c1_86 = arith.constant 1 : index
    %c0_87 = arith.constant 0 : index
    %c0_88 = arith.constant 0 : index
    %96 = vector.load %arg8[%c1_86, %c0_87, %c0_88] : memref<9x128x128xbf16, #tpu.memory_space<vmem>>, vector<1x128x128xbf16>
    %97 = vector.shape_cast %96 : vector<1x128x128xbf16> to vector<128x128xbf16>
    %cst_89 = arith.constant dense<0.000000e+00> : vector<64x128xf32>
    %98 = tpu.matmul %95, %97, %cst_89 {dimension_numbers = #tpu.dot_dimension_numbers<[1], [0], [0], [1], [0, 0, 1, 1], [], []>} : vector<64x128xbf16>, vector<128x128xbf16>, vector<64x128xf32> -> vector<64x128xf32>
    %99 = arith.addf %92, %98 : vector<64x128xf32>
    %c0_90 = arith.constant 0 : index
    %c2_91 = arith.constant 2 : index
    %c0_92 = arith.constant 0 : index
    %100 = vector.load %arg15[%c0_90, %c2_91, %c0_92] : memref<10x10x128xf32, #tpu.memory_space<vmem>>, vector<8x8x128xf32>
    %101 = vector.shape_cast %100 : vector<8x8x128xf32> to vector<64x128xf32>
    %102 = arith.truncf %101 : vector<64x128xf32> to vector<64x128xbf16>
    %c2_93 = arith.constant 2 : index
    %c0_94 = arith.constant 0 : index
    %c0_95 = arith.constant 0 : index
    %103 = vector.load %arg8[%c2_93, %c0_94, %c0_95] : memref<9x128x128xbf16, #tpu.memory_space<vmem>>, vector<1x128x128xbf16>
    %104 = vector.shape_cast %103 : vector<1x128x128xbf16> to vector<128x128xbf16>
    %cst_96 = arith.constant dense<0.000000e+00> : vector<64x128xf32>
    %105 = tpu.matmul %102, %104, %cst_96 {dimension_numbers = #tpu.dot_dimension_numbers<[1], [0], [0], [1], [0, 0, 1, 1], [], []>} : vector<64x128xbf16>, vector<128x128xbf16>, vector<64x128xf32> -> vector<64x128xf32>
    %106 = arith.addf %99, %105 : vector<64x128xf32>
    %c1_97 = arith.constant 1 : index
    %c0_98 = arith.constant 0 : index
    %c0_99 = arith.constant 0 : index
    %107 = vector.load %arg15[%c1_97, %c0_98, %c0_99] : memref<10x10x128xf32, #tpu.memory_space<vmem>>, vector<8x8x128xf32>
    %108 = vector.shape_cast %107 : vector<8x8x128xf32> to vector<64x128xf32>
    %109 = arith.truncf %108 : vector<64x128xf32> to vector<64x128xbf16>
    %c3_100 = arith.constant 3 : index
    %c0_101 = arith.constant 0 : index
    %c0_102 = arith.constant 0 : index
    %110 = vector.load %arg8[%c3_100, %c0_101, %c0_102] : memref<9x128x128xbf16, #tpu.memory_space<vmem>>, vector<1x128x128xbf16>
    %111 = vector.shape_cast %110 : vector<1x128x128xbf16> to vector<128x128xbf16>
    %cst_103 = arith.constant dense<0.000000e+00> : vector<64x128xf32>
    %112 = tpu.matmul %109, %111, %cst_103 {dimension_numbers = #tpu.dot_dimension_numbers<[1], [0], [0], [1], [0, 0, 1, 1], [], []>} : vector<64x128xbf16>, vector<128x128xbf16>, vector<64x128xf32> -> vector<64x128xf32>
    %113 = arith.addf %106, %112 : vector<64x128xf32>
    %c1_104 = arith.constant 1 : index
    %c1_105 = arith.constant 1 : index
    %c0_106 = arith.constant 0 : index
    %114 = vector.load %arg15[%c1_104, %c1_105, %c0_106] : memref<10x10x128xf32, #tpu.memory_space<vmem>>, vector<8x8x128xf32>
    %115 = vector.shape_cast %114 : vector<8x8x128xf32> to vector<64x128xf32>
    %116 = arith.truncf %115 : vector<64x128xf32> to vector<64x128xbf16>
    %c4_107 = arith.constant 4 : index
    %c0_108 = arith.constant 0 : index
    %c0_109 = arith.constant 0 : index
    %117 = vector.load %arg8[%c4_107, %c0_108, %c0_109] : memref<9x128x128xbf16, #tpu.memory_space<vmem>>, vector<1x128x128xbf16>
    %118 = vector.shape_cast %117 : vector<1x128x128xbf16> to vector<128x128xbf16>
    %cst_110 = arith.constant dense<0.000000e+00> : vector<64x128xf32>
    %119 = tpu.matmul %116, %118, %cst_110 {dimension_numbers = #tpu.dot_dimension_numbers<[1], [0], [0], [1], [0, 0, 1, 1], [], []>} : vector<64x128xbf16>, vector<128x128xbf16>, vector<64x128xf32> -> vector<64x128xf32>
    %120 = arith.addf %113, %119 : vector<64x128xf32>
    %c1_111 = arith.constant 1 : index
    %c2_112 = arith.constant 2 : index
    %c0_113 = arith.constant 0 : index
    %121 = vector.load %arg15[%c1_111, %c2_112, %c0_113] : memref<10x10x128xf32, #tpu.memory_space<vmem>>, vector<8x8x128xf32>
    %122 = vector.shape_cast %121 : vector<8x8x128xf32> to vector<64x128xf32>
    %123 = arith.truncf %122 : vector<64x128xf32> to vector<64x128xbf16>
    %c5_114 = arith.constant 5 : index
    %c0_115 = arith.constant 0 : index
    %c0_116 = arith.constant 0 : index
    %124 = vector.load %arg8[%c5_114, %c0_115, %c0_116] : memref<9x128x128xbf16, #tpu.memory_space<vmem>>, vector<1x128x128xbf16>
    %125 = vector.shape_cast %124 : vector<1x128x128xbf16> to vector<128x128xbf16>
    %cst_117 = arith.constant dense<0.000000e+00> : vector<64x128xf32>
    %126 = tpu.matmul %123, %125, %cst_117 {dimension_numbers = #tpu.dot_dimension_numbers<[1], [0], [0], [1], [0, 0, 1, 1], [], []>} : vector<64x128xbf16>, vector<128x128xbf16>, vector<64x128xf32> -> vector<64x128xf32>
    %127 = arith.addf %120, %126 : vector<64x128xf32>
    %c2_118 = arith.constant 2 : index
    %c0_119 = arith.constant 0 : index
    %c0_120 = arith.constant 0 : index
    %128 = vector.load %arg15[%c2_118, %c0_119, %c0_120] : memref<10x10x128xf32, #tpu.memory_space<vmem>>, vector<8x8x128xf32>
    %129 = vector.shape_cast %128 : vector<8x8x128xf32> to vector<64x128xf32>
    %130 = arith.truncf %129 : vector<64x128xf32> to vector<64x128xbf16>
    %c6_121 = arith.constant 6 : index
    %c0_122 = arith.constant 0 : index
    %c0_123 = arith.constant 0 : index
    %131 = vector.load %arg8[%c6_121, %c0_122, %c0_123] : memref<9x128x128xbf16, #tpu.memory_space<vmem>>, vector<1x128x128xbf16>
    %132 = vector.shape_cast %131 : vector<1x128x128xbf16> to vector<128x128xbf16>
    %cst_124 = arith.constant dense<0.000000e+00> : vector<64x128xf32>
    %133 = tpu.matmul %130, %132, %cst_124 {dimension_numbers = #tpu.dot_dimension_numbers<[1], [0], [0], [1], [0, 0, 1, 1], [], []>} : vector<64x128xbf16>, vector<128x128xbf16>, vector<64x128xf32> -> vector<64x128xf32>
    %134 = arith.addf %127, %133 : vector<64x128xf32>
    %c2_125 = arith.constant 2 : index
    %c1_126 = arith.constant 1 : index
    %c0_127 = arith.constant 0 : index
    %135 = vector.load %arg15[%c2_125, %c1_126, %c0_127] : memref<10x10x128xf32, #tpu.memory_space<vmem>>, vector<8x8x128xf32>
    %136 = vector.shape_cast %135 : vector<8x8x128xf32> to vector<64x128xf32>
    %137 = arith.truncf %136 : vector<64x128xf32> to vector<64x128xbf16>
    %c7_128 = arith.constant 7 : index
    %c0_129 = arith.constant 0 : index
    %c0_130 = arith.constant 0 : index
    %138 = vector.load %arg8[%c7_128, %c0_129, %c0_130] : memref<9x128x128xbf16, #tpu.memory_space<vmem>>, vector<1x128x128xbf16>
    %139 = vector.shape_cast %138 : vector<1x128x128xbf16> to vector<128x128xbf16>
    %cst_131 = arith.constant dense<0.000000e+00> : vector<64x128xf32>
    %140 = tpu.matmul %137, %139, %cst_131 {dimension_numbers = #tpu.dot_dimension_numbers<[1], [0], [0], [1], [0, 0, 1, 1], [], []>} : vector<64x128xbf16>, vector<128x128xbf16>, vector<64x128xf32> -> vector<64x128xf32>
    %141 = arith.addf %134, %140 : vector<64x128xf32>
    %c2_132 = arith.constant 2 : index
    %c2_133 = arith.constant 2 : index
    %c0_134 = arith.constant 0 : index
    %142 = vector.load %arg15[%c2_132, %c2_133, %c0_134] : memref<10x10x128xf32, #tpu.memory_space<vmem>>, vector<8x8x128xf32>
    %143 = vector.shape_cast %142 : vector<8x8x128xf32> to vector<64x128xf32>
    %144 = arith.truncf %143 : vector<64x128xf32> to vector<64x128xbf16>
    %c8_135 = arith.constant 8 : index
    %c0_136 = arith.constant 0 : index
    %c0_137 = arith.constant 0 : index
    %145 = vector.load %arg8[%c8_135, %c0_136, %c0_137] : memref<9x128x128xbf16, #tpu.memory_space<vmem>>, vector<1x128x128xbf16>
    %146 = vector.shape_cast %145 : vector<1x128x128xbf16> to vector<128x128xbf16>
    %cst_138 = arith.constant dense<0.000000e+00> : vector<64x128xf32>
    %147 = tpu.matmul %144, %146, %cst_138 {dimension_numbers = #tpu.dot_dimension_numbers<[1], [0], [0], [1], [0, 0, 1, 1], [], []>} : vector<64x128xbf16>, vector<128x128xbf16>, vector<64x128xf32> -> vector<64x128xf32>
    %148 = arith.addf %141, %147 : vector<64x128xf32>
    %c0_139 = arith.constant 0 : index
    %c0_140 = arith.constant 0 : index
    %149 = vector.load %arg9[%c0_139, %c0_140] : memref<1x128xf32, #tpu.memory_space<vmem>>, vector<1x128xf32>
    %150 = vector.broadcast %149 : vector<1x128xf32> to vector<64x128xf32>
    %151 = arith.mulf %148, %150 : vector<64x128xf32>
    %c0_141 = arith.constant 0 : index
    %c0_142 = arith.constant 0 : index
    %152 = vector.load %arg10[%c0_141, %c0_142] : memref<1x128xf32, #tpu.memory_space<vmem>>, vector<1x128xf32>
    %153 = vector.broadcast %152 : vector<1x128xf32> to vector<64x128xf32>
    %154 = arith.addf %151, %153 : vector<64x128xf32>
    %c0_143 = arith.constant 0 : index
    %c1_144 = arith.constant 1 : index
    %c1_145 = arith.constant 1 : index
    %c0_146 = arith.constant 0 : index
    %155 = vector.load %arg1[%c0_143, %c1_144, %c1_145, %c0_146] : memref<1x9x9x128xf32, #tpu.memory_space<vmem>>, vector<1x8x8x128xf32>
    %156 = vector.shape_cast %155 : vector<1x8x8x128xf32> to vector<8x8x128xf32>
    %157 = vector.shape_cast %156 : vector<8x8x128xf32> to vector<64x128xf32>
    %158 = arith.truncf %157 : vector<64x128xf32> to vector<64x128xbf16>
    %c0_147 = arith.constant 0 : index
    %c0_148 = arith.constant 0 : index
    %159 = vector.load %arg11[%c0_147, %c0_148] : memref<128x128xbf16, #tpu.memory_space<vmem>>, vector<128x128xbf16>
    %cst_149 = arith.constant dense<0.000000e+00> : vector<64x128xf32>
    %160 = tpu.matmul %158, %159, %cst_149 {dimension_numbers = #tpu.dot_dimension_numbers<[1], [0], [0], [1], [0, 0, 1, 1], [], []>} : vector<64x128xbf16>, vector<128x128xbf16>, vector<64x128xf32> -> vector<64x128xf32>
    %c0_150 = arith.constant 0 : index
    %c0_151 = arith.constant 0 : index
    %161 = vector.load %arg12[%c0_150, %c0_151] : memref<1x128xf32, #tpu.memory_space<vmem>>, vector<1x128xf32>
    %162 = vector.broadcast %161 : vector<1x128xf32> to vector<64x128xf32>
    %163 = arith.mulf %160, %162 : vector<64x128xf32>
    %c0_152 = arith.constant 0 : index
    %c0_153 = arith.constant 0 : index
    %164 = vector.load %arg13[%c0_152, %c0_153] : memref<1x128xf32, #tpu.memory_space<vmem>>, vector<1x128xf32>
    %165 = vector.broadcast %164 : vector<1x128xf32> to vector<64x128xf32>
    %166 = arith.addf %163, %165 : vector<64x128xf32>
    %167 = arith.addf %154, %166 : vector<64x128xf32>
    %cst_154 = arith.constant 0.000000e+00 : f32
    %168 = vector.broadcast %cst_154 : f32 to vector<64x128xf32>
    %169 = arith.maximumf %167, %168 : vector<64x128xf32>
    %cst_155 = arith.constant dense<0.000000e+00> : vector<128xf32>
    %170 = vector.multi_reduction <add>, %169, %cst_155 [0] : vector<64x128xf32> to vector<128xf32>
    %171 = vector.shape_cast %170 : vector<128xf32> to vector<1x128xf32>
    %cst_156 = arith.constant 6.400000e+01 : f32
    %172 = vector.broadcast %cst_156 : f32 to vector<1x128xf32>
    %173 = arith.divf %171, %172 : vector<1x128xf32>
    %174 = vector.shape_cast %173 : vector<1x128xf32> to vector<1x128xf32>
    %175 = vector.broadcast %174 : vector<1x128xf32> to vector<8x128xf32>
    %c0_157 = arith.constant 0 : index
    %c0_158 = arith.constant 0 : index
    %c0_159 = arith.constant 0 : index
    %176 = vector.load %arg14[%c0_157, %c0_158, %c0_159] : memref<1x8x128xf32, #tpu.memory_space<vmem>>, vector<1x8x128xf32>
    %177 = vector.shape_cast %176 : vector<1x8x128xf32> to vector<8x128xf32>
    %178 = vector.shape_cast %175 : vector<8x128xf32> to vector<1x8x128xf32>
    tpu.vector_store %arg14[%c0_157, %c0_158, %c0_159], %178 {strides = array<i32>} : memref<1x8x128xf32, #tpu.memory_space<vmem>>, vector<1x8x128xf32>,
    return
  }
  func.func @transform_0(%arg0: i32) -> (i32, i32, i32, i32) {
    %c0_i32 = arith.constant 0 : i32
    %c0_i32_0 = arith.constant 0 : i32
    %c0_i32_1 = arith.constant 0 : i32
    %c0_i32_2 = arith.constant 0 : i32
    return %arg0, %c0_i32, %c0_i32_0, %c0_i32_1 : i32, i32, i32, i32
  }
  func.func @transform_1(%arg0: i32) -> (i32, i32, i32, i32) {
    %c0_i32 = arith.constant 0 : i32
    %c0_i32_0 = arith.constant 0 : i32
    %c0_i32_1 = arith.constant 0 : i32
    %c0_i32_2 = arith.constant 0 : i32
    return %arg0, %c0_i32, %c0_i32_0, %c0_i32_1 : i32, i32, i32, i32
  }
  func.func @transform_2(%arg0: i32) -> (i32, i32, i32, i32) {
    %c0_i32 = arith.constant 0 : i32
    %c0_i32_0 = arith.constant 0 : i32
    %c0_i32_1 = arith.constant 0 : i32
    %c0_i32_2 = arith.constant 0 : i32
    return %arg0, %c0_i32, %c0_i32_0, %c0_i32_1 : i32, i32, i32, i32
  }
  func.func @transform_3(%arg0: i32) -> (i32, i32, i32, i32) {
    %c0_i32 = arith.constant 0 : i32
    %c0_i32_0 = arith.constant 0 : i32
    %c0_i32_1 = arith.constant 0 : i32
    %c0_i32_2 = arith.constant 0 : i32
    return %arg0, %c0_i32, %c0_i32_0, %c0_i32_1 : i32, i32, i32, i32
  }
  func.func @transform_4(%arg0: i32) -> (i32, i32, i32) {
    %c0_i32 = arith.constant 0 : i32
    %c0_i32_0 = arith.constant 0 : i32
    %c0_i32_1 = arith.constant 0 : i32
    %c0_i32_2 = arith.constant 0 : i32
    return %c0_i32, %c0_i32_0, %c0_i32_1 : i32, i32, i32
  }
  func.func @transform_5(%arg0: i32) -> (i32, i32) {
    %c0_i32 = arith.constant 0 : i32
    %c0_i32_0 = arith.constant 0 : i32
    %c0_i32_1 = arith.constant 0 : i32
    return %c0_i32, %c0_i32_0 : i32, i32
  }
  func.func @transform_6(%arg0: i32) -> (i32, i32) {
    %c0_i32 = arith.constant 0 : i32
    %c0_i32_0 = arith.constant 0 : i32
    %c0_i32_1 = arith.constant 0 : i32
    return %c0_i32, %c0_i32_0 : i32, i32
  }
  func.func @transform_7(%arg0: i32) -> (i32, i32, i32) {
    %c0_i32 = arith.constant 0 : i32
    %c0_i32_0 = arith.constant 0 : i32
    %c0_i32_1 = arith.constant 0 : i32
    %c0_i32_2 = arith.constant 0 : i32
    return %c0_i32, %c0_i32_0, %c0_i32_1 : i32, i32, i32
  }
  func.func @transform_8(%arg0: i32) -> (i32, i32) {
    %c0_i32 = arith.constant 0 : i32
    %c0_i32_0 = arith.constant 0 : i32
    %c0_i32_1 = arith.constant 0 : i32
    return %c0_i32, %c0_i32_0 : i32, i32
  }
  func.func @transform_9(%arg0: i32) -> (i32, i32) {
    %c0_i32 = arith.constant 0 : i32
    %c0_i32_0 = arith.constant 0 : i32
    %c0_i32_1 = arith.constant 0 : i32
    return %c0_i32, %c0_i32_0 : i32, i32
  }
  func.func @transform_10(%arg0: i32) -> (i32, i32) {
    %c0_i32 = arith.constant 0 : i32
    %c0_i32_0 = arith.constant 0 : i32
    %c0_i32_1 = arith.constant 0 : i32
    return %c0_i32, %c0_i32_0 : i32, i32
  }
  func.func @transform_11(%arg0: i32) -> (i32, i32) {
    %c0_i32 = arith.constant 0 : i32
    %c0_i32_0 = arith.constant 0 : i32
    %c0_i32_1 = arith.constant 0 : i32
    return %c0_i32, %c0_i32_0 : i32, i32
  }
  func.func @transform_12(%arg0: i32) -> (i32, i32) {
    %c0_i32 = arith.constant 0 : i32
    %c0_i32_0 = arith.constant 0 : i32
    %c0_i32_1 = arith.constant 0 : i32
    return %c0_i32, %c0_i32_0 : i32, i32
  }
  func.func @transform_13(%arg0: i32) -> (i32, i32, i32) {
    %c0_i32 = arith.constant 0 : i32
    %c0_i32_0 = arith.constant 0 : i32
    %c0_i32_1 = arith.constant 0 : i32
    return %arg0, %c0_i32, %c0_i32_0 : i32, i32, i32
  }
}

</mosaic_0001>

<llo_original>
// kernel: image_encoder_forward.3
$region0: #{image_encoder_forward.3}
  #allocation0 [shape = 'u32[]', space=smem, size = 0x4, offset = 0x4, fixed_abs, tag = 'smem constant byte address 0x4 - core index']
  #allocation1 [shape = 'u32[144,128]{1,0:T(1,128)}', space=vmem, size = 0x12000, scoped, tag = 'internal scratch']
  #allocation2 [shape = 'f32[10,10,128]{2,1,0:T(8,128)}', space=vmem, size = 0x14000, scoped, tag = 'scratch operand']
  %s0 = inlined_call_operand.vmem [shape: f32[2,9,9,128], index: 0, kind: input, shape index: {}]
  %s1 = inlined_call_operand.vmem [shape: f32[2,9,9,128], index: 1, kind: input, shape index: {}]
  %s2 = inlined_call_operand.vmem [shape: f32[2,9,9,128], index: 2, kind: input, shape index: {}]
  %s3 = inlined_call_operand.vmem [shape: f32[2,9,9,128], index: 3, kind: input, shape index: {}]
  %s4 = inlined_call_operand.vmem [shape: bf16[9,128,128], index: 4, kind: input, shape index: {}]
  %s5 = inlined_call_operand.vmem [shape: f32[1,128], index: 5, kind: input, shape index: {}]
  %s6 = inlined_call_operand.vmem [shape: f32[1,128], index: 6, kind: input, shape index: {}]
  %s7 = inlined_call_operand.vmem [shape: bf16[9,128,128], index: 7, kind: input, shape index: {}]
  %s8 = inlined_call_operand.vmem [shape: f32[1,128], index: 8, kind: input, shape index: {}]
  %s9 = inlined_call_operand.vmem [shape: f32[1,128], index: 9, kind: input, shape index: {}]
  %s10 = inlined_call_operand.vmem [shape: bf16[128,128], index: 10, kind: input, shape index: {}]
  %s11 = inlined_call_operand.vmem [shape: f32[1,128], index: 11, kind: input, shape index: {}]
  %s12 = inlined_call_operand.vmem [shape: f32[1,128], index: 12, kind: input, shape index: {}]
  %s13 = inlined_call_operand.vmem [shape: f32[2,8,128], index: 13, kind: output, shape index: {}]
  %s14 = sld [smem:[#allocation0]]
  $region85: #{image_encoder_forward.3} parent=0
    _
  %s16 = ssub.s32 1, %s14
  %s17 = scalar_select 0, %s16, %s14
  loop: start=0, step=1, limit=4
  $region2: #{image_encoder_forward.3} parent=0 // loop_pre_header
    _
  $region3: #{image_encoder_forward.3} parent=0 // loop_header
    %s19 = sphi 0, %s23
    %p20 = scmp.ge.s32.totalorder %s19, 4
    %s29 = sphi 0, %s31
    %s32 = sphi 0, %s29
    %s33 = sphi 0, %s32
    %s49 = sphi 0, %s33
    %s55 = sphi 0, %s57
    %s58 = sphi 0, %s55
    %s59 = sphi 0, %s58
    %s75 = sphi 0, %s59
    %s81 = sphi 0, %s83
    %s84 = sphi 0, %s81
    %s85 = sphi 0, %s84
    %s101 = sphi 0, %s85
    %s107 = sphi 0, %s109
    %s110 = sphi 0, %s107
    %s111 = sphi 0, %s110
    %s127 = sphi 0, %s111
    %s131 = sphi 0, %s131
    %s133 = sphi 0, %s131
    %s134 = sphi 0, %s133
    %s148 = sphi 0, %s134
    %s152 = sphi 0, %s152
    %s154 = sphi 0, %s152
    %s155 = sphi 0, %s154
    %s169 = sphi 0, %s155
    %s173 = sphi 0, %s173
    %s175 = sphi 0, %s173
    %s176 = sphi 0, %s175
    %s190 = sphi 0, %s176
    %s194 = sphi 0, %s194
    %s196 = sphi 0, %s194
    %s197 = sphi 0, %s196
    %s211 = sphi 0, %s197
    %s215 = sphi 0, %s215
    %s217 = sphi 0, %s215
    %s218 = sphi 0, %s217
    %s232 = sphi 0, %s218
    %s236 = sphi 0, %s236
    %s238 = sphi 0, %s236
    %s239 = sphi 0, %s238
    %s253 = sphi 0, %s239
    %s257 = sphi 0, %s257
    %s259 = sphi 0, %s257
    %s260 = sphi 0, %s259
    %s274 = sphi 0, %s260
    %s278 = sphi 0, %s278
    %s280 = sphi 0, %s278
    %s281 = sphi 0, %s280
    %s295 = sphi 0, %s281
    %s299 = sphi 0, %s299
    %s301 = sphi 0, %s299
    %s302 = sphi 0, %s301
    %s316 = sphi 0, %s302
    %s322 = sphi 0, %s324
    %s325 = sphi 0, %s322
    %s326 = sphi 0, %s325
    %s342 = sphi 0, %s326
  $region4: #{image_encoder_forward.3} parent=0 // loop_header_branch
    %22 = sbr.rel (%p20) target = $region8
  $region5: #{image_encoder_forward.3} parent=0 // loop_body
    %s24 = ssub.s32 %s19, 1
    %s25 = ssub.s32 %s19, 2
    %s26 = sadd.s32 %s19, 1
    %s27 = ssub.s32 %s19, %s26
    %p28 = scmp.eq.s32.totalorder %s27, 0
    %s30 = sadd.s32 %s29, 1
    %s31 = scalar_select %p28, %s29, %s30
    %p34 = pneg %p28
    %p35 = scmp.eq.s32.totalorder %s19, 1
    %p36 = por %p34, %p35
    %p37 = scmp.ne.s32.totalorder %s29, %s32
    %p38 = scmp.eq.s32.totalorder %s19, 0
    %p39 = por %p37, %p38
    %p40 = scmp.ne.s32.totalorder %s29, %s32
    %p41 = scmp.eq.s32.totalorder %s24, 1
    %p42 = por %p40, %p41
    %p43 = scmp.ne.s32.totalorder %s32, %s33
    %p44 = scmp.eq.s32.totalorder %s24, 0
    %p45 = por %p43, %p44
    %p46 = scmp.ne.s32.totalorder %s32, %s33
    %p47 = scmp.eq.s32.totalorder %s25, 1
    %p48 = por %p46, %p47
    %p50 = scmp.ne.s32.totalorder %s33, %s49
    %p51 = scmp.eq.s32.totalorder %s25, 0
    %p52 = por %p50, %p51
    %s53 = ssub.s32 %s19, %s26
    %p54 = scmp.eq.s32.totalorder %s53, 0
    %s56 = sadd.s32 %s55, 1
    %s57 = scalar_select %p54, %s55, %s56
    %p60 = pneg %p54
    %p61 = scmp.eq.s32.totalorder %s19, 1
    %p62 = por %p60, %p61
    %p63 = scmp.ne.s32.totalorder %s55, %s58
    %p64 = scmp.eq.s32.totalorder %s19, 0
    %p65 = por %p63, %p64
    %p66 = scmp.ne.s32.totalorder %s55, %s58
    %p67 = scmp.eq.s32.totalorder %s24, 1
    %p68 = por %p66, %p67
    %p69 = scmp.ne.s32.totalorder %s58, %s59
    %p70 = scmp.eq.s32.totalorder %s24, 0
    %p71 = por %p69, %p70
    %p72 = scmp.ne.s32.totalorder %s58, %s59
    %p73 = scmp.eq.s32.totalorder %s25, 1
    %p74 = por %p72, %p73
    %p76 = scmp.ne.s32.totalorder %s59, %s75
    %p77 = scmp.eq.s32.totalorder %s25, 0
    %p78 = por %p76, %p77
    %s79 = ssub.s32 %s19, %s26
    %p80 = scmp.eq.s32.totalorder %s79, 0
    %s82 = sadd.s32 %s81, 1
    %s83 = scalar_select %p80, %s81, %s82
    %p86 = pneg %p80
    %p87 = scmp.eq.s32.totalorder %s19, 1
    %p88 = por %p86, %p87
    %p89 = scmp.ne.s32.totalorder %s81, %s84
    %p90 = scmp.eq.s32.totalorder %s19, 0
    %p91 = por %p89, %p90
    %p92 = scmp.ne.s32.totalorder %s81, %s84
    %p93 = scmp.eq.s32.totalorder %s24, 1
    %p94 = por %p92, %p93
    %p95 = scmp.ne.s32.totalorder %s84, %s85
    %p96 = scmp.eq.s32.totalorder %s24, 0
    %p97 = por %p95, %p96
    %p98 = scmp.ne.s32.totalorder %s84, %s85
    %p99 = scmp.eq.s32.totalorder %s25, 1
    %p100 = por %p98, %p99
    %p102 = scmp.ne.s32.totalorder %s85, %s101
    %p103 = scmp.eq.s32.totalorder %s25, 0
    %p104 = por %p102, %p103
    %s105 = ssub.s32 %s19, %s26
    %p106 = scmp.eq.s32.totalorder %s105, 0
    %s108 = sadd.s32 %s107, 1
    %s109 = scalar_select %p106, %s107, %s108
    %p112 = pneg %p106
    %p113 = scmp.eq.s32.totalorder %s19, 1
    %p114 = por %p112, %p113
    %p115 = scmp.ne.s32.totalorder %s107, %s110
    %p116 = scmp.eq.s32.totalorder %s19, 0
    %p117 = por %p115, %p116
    %p118 = scmp.ne.s32.totalorder %s107, %s110
    %p119 = scmp.eq.s32.totalorder %s24, 1
    %p120 = por %p118, %p119
    %p121 = scmp.ne.s32.totalorder %s110, %s111
    %p122 = scmp.eq.s32.totalorder %s24, 0
    %p123 = por %p121, %p122
    %p124 = scmp.ne.s32.totalorder %s110, %s111
    %p125 = scmp.eq.s32.totalorder %s25, 1
    %p126 = por %p124, %p125
    %p128 = scmp.ne.s32.totalorder %s111, %s127
    %p129 = scmp.eq.s32.totalorder %s25, 0
    %p130 = por %p128, %p129
    %s132 = sadd.s32 %s131, 1
    %p135 = scmp.eq.s32.totalorder %s19, 1
    %p136 = scmp.ne.s32.totalorder %s131, %s133
    %p137 = scmp.eq.s32.totalorder %s19, 0
    %p138 = por %p136, %p137
    %p139 = scmp.ne.s32.totalorder %s131, %s133
    %p140 = scmp.eq.s32.totalorder %s24, 1
    %p141 = por %p139, %p140
    %p142 = scmp.ne.s32.totalorder %s133, %s134
    %p143 = scmp.eq.s32.totalorder %s24, 0
    %p144 = por %p142, %p143
    %p145 = scmp.ne.s32.totalorder %s133, %s134
    %p146 = scmp.eq.s32.totalorder %s25, 1
    %p147 = por %p145, %p146
    %p149 = scmp.ne.s32.totalorder %s134, %s148
    %p150 = scmp.eq.s32.totalorder %s25, 0
    %p151 = por %p149, %p150
    %s153 = sadd.s32 %s152, 1
    %p156 = scmp.eq.s32.totalorder %s19, 1
    %p157 = scmp.ne.s32.totalorder %s152, %s154
    %p158 = scmp.eq.s32.totalorder %s19, 0
    %p159 = por %p157, %p158
    %p160 = scmp.ne.s32.totalorder %s152, %s154
    %p161 = scmp.eq.s32.totalorder %s24, 1
    %p162 = por %p160, %p161
    %p163 = scmp.ne.s32.totalorder %s154, %s155
    %p164 = scmp.eq.s32.totalorder %s24, 0
    %p165 = por %p163, %p164
    %p166 = scmp.ne.s32.totalorder %s154, %s155
    %p167 = scmp.eq.s32.totalorder %s25, 1
    %p168 = por %p166, %p167
    %p170 = scmp.ne.s32.totalorder %s155, %s169
    %p171 = scmp.eq.s32.totalorder %s25, 0
    %p172 = por %p170, %p171
    %s174 = sadd.s32 %s173, 1
    %p177 = scmp.eq.s32.totalorder %s19, 1
    %p178 = scmp.ne.s32.totalorder %s173, %s175
    %p179 = scmp.eq.s32.totalorder %s19, 0
    %p180 = por %p178, %p179
    %p181 = scmp.ne.s32.totalorder %s173, %s175
    %p182 = scmp.eq.s32.totalorder %s24, 1
    %p183 = por %p181, %p182
    %p184 = scmp.ne.s32.totalorder %s175, %s176
    %p185 = scmp.eq.s32.totalorder %s24, 0
    %p186 = por %p184, %p185
    %p187 = scmp.ne.s32.totalorder %s175, %s176
    %p188 = scmp.eq.s32.totalorder %s25, 1
    %p189 = por %p187, %p188
    %p191 = scmp.ne.s32.totalorder %s176, %s190
    %p192 = scmp.eq.s32.totalorder %s25, 0
    %p193 = por %p191, %p192
    %s195 = sadd.s32 %s194, 1
    %p198 = scmp.eq.s32.totalorder %s19, 1
    %p199 = scmp.ne.s32.totalorder %s194, %s196
    %p200 = scmp.eq.s32.totalorder %s19, 0
    %p201 = por %p199, %p200
    %p202 = scmp.ne.s32.totalorder %s194, %s196
    %p203 = scmp.eq.s32.totalorder %s24, 1
    %p204 = por %p202, %p203
    %p205 = scmp.ne.s32.totalorder %s196, %s197
    %p206 = scmp.eq.s32.totalorder %s24, 0
    %p207 = por %p205, %p206
    %p208 = scmp.ne.s32.totalorder %s196, %s197
    %p209 = scmp.eq.s32.totalorder %s25, 1
    %p210 = por %p208, %p209
    %p212 = scmp.ne.s32.totalorder %s197, %s211
    %p213 = scmp.eq.s32.totalorder %s25, 0
    %p214 = por %p212, %p213
    %s216 = sadd.s32 %s215, 1
    %p219 = scmp.eq.s32.totalorder %s19, 1
    %p220 = scmp.ne.s32.totalorder %s215, %s217
    %p221 = scmp.eq.s32.totalorder %s19, 0
    %p222 = por %p220, %p221
    %p223 = scmp.ne.s32.totalorder %s215, %s217
    %p224 = scmp.eq.s32.totalorder %s24, 1
    %p225 = por %p223, %p224
    %p226 = scmp.ne.s32.totalorder %s217, %s218
    %p227 = scmp.eq.s32.totalorder %s24, 0
    %p228 = por %p226, %p227
    %p229 = scmp.ne.s32.totalorder %s217, %s218
    %p230 = scmp.eq.s32.totalorder %s25, 1
    %p231 = por %p229, %p230
    %p233 = scmp.ne.s32.totalorder %s218, %s232
    %p234 = scmp.eq.s32.totalorder %s25, 0
    %p235 = por %p233, %p234
    %s237 = sadd.s32 %s236, 1
    %p240 = scmp.eq.s32.totalorder %s19, 1
    %p241 = scmp.ne.s32.totalorder %s236, %s238
    %p242 = scmp.eq.s32.totalorder %s19, 0
    %p243 = por %p241, %p242
    %p244 = scmp.ne.s32.totalorder %s236, %s238
    %p245 = scmp.eq.s32.totalorder %s24, 1
    %p246 = por %p244, %p245
    %p247 = scmp.ne.s32.totalorder %s238, %s239
    %p248 = scmp.eq.s32.totalorder %s24, 0
    %p249 = por %p247, %p248
    %p250 = scmp.ne.s32.totalorder %s238, %s239
    %p251 = scmp.eq.s32.totalorder %s25, 1
    %p252 = por %p250, %p251
    %p254 = scmp.ne.s32.totalorder %s239, %s253
    %p255 = scmp.eq.s32.totalorder %s25, 0
    %p256 = por %p254, %p255
    %s258 = sadd.s32 %s257, 1
    %p261 = scmp.eq.s32.totalorder %s19, 1
    %p262 = scmp.ne.s32.totalorder %s257, %s259
    %p263 = scmp.eq.s32.totalorder %s19, 0
    %p264 = por %p262, %p263
    %p265 = scmp.ne.s32.totalorder %s257, %s259
    %p266 = scmp.eq.s32.totalorder %s24, 1
    %p267 = por %p265, %p266
    %p268 = scmp.ne.s32.totalorder %s259, %s260
    %p269 = scmp.eq.s32.totalorder %s24, 0
    %p270 = por %p268, %p269
    %p271 = scmp.ne.s32.totalorder %s259, %s260
    %p272 = scmp.eq.s32.totalorder %s25, 1
    %p273 = por %p271, %p272
    %p275 = scmp.ne.s32.totalorder %s260, %s274
    %p276 = scmp.eq.s32.totalorder %s25, 0
    %p277 = por %p275, %p276
    %s279 = sadd.s32 %s278, 1
    %p282 = scmp.eq.s32.totalorder %s19, 1
    %p283 = scmp.ne.s32.totalorder %s278, %s280
    %p284 = scmp.eq.s32.totalorder %s19, 0
    %p285 = por %p283, %p284
    %p286 = scmp.ne.s32.totalorder %s278, %s280
    %p287 = scmp.eq.s32.totalorder %s24, 1
    %p288 = por %p286, %p287
    %p289 = scmp.ne.s32.totalorder %s280, %s281
    %p290 = scmp.eq.s32.totalorder %s24, 0
    %p291 = por %p289, %p290
    %p292 = scmp.ne.s32.totalorder %s280, %s281
    %p293 = scmp.eq.s32.totalorder %s25, 1
    %p294 = por %p292, %p293
    %p296 = scmp.ne.s32.totalorder %s281, %s295
    %p297 = scmp.eq.s32.totalorder %s25, 0
    %p298 = por %p296, %p297
    %s300 = sadd.s32 %s299, 1
    %p303 = scmp.eq.s32.totalorder %s19, 1
    %p304 = scmp.ne.s32.totalorder %s299, %s301
    %p305 = scmp.eq.s32.totalorder %s19, 0
    %p306 = por %p304, %p305
    %p307 = scmp.ne.s32.totalorder %s299, %s301
    %p308 = scmp.eq.s32.totalorder %s24, 1
    %p309 = por %p307, %p308
    %p310 = scmp.ne.s32.totalorder %s301, %s302
    %p311 = scmp.eq.s32.totalorder %s24, 0
    %p312 = por %p310, %p311
    %p313 = scmp.ne.s32.totalorder %s301, %s302
    %p314 = scmp.eq.s32.totalorder %s25, 1
    %p315 = por %p313, %p314
    %p317 = scmp.ne.s32.totalorder %s302, %s316
    %p318 = scmp.eq.s32.totalorder %s25, 0
    %p319 = por %p317, %p318
    %s320 = ssub.s32 %s19, %s26
    %p321 = scmp.eq.s32.totalorder %s320, 0
    %s323 = sadd.s32 %s322, 1
    %s324 = scalar_select %p321, %s322, %s323
    %p327 = pneg %p321
    %p328 = scmp.eq.s32.totalorder %s19, 1
    %p329 = por %p327, %p328
    %p330 = scmp.ne.s32.totalorder %s322, %s325
    %p331 = scmp.eq.s32.totalorder %s19, 0
    %p332 = por %p330, %p331
    %p333 = scmp.ne.s32.totalorder %s322, %s325
    %p334 = scmp.eq.s32.totalorder %s24, 1
    %p335 = por %p333, %p334
    %p336 = scmp.ne.s32.totalorder %s325, %s326
    %p337 = scmp.eq.s32.totalorder %s24, 0
    %p338 = por %p336, %p337
    %p339 = scmp.ne.s32.totalorder %s325, %s326
    %p340 = scmp.eq.s32.totalorder %s25, 1
    %p341 = por %p339, %p340
    %p343 = scmp.ne.s32.totalorder %s326, %s342
    %p344 = scmp.eq.s32.totalorder %s25, 0
    %p345 = por %p343, %p344
    %p346 = scmp.le.s32.totalorder 1, %s19
    %p347 = scmp.lt.s32.totalorder %s19, 3
    %p348 = pnand %p346, %p347
    %p349 = pneg %p348
    // Predicated region
    $region9: #{image_encoder_forward.3} parent=5 // pred_check
      _
    $region10: #{image_encoder_forward.3} parent=5 // pred_check_branch
      %351 = sbr.rel (%p348) target = $region12
    $region11: #{image_encoder_forward.3} parent=5 // pred_region
      %s352 = ssub.s32 %s19, 1
      // Predicated region
      $region13: #{image_encoder_forward.3} parent=11 // pred_check
        %p353 = pneg %p144
      $region14: #{image_encoder_forward.3} parent=11 // pred_check_branch
        %355 = sbr.rel (%p353) target = $region16
      $region15: #{image_encoder_forward.3} parent=11 // pred_region
        _
      $region16: #{image_encoder_forward.3} parent=11 // pred_fallthru
        _
      // Predicated region
      $region17: #{image_encoder_forward.3} parent=11 // pred_check
        %p356 = pneg %p165
      $region18: #{image_encoder_forward.3} parent=11 // pred_check_branch
        %358 = sbr.rel (%p356) target = $region20
      $region19: #{image_encoder_forward.3} parent=11 // pred_region
        _
      $region20: #{image_encoder_forward.3} parent=11 // pred_fallthru
        _
      // Predicated region
      $region21: #{image_encoder_forward.3} parent=11 // pred_check
        %p359 = pneg %p186
      $region22: #{image_encoder_forward.3} parent=11 // pred_check_branch
        %361 = sbr.rel (%p359) target = $region24
      $region23: #{image_encoder_forward.3} parent=11 // pred_region
        _
      $region24: #{image_encoder_forward.3} parent=11 // pred_fallthru
        _
      // Predicated region
      $region25: #{image_encoder_forward.3} parent=11 // pred_check
        %p362 = pneg %p207
      $region26: #{image_encoder_forward.3} parent=11 // pred_check_branch
        %364 = sbr.rel (%p362) target = $region28
      $region27: #{image_encoder_forward.3} parent=11 // pred_region
        _
      $region28: #{image_encoder_forward.3} parent=11 // pred_fallthru
        _
      // Predicated region
      $region29: #{image_encoder_forward.3} parent=11 // pred_check
        %p365 = pneg %p228
      $region30: #{image_encoder_forward.3} parent=11 // pred_check_branch
        %367 = sbr.rel (%p365) target = $region32
      $region31: #{image_encoder_forward.3} parent=11 // pred_region
        _
      $region32: #{image_encoder_forward.3} parent=11 // pred_fallthru
        _
      // Predicated region
      $region33: #{image_encoder_forward.3} parent=11 // pred_check
        %p368 = pneg %p249
      $region34: #{image_encoder_forward.3} parent=11 // pred_check_branch
        %370 = sbr.rel (%p368) target = $region36
      $region35: #{image_encoder_forward.3} parent=11 // pred_region
        _
      $region36: #{image_encoder_forward.3} parent=11 // pred_fallthru
        _
      // Predicated region
      $region37: #{image_encoder_forward.3} parent=11 // pred_check
        %p371 = pneg %p270
      $region38: #{image_encoder_forward.3} parent=11 // pred_check_branch
        %373 = sbr.rel (%p371) target = $region40
      $region39: #{image_encoder_forward.3} parent=11 // pred_region
        _
      $region40: #{image_encoder_forward.3} parent=11 // pred_fallthru
        _
      // Predicated region
      $region41: #{image_encoder_forward.3} parent=11 // pred_check
        %p374 = pneg %p291
      $region42: #{image_encoder_forward.3} parent=11 // pred_check_branch
        %376 = sbr.rel (%p374) target = $region44
      $region43: #{image_encoder_forward.3} parent=11 // pred_region
        _
      $region44: #{image_encoder_forward.3} parent=11 // pred_fallthru
        _
      // Predicated region
      $region45: #{image_encoder_forward.3} parent=11 // pred_check
        %p377 = pneg %p312
      $region46: #{image_encoder_forward.3} parent=11 // pred_check_branch
        %379 = sbr.rel (%p377) target = $region48
      $region47: #{image_encoder_forward.3} parent=11 // pred_region
        _
      $region48: #{image_encoder_forward.3} parent=11 // pred_fallthru
        _
    $region12: #{image_encoder_forward.3} parent=5 // pred_fallthru
      _
    %p380 = scmp.lt.s32.totalorder %s19, 2
    // Predicated region
    $region49: #{image_encoder_forward.3} parent=5 // pred_check
      %p381 = pneg %p380
    $region50: #{image_encoder_forward.3} parent=5 // pred_check_branch
      %383 = sbr.rel (%p381) target = $region52
    $region51: #{image_encoder_forward.3} parent=5 // pred_region
      // Predicated region
      $region53: #{image_encoder_forward.3} parent=51 // pred_check
        %p384 = pneg %p39
      $region54: #{image_encoder_forward.3} parent=51 // pred_check_branch
        %386 = sbr.rel (%p384) target = $region56
      $region55: #{image_encoder_forward.3} parent=51 // pred_region
        %p387 = scmp.lt.s32.totalorder %s19, 1
        %s388 = scalar_select %p387, %s19, 1
        %s389 = smul.addr %s388, 18
        %s390 = smul.addr %s389, 8
        %s391 = scalar_lea.vmem %s0, %s390
      $region56: #{image_encoder_forward.3} parent=51 // pred_fallthru
        _
      // Predicated region
      $region57: #{image_encoder_forward.3} parent=51 // pred_check
        %p392 = pneg %p65
      $region58: #{image_encoder_forward.3} parent=51 // pred_check_branch
        %394 = sbr.rel (%p392) target = $region60
      $region59: #{image_encoder_forward.3} parent=51 // pred_region
        %p395 = scmp.lt.s32.totalorder %s19, 1
        %s396 = scalar_select %p395, %s19, 1
        %s397 = smul.addr %s396, 18
        %s398 = smul.addr %s397, 8
        %s399 = scalar_lea.vmem %s1, %s398
      $region60: #{image_encoder_forward.3} parent=51 // pred_fallthru
        _
      // Predicated region
      $region61: #{image_encoder_forward.3} parent=51 // pred_check
        %p400 = pneg %p91
      $region62: #{image_encoder_forward.3} parent=51 // pred_check_branch
        %402 = sbr.rel (%p400) target = $region64
      $region63: #{image_encoder_forward.3} parent=51 // pred_region
        %p403 = scmp.lt.s32.totalorder %s19, 1
        %s404 = scalar_select %p403, %s19, 1
        %s405 = smul.addr %s404, 18
        %s406 = smul.addr %s405, 8
        %s407 = scalar_lea.vmem %s2, %s406
      $region64: #{image_encoder_forward.3} parent=51 // pred_fallthru
        _
      // Predicated region
      $region65: #{image_encoder_forward.3} parent=51 // pred_check
        %p408 = pneg %p117
      $region66: #{image_encoder_forward.3} parent=51 // pred_check_branch
        %410 = sbr.rel (%p408) target = $region68
      $region67: #{image_encoder_forward.3} parent=51 // pred_region
        %p411 = scmp.lt.s32.totalorder %s19, 1
        %s412 = scalar_select %p411, %s19, 1
        %s413 = smul.addr %s412, 18
        %s414 = smul.addr %s413, 8
        %s415 = scalar_lea.vmem %s3, %s414
      $region68: #{image_encoder_forward.3} parent=51 // pred_fallthru
        _
    $region52: #{image_encoder_forward.3} parent=5 // pred_fallthru
      _
    %p416 = scmp.le.s32.totalorder 1, %s19
    %p417 = scmp.lt.s32.totalorder %s19, 3
    %p418 = pnand %p416, %p417
    %p419 = pneg %p418
    // Predicated region
    $region69: #{image_encoder_forward.3} parent=5 // pred_check
      _
    $region70: #{image_encoder_forward.3} parent=5 // pred_check_branch
      %421 = sbr.rel (%p418) target = $region72
    $region71: #{image_encoder_forward.3} parent=5 // pred_region
      %s422 = ssub.s32 %s19, 1
      %p423 = scmp.lt.s32.totalorder %s24, 1
      %s424 = scalar_select %p423, %s24, 1
      %s425 = smul.addr %s424, 18
      %s426 = smul.addr %s425, 8
      %s427 = scalar_lea.vmem %s0, %s426
      %p428 = pneg %p45
      %p429 = pneg %p42
      %p430 = scmp.lt.s32.totalorder %s24, 1
      %s431 = scalar_select %p430, %s24, 1
      %s432 = smul.addr %s431, 18
      %s433 = smul.addr %s432, 8
      %s434 = scalar_lea.vmem %s1, %s433
      %p435 = pneg %p71
      %p436 = pneg %p68
      %p437 = scmp.lt.s32.totalorder %s24, 1
      %s438 = scalar_select %p437, %s24, 1
      %s439 = smul.addr %s438, 18
      %s440 = smul.addr %s439, 8
      %s441 = scalar_lea.vmem %s2, %s440
      %p442 = pneg %p97
      %p443 = pneg %p94
      %p444 = scmp.lt.s32.totalorder %s24, 1
      %s445 = scalar_select %p444, %s24, 1
      %s446 = smul.addr %s445, 18
      %s447 = smul.addr %s446, 8
      %s448 = scalar_lea.vmem %s3, %s447
      %p449 = pneg %p123
      %p450 = pneg %p120
      %p451 = pneg %p144
      %p452 = pneg %p141
      %p453 = pneg %p165
      %p454 = pneg %p162
      %p455 = pneg %p186
      %p456 = pneg %p183
      %p457 = pneg %p207
      %p458 = pneg %p204
      %p459 = pneg %p228
      %p460 = pneg %p225
      %p461 = pneg %p249
      %p462 = pneg %p246
      %p463 = pneg %p270
      %p464 = pneg %p267
      %p465 = pneg %p291
      %p466 = pneg %p288
      %p467 = pneg %p312
      %p468 = pneg %p309
      %p469 = pneg %p338
      %p470 = pneg %p335
      %p471 = scmp.lt.s32.totalorder %s24, 1
      %s472 = scalar_select %p471, %s24, 1
      %s473 = smul.addr %s472, 8
      %s474 = scalar_lea.vmem %s13, %s473
      %p475 = scmp.lt.s32.totalorder %s24, 1
      %s476 = scalar_select %p475, %s24, 1
      %s477 = smul.addr %s476, 18
      %s478 = smul.addr %s477, 8
      %s479 = scalar_lea.vmem %s0, %s478
      %p480 = scmp.lt.s32.totalorder %s24, 1
      %s481 = scalar_select %p480, %s24, 1
      %s482 = smul.addr %s481, 18
      %s483 = smul.addr %s482, 8
      %s484 = scalar_lea.vmem %s1, %s483
      %p485 = scmp.lt.s32.totalorder %s24, 1
      %s486 = scalar_select %p485, %s24, 1
      %s487 = smul.addr %s486, 18
      %s488 = smul.addr %s487, 8
      %s489 = scalar_lea.vmem %s2, %s488
      %p490 = scmp.lt.s32.totalorder %s24, 1
      %s491 = scalar_select %p490, %s24, 1
      %s492 = smul.addr %s491, 18
      %s493 = smul.addr %s492, 8
      %s494 = scalar_lea.vmem %s3, %s493
      %p495 = scmp.lt.s32.totalorder %s24, 1
      %s496 = scalar_select %p495, %s24, 1
      %s497 = smul.addr %s496, 8
      %s498 = scalar_lea.vmem %s13, %s497
      %v500 = vld [vmem:[%s494] sm:$0xff]
      %v501 = vld [vmem:[%s494 + $0x10] sm:$0xff]
      %v502 = vld [vmem:[%s494 + $0x20] sm:$0xff]
      %v503 = vld [vmem:[%s494 + $0x30] sm:$0xff]
      %v504 = vld [vmem:[%s494 + $0x40] sm:$0xff]
      %v505 = vld [vmem:[%s494 + $0x50] sm:$0xff]
      %v506 = vld [vmem:[%s494 + $0x60] sm:$0xff]
      %v507 = vld [vmem:[%s494 + $0x70] sm:$0xff]
      %v508 = vpack.c.bf16 %v501, %v500
      %v509 = vpack.c.bf16 %v503, %v502
      %v510 = vpack.c.bf16 %v505, %v504
      %v511 = vpack.c.bf16 %v507, %v506
      %v512 = vld [vmem:[%s4] sm:$0xf]
      %v513 = vld [vmem:[%s4 + $0x4] sm:$0xf]
      %v514 = vld [vmem:[%s4 + $0x8] sm:$0xf]
      %v515 = vld [vmem:[%s4 + $0xc] sm:$0xf]
      %v516 = vld [vmem:[%s4 + $0x10] sm:$0xf]
      %v517 = vld [vmem:[%s4 + $0x14] sm:$0xf]
      %v518 = vld [vmem:[%s4 + $0x18] sm:$0xf]
      %v519 = vld [vmem:[%s4 + $0x1c] sm:$0xf]
      %v520 = vld [vmem:[%s4 + $0x20] sm:$0xf]
      %v521 = vld [vmem:[%s4 + $0x24] sm:$0xf]
      %v522 = vld [vmem:[%s4 + $0x28] sm:$0xf]
      %v523 = vld [vmem:[%s4 + $0x2c] sm:$0xf]
      %v524 = vld [vmem:[%s4 + $0x30] sm:$0xf]
      %v525 = vld [vmem:[%s4 + $0x34] sm:$0xf]
      %v526 = vld [vmem:[%s4 + $0x38] sm:$0xf]
      %v527 = vld [vmem:[%s4 + $0x3c] sm:$0xf]
      %v528 = vld [vmem:[%s489 + $0x1] sm:$0xff]
      %v529 = vld [vmem:[%s489 + $0x11] sm:$0xff]
      %v530 = vld [vmem:[%s489 + $0x21] sm:$0xff]
      %v531 = vld [vmem:[%s489 + $0x31] sm:$0xff]
      %v532 = vld [vmem:[%s489 + $0x41] sm:$0xff]
      %v533 = vld [vmem:[%s489 + $0x51] sm:$0xff]
      %v534 = vld [vmem:[%s489 + $0x61] sm:$0xff]
      %v535 = vld [vmem:[%s489 + $0x71] sm:$0xff]
      %v536 = vpack.c.bf16 %v529, %v528
      %v537 = vpack.c.bf16 %v531, %v530
      %v538 = vpack.c.bf16 %v533, %v532
      %v539 = vpack.c.bf16 %v535, %v534
      %s540 = scalar_lea.vmem %s4, 64
      %v541 = vld [vmem:[%s540] sm:$0xf]
      %v542 = vld [vmem:[%s540 + $0x4] sm:$0xf]
      %v543 = vld [vmem:[%s540 + $0x8] sm:$0xf]
      %v544 = vld [vmem:[%s540 + $0xc] sm:$0xf]
      %v545 = vld [vmem:[%s540 + $0x10] sm:$0xf]
      %v546 = vld [vmem:[%s540 + $0x14] sm:$0xf]
      %v547 = vld [vmem:[%s540 + $0x18] sm:$0xf]
      %v548 = vld [vmem:[%s540 + $0x1c] sm:$0xf]
      %v549 = vld [vmem:[%s540 + $0x20] sm:$0xf]
      %v550 = vld [vmem:[%s540 + $0x24] sm:$0xf]
      %v551 = vld [vmem:[%s540 + $0x28] sm:$0xf]
      %v552 = vld [vmem:[%s540 + $0x2c] sm:$0xf]
      %v553 = vld [vmem:[%s540 + $0x30] sm:$0xf]
      %v554 = vld [vmem:[%s540 + $0x34] sm:$0xf]
      %v555 = vld [vmem:[%s540 + $0x38] sm:$0xf]
      %v556 = vld [vmem:[%s540 + $0x3c] sm:$0xf]
      %v573 = vunpack.c.l.b16 %v541
      %v574 = vunpack.c.l.b16 %v542
      %v575 = vunpack.c.l.b16 %v543
      %v576 = vunpack.c.l.b16 %v544
      %v577 = vunpack.c.l.b16 %v545
      %v578 = vunpack.c.l.b16 %v546
      %v579 = vunpack.c.l.b16 %v547
      %v580 = vunpack.c.l.b16 %v548
      %v581 = vunpack.c.l.b16 %v549
      %v582 = vunpack.c.l.b16 %v550
      %v583 = vunpack.c.l.b16 %v551
      %v584 = vunpack.c.l.b16 %v552
      %v585 = vunpack.c.l.b16 %v553
      %v586 = vunpack.c.l.b16 %v554
      %v587 = vunpack.c.l.b16 %v555
      %v588 = vunpack.c.l.b16 %v556
      %v589 = vpack.c.b16 %v574, %v573
      %v590 = vpack.c.b16 %v576, %v575
      %v591 = vpack.c.b16 %v578, %v577
      %v592 = vpack.c.b16 %v580, %v579
      %v593 = vpack.c.b16 %v582, %v581
      %v594 = vpack.c.b16 %v584, %v583
      %v595 = vpack.c.b16 %v586, %v585
      %v596 = vpack.c.b16 %v588, %v587
      %605 = vmatprep.subr.bf16.mxu0 0
      %606 = vmatpush1.bf16.msra.mxu0 %v589
      %607 = vmatprep.subr.bf16.mxu0 0
      %608 = vmatpush1.bf16.msra.mxu0 %v590
      %609 = vmatprep.subr.bf16.mxu0 0
      %610 = vmatpush1.bf16.msra.mxu0 %v591
      %611 = vmatprep.subr.bf16.mxu0 0
      %612 = vmatpush1.bf16.msra.mxu0 %v592
      %613 = vmatprep.subr.bf16.mxu0 0
      %614 = vmatpush1.bf16.msra.mxu0 %v593
      %615 = vmatprep.subr.bf16.mxu0 0
      %616 = vmatpush1.bf16.msra.mxu0 %v594
      %617 = vmatprep.subr.bf16.mxu0 0
      %618 = vmatpush1.bf16.msra.mxu0 %v595
      %619 = vmatprep.subr.bf16.mxu0 0
      %620 = vmatpush1.bf16.msra.mxu0 %v596
      %621 = vmatprep.subr.bf16.mxu0 0
      %622 = vmatpush1.bf16.msra.mxu0 0
      %623 = vmatprep.subr.bf16.mxu0 0
      %624 = vmatpush1.bf16.msra.mxu0 0
      %625 = vmatprep.subr.bf16.mxu0 0
      %626 = vmatpush1.bf16.msra.mxu0 0
      %627 = vmatprep.subr.bf16.mxu0 0
      %628 = vmatpush1.bf16.msra.mxu0 0
      %629 = vmatprep.subr.bf16.mxu0 0
      %630 = vmatpush1.bf16.msra.mxu0 0
      %631 = vmatprep.subr.bf16.mxu0 0
      %632 = vmatpush1.bf16.msra.mxu0 0
      %633 = vmatprep.subr.bf16.mxu0 0
      %634 = vmatpush1.bf16.msra.mxu0 0
      %635 = vmatprep.subr.bf16.mxu0 0
      %636 = vmatpush1.bf16.msra.mxu0 0
      %637 = vmatprep.mubr.bf16.mxu0 0
      %638 = vmatmul.mubr.bf16.gmra.mrb[0].mxu0 %v536
      %v639 = vpop.f32.mrb[0].mxu0
      %v640 = vadd.f32 0.0, %v639
      %v641 = vpop.f32.mrb[0].mxu0
      %v642 = vpop.f32.mrb[0].mxu0
      %v643 = vadd.f32 0.0, %v642
      %v644 = vpop.f32.mrb[0].mxu0
      %645 = vmatprep.mubr.bf16.mxu0 0
      %646 = vmatmul.mubr.bf16.gmra.mrb[0].mxu0 %v537
      %v647 = vpop.f32.mrb[0].mxu0
      %v648 = vadd.f32 0.0, %v647
      %v649 = vpop.f32.mrb[0].mxu0
      %v650 = vpop.f32.mrb[0].mxu0
      %v651 = vadd.f32 0.0, %v650
      %v652 = vpop.f32.mrb[0].mxu0
      %653 = vmatprep.mubr.bf16.mxu0 0
      %654 = vmatmul.mubr.bf16.gmra.mrb[0].mxu0 %v538
      %v655 = vpop.f32.mrb[0].mxu0
      %v656 = vadd.f32 0.0, %v655
      %v657 = vpop.f32.mrb[0].mxu0
      %v658 = vpop.f32.mrb[0].mxu0
      %v659 = vadd.f32 0.0, %v658
      %v660 = vpop.f32.mrb[0].mxu0
      %661 = vmatprep.mubr.bf16.mxu0 0
      %662 = vmatmul.mubr.bf16.gmra.mrb[0].mxu0 %v539
      %v663 = vpop.f32.mrb[0].mxu0
      %v664 = vadd.f32 0.0, %v663
      %v665 = vpop.f32.mrb[0].mxu0
      %v666 = vpop.f32.mrb[0].mxu0
      %v667 = vadd.f32 0.0, %v666
      %v668 = vpop.f32.mrb[0].mxu0
      %669 = vdwg.mxu0
      %v686 = vunpack.c.l.b16 %v512
      %v687 = vunpack.c.l.b16 %v513
      %v688 = vunpack.c.l.b16 %v514
      %v689 = vunpack.c.l.b16 %v515
      %v690 = vunpack.c.l.b16 %v516
      %v691 = vunpack.c.l.b16 %v517
      %v692 = vunpack.c.l.b16 %v518
      %v693 = vunpack.c.l.b16 %v519
      %v694 = vunpack.c.l.b16 %v520
      %v695 = vunpack.c.l.b16 %v521
      %v696 = vunpack.c.l.b16 %v522
      %v697 = vunpack.c.l.b16 %v523
      %v698 = vunpack.c.l.b16 %v524
      %v699 = vunpack.c.l.b16 %v525
      %v700 = vunpack.c.l.b16 %v526
      %v701 = vunpack.c.l.b16 %v527
      %v702 = vpack.c.b16 %v687, %v686
      %v703 = vpack.c.b16 %v689, %v688
      %v704 = vpack.c.b16 %v691, %v690
      %v705 = vpack.c.b16 %v693, %v692
      %v706 = vpack.c.b16 %v695, %v694
      %v707 = vpack.c.b16 %v697, %v696
      %v708 = vpack.c.b16 %v699, %v698
      %v709 = vpack.c.b16 %v701, %v700
      %718 = vmatprep.subr.bf16.mxu0 0
      %719 = vmatpush1.bf16.msra.mxu0 %v702
      %720 = vmatprep.subr.bf16.mxu0 0
      %721 = vmatpush1.bf16.msra.mxu0 %v703
      %722 = vmatprep.subr.bf16.mxu0 0
      %723 = vmatpush1.bf16.msra.mxu0 %v704
      %724 = vmatprep.subr.bf16.mxu0 0
      %725 = vmatpush1.bf16.msra.mxu0 %v705
      %726 = vmatprep.subr.bf16.mxu0 0
      %727 = vmatpush1.bf16.msra.mxu0 %v706
      %728 = vmatprep.subr.bf16.mxu0 0
      %729 = vmatpush1.bf16.msra.mxu0 %v707
      %730 = vmatprep.subr.bf16.mxu0 0
      %731 = vmatpush1.bf16.msra.mxu0 %v708
      %732 = vmatprep.subr.bf16.mxu0 0
      %733 = vmatpush1.bf16.msra.mxu0 %v709
      %734 = vmatprep.subr.bf16.mxu0 0
      %735 = vmatpush1.bf16.msra.mxu0 0
      %736 = vmatprep.subr.bf16.mxu0 0
      %737 = vmatpush1.bf16.msra.mxu0 0
      %738 = vmatprep.subr.bf16.mxu0 0
      %739 = vmatpush1.bf16.msra.mxu0 0
      %740 = vmatprep.subr.bf16.mxu0 0
      %741 = vmatpush1.bf16.msra.mxu0 0
      %742 = vmatprep.subr.bf16.mxu0 0
      %743 = vmatpush1.bf16.msra.mxu0 0
      %744 = vmatprep.subr.bf16.mxu0 0
      %745 = vmatpush1.bf16.msra.mxu0 0
      %746 = vmatprep.subr.bf16.mxu0 0
      %747 = vmatpush1.bf16.msra.mxu0 0
      %748 = vmatprep.subr.bf16.mxu0 0
      %749 = vmatpush1.bf16.msra.mxu0 0
      %750 = vmatprep.mubr.bf16.mxu0 0
      %751 = vmatmul.mubr.bf16.gmra.mrb[0].mxu0 %v508
      %v752 = vpop.f32.mrb[0].mxu0
      %v753 = vadd.f32 %v640, %v752
      %v754 = vpop.f32.mrb[0].mxu0
      %v755 = vpop.f32.mrb[0].mxu0
      %v756 = vadd.f32 %v643, %v755
      %v757 = vpop.f32.mrb[0].mxu0
      %758 = vmatprep.mubr.bf16.mxu0 0
      %759 = vmatmul.mubr.bf16.gmra.mrb[0].mxu0 %v509
      %v760 = vpop.f32.mrb[0].mxu0
      %v761 = vadd.f32 %v648, %v760
      %v762 = vpop.f32.mrb[0].mxu0
      %v763 = vpop.f32.mrb[0].mxu0
      %v764 = vadd.f32 %v651, %v763
      %v765 = vpop.f32.mrb[0].mxu0
      %766 = vmatprep.mubr.bf16.mxu0 0
      %767 = vmatmul.mubr.bf16.gmra.mrb[0].mxu0 %v510
      %v768 = vpop.f32.mrb[0].mxu0
      %v769 = vadd.f32 %v656, %v768
      %v770 = vpop.f32.mrb[0].mxu0
      %v771 = vpop.f32.mrb[0].mxu0
      %v772 = vadd.f32 %v659, %v771
      %v773 = vpop.f32.mrb[0].mxu0
      %774 = vmatprep.mubr.bf16.mxu0 0
      %775 = vmatmul.mubr.bf16.gmra.mrb[0].mxu0 %v511
      %v776 = vpop.f32.mrb[0].mxu0
      %v777 = vadd.f32 %v664, %v776
      %v778 = vpop.f32.mrb[0].mxu0
      %v779 = vpop.f32.mrb[0].mxu0
      %v780 = vadd.f32 %v667, %v779
      %v781 = vpop.f32.mrb[0].mxu0
      %782 = vdwg.mxu0
      %v783 = vld [vmem:[%s494 + $0x1] sm:$0xff]
      %v784 = vld [vmem:[%s494 + $0x11] sm:$0xff]
      %v785 = vld [vmem:[%s494 + $0x21] sm:$0xff]
      %v786 = vld [vmem:[%s494 + $0x31] sm:$0xff]
      %v787 = vld [vmem:[%s494 + $0x41] sm:$0xff]
      %v788 = vld [vmem:[%s494 + $0x51] sm:$0xff]
      %v789 = vld [vmem:[%s494 + $0x61] sm:$0xff]
      %v790 = vld [vmem:[%s494 + $0x71] sm:$0xff]
      %v791 = vpack.c.bf16 %v784, %v783
      %v792 = vpack.c.bf16 %v786, %v785
      %v793 = vpack.c.bf16 %v788, %v787
      %v794 = vpack.c.bf16 %v790, %v789
      %s795 = scalar_lea.vmem %s4, 128
      %v796 = vld [vmem:[%s795] sm:$0xf]
      %v797 = vld [vmem:[%s795 + $0x4] sm:$0xf]
      %v798 = vld [vmem:[%s795 + $0x8] sm:$0xf]
      %v799 = vld [vmem:[%s795 + $0xc] sm:$0xf]
      %v800 = vld [vmem:[%s795 + $0x10] sm:$0xf]
      %v801 = vld [vmem:[%s795 + $0x14] sm:$0xf]
      %v802 = vld [vmem:[%s795 + $0x18] sm:$0xf]
      %v803 = vld [vmem:[%s795 + $0x1c] sm:$0xf]
      %v804 = vld [vmem:[%s795 + $0x20] sm:$0xf]
      %v805 = vld [vmem:[%s795 + $0x24] sm:$0xf]
      %v806 = vld [vmem:[%s795 + $0x28] sm:$0xf]
      %v807 = vld [vmem:[%s795 + $0x2c] sm:$0xf]
      %v808 = vld [vmem:[%s795 + $0x30] sm:$0xf]
      %v809 = vld [vmem:[%s795 + $0x34] sm:$0xf]
      %v810 = vld [vmem:[%s795 + $0x38] sm:$0xf]
      %v811 = vld [vmem:[%s795 + $0x3c] sm:$0xf]
      %v828 = vunpack.c.l.b16 %v796
      %v829 = vunpack.c.l.b16 %v797
      %v830 = vunpack.c.l.b16 %v798
      %v831 = vunpack.c.l.b16 %v799
      %v832 = vunpack.c.l.b16 %v800
      %v833 = vunpack.c.l.b16 %v801
      %v834 = vunpack.c.l.b16 %v802
      %v835 = vunpack.c.l.b16 %v803
      %v836 = vunpack.c.l.b16 %v804
      %v837 = vunpack.c.l.b16 %v805
      %v838 = vunpack.c.l.b16 %v806
      %v839 = vunpack.c.l.b16 %v807
      %v840 = vunpack.c.l.b16 %v808
      %v841 = vunpack.c.l.b16 %v809
      %v842 = vunpack.c.l.b16 %v810
      %v843 = vunpack.c.l.b16 %v811
      %v844 = vpack.c.b16 %v829, %v828
      %v845 = vpack.c.b16 %v831, %v830
      %v846 = vpack.c.b16 %v833, %v832
      %v847 = vpack.c.b16 %v835, %v834
      %v848 = vpack.c.b16 %v837, %v836
      %v849 = vpack.c.b16 %v839, %v838
      %v850 = vpack.c.b16 %v841, %v840
      %v851 = vpack.c.b16 %v843, %v842
      %860 = vmatprep.subr.bf16.mxu0 0
      %861 = vmatpush1.bf16.msra.mxu0 %v844
      %862 = vmatprep.subr.bf16.mxu0 0
      %863 = vmatpush1.bf16.msra.mxu0 %v845
      %864 = vmatprep.subr.bf16.mxu0 0
      %865 = vmatpush1.bf16.msra.mxu0 %v846
      %866 = vmatprep.subr.bf16.mxu0 0
      %867 = vmatpush1.bf16.msra.mxu0 %v847
      %868 = vmatprep.subr.bf16.mxu0 0
      %869 = vmatpush1.bf16.msra.mxu0 %v848
      %870 = vmatprep.subr.bf16.mxu0 0
      %871 = vmatpush1.bf16.msra.mxu0 %v849
      %872 = vmatprep.subr.bf16.mxu0 0
      %873 = vmatpush1.bf16.msra.mxu0 %v850
      %874 = vmatprep.subr.bf16.mxu0 0
      %875 = vmatpush1.bf16.msra.mxu0 %v851
      %876 = vmatprep.subr.bf16.mxu0 0
      %877 = vmatpush1.bf16.msra.mxu0 0
      %878 = vmatprep.subr.bf16.mxu0 0
      %879 = vmatpush1.bf16.msra.mxu0 0
      %880 = vmatprep.subr.bf16.mxu0 0
      %881 = vmatpush1.bf16.msra.mxu0 0
      %882 = vmatprep.subr.bf16.mxu0 0
      %883 = vmatpush1.bf16.msra.mxu0 0
      %884 = vmatprep.subr.bf16.mxu0 0
      %885 = vmatpush1.bf16.msra.mxu0 0
      %886 = vmatprep.subr.bf16.mxu0 0
      %887 = vmatpush1.bf16.msra.mxu0 0
      %888 = vmatprep.subr.bf16.mxu0 0
      %889 = vmatpush1.bf16.msra.mxu0 0
      %890 = vmatprep.subr.bf16.mxu0 0
      %891 = vmatpush1.bf16.msra.mxu0 0
      %892 = vmatprep.mubr.bf16.mxu0 0
      %893 = vmatmul.mubr.bf16.gmra.mrb[0].mxu0 %v791
      %v894 = vpop.f32.mrb[0].mxu0
      %v895 = vadd.f32 0.0, %v894
      %v896 = vpop.f32.mrb[0].mxu0
      %v897 = vpop.f32.mrb[0].mxu0
      %v898 = vadd.f32 0.0, %v897
      %v899 = vpop.f32.mrb[0].mxu0
      %900 = vmatprep.mubr.bf16.mxu0 0
      %901 = vmatmul.mubr.bf16.gmra.mrb[0].mxu0 %v792
      %v902 = vpop.f32.mrb[0].mxu0
      %v903 = vadd.f32 0.0, %v902
      %v904 = vpop.f32.mrb[0].mxu0
      %v905 = vpop.f32.mrb[0].mxu0
      %v906 = vadd.f32 0.0, %v905
      %v907 = vpop.f32.mrb[0].mxu0
      %908 = vmatprep.mubr.bf16.mxu0 0
      %909 = vmatmul.mubr.bf16.gmra.mrb[0].mxu0 %v793
      %v910 = vpop.f32.mrb[0].mxu0
      %v911 = vadd.f32 0.0, %v910
      %v912 = vpop.f32.mrb[0].mxu0
      %v913 = vpop.f32.mrb[0].mxu0
      %v914 = vadd.f32 0.0, %v913
      %v915 = vpop.f32.mrb[0].mxu0
      %916 = vmatprep.mubr.bf16.mxu0 0
      %917 = vmatmul.mubr.bf16.gmra.mrb[0].mxu0 %v794
      %v918 = vpop.f32.mrb[0].mxu0
      %v919 = vadd.f32 0.0, %v918
      %v920 = vpop.f32.mrb[0].mxu0
      %v921 = vpop.f32.mrb[0].mxu0
      %v922 = vadd.f32 0.0, %v921
      %v923 = vpop.f32.mrb[0].mxu0
      %924 = vdwg.mxu0
      %v925 = vadd.f32 %v753, %v895
      %v926 = vadd.f32 %v756, %v898
      %v927 = vadd.f32 %v761, %v903
      %v928 = vadd.f32 %v764, %v906
      %v929 = vadd.f32 %v769, %v911
      %v930 = vadd.f32 %v772, %v914
      %v931 = vadd.f32 %v777, %v919
      %v932 = vadd.f32 %v780, %v922
      %s933 = scalar_lea.vmem %s484, 16
      %v934 = vld [vmem:[%s933] sm:$0xff]
      %v935 = vld [vmem:[%s933 + $0x10] sm:$0xff]
      %v936 = vld [vmem:[%s933 + $0x20] sm:$0xff]
      %v937 = vld [vmem:[%s933 + $0x30] sm:$0xff]
      %v938 = vld [vmem:[%s933 + $0x40] sm:$0xff]
      %v939 = vld [vmem:[%s933 + $0x50] sm:$0xff]
      %v940 = vld [vmem:[%s933 + $0x60] sm:$0xff]
      %v941 = vld [vmem:[%s933 + $0x70] sm:$0xff]
      %v942 = vpack.c.bf16 %v935, %v934
      %v943 = vpack.c.bf16 %v937, %v936
      %v944 = vpack.c.bf16 %v939, %v938
      %v945 = vpack.c.bf16 %v941, %v940
      %s946 = scalar_lea.vmem %s4, 192
      %v947 = vld [vmem:[%s946] sm:$0xf]
      %v948 = vld [vmem:[%s946 + $0x4] sm:$0xf]
      %v949 = vld [vmem:[%s946 + $0x8] sm:$0xf]
      %v950 = vld [vmem:[%s946 + $0xc] sm:$0xf]
      %v951 = vld [vmem:[%s946 + $0x10] sm:$0xf]
      %v952 = vld [vmem:[%s946 + $0x14] sm:$0xf]
      %v953 = vld [vmem:[%s946 + $0x18] sm:$0xf]
      %v954 = vld [vmem:[%s946 + $0x1c] sm:$0xf]
      %v955 = vld [vmem:[%s946 + $0x20] sm:$0xf]
      %v956 = vld [vmem:[%s946 + $0x24] sm:$0xf]
      %v957 = vld [vmem:[%s946 + $0x28] sm:$0xf]
      %v958 = vld [vmem:[%s946 + $0x2c] sm:$0xf]
      %v959 = vld [vmem:[%s946 + $0x30] sm:$0xf]
      %v960 = vld [vmem:[%s946 + $0x34] sm:$0xf]
      %v961 = vld [vmem:[%s946 + $0x38] sm:$0xf]
      %v962 = vld [vmem:[%s946 + $0x3c] sm:$0xf]
      %v979 = vunpack.c.l.b16 %v947
      %v980 = vunpack.c.l.b16 %v948
      %v981 = vunpack.c.l.b16 %v949
      %v982 = vunpack.c.l.b16 %v950
      %v983 = vunpack.c.l.b16 %v951
      %v984 = vunpack.c.l.b16 %v952
      %v985 = vunpack.c.l.b16 %v953
      %v986 = vunpack.c.l.b16 %v954
      %v987 = vunpack.c.l.b16 %v955
      %v988 = vunpack.c.l.b16 %v956
      %v989 = vunpack.c.l.b16 %v957
      %v990 = vunpack.c.l.b16 %v958
      %v991 = vunpack.c.l.b16 %v959
      %v992 = vunpack.c.l.b16 %v960
      %v993 = vunpack.c.l.b16 %v961
      %v994 = vunpack.c.l.b16 %v962
      %v995 = vpack.c.b16 %v980, %v979
      %v996 = vpack.c.b16 %v982, %v981
      %v997 = vpack.c.b16 %v984, %v983
      %v998 = vpack.c.b16 %v986, %v985
      %v999 = vpack.c.b16 %v988, %v987
      %v1000 = vpack.c.b16 %v990, %v989
      %v1001 = vpack.c.b16 %v992, %v991
      %v1002 = vpack.c.b16 %v994, %v993
      %1011 = vmatprep.subr.bf16.mxu0 0
      %1012 = vmatpush1.bf16.msra.mxu0 %v995
      %1013 = vmatprep.subr.bf16.mxu0 0
      %1014 = vmatpush1.bf16.msra.mxu0 %v996
      %1015 = vmatprep.subr.bf16.mxu0 0
      %1016 = vmatpush1.bf16.msra.mxu0 %v997
      %1017 = vmatprep.subr.bf16.mxu0 0
      %1018 = vmatpush1.bf16.msra.mxu0 %v998
      %1019 = vmatprep.subr.bf16.mxu0 0
      %1020 = vmatpush1.bf16.msra.mxu0 %v999
      %1021 = vmatprep.subr.bf16.mxu0 0
      %1022 = vmatpush1.bf16.msra.mxu0 %v1000
      %1023 = vmatprep.subr.bf16.mxu0 0
      %1024 = vmatpush1.bf16.msra.mxu0 %v1001
      %1025 = vmatprep.subr.bf16.mxu0 0
      %1026 = vmatpush1.bf16.msra.mxu0 %v1002
      %1027 = vmatprep.subr.bf16.mxu0 0
      %1028 = vmatpush1.bf16.msra.mxu0 0
      %1029 = vmatprep.subr.bf16.mxu0 0
      %1030 = vmatpush1.bf16.msra.mxu0 0
      %1031 = vmatprep.subr.bf16.mxu0 0
      %1032 = vmatpush1.bf16.msra.mxu0 0
      %1033 = vmatprep.subr.bf16.mxu0 0
      %1034 = vmatpush1.bf16.msra.mxu0 0
      %1035 = vmatprep.subr.bf16.mxu0 0
      %1036 = vmatpush1.bf16.msra.mxu0 0
      %1037 = vmatprep.subr.bf16.mxu0 0
      %1038 = vmatpush1.bf16.msra.mxu0 0
      %1039 = vmatprep.subr.bf16.mxu0 0
      %1040 = vmatpush1.bf16.msra.mxu0 0
      %1041 = vmatprep.subr.bf16.mxu0 0
      %1042 = vmatpush1.bf16.msra.mxu0 0
      %1043 = vmatprep.mubr.bf16.mxu0 0
      %1044 = vmatmul.mubr.bf16.gmra.mrb[0].mxu0 %v942
      %v1045 = vpop.f32.mrb[0].mxu0
      %v1046 = vadd.f32 0.0, %v1045
      %v1047 = vpop.f32.mrb[0].mxu0
      %v1048 = vpop.f32.mrb[0].mxu0
      %v1049 = vadd.f32 0.0, %v1048
      %v1050 = vpop.f32.mrb[0].mxu0
      %1051 = vmatprep.mubr.bf16.mxu0 0
      %1052 = vmatmul.mubr.bf16.gmra.mrb[0].mxu0 %v943
      %v1053 = vpop.f32.mrb[0].mxu0
      %v1054 = vadd.f32 0.0, %v1053
      %v1055 = vpop.f32.mrb[0].mxu0
      %v1056 = vpop.f32.mrb[0].mxu0
      %v1057 = vadd.f32 0.0, %v1056
      %v1058 = vpop.f32.mrb[0].mxu0
      %1059 = vmatprep.mubr.bf16.mxu0 0
      %1060 = vmatmul.mubr.bf16.gmra.mrb[0].mxu0 %v944
      %v1061 = vpop.f32.mrb[0].mxu0
      %v1062 = vadd.f32 0.0, %v1061
      %v1063 = vpop.f32.mrb[0].mxu0
      %v1064 = vpop.f32.mrb[0].mxu0
      %v1065 = vadd.f32 0.0, %v1064
      %v1066 = vpop.f32.mrb[0].mxu0
      %1067 = vmatprep.mubr.bf16.mxu0 0
      %1068 = vmatmul.mubr.bf16.gmra.mrb[0].mxu0 %v945
      %v1069 = vpop.f32.mrb[0].mxu0
      %v1070 = vadd.f32 0.0, %v1069
      %v1071 = vpop.f32.mrb[0].mxu0
      %v1072 = vpop.f32.mrb[0].mxu0
      %v1073 = vadd.f32 0.0, %v1072
      %v1074 = vpop.f32.mrb[0].mxu0
      %1075 = vdwg.mxu0
      %v1076 = vadd.f32 %v925, %v1046
      %v1077 = vadd.f32 %v926, %v1049
      %v1078 = vadd.f32 %v927, %v1054
      %v1079 = vadd.f32 %v928, %v1057
      %v1080 = vadd.f32 %v929, %v1062
      %v1081 = vadd.f32 %v930, %v1065
      %v1082 = vadd.f32 %v931, %v1070
      %v1083 = vadd.f32 %v932, %v1073
      %s1084 = scalar_lea.vmem %s479, 16
      %v1085 = vld [vmem:[%s1084 + $0x1] sm:$0xff]
      %v1086 = vld [vmem:[%s1084 + $0x11] sm:$0xff]
      %v1087 = vld [vmem:[%s1084 + $0x21] sm:$0xff]
      %v1088 = vld [vmem:[%s1084 + $0x31] sm:$0xff]
      %v1089 = vld [vmem:[%s1084 + $0x41] sm:$0xff]
      %v1090 = vld [vmem:[%s1084 + $0x51] sm:$0xff]
      %v1091 = vld [vmem:[%s1084 + $0x61] sm:$0xff]
      %v1092 = vld [vmem:[%s1084 + $0x71] sm:$0xff]
      %v1093 = vpack.c.bf16 %v1086, %v1085
      %v1094 = vpack.c.bf16 %v1088, %v1087
      %v1095 = vpack.c.bf16 %v1090, %v1089
      %v1096 = vpack.c.bf16 %v1092, %v1091
      %s1097 = scalar_lea.vmem %s4, 256
      %v1098 = vld [vmem:[%s1097] sm:$0xf]
      %v1099 = vld [vmem:[%s1097 + $0x4] sm:$0xf]
      %v1100 = vld [vmem:[%s1097 + $0x8] sm:$0xf]
      %v1101 = vld [vmem:[%s1097 + $0xc] sm:$0xf]
      %v1102 = vld [vmem:[%s1097 + $0x10] sm:$0xf]
      %v1103 = vld [vmem:[%s1097 + $0x14] sm:$0xf]
      %v1104 = vld [vmem:[%s1097 + $0x18] sm:$0xf]
      %v1105 = vld [vmem:[%s1097 + $0x1c] sm:$0xf]
      %v1106 = vld [vmem:[%s1097 + $0x20] sm:$0xf]
      %v1107 = vld [vmem:[%s1097 + $0x24] sm:$0xf]
      %v1108 = vld [vmem:[%s1097 + $0x28] sm:$0xf]
      %v1109 = vld [vmem:[%s1097 + $0x2c] sm:$0xf]
      %v1110 = vld [vmem:[%s1097 + $0x30] sm:$0xf]
      %v1111 = vld [vmem:[%s1097 + $0x34] sm:$0xf]
      %v1112 = vld [vmem:[%s1097 + $0x38] sm:$0xf]
      %v1113 = vld [vmem:[%s1097 + $0x3c] sm:$0xf]
      %v1130 = vunpack.c.l.b16 %v1098
      %v1131 = vunpack.c.l.b16 %v1099
      %v1132 = vunpack.c.l.b16 %v1100
      %v1133 = vunpack.c.l.b16 %v1101
      %v1134 = vunpack.c.l.b16 %v1102
      %v1135 = vunpack.c.l.b16 %v1103
      %v1136 = vunpack.c.l.b16 %v1104
      %v1137 = vunpack.c.l.b16 %v1105
      %v1138 = vunpack.c.l.b16 %v1106
      %v1139 = vunpack.c.l.b16 %v1107
      %v1140 = vunpack.c.l.b16 %v1108
      %v1141 = vunpack.c.l.b16 %v1109
      %v1142 = vunpack.c.l.b16 %v1110
      %v1143 = vunpack.c.l.b16 %v1111
      %v1144 = vunpack.c.l.b16 %v1112
      %v1145 = vunpack.c.l.b16 %v1113
      %v1146 = vpack.c.b16 %v1131, %v1130
      %v1147 = vpack.c.b16 %v1133, %v1132
      %v1148 = vpack.c.b16 %v1135, %v1134
      %v1149 = vpack.c.b16 %v1137, %v1136
      %v1150 = vpack.c.b16 %v1139, %v1138
      %v1151 = vpack.c.b16 %v1141, %v1140
      %v1152 = vpack.c.b16 %v1143, %v1142
      %v1153 = vpack.c.b16 %v1145, %v1144
      %1162 = vmatprep.subr.bf16.mxu0 0
      %1163 = vmatpush1.bf16.msra.mxu0 %v1146
      %1164 = vmatprep.subr.bf16.mxu0 0
      %1165 = vmatpush1.bf16.msra.mxu0 %v1147
      %1166 = vmatprep.subr.bf16.mxu0 0
      %1167 = vmatpush1.bf16.msra.mxu0 %v1148
      %1168 = vmatprep.subr.bf16.mxu0 0
      %1169 = vmatpush1.bf16.msra.mxu0 %v1149
      %1170 = vmatprep.subr.bf16.mxu0 0
      %1171 = vmatpush1.bf16.msra.mxu0 %v1150
      %1172 = vmatprep.subr.bf16.mxu0 0
      %1173 = vmatpush1.bf16.msra.mxu0 %v1151
      %1174 = vmatprep.subr.bf16.mxu0 0
      %1175 = vmatpush1.bf16.msra.mxu0 %v1152
      %1176 = vmatprep.subr.bf16.mxu0 0
      %1177 = vmatpush1.bf16.msra.mxu0 %v1153
      %1178 = vmatprep.subr.bf16.mxu0 0
      %1179 = vmatpush1.bf16.msra.mxu0 0
      %1180 = vmatprep.subr.bf16.mxu0 0
      %1181 = vmatpush1.bf16.msra.mxu0 0
      %1182 = vmatprep.subr.bf16.mxu0 0
      %1183 = vmatpush1.bf16.msra.mxu0 0
      %1184 = vmatprep.subr.bf16.mxu0 0
      %1185 = vmatpush1.bf16.msra.mxu0 0
      %1186 = vmatprep.subr.bf16.mxu0 0
      %1187 = vmatpush1.bf16.msra.mxu0 0
      %1188 = vmatprep.subr.bf16.mxu0 0
      %1189 = vmatpush1.bf16.msra.mxu0 0
      %1190 = vmatprep.subr.bf16.mxu0 0
      %1191 = vmatpush1.bf16.msra.mxu0 0
      %1192 = vmatprep.subr.bf16.mxu0 0
      %1193 = vmatpush1.bf16.msra.mxu0 0
      %1194 = vmatprep.mubr.bf16.mxu0 0
      %1195 = vmatmul.mubr.bf16.gmra.mrb[0].mxu0 %v1093
      %v1196 = vpop.f32.mrb[0].mxu0
      %v1197 = vadd.f32 0.0, %v1196
      %v1198 = vpop.f32.mrb[0].mxu0
      %v1199 = vpop.f32.mrb[0].mxu0
      %v1200 = vadd.f32 0.0, %v1199
      %v1201 = vpop.f32.mrb[0].mxu0
      %1202 = vmatprep.mubr.bf16.mxu0 0
      %1203 = vmatmul.mubr.bf16.gmra.mrb[0].mxu0 %v1094
      %v1204 = vpop.f32.mrb[0].mxu0
      %v1205 = vadd.f32 0.0, %v1204
      %v1206 = vpop.f32.mrb[0].mxu0
      %v1207 = vpop.f32.mrb[0].mxu0
      %v1208 = vadd.f32 0.0, %v1207
      %v1209 = vpop.f32.mrb[0].mxu0
      %1210 = vmatprep.mubr.bf16.mxu0 0
      %1211 = vmatmul.mubr.bf16.gmra.mrb[0].mxu0 %v1095
      %v1212 = vpop.f32.mrb[0].mxu0
      %v1213 = vadd.f32 0.0, %v1212
      %v1214 = vpop.f32.mrb[0].mxu0
      %v1215 = vpop.f32.mrb[0].mxu0
      %v1216 = vadd.f32 0.0, %v1215
      %v1217 = vpop.f32.mrb[0].mxu0
      %1218 = vmatprep.mubr.bf16.mxu0 0
      %1219 = vmatmul.mubr.bf16.gmra.mrb[0].mxu0 %v1096
      %v1220 = vpop.f32.mrb[0].mxu0
      %v1221 = vadd.f32 0.0, %v1220
      %v1222 = vpop.f32.mrb[0].mxu0
      %v1223 = vpop.f32.mrb[0].mxu0
      %v1224 = vadd.f32 0.0, %v1223
      %v1225 = vpop.f32.mrb[0].mxu0
      %1226 = vdwg.mxu0
      %v1227 = vadd.f32 %v1076, %v1197
      %v1228 = vadd.f32 %v1077, %v1200
      %v1229 = vadd.f32 %v1078, %v1205
      %v1230 = vadd.f32 %v1079, %v1208
      %v1231 = vadd.f32 %v1080, %v1213
      %v1232 = vadd.f32 %v1081, %v1216
      %v1233 = vadd.f32 %v1082, %v1221
      %v1234 = vadd.f32 %v1083, %v1224
      %v1235 = vld [vmem:[%s933 + $0x1] sm:$0xff]
      %v1236 = vld [vmem:[%s933 + $0x11] sm:$0xff]
      %v1237 = vld [vmem:[%s933 + $0x21] sm:$0xff]
      %v1238 = vld [vmem:[%s933 + $0x31] sm:$0xff]
      %v1239 = vld [vmem:[%s933 + $0x41] sm:$0xff]
      %v1240 = vld [vmem:[%s933 + $0x51] sm:$0xff]
      %v1241 = vld [vmem:[%s933 + $0x61] sm:$0xff]
      %v1242 = vld [vmem:[%s933 + $0x71] sm:$0xff]
      %v1243 = vpack.c.bf16 %v1236, %v1235
      %v1244 = vpack.c.bf16 %v1238, %v1237
      %v1245 = vpack.c.bf16 %v1240, %v1239
      %v1246 = vpack.c.bf16 %v1242, %v1241
      %s1247 = scalar_lea.vmem %s4, 320
      %v1248 = vld [vmem:[%s1247] sm:$0xf]
      %v1249 = vld [vmem:[%s1247 + $0x4] sm:$0xf]
      %v1250 = vld [vmem:[%s1247 + $0x8] sm:$0xf]
      %v1251 = vld [vmem:[%s1247 + $0xc] sm:$0xf]
      %v1252 = vld [vmem:[%s1247 + $0x10] sm:$0xf]
      %v1253 = vld [vmem:[%s1247 + $0x14] sm:$0xf]
      %v1254 = vld [vmem:[%s1247 + $0x18] sm:$0xf]
      %v1255 = vld [vmem:[%s1247 + $0x1c] sm:$0xf]
      %v1256 = vld [vmem:[%s1247 + $0x20] sm:$0xf]
      %v1257 = vld [vmem:[%s1247 + $0x24] sm:$0xf]
      %v1258 = vld [vmem:[%s1247 + $0x28] sm:$0xf]
      %v1259 = vld [vmem:[%s1247 + $0x2c] sm:$0xf]
      %v1260 = vld [vmem:[%s1247 + $0x30] sm:$0xf]
      %v1261 = vld [vmem:[%s1247 + $0x34] sm:$0xf]
      %v1262 = vld [vmem:[%s1247 + $0x38] sm:$0xf]
      %v1263 = vld [vmem:[%s1247 + $0x3c] sm:$0xf]
      %v1280 = vunpack.c.l.b16 %v1248
      %v1281 = vunpack.c.l.b16 %v1249
      %v1282 = vunpack.c.l.b16 %v1250
      %v1283 = vunpack.c.l.b16 %v1251
      %v1284 = vunpack.c.l.b16 %v1252
      %v1285 = vunpack.c.l.b16 %v1253
      %v1286 = vunpack.c.l.b16 %v1254
      %v1287 = vunpack.c.l.b16 %v1255
      %v1288 = vunpack.c.l.b16 %v1256
      %v1289 = vunpack.c.l.b16 %v1257
      %v1290 = vunpack.c.l.b16 %v1258
      %v1291 = vunpack.c.l.b16 %v1259
      %v1292 = vunpack.c.l.b16 %v1260
      %v1293 = vunpack.c.l.b16 %v1261
      %v1294 = vunpack.c.l.b16 %v1262
      %v1295 = vunpack.c.l.b16 %v1263
      %v1296 = vpack.c.b16 %v1281, %v1280
      %v1297 = vpack.c.b16 %v1283, %v1282
      %v1298 = vpack.c.b16 %v1285, %v1284
      %v1299 = vpack.c.b16 %v1287, %v1286
      %v1300 = vpack.c.b16 %v1289, %v1288
      %v1301 = vpack.c.b16 %v1291, %v1290
      %v1302 = vpack.c.b16 %v1293, %v1292
      %v1303 = vpack.c.b16 %v1295, %v1294
      %1312 = vmatprep.subr.bf16.mxu0 0
      %1313 = vmatpush1.bf16.msra.mxu0 %v1296
      %1314 = vmatprep.subr.bf16.mxu0 0
      %1315 = vmatpush1.bf16.msra.mxu0 %v1297
      %1316 = vmatprep.subr.bf16.mxu0 0
      %1317 = vmatpush1.bf16.msra.mxu0 %v1298
      %1318 = vmatprep.subr.bf16.mxu0 0
      %1319 = vmatpush1.bf16.msra.mxu0 %v1299
      %1320 = vmatprep.subr.bf16.mxu0 0
      %1321 = vmatpush1.bf16.msra.mxu0 %v1300
      %1322 = vmatprep.subr.bf16.mxu0 0
      %1323 = vmatpush1.bf16.msra.mxu0 %v1301
      %1324 = vmatprep.subr.bf16.mxu0 0
      %1325 = vmatpush1.bf16.msra.mxu0 %v1302
      %1326 = vmatprep.subr.bf16.mxu0 0
      %1327 = vmatpush1.bf16.msra.mxu0 %v1303
      %1328 = vmatprep.subr.bf16.mxu0 0
      %1329 = vmatpush1.bf16.msra.mxu0 0
      %1330 = vmatprep.subr.bf16.mxu0 0
      %1331 = vmatpush1.bf16.msra.mxu0 0
      %1332 = vmatprep.subr.bf16.mxu0 0
      %1333 = vmatpush1.bf16.msra.mxu0 0
      %1334 = vmatprep.subr.bf16.mxu0 0
      %1335 = vmatpush1.bf16.msra.mxu0 0
      %1336 = vmatprep.subr.bf16.mxu0 0
      %1337 = vmatpush1.bf16.msra.mxu0 0
      %1338 = vmatprep.subr.bf16.mxu0 0
      %1339 = vmatpush1.bf16.msra.mxu0 0
      %1340 = vmatprep.subr.bf16.mxu0 0
      %1341 = vmatpush1.bf16.msra.mxu0 0
      %1342 = vmatprep.subr.bf16.mxu0 0
      %1343 = vmatpush1.bf16.msra.mxu0 0
      %1344 = vmatprep.mubr.bf16.mxu0 0
      %1345 = vmatmul.mubr.bf16.gmra.mrb[0].mxu0 %v1243
      %v1346 = vpop.f32.mrb[0].mxu0
      %v1347 = vadd.f32 0.0, %v1346
      %v1348 = vpop.f32.mrb[0].mxu0
      %v1349 = vpop.f32.mrb[0].mxu0
      %v1350 = vadd.f32 0.0, %v1349
      %v1351 = vpop.f32.mrb[0].mxu0
      %1352 = vmatprep.mubr.bf16.mxu0 0
      %1353 = vmatmul.mubr.bf16.gmra.mrb[0].mxu0 %v1244
      %v1354 = vpop.f32.mrb[0].mxu0
      %v1355 = vadd.f32 0.0, %v1354
      %v1356 = vpop.f32.mrb[0].mxu0
      %v1357 = vpop.f32.mrb[0].mxu0
      %v1358 = vadd.f32 0.0, %v1357
      %v1359 = vpop.f32.mrb[0].mxu0
      %1360 = vmatprep.mubr.bf16.mxu0 0
      %1361 = vmatmul.mubr.bf16.gmra.mrb[0].mxu0 %v1245
      %v1362 = vpop.f32.mrb[0].mxu0
      %v1363 = vadd.f32 0.0, %v1362
      %v1364 = vpop.f32.mrb[0].mxu0
      %v1365 = vpop.f32.mrb[0].mxu0
      %v1366 = vadd.f32 0.0, %v1365
      %v1367 = vpop.f32.mrb[0].mxu0
      %1368 = vmatprep.mubr.bf16.mxu0 0
      %1369 = vmatmul.mubr.bf16.gmra.mrb[0].mxu0 %v1246
      %v1370 = vpop.f32.mrb[0].mxu0
      %v1371 = vadd.f32 0.0, %v1370
      %v1372 = vpop.f32.mrb[0].mxu0
      %v1373 = vpop.f32.mrb[0].mxu0
      %v1374 = vadd.f32 0.0, %v1373
      %v1375 = vpop.f32.mrb[0].mxu0
      %1376 = vdwg.mxu0
      %v1377 = vadd.f32 %v1227, %v1347
      %v1378 = vadd.f32 %v1228, %v1350
      %v1379 = vadd.f32 %v1229, %v1355
      %v1380 = vadd.f32 %v1230, %v1358
      %v1381 = vadd.f32 %v1231, %v1363
      %v1382 = vadd.f32 %v1232, %v1366
      %v1383 = vadd.f32 %v1233, %v1371
      %v1384 = vadd.f32 %v1234, %v1374
      %s1385 = scalar_lea.vmem %s494, 16
      %v1386 = vld [vmem:[%s1385] sm:$0xff]
      %v1387 = vld [vmem:[%s1385 + $0x10] sm:$0xff]
      %v1388 = vld [vmem:[%s1385 + $0x20] sm:$0xff]
      %v1389 = vld [vmem:[%s1385 + $0x30] sm:$0xff]
      %v1390 = vld [vmem:[%s1385 + $0x40] sm:$0xff]
      %v1391 = vld [vmem:[%s1385 + $0x50] sm:$0xff]
      %v1392 = vld [vmem:[%s1385 + $0x60] sm:$0xff]
      %v1393 = vld [vmem:[%s1385 + $0x70] sm:$0xff]
      %v1394 = vpack.c.bf16 %v1387, %v1386
      %v1395 = vpack.c.bf16 %v1389, %v1388
      %v1396 = vpack.c.bf16 %v1391, %v1390
      %v1397 = vpack.c.bf16 %v1393, %v1392
      %s1398 = scalar_lea.vmem %s4, 384
      %v1399 = vld [vmem:[%s1398] sm:$0xf]
      %v1400 = vld [vmem:[%s1398 + $0x4] sm:$0xf]
      %v1401 = vld [vmem:[%s1398 + $0x8] sm:$0xf]
      %v1402 = vld [vmem:[%s1398 + $0xc] sm:$0xf]
      %v1403 = vld [vmem:[%s1398 + $0x10] sm:$0xf]
      %v1404 = vld [vmem:[%s1398 + $0x14] sm:$0xf]
      %v1405 = vld [vmem:[%s1398 + $0x18] sm:$0xf]
      %v1406 = vld [vmem:[%s1398 + $0x1c] sm:$0xf]
      %v1407 = vld [vmem:[%s1398 + $0x20] sm:$0xf]
      %v1408 = vld [vmem:[%s1398 + $0x24] sm:$0xf]
      %v1409 = vld [vmem:[%s1398 + $0x28] sm:$0xf]
      %v1410 = vld [vmem:[%s1398 + $0x2c] sm:$0xf]
      %v1411 = vld [vmem:[%s1398 + $0x30] sm:$0xf]
      %v1412 = vld [vmem:[%s1398 + $0x34] sm:$0xf]
      %v1413 = vld [vmem:[%s1398 + $0x38] sm:$0xf]
      %v1414 = vld [vmem:[%s1398 + $0x3c] sm:$0xf]
      %v1431 = vunpack.c.l.b16 %v1399
      %v1432 = vunpack.c.l.b16 %v1400
      %v1433 = vunpack.c.l.b16 %v1401
      %v1434 = vunpack.c.l.b16 %v1402
      %v1435 = vunpack.c.l.b16 %v1403
      %v1436 = vunpack.c.l.b16 %v1404
      %v1437 = vunpack.c.l.b16 %v1405
      %v1438 = vunpack.c.l.b16 %v1406
      %v1439 = vunpack.c.l.b16 %v1407
      %v1440 = vunpack.c.l.b16 %v1408
      %v1441 = vunpack.c.l.b16 %v1409
      %v1442 = vunpack.c.l.b16 %v1410
      %v1443 = vunpack.c.l.b16 %v1411
      %v1444 = vunpack.c.l.b16 %v1412
      %v1445 = vunpack.c.l.b16 %v1413
      %v1446 = vunpack.c.l.b16 %v1414
      %v1447 = vpack.c.b16 %v1432, %v1431
      %v1448 = vpack.c.b16 %v1434, %v1433
      %v1449 = vpack.c.b16 %v1436, %v1435
      %v1450 = vpack.c.b16 %v1438, %v1437
      %v1451 = vpack.c.b16 %v1440, %v1439
      %v1452 = vpack.c.b16 %v1442, %v1441
      %v1453 = vpack.c.b16 %v1444, %v1443
      %v1454 = vpack.c.b16 %v1446, %v1445
      %1463 = vmatprep.subr.bf16.mxu0 0
      %1464 = vmatpush1.bf16.msra.mxu0 %v1447
      %1465 = vmatprep.subr.bf16.mxu0 0
      %1466 = vmatpush1.bf16.msra.mxu0 %v1448
      %1467 = vmatprep.subr.bf16.mxu0 0
      %1468 = vmatpush1.bf16.msra.mxu0 %v1449
      %1469 = vmatprep.subr.bf16.mxu0 0
      %1470 = vmatpush1.bf16.msra.mxu0 %v1450
      %1471 = vmatprep.subr.bf16.mxu0 0
      %1472 = vmatpush1.bf16.msra.mxu0 %v1451
      %1473 = vmatprep.subr.bf16.mxu0 0
      %1474 = vmatpush1.bf16.msra.mxu0 %v1452
      %1475 = vmatprep.subr.bf16.mxu0 0
      %1476 = vmatpush1.bf16.msra.mxu0 %v1453
      %1477 = vmatprep.subr.bf16.mxu0 0
      %1478 = vmatpush1.bf16.msra.mxu0 %v1454
      %1479 = vmatprep.subr.bf16.mxu0 0
      %1480 = vmatpush1.bf16.msra.mxu0 0
      %1481 = vmatprep.subr.bf16.mxu0 0
      %1482 = vmatpush1.bf16.msra.mxu0 0
      %1483 = vmatprep.subr.bf16.mxu0 0
      %1484 = vmatpush1.bf16.msra.mxu0 0
      %1485 = vmatprep.subr.bf16.mxu0 0
      %1486 = vmatpush1.bf16.msra.mxu0 0
      %1487 = vmatprep.subr.bf16.mxu0 0
      %1488 = vmatpush1.bf16.msra.mxu0 0
      %1489 = vmatprep.subr.bf16.mxu0 0
      %1490 = vmatpush1.bf16.msra.mxu0 0
      %1491 = vmatprep.subr.bf16.mxu0 0
      %1492 = vmatpush1.bf16.msra.mxu0 0
      %1493 = vmatprep.subr.bf16.mxu0 0
      %1494 = vmatpush1.bf16.msra.mxu0 0
      %1495 = vmatprep.mubr.bf16.mxu0 0
      %1496 = vmatmul.mubr.bf16.gmra.mrb[0].mxu0 %v1394
      %v1497 = vpop.f32.mrb[0].mxu0
      %v1498 = vadd.f32 0.0, %v1497
      %v1499 = vpop.f32.mrb[0].mxu0
      %v1500 = vpop.f32.mrb[0].mxu0
      %v1501 = vadd.f32 0.0, %v1500
      %v1502 = vpop.f32.mrb[0].mxu0
      %1503 = vmatprep.mubr.bf16.mxu0 0
      %1504 = vmatmul.mubr.bf16.gmra.mrb[0].mxu0 %v1395
      %v1505 = vpop.f32.mrb[0].mxu0
      %v1506 = vadd.f32 0.0, %v1505
      %v1507 = vpop.f32.mrb[0].mxu0
      %v1508 = vpop.f32.mrb[0].mxu0
      %v1509 = vadd.f32 0.0, %v1508
      %v1510 = vpop.f32.mrb[0].mxu0
      %1511 = vmatprep.mubr.bf16.mxu0 0
      %1512 = vmatmul.mubr.bf16.gmra.mrb[0].mxu0 %v1396
      %v1513 = vpop.f32.mrb[0].mxu0
      %v1514 = vadd.f32 0.0, %v1513
      %v1515 = vpop.f32.mrb[0].mxu0
      %v1516 = vpop.f32.mrb[0].mxu0
      %v1517 = vadd.f32 0.0, %v1516
      %v1518 = vpop.f32.mrb[0].mxu0
      %1519 = vmatprep.mubr.bf16.mxu0 0
      %1520 = vmatmul.mubr.bf16.gmra.mrb[0].mxu0 %v1397
      %v1521 = vpop.f32.mrb[0].mxu0
      %v1522 = vadd.f32 0.0, %v1521
      %v1523 = vpop.f32.mrb[0].mxu0
      %v1524 = vpop.f32.mrb[0].mxu0
      %v1525 = vadd.f32 0.0, %v1524
      %v1526 = vpop.f32.mrb[0].mxu0
      %1527 = vdwg.mxu0
      %v1528 = vadd.f32 %v1377, %v1498
      %v1529 = vadd.f32 %v1378, %v1501
      %v1530 = vadd.f32 %v1379, %v1506
      %v1531 = vadd.f32 %v1380, %v1509
      %v1532 = vadd.f32 %v1381, %v1514
      %v1533 = vadd.f32 %v1382, %v1517
      %v1534 = vadd.f32 %v1383, %v1522
      %v1535 = vadd.f32 %v1384, %v1525
      %s1536 = scalar_lea.vmem %s489, 16
      %v1537 = vld [vmem:[%s1536 + $0x1] sm:$0xff]
      %v1538 = vld [vmem:[%s1536 + $0x11] sm:$0xff]
      %v1539 = vld [vmem:[%s1536 + $0x21] sm:$0xff]
      %v1540 = vld [vmem:[%s1536 + $0x31] sm:$0xff]
      %v1541 = vld [vmem:[%s1536 + $0x41] sm:$0xff]
      %v1542 = vld [vmem:[%s1536 + $0x51] sm:$0xff]
      %v1543 = vld [vmem:[%s1536 + $0x61] sm:$0xff]
      %v1544 = vld [vmem:[%s1536 + $0x71] sm:$0xff]
      %v1545 = vpack.c.bf16 %v1538, %v1537
      %v1546 = vpack.c.bf16 %v1540, %v1539
      %v1547 = vpack.c.bf16 %v1542, %v1541
      %v1548 = vpack.c.bf16 %v1544, %v1543
      %s1549 = scalar_lea.vmem %s4, 448
      %v1550 = vld [vmem:[%s1549] sm:$0xf]
      %v1551 = vld [vmem:[%s1549 + $0x4] sm:$0xf]
      %v1552 = vld [vmem:[%s1549 + $0x8] sm:$0xf]
      %v1553 = vld [vmem:[%s1549 + $0xc] sm:$0xf]
      %v1554 = vld [vmem:[%s1549 + $0x10] sm:$0xf]
      %v1555 = vld [vmem:[%s1549 + $0x14] sm:$0xf]
      %v1556 = vld [vmem:[%s1549 + $0x18] sm:$0xf]
      %v1557 = vld [vmem:[%s1549 + $0x1c] sm:$0xf]
      %v1558 = vld [vmem:[%s1549 + $0x20] sm:$0xf]
      %v1559 = vld [vmem:[%s1549 + $0x24] sm:$0xf]
      %v1560 = vld [vmem:[%s1549 + $0x28] sm:$0xf]
      %v1561 = vld [vmem:[%s1549 + $0x2c] sm:$0xf]
      %v1562 = vld [vmem:[%s1549 + $0x30] sm:$0xf]
      %v1563 = vld [vmem:[%s1549 + $0x34] sm:$0xf]
      %v1564 = vld [vmem:[%s1549 + $0x38] sm:$0xf]
      %v1565 = vld [vmem:[%s1549 + $0x3c] sm:$0xf]
      %v1582 = vunpack.c.l.b16 %v1550
      %v1583 = vunpack.c.l.b16 %v1551
      %v1584 = vunpack.c.l.b16 %v1552
      %v1585 = vunpack.c.l.b16 %v1553
      %v1586 = vunpack.c.l.b16 %v1554
      %v1587 = vunpack.c.l.b16 %v1555
      %v1588 = vunpack.c.l.b16 %v1556
      %v1589 = vunpack.c.l.b16 %v1557
      %v1590 = vunpack.c.l.b16 %v1558
      %v1591 = vunpack.c.l.b16 %v1559
      %v1592 = vunpack.c.l.b16 %v1560
      %v1593 = vunpack.c.l.b16 %v1561
      %v1594 = vunpack.c.l.b16 %v1562
      %v1595 = vunpack.c.l.b16 %v1563
      %v1596 = vunpack.c.l.b16 %v1564
      %v1597 = vunpack.c.l.b16 %v1565
      %v1598 = vpack.c.b16 %v1583, %v1582
      %v1599 = vpack.c.b16 %v1585, %v1584
      %v1600 = vpack.c.b16 %v1587, %v1586
      %v1601 = vpack.c.b16 %v1589, %v1588
      %v1602 = vpack.c.b16 %v1591, %v1590
      %v1603 = vpack.c.b16 %v1593, %v1592
      %v1604 = vpack.c.b16 %v1595, %v1594
      %v1605 = vpack.c.b16 %v1597, %v1596
      %1614 = vmatprep.subr.bf16.mxu0 0
      %1615 = vmatpush1.bf16.msra.mxu0 %v1598
      %1616 = vmatprep.subr.bf16.mxu0 0
      %1617 = vmatpush1.bf16.msra.mxu0 %v1599
      %1618 = vmatprep.subr.bf16.mxu0 0
      %1619 = vmatpush1.bf16.msra.mxu0 %v1600
      %1620 = vmatprep.subr.bf16.mxu0 0
      %1621 = vmatpush1.bf16.msra.mxu0 %v1601
      %1622 = vmatprep.subr.bf16.mxu0 0
      %1623 = vmatpush1.bf16.msra.mxu0 %v1602
      %1624 = vmatprep.subr.bf16.mxu0 0
      %1625 = vmatpush1.bf16.msra.mxu0 %v1603
      %1626 = vmatprep.subr.bf16.mxu0 0
      %1627 = vmatpush1.bf16.msra.mxu0 %v1604
      %1628 = vmatprep.subr.bf16.mxu0 0
      %1629 = vmatpush1.bf16.msra.mxu0 %v1605
      %1630 = vmatprep.subr.bf16.mxu0 0
      %1631 = vmatpush1.bf16.msra.mxu0 0
      %1632 = vmatprep.subr.bf16.mxu0 0
      %1633 = vmatpush1.bf16.msra.mxu0 0
      %1634 = vmatprep.subr.bf16.mxu0 0
      %1635 = vmatpush1.bf16.msra.mxu0 0
      %1636 = vmatprep.subr.bf16.mxu0 0
      %1637 = vmatpush1.bf16.msra.mxu0 0
      %1638 = vmatprep.subr.bf16.mxu0 0
      %1639 = vmatpush1.bf16.msra.mxu0 0
      %1640 = vmatprep.subr.bf16.mxu0 0
      %1641 = vmatpush1.bf16.msra.mxu0 0
      %1642 = vmatprep.subr.bf16.mxu0 0
      %1643 = vmatpush1.bf16.msra.mxu0 0
      %1644 = vmatprep.subr.bf16.mxu0 0
      %1645 = vmatpush1.bf16.msra.mxu0 0
      %1646 = vmatprep.mubr.bf16.mxu0 0
      %1647 = vmatmul.mubr.bf16.gmra.mrb[0].mxu0 %v1545
      %v1648 = vpop.f32.mrb[0].mxu0
      %v1649 = vadd.f32 0.0, %v1648
      %v1650 = vpop.f32.mrb[0].mxu0
      %v1651 = vpop.f32.mrb[0].mxu0
      %v1652 = vadd.f32 0.0, %v1651
      %v1653 = vpop.f32.mrb[0].mxu0
      %1654 = vmatprep.mubr.bf16.mxu0 0
      %1655 = vmatmul.mubr.bf16.gmra.mrb[0].mxu0 %v1546
      %v1656 = vpop.f32.mrb[0].mxu0
      %v1657 = vadd.f32 0.0, %v1656
      %v1658 = vpop.f32.mrb[0].mxu0
      %v1659 = vpop.f32.mrb[0].mxu0
      %v1660 = vadd.f32 0.0, %v1659
      %v1661 = vpop.f32.mrb[0].mxu0
      %1662 = vmatprep.mubr.bf16.mxu0 0
      %1663 = vmatmul.mubr.bf16.gmra.mrb[0].mxu0 %v1547
      %v1664 = vpop.f32.mrb[0].mxu0
      %v1665 = vadd.f32 0.0, %v1664
      %v1666 = vpop.f32.mrb[0].mxu0
      %v1667 = vpop.f32.mrb[0].mxu0
      %v1668 = vadd.f32 0.0, %v1667
      %v1669 = vpop.f32.mrb[0].mxu0
      %1670 = vmatprep.mubr.bf16.mxu0 0
      %1671 = vmatmul.mubr.bf16.gmra.mrb[0].mxu0 %v1548
      %v1672 = vpop.f32.mrb[0].mxu0
      %v1673 = vadd.f32 0.0, %v1672
      %v1674 = vpop.f32.mrb[0].mxu0
      %v1675 = vpop.f32.mrb[0].mxu0
      %v1676 = vadd.f32 0.0, %v1675
      %v1677 = vpop.f32.mrb[0].mxu0
      %1678 = vdwg.mxu0
      %v1679 = vadd.f32 %v1528, %v1649
      %v1680 = vadd.f32 %v1529, %v1652
      %v1681 = vadd.f32 %v1530, %v1657
      %v1682 = vadd.f32 %v1531, %v1660
      %v1683 = vadd.f32 %v1532, %v1665
      %v1684 = vadd.f32 %v1533, %v1668
      %v1685 = vadd.f32 %v1534, %v1673
      %v1686 = vadd.f32 %v1535, %v1676
      %v1687 = vld [vmem:[%s1385 + $0x1] sm:$0xff]
      %v1688 = vld [vmem:[%s1385 + $0x11] sm:$0xff]
      %v1689 = vld [vmem:[%s1385 + $0x21] sm:$0xff]
      %v1690 = vld [vmem:[%s1385 + $0x31] sm:$0xff]
      %v1691 = vld [vmem:[%s1385 + $0x41] sm:$0xff]
      %v1692 = vld [vmem:[%s1385 + $0x51] sm:$0xff]
      %v1693 = vld [vmem:[%s1385 + $0x61] sm:$0xff]
      %v1694 = vld [vmem:[%s1385 + $0x71] sm:$0xff]
      %v1695 = vpack.c.bf16 %v1688, %v1687
      %v1696 = vpack.c.bf16 %v1690, %v1689
      %v1697 = vpack.c.bf16 %v1692, %v1691
      %v1698 = vpack.c.bf16 %v1694, %v1693
      %s1699 = scalar_lea.vmem %s4, 512
      %v1700 = vld [vmem:[%s1699] sm:$0xf]
      %v1701 = vld [vmem:[%s1699 + $0x4] sm:$0xf]
      %v1702 = vld [vmem:[%s1699 + $0x8] sm:$0xf]
      %v1703 = vld [vmem:[%s1699 + $0xc] sm:$0xf]
      %v1704 = vld [vmem:[%s1699 + $0x10] sm:$0xf]
      %v1705 = vld [vmem:[%s1699 + $0x14] sm:$0xf]
      %v1706 = vld [vmem:[%s1699 + $0x18] sm:$0xf]
      %v1707 = vld [vmem:[%s1699 + $0x1c] sm:$0xf]
      %v1708 = vld [vmem:[%s1699 + $0x20] sm:$0xf]
      %v1709 = vld [vmem:[%s1699 + $0x24] sm:$0xf]
      %v1710 = vld [vmem:[%s1699 + $0x28] sm:$0xf]
      %v1711 = vld [vmem:[%s1699 + $0x2c] sm:$0xf]
      %v1712 = vld [vmem:[%s1699 + $0x30] sm:$0xf]
      %v1713 = vld [vmem:[%s1699 + $0x34] sm:$0xf]
      %v1714 = vld [vmem:[%s1699 + $0x38] sm:$0xf]
      %v1715 = vld [vmem:[%s1699 + $0x3c] sm:$0xf]
      %v1732 = vunpack.c.l.b16 %v1700
      %v1733 = vunpack.c.l.b16 %v1701
      %v1734 = vunpack.c.l.b16 %v1702
      %v1735 = vunpack.c.l.b16 %v1703
      %v1736 = vunpack.c.l.b16 %v1704
      %v1737 = vunpack.c.l.b16 %v1705
      %v1738 = vunpack.c.l.b16 %v1706
      %v1739 = vunpack.c.l.b16 %v1707
      %v1740 = vunpack.c.l.b16 %v1708
      %v1741 = vunpack.c.l.b16 %v1709
      %v1742 = vunpack.c.l.b16 %v1710
      %v1743 = vunpack.c.l.b16 %v1711
      %v1744 = vunpack.c.l.b16 %v1712
      %v1745 = vunpack.c.l.b16 %v1713
      %v1746 = vunpack.c.l.b16 %v1714
      %v1747 = vunpack.c.l.b16 %v1715
      %v1748 = vpack.c.b16 %v1733, %v1732
      %v1749 = vpack.c.b16 %v1735, %v1734
      %v1750 = vpack.c.b16 %v1737, %v1736
      %v1751 = vpack.c.b16 %v1739, %v1738
      %v1752 = vpack.c.b16 %v1741, %v1740
      %v1753 = vpack.c.b16 %v1743, %v1742
      %v1754 = vpack.c.b16 %v1745, %v1744
      %v1755 = vpack.c.b16 %v1747, %v1746
      %1764 = vmatprep.subr.bf16.mxu0 0
      %1765 = vmatpush1.bf16.msra.mxu0 %v1748
      %1766 = vmatprep.subr.bf16.mxu0 0
      %1767 = vmatpush1.bf16.msra.mxu0 %v1749
      %1768 = vmatprep.subr.bf16.mxu0 0
      %1769 = vmatpush1.bf16.msra.mxu0 %v1750
      %1770 = vmatprep.subr.bf16.mxu0 0
      %1771 = vmatpush1.bf16.msra.mxu0 %v1751
      %1772 = vmatprep.subr.bf16.mxu0 0
      %1773 = vmatpush1.bf16.msra.mxu0 %v1752
      %1774 = vmatprep.subr.bf16.mxu0 0
      %1775 = vmatpush1.bf16.msra.mxu0 %v1753
      %1776 = vmatprep.subr.bf16.mxu0 0
      %1777 = vmatpush1.bf16.msra.mxu0 %v1754
      %1778 = vmatprep.subr.bf16.mxu0 0
      %1779 = vmatpush1.bf16.msra.mxu0 %v1755
      %1780 = vmatprep.subr.bf16.mxu0 0
      %1781 = vmatpush1.bf16.msra.mxu0 0
      %1782 = vmatprep.subr.bf16.mxu0 0
      %1783 = vmatpush1.bf16.msra.mxu0 0
      %1784 = vmatprep.subr.bf16.mxu0 0
      %1785 = vmatpush1.bf16.msra.mxu0 0
      %1786 = vmatprep.subr.bf16.mxu0 0
      %1787 = vmatpush1.bf16.msra.mxu0 0
      %1788 = vmatprep.subr.bf16.mxu0 0
      %1789 = vmatpush1.bf16.msra.mxu0 0
      %1790 = vmatprep.subr.bf16.mxu0 0
      %1791 = vmatpush1.bf16.msra.mxu0 0
      %1792 = vmatprep.subr.bf16.mxu0 0
      %1793 = vmatpush1.bf16.msra.mxu0 0
      %1794 = vmatprep.subr.bf16.mxu0 0
      %1795 = vmatpush1.bf16.msra.mxu0 0
      %1796 = vmatprep.mubr.bf16.mxu0 0
      %1797 = vmatmul.mubr.bf16.gmra.mrb[0].mxu0 %v1695
      %v1798 = vpop.f32.mrb[0].mxu0
      %v1799 = vadd.f32 0.0, %v1798
      %v1800 = vpop.f32.mrb[0].mxu0
      %v1801 = vpop.f32.mrb[0].mxu0
      %v1802 = vadd.f32 0.0, %v1801
      %v1803 = vpop.f32.mrb[0].mxu0
      %1804 = vmatprep.mubr.bf16.mxu0 0
      %1805 = vmatmul.mubr.bf16.gmra.mrb[0].mxu0 %v1696
      %v1806 = vpop.f32.mrb[0].mxu0
      %v1807 = vadd.f32 0.0, %v1806
      %v1808 = vpop.f32.mrb[0].mxu0
      %v1809 = vpop.f32.mrb[0].mxu0
      %v1810 = vadd.f32 0.0, %v1809
      %v1811 = vpop.f32.mrb[0].mxu0
      %1812 = vmatprep.mubr.bf16.mxu0 0
      %1813 = vmatmul.mubr.bf16.gmra.mrb[0].mxu0 %v1697
      %v1814 = vpop.f32.mrb[0].mxu0
      %v1815 = vadd.f32 0.0, %v1814
      %v1816 = vpop.f32.mrb[0].mxu0
      %v1817 = vpop.f32.mrb[0].mxu0
      %v1818 = vadd.f32 0.0, %v1817
      %v1819 = vpop.f32.mrb[0].mxu0
      %1820 = vmatprep.mubr.bf16.mxu0 0
      %1821 = vmatmul.mubr.bf16.gmra.mrb[0].mxu0 %v1698
      %v1822 = vpop.f32.mrb[0].mxu0
      %v1823 = vadd.f32 0.0, %v1822
      %v1824 = vpop.f32.mrb[0].mxu0
      %v1825 = vpop.f32.mrb[0].mxu0
      %v1826 = vadd.f32 0.0, %v1825
      %v1827 = vpop.f32.mrb[0].mxu0
      %1828 = vdwg.mxu0
      %v1829 = vadd.f32 %v1679, %v1799
      %v1830 = vadd.f32 %v1680, %v1802
      %v1831 = vadd.f32 %v1681, %v1807
      %v1832 = vadd.f32 %v1682, %v1810
      %v1833 = vadd.f32 %v1683, %v1815
      %v1834 = vadd.f32 %v1684, %v1818
      %v1835 = vadd.f32 %v1685, %v1823
      %v1836 = vadd.f32 %v1686, %v1826
      %v1837 = vld [vmem:[%s5] sm:$0x1]
      %v1839 = vlaneseq
      %v1840 = vshrl.u32 %v1839, 7
      %v1841 = vsub.s32 0, %v1840
      %v1842 = vrot.slane %v1837, %v1841
      %v1844 = vmul.f32 %v1829, %v1842
      %v1845 = vmul.f32 %v1830, %v1842
      %v1846 = vmul.f32 %v1831, %v1842
      %v1847 = vmul.f32 %v1832, %v1842
      %v1848 = vmul.f32 %v1833, %v1842
      %v1849 = vmul.f32 %v1834, %v1842
      %v1850 = vmul.f32 %v1835, %v1842
      %v1851 = vmul.f32 %v1836, %v1842
      %v1852 = vld [vmem:[%s6] sm:$0x1]
      %v1854 = vlaneseq
      %v1855 = vshrl.u32 %v1854, 7
      %v1856 = vsub.s32 0, %v1855
      %v1857 = vrot.slane %v1852, %v1856
      %v1859 = vadd.f32 %v1844, %v1857
      %v1860 = vadd.f32 %v1845, %v1857
      %v1861 = vadd.f32 %v1846, %v1857
      %v1862 = vadd.f32 %v1847, %v1857
      %v1863 = vadd.f32 %v1848, %v1857
      %v1864 = vadd.f32 %v1849, %v1857
      %v1865 = vadd.f32 %v1850, %v1857
      %v1866 = vadd.f32 %v1851, %v1857
      %v1867 = vmax.f32 %v1859, 0.0
      %v1868 = vmax.f32 %v1860, 0.0
      %v1869 = vmax.f32 %v1861, 0.0
      %v1870 = vmax.f32 %v1862, 0.0
      %v1871 = vmax.f32 %v1863, 0.0
      %v1872 = vmax.f32 %v1864, 0.0
      %v1873 = vmax.f32 %v1865, 0.0
      %v1874 = vmax.f32 %v1866, 0.0
      %1875 = vst [vmem:[#allocation2] sm:$0xff] 0.0
      %1876 = vst [vmem:[#allocation2 + $0x8] sm:$0x3] 0.0
      %1877 = vst [vmem:[#allocation2 + $0x10] sm:$0xff] 0.0
      %1878 = vst [vmem:[#allocation2 + $0x18] sm:$0x3] 0.0
      %1879 = vst [vmem:[#allocation2 + $0x20] sm:$0xff] 0.0
      %1880 = vst [vmem:[#allocation2 + $0x28] sm:$0x3] 0.0
      %1881 = vst [vmem:[#allocation2 + $0x30] sm:$0xff] 0.0
      %1882 = vst [vmem:[#allocation2 + $0x38] sm:$0x3] 0.0
      %1883 = vst [vmem:[#allocation2 + $0x40] sm:$0xff] 0.0
      %1884 = vst [vmem:[#allocation2 + $0x48] sm:$0x3] 0.0
      %1885 = vst [vmem:[#allocation2 + $0x50] sm:$0xff] 0.0
      %1886 = vst [vmem:[#allocation2 + $0x58] sm:$0x3] 0.0
      %1887 = vst [vmem:[#allocation2 + $0x60] sm:$0xff] 0.0
      %1888 = vst [vmem:[#allocation2 + $0x68] sm:$0x3] 0.0
      %1889 = vst [vmem:[#allocation2 + $0x70] sm:$0xff] 0.0
      %1890 = vst [vmem:[#allocation2 + $0x78] sm:$0x3] 0.0
      %1891 = vst [vmem:[#allocation2 + $0x80] sm:$0xff] 0.0
      %1892 = vst [vmem:[#allocation2 + $0x88] sm:$0x3] 0.0
      %1893 = vst [vmem:[#allocation2 + $0x90] sm:$0xff] 0.0
      %1894 = vst [vmem:[#allocation2 + $0x98] sm:$0x3] 0.0
      %s1895 = scalar_lea.vmem [#allocation2], 16
      %1896 = vst [vmem:[%s1895 + $0x1] sm:$0xff] %v1867
      %1897 = vst [vmem:[%s1895 + $0x11] sm:$0xff] %v1868
      %1898 = vst [vmem:[%s1895 + $0x21] sm:$0xff] %v1869
      %1899 = vst [vmem:[%s1895 + $0x31] sm:$0xff] %v1870
      %1900 = vst [vmem:[%s1895 + $0x41] sm:$0xff] %v1871
      %1901 = vst [vmem:[%s1895 + $0x51] sm:$0xff] %v1872
      %1902 = vst [vmem:[%s1895 + $0x61] sm:$0xff] %v1873
      %1903 = vst [vmem:[%s1895 + $0x71] sm:$0xff] %v1874
      %v1904 = vld [vmem:[#allocation2] sm:$0xff]
      %v1905 = vld [vmem:[#allocation2 + $0x10] sm:$0xff]
      %v1906 = vld [vmem:[#allocation2 + $0x20] sm:$0xff]
      %v1907 = vld [vmem:[#allocation2 + $0x30] sm:$0xff]
      %v1908 = vld [vmem:[#allocation2 + $0x40] sm:$0xff]
      %v1909 = vld [vmem:[#allocation2 + $0x50] sm:$0xff]
      %v1910 = vld [vmem:[#allocation2 + $0x60] sm:$0xff]
      %v1911 = vld [vmem:[#allocation2 + $0x70] sm:$0xff]
      %v1912 = vpack.c.bf16 %v1905, %v1904
      %v1913 = vpack.c.bf16 %v1907, %v1906
      %v1914 = vpack.c.bf16 %v1909, %v1908
      %v1915 = vpack.c.bf16 %v1911, %v1910
      %v1916 = vld [vmem:[%s7] sm:$0xf]
      %v1917 = vld [vmem:[%s7 + $0x4] sm:$0xf]
      %v1918 = vld [vmem:[%s7 + $0x8] sm:$0xf]
      %v1919 = vld [vmem:[%s7 + $0xc] sm:$0xf]
      %v1920 = vld [vmem:[%s7 + $0x10] sm:$0xf]
      %v1921 = vld [vmem:[%s7 + $0x14] sm:$0xf]
      %v1922 = vld [vmem:[%s7 + $0x18] sm:$0xf]
      %v1923 = vld [vmem:[%s7 + $0x1c] sm:$0xf]
      %v1924 = vld [vmem:[%s7 + $0x20] sm:$0xf]
      %v1925 = vld [vmem:[%s7 + $0x24] sm:$0xf]
      %v1926 = vld [vmem:[%s7 + $0x28] sm:$0xf]
      %v1927 = vld [vmem:[%s7 + $0x2c] sm:$0xf]
      %v1928 = vld [vmem:[%s7 + $0x30] sm:$0xf]
      %v1929 = vld [vmem:[%s7 + $0x34] sm:$0xf]
      %v1930 = vld [vmem:[%s7 + $0x38] sm:$0xf]
      %v1931 = vld [vmem:[%s7 + $0x3c] sm:$0xf]
      %v1932 = vld [vmem:[#allocation2 + $0x1] sm:$0xff]
      %v1933 = vld [vmem:[#allocation2 + $0x11] sm:$0xff]
      %v1934 = vld [vmem:[#allocation2 + $0x21] sm:$0xff]
      %v1935 = vld [vmem:[#allocation2 + $0x31] sm:$0xff]
      %v1936 = vld [vmem:[#allocation2 + $0x41] sm:$0xff]
      %v1937 = vld [vmem:[#allocation2 + $0x51] sm:$0xff]
      %v1938 = vld [vmem:[#allocation2 + $0x61] sm:$0xff]
      %v1939 = vld [vmem:[#allocation2 + $0x71] sm:$0xff]
      %v1940 = vpack.c.bf16 %v1933, %v1932
      %v1941 = vpack.c.bf16 %v1935, %v1934
      %v1942 = vpack.c.bf16 %v1937, %v1936
      %v1943 = vpack.c.bf16 %v1939, %v1938
      %s1944 = scalar_lea.vmem %s7, 64
      %v1945 = vld [vmem:[%s1944] sm:$0xf]
      %v1946 = vld [vmem:[%s1944 + $0x4] sm:$0xf]
      %v1947 = vld [vmem:[%s1944 + $0x8] sm:$0xf]
      %v1948 = vld [vmem:[%s1944 + $0xc] sm:$0xf]
      %v1949 = vld [vmem:[%s1944 + $0x10] sm:$0xf]
      %v1950 = vld [vmem:[%s1944 + $0x14] sm:$0xf]
      %v1951 = vld [vmem:[%s1944 + $0x18] sm:$0xf]
      %v1952 = vld [vmem:[%s1944 + $0x1c] sm:$0xf]
      %v1953 = vld [vmem:[%s1944 + $0x20] sm:$0xf]
      %v1954 = vld [vmem:[%s1944 + $0x24] sm:$0xf]
      %v1955 = vld [vmem:[%s1944 + $0x28] sm:$0xf]
      %v1956 = vld [vmem:[%s1944 + $0x2c] sm:$0xf]
      %v1957 = vld [vmem:[%s1944 + $0x30] sm:$0xf]
      %v1958 = vld [vmem:[%s1944 + $0x34] sm:$0xf]
      %v1959 = vld [vmem:[%s1944 + $0x38] sm:$0xf]
      %v1960 = vld [vmem:[%s1944 + $0x3c] sm:$0xf]
      %v1977 = vunpack.c.l.b16 %v1945
      %v1978 = vunpack.c.l.b16 %v1946
      %v1979 = vunpack.c.l.b16 %v1947
      %v1980 = vunpack.c.l.b16 %v1948
      %v1981 = vunpack.c.l.b16 %v1949
      %v1982 = vunpack.c.l.b16 %v1950
      %v1983 = vunpack.c.l.b16 %v1951
      %v1984 = vunpack.c.l.b16 %v1952
      %v1985 = vunpack.c.l.b16 %v1953
      %v1986 = vunpack.c.l.b16 %v1954
      %v1987 = vunpack.c.l.b16 %v1955
      %v1988 = vunpack.c.l.b16 %v1956
      %v1989 = vunpack.c.l.b16 %v1957
      %v1990 = vunpack.c.l.b16 %v1958
      %v1991 = vunpack.c.l.b16 %v1959
      %v1992 = vunpack.c.l.b16 %v1960
      %v1993 = vpack.c.b16 %v1978, %v1977
      %v1994 = vpack.c.b16 %v1980, %v1979
      %v1995 = vpack.c.b16 %v1982, %v1981
      %v1996 = vpack.c.b16 %v1984, %v1983
      %v1997 = vpack.c.b16 %v1986, %v1985
      %v1998 = vpack.c.b16 %v1988, %v1987
      %v1999 = vpack.c.b16 %v1990, %v1989
      %v2000 = vpack.c.b16 %v1992, %v1991
      %2009 = vmatprep.subr.bf16.mxu0 0
      %2010 = vmatpush1.bf16.msra.mxu0 %v1993
      %2011 = vmatprep.subr.bf16.mxu0 0
      %2012 = vmatpush1.bf16.msra.mxu0 %v1994
      %2013 = vmatprep.subr.bf16.mxu0 0
      %2014 = vmatpush1.bf16.msra.mxu0 %v1995
      %2015 = vmatprep.subr.bf16.mxu0 0
      %2016 = vmatpush1.bf16.msra.mxu0 %v1996
      %2017 = vmatprep.subr.bf16.mxu0 0
      %2018 = vmatpush1.bf16.msra.mxu0 %v1997
      %2019 = vmatprep.subr.bf16.mxu0 0
      %2020 = vmatpush1.bf16.msra.mxu0 %v1998
      %2021 = vmatprep.subr.bf16.mxu0 0
      %2022 = vmatpush1.bf16.msra.mxu0 %v1999
      %2023 = vmatprep.subr.bf16.mxu0 0
      %2024 = vmatpush1.bf16.msra.mxu0 %v2000
      %2025 = vmatprep.subr.bf16.mxu0 0
      %2026 = vmatpush1.bf16.msra.mxu0 0
      %2027 = vmatprep.subr.bf16.mxu0 0
      %2028 = vmatpush1.bf16.msra.mxu0 0
      %2029 = vmatprep.subr.bf16.mxu0 0
      %2030 = vmatpush1.bf16.msra.mxu0 0
      %2031 = vmatprep.subr.bf16.mxu0 0
      %2032 = vmatpush1.bf16.msra.mxu0 0
      %2033 = vmatprep.subr.bf16.mxu0 0
      %2034 = vmatpush1.bf16.msra.mxu0 0
      %2035 = vmatprep.subr.bf16.mxu0 0
      %2036 = vmatpush1.bf16.msra.mxu0 0
      %2037 = vmatprep.subr.bf16.mxu0 0
      %2038 = vmatpush1.bf16.msra.mxu0 0
      %2039 = vmatprep.subr.bf16.mxu0 0
      %2040 = vmatpush1.bf16.msra.mxu0 0
      %2041 = vmatprep.mubr.bf16.mxu0 0
      %2042 = vmatmul.mubr.bf16.gmra.mrb[0].mxu0 %v1940
      %v2043 = vpop.f32.mrb[0].mxu0
      %v2044 = vadd.f32 0.0, %v2043
      %v2045 = vpop.f32.mrb[0].mxu0
      %v2046 = vpop.f32.mrb[0].mxu0
      %v2047 = vadd.f32 0.0, %v2046
      %v2048 = vpop.f32.mrb[0].mxu0
      %2049 = vmatprep.mubr.bf16.mxu0 0
      %2050 = vmatmul.mubr.bf16.gmra.mrb[0].mxu0 %v1941
      %v2051 = vpop.f32.mrb[0].mxu0
      %v2052 = vadd.f32 0.0, %v2051
      %v2053 = vpop.f32.mrb[0].mxu0
      %v2054 = vpop.f32.mrb[0].mxu0
      %v2055 = vadd.f32 0.0, %v2054
      %v2056 = vpop.f32.mrb[0].mxu0
      %2057 = vmatprep.mubr.bf16.mxu0 0
      %2058 = vmatmul.mubr.bf16.gmra.mrb[0].mxu0 %v1942
      %v2059 = vpop.f32.mrb[0].mxu0
      %v2060 = vadd.f32 0.0, %v2059
      %v2061 = vpop.f32.mrb[0].mxu0
      %v2062 = vpop.f32.mrb[0].mxu0
      %v2063 = vadd.f32 0.0, %v2062
      %v2064 = vpop.f32.mrb[0].mxu0
      %2065 = vmatprep.mubr.bf16.mxu0 0
      %2066 = vmatmul.mubr.bf16.gmra.mrb[0].mxu0 %v1943
      %v2067 = vpop.f32.mrb[0].mxu0
      %v2068 = vadd.f32 0.0, %v2067
      %v2069 = vpop.f32.mrb[0].mxu0
      %v2070 = vpop.f32.mrb[0].mxu0
      %v2071 = vadd.f32 0.0, %v2070
      %v2072 = vpop.f32.mrb[0].mxu0
      %2073 = vdwg.mxu0
      %v2090 = vunpack.c.l.b16 %v1916
      %v2091 = vunpack.c.l.b16 %v1917
      %v2092 = vunpack.c.l.b16 %v1918
      %v2093 = vunpack.c.l.b16 %v1919
      %v2094 = vunpack.c.l.b16 %v1920
      %v2095 = vunpack.c.l.b16 %v1921
      %v2096 = vunpack.c.l.b16 %v1922
      %v2097 = vunpack.c.l.b16 %v1923
      %v2098 = vunpack.c.l.b16 %v1924
      %v2099 = vunpack.c.l.b16 %v1925
      %v2100 = vunpack.c.l.b16 %v1926
      %v2101 = vunpack.c.l.b16 %v1927
      %v2102 = vunpack.c.l.b16 %v1928
      %v2103 = vunpack.c.l.b16 %v1929
      %v2104 = vunpack.c.l.b16 %v1930
      %v2105 = vunpack.c.l.b16 %v1931
      %v2106 = vpack.c.b16 %v2091, %v2090
      %v2107 = vpack.c.b16 %v2093, %v2092
      %v2108 = vpack.c.b16 %v2095, %v2094
      %v2109 = vpack.c.b16 %v2097, %v2096
      %v2110 = vpack.c.b16 %v2099, %v2098
      %v2111 = vpack.c.b16 %v2101, %v2100
      %v2112 = vpack.c.b16 %v2103, %v2102
      %v2113 = vpack.c.b16 %v2105, %v2104
      %2122 = vmatprep.subr.bf16.mxu0 0
      %2123 = vmatpush1.bf16.msra.mxu0 %v2106
      %2124 = vmatprep.subr.bf16.mxu0 0
      %2125 = vmatpush1.bf16.msra.mxu0 %v2107
      %2126 = vmatprep.subr.bf16.mxu0 0
      %2127 = vmatpush1.bf16.msra.mxu0 %v2108
      %2128 = vmatprep.subr.bf16.mxu0 0
      %2129 = vmatpush1.bf16.msra.mxu0 %v2109
      %2130 = vmatprep.subr.bf16.mxu0 0
      %2131 = vmatpush1.bf16.msra.mxu0 %v2110
      %2132 = vmatprep.subr.bf16.mxu0 0
      %2133 = vmatpush1.bf16.msra.mxu0 %v2111
      %2134 = vmatprep.subr.bf16.mxu0 0
      %2135 = vmatpush1.bf16.msra.mxu0 %v2112
      %2136 = vmatprep.subr.bf16.mxu0 0
      %2137 = vmatpush1.bf16.msra.mxu0 %v2113
      %2138 = vmatprep.subr.bf16.mxu0 0
      %2139 = vmatpush1.bf16.msra.mxu0 0
      %2140 = vmatprep.subr.bf16.mxu0 0
      %2141 = vmatpush1.bf16.msra.mxu0 0
      %2142 = vmatprep.subr.bf16.mxu0 0
      %2143 = vmatpush1.bf16.msra.mxu0 0
      %2144 = vmatprep.subr.bf16.mxu0 0
      %2145 = vmatpush1.bf16.msra.mxu0 0
      %2146 = vmatprep.subr.bf16.mxu0 0
      %2147 = vmatpush1.bf16.msra.mxu0 0
      %2148 = vmatprep.subr.bf16.mxu0 0
      %2149 = vmatpush1.bf16.msra.mxu0 0
      %2150 = vmatprep.subr.bf16.mxu0 0
      %2151 = vmatpush1.bf16.msra.mxu0 0
      %2152 = vmatprep.subr.bf16.mxu0 0
      %2153 = vmatpush1.bf16.msra.mxu0 0
      %2154 = vmatprep.mubr.bf16.mxu0 0
      %2155 = vmatmul.mubr.bf16.gmra.mrb[0].mxu0 %v1912
      %v2156 = vpop.f32.mrb[0].mxu0
      %v2157 = vadd.f32 %v2044, %v2156
      %v2158 = vpop.f32.mrb[0].mxu0
      %v2159 = vpop.f32.mrb[0].mxu0
      %v2160 = vadd.f32 %v2047, %v2159
      %v2161 = vpop.f32.mrb[0].mxu0
      %2162 = vmatprep.mubr.bf16.mxu0 0
      %2163 = vmatmul.mubr.bf16.gmra.mrb[0].mxu0 %v1913
      %v2164 = vpop.f32.mrb[0].mxu0
      %v2165 = vadd.f32 %v2052, %v2164
      %v2166 = vpop.f32.mrb[0].mxu0
      %v2167 = vpop.f32.mrb[0].mxu0
      %v2168 = vadd.f32 %v2055, %v2167
      %v2169 = vpop.f32.mrb[0].mxu0
      %2170 = vmatprep.mubr.bf16.mxu0 0
      %2171 = vmatmul.mubr.bf16.gmra.mrb[0].mxu0 %v1914
      %v2172 = vpop.f32.mrb[0].mxu0
      %v2173 = vadd.f32 %v2060, %v2172
      %v2174 = vpop.f32.mrb[0].mxu0
      %v2175 = vpop.f32.mrb[0].mxu0
      %v2176 = vadd.f32 %v2063, %v2175
      %v2177 = vpop.f32.mrb[0].mxu0
      %2178 = vmatprep.mubr.bf16.mxu0 0
      %2179 = vmatmul.mubr.bf16.gmra.mrb[0].mxu0 %v1915
      %v2180 = vpop.f32.mrb[0].mxu0
      %v2181 = vadd.f32 %v2068, %v2180
      %v2182 = vpop.f32.mrb[0].mxu0
      %v2183 = vpop.f32.mrb[0].mxu0
      %v2184 = vadd.f32 %v2071, %v2183
      %v2185 = vpop.f32.mrb[0].mxu0
      %2186 = vdwg.mxu0
      %v2187 = vld [vmem:[#allocation2 + $0x2] sm:$0xff]
      %v2188 = vld [vmem:[#allocation2 + $0x12] sm:$0xff]
      %v2189 = vld [vmem:[#allocation2 + $0x22] sm:$0xff]
      %v2190 = vld [vmem:[#allocation2 + $0x32] sm:$0xff]
      %v2191 = vld [vmem:[#allocation2 + $0x42] sm:$0xff]
      %v2192 = vld [vmem:[#allocation2 + $0x52] sm:$0xff]
      %v2193 = vld [vmem:[#allocation2 + $0x62] sm:$0xff]
      %v2194 = vld [vmem:[#allocation2 + $0x72] sm:$0xff]
      %v2195 = vpack.c.bf16 %v2188, %v2187
      %v2196 = vpack.c.bf16 %v2190, %v2189
      %v2197 = vpack.c.bf16 %v2192, %v2191
      %v2198 = vpack.c.bf16 %v2194, %v2193
      %s2199 = scalar_lea.vmem %s7, 128
      %v2200 = vld [vmem:[%s2199] sm:$0xf]
      %v2201 = vld [vmem:[%s2199 + $0x4] sm:$0xf]
      %v2202 = vld [vmem:[%s2199 + $0x8] sm:$0xf]
      %v2203 = vld [vmem:[%s2199 + $0xc] sm:$0xf]
      %v2204 = vld [vmem:[%s2199 + $0x10] sm:$0xf]
      %v2205 = vld [vmem:[%s2199 + $0x14] sm:$0xf]
      %v2206 = vld [vmem:[%s2199 + $0x18] sm:$0xf]
      %v2207 = vld [vmem:[%s2199 + $0x1c] sm:$0xf]
      %v2208 = vld [vmem:[%s2199 + $0x20] sm:$0xf]
      %v2209 = vld [vmem:[%s2199 + $0x24] sm:$0xf]
      %v2210 = vld [vmem:[%s2199 + $0x28] sm:$0xf]
      %v2211 = vld [vmem:[%s2199 + $0x2c] sm:$0xf]
      %v2212 = vld [vmem:[%s2199 + $0x30] sm:$0xf]
      %v2213 = vld [vmem:[%s2199 + $0x34] sm:$0xf]
      %v2214 = vld [vmem:[%s2199 + $0x38] sm:$0xf]
      %v2215 = vld [vmem:[%s2199 + $0x3c] sm:$0xf]
      %v2232 = vunpack.c.l.b16 %v2200
      %v2233 = vunpack.c.l.b16 %v2201
      %v2234 = vunpack.c.l.b16 %v2202
      %v2235 = vunpack.c.l.b16 %v2203
      %v2236 = vunpack.c.l.b16 %v2204
      %v2237 = vunpack.c.l.b16 %v2205
      %v2238 = vunpack.c.l.b16 %v2206
      %v2239 = vunpack.c.l.b16 %v2207
      %v2240 = vunpack.c.l.b16 %v2208
      %v2241 = vunpack.c.l.b16 %v2209
      %v2242 = vunpack.c.l.b16 %v2210
      %v2243 = vunpack.c.l.b16 %v2211
      %v2244 = vunpack.c.l.b16 %v2212
      %v2245 = vunpack.c.l.b16 %v2213
      %v2246 = vunpack.c.l.b16 %v2214
      %v2247 = vunpack.c.l.b16 %v2215
      %v2248 = vpack.c.b16 %v2233, %v2232
      %v2249 = vpack.c.b16 %v2235, %v2234
      %v2250 = vpack.c.b16 %v2237, %v2236
      %v2251 = vpack.c.b16 %v2239, %v2238
      %v2252 = vpack.c.b16 %v2241, %v2240
      %v2253 = vpack.c.b16 %v2243, %v2242
      %v2254 = vpack.c.b16 %v2245, %v2244
      %v2255 = vpack.c.b16 %v2247, %v2246
      %2264 = vmatprep.subr.bf16.mxu0 0
      %2265 = vmatpush1.bf16.msra.mxu0 %v2248
      %2266 = vmatprep.subr.bf16.mxu0 0
      %2267 = vmatpush1.bf16.msra.mxu0 %v2249
      %2268 = vmatprep.subr.bf16.mxu0 0
      %2269 = vmatpush1.bf16.msra.mxu0 %v2250
      %2270 = vmatprep.subr.bf16.mxu0 0
      %2271 = vmatpush1.bf16.msra.mxu0 %v2251
      %2272 = vmatprep.subr.bf16.mxu0 0
      %2273 = vmatpush1.bf16.msra.mxu0 %v2252
      %2274 = vmatprep.subr.bf16.mxu0 0
      %2275 = vmatpush1.bf16.msra.mxu0 %v2253
      %2276 = vmatprep.subr.bf16.mxu0 0
      %2277 = vmatpush1.bf16.msra.mxu0 %v2254
      %2278 = vmatprep.subr.bf16.mxu0 0
      %2279 = vmatpush1.bf16.msra.mxu0 %v2255
      %2280 = vmatprep.subr.bf16.mxu0 0
      %2281 = vmatpush1.bf16.msra.mxu0 0
      %2282 = vmatprep.subr.bf16.mxu0 0
      %2283 = vmatpush1.bf16.msra.mxu0 0
      %2284 = vmatprep.subr.bf16.mxu0 0
      %2285 = vmatpush1.bf16.msra.mxu0 0
      %2286 = vmatprep.subr.bf16.mxu0 0
      %2287 = vmatpush1.bf16.msra.mxu0 0
      %2288 = vmatprep.subr.bf16.mxu0 0
      %2289 = vmatpush1.bf16.msra.mxu0 0
      %2290 = vmatprep.subr.bf16.mxu0 0
      %2291 = vmatpush1.bf16.msra.mxu0 0
      %2292 = vmatprep.subr.bf16.mxu0 0
      %2293 = vmatpush1.bf16.msra.mxu0 0
      %2294 = vmatprep.subr.bf16.mxu0 0
      %2295 = vmatpush1.bf16.msra.mxu0 0
      %2296 = vmatprep.mubr.bf16.mxu0 0
      %2297 = vmatmul.mubr.bf16.gmra.mrb[0].mxu0 %v2195
      %v2298 = vpop.f32.mrb[0].mxu0
      %v2299 = vadd.f32 0.0, %v2298
      %v2300 = vpop.f32.mrb[0].mxu0
      %v2301 = vpop.f32.mrb[0].mxu0
      %v2302 = vadd.f32 0.0, %v2301
      %v2303 = vpop.f32.mrb[0].mxu0
      %2304 = vmatprep.mubr.bf16.mxu0 0
      %2305 = vmatmul.mubr.bf16.gmra.mrb[0].mxu0 %v2196
      %v2306 = vpop.f32.mrb[0].mxu0
      %v2307 = vadd.f32 0.0, %v2306
      %v2308 = vpop.f32.mrb[0].mxu0
      %v2309 = vpop.f32.mrb[0].mxu0
      %v2310 = vadd.f32 0.0, %v2309
      %v2311 = vpop.f32.mrb[0].mxu0
      %2312 = vmatprep.mubr.bf16.mxu0 0
      %2313 = vmatmul.mubr.bf16.gmra.mrb[0].mxu0 %v2197
      %v2314 = vpop.f32.mrb[0].mxu0
      %v2315 = vadd.f32 0.0, %v2314
      %v2316 = vpop.f32.mrb[0].mxu0
      %v2317 = vpop.f32.mrb[0].mxu0
      %v2318 = vadd.f32 0.0, %v2317
      %v2319 = vpop.f32.mrb[0].mxu0
      %2320 = vmatprep.mubr.bf16.mxu0 0
      %2321 = vmatmul.mubr.bf16.gmra.mrb[0].mxu0 %v2198
      %v2322 = vpop.f32.mrb[0].mxu0
      %v2323 = vadd.f32 0.0, %v2322
      %v2324 = vpop.f32.mrb[0].mxu0
      %v2325 = vpop.f32.mrb[0].mxu0
      %v2326 = vadd.f32 0.0, %v2325
      %v2327 = vpop.f32.mrb[0].mxu0
      %2328 = vdwg.mxu0
      %v2329 = vadd.f32 %v2157, %v2299
      %v2330 = vadd.f32 %v2160, %v2302
      %v2331 = vadd.f32 %v2165, %v2307
      %v2332 = vadd.f32 %v2168, %v2310
      %v2333 = vadd.f32 %v2173, %v2315
      %v2334 = vadd.f32 %v2176, %v2318
      %v2335 = vadd.f32 %v2181, %v2323
      %v2336 = vadd.f32 %v2184, %v2326
      %v2337 = vld [vmem:[%s1895] sm:$0xff]
      %v2338 = vld [vmem:[%s1895 + $0x10] sm:$0xff]
      %v2339 = vld [vmem:[%s1895 + $0x20] sm:$0xff]
      %v2340 = vld [vmem:[%s1895 + $0x30] sm:$0xff]
      %v2341 = vld [vmem:[%s1895 + $0x40] sm:$0xff]
      %v2342 = vld [vmem:[%s1895 + $0x50] sm:$0xff]
      %v2343 = vld [vmem:[%s1895 + $0x60] sm:$0xff]
      %v2344 = vld [vmem:[%s1895 + $0x70] sm:$0xff]
      %v2345 = vpack.c.bf16 %v2338, %v2337
      %v2346 = vpack.c.bf16 %v2340, %v2339
      %v2347 = vpack.c.bf16 %v2342, %v2341
      %v2348 = vpack.c.bf16 %v2344, %v2343
      %s2349 = scalar_lea.vmem %s7, 192
      %v2350 = vld [vmem:[%s2349] sm:$0xf]
      %v2351 = vld [vmem:[%s2349 + $0x4] sm:$0xf]
      %v2352 = vld [vmem:[%s2349 + $0x8] sm:$0xf]
      %v2353 = vld [vmem:[%s2349 + $0xc] sm:$0xf]
      %v2354 = vld [vmem:[%s2349 + $0x10] sm:$0xf]
      %v2355 = vld [vmem:[%s2349 + $0x14] sm:$0xf]
      %v2356 = vld [vmem:[%s2349 + $0x18] sm:$0xf]
      %v2357 = vld [vmem:[%s2349 + $0x1c] sm:$0xf]
      %v2358 = vld [vmem:[%s2349 + $0x20] sm:$0xf]
      %v2359 = vld [vmem:[%s2349 + $0x24] sm:$0xf]
      %v2360 = vld [vmem:[%s2349 + $0x28] sm:$0xf]
      %v2361 = vld [vmem:[%s2349 + $0x2c] sm:$0xf]
      %v2362 = vld [vmem:[%s2349 + $0x30] sm:$0xf]
      %v2363 = vld [vmem:[%s2349 + $0x34] sm:$0xf]
      %v2364 = vld [vmem:[%s2349 + $0x38] sm:$0xf]
      %v2365 = vld [vmem:[%s2349 + $0x3c] sm:$0xf]
      %v2382 = vunpack.c.l.b16 %v2350
      %v2383 = vunpack.c.l.b16 %v2351
      %v2384 = vunpack.c.l.b16 %v2352
      %v2385 = vunpack.c.l.b16 %v2353
      %v2386 = vunpack.c.l.b16 %v2354
      %v2387 = vunpack.c.l.b16 %v2355
      %v2388 = vunpack.c.l.b16 %v2356
      %v2389 = vunpack.c.l.b16 %v2357
      %v2390 = vunpack.c.l.b16 %v2358
      %v2391 = vunpack.c.l.b16 %v2359
      %v2392 = vunpack.c.l.b16 %v2360
      %v2393 = vunpack.c.l.b16 %v2361
      %v2394 = vunpack.c.l.b16 %v2362
      %v2395 = vunpack.c.l.b16 %v2363
      %v2396 = vunpack.c.l.b16 %v2364
      %v2397 = vunpack.c.l.b16 %v2365
      %v2398 = vpack.c.b16 %v2383, %v2382
      %v2399 = vpack.c.b16 %v2385, %v2384
      %v2400 = vpack.c.b16 %v2387, %v2386
      %v2401 = vpack.c.b16 %v2389, %v2388
      %v2402 = vpack.c.b16 %v2391, %v2390
      %v2403 = vpack.c.b16 %v2393, %v2392
      %v2404 = vpack.c.b16 %v2395, %v2394
      %v2405 = vpack.c.b16 %v2397, %v2396
      %2414 = vmatprep.subr.bf16.mxu0 0
      %2415 = vmatpush1.bf16.msra.mxu0 %v2398
      %2416 = vmatprep.subr.bf16.mxu0 0
      %2417 = vmatpush1.bf16.msra.mxu0 %v2399
      %2418 = vmatprep.subr.bf16.mxu0 0
      %2419 = vmatpush1.bf16.msra.mxu0 %v2400
      %2420 = vmatprep.subr.bf16.mxu0 0
      %2421 = vmatpush1.bf16.msra.mxu0 %v2401
      %2422 = vmatprep.subr.bf16.mxu0 0
      %2423 = vmatpush1.bf16.msra.mxu0 %v2402
      %2424 = vmatprep.subr.bf16.mxu0 0
      %2425 = vmatpush1.bf16.msra.mxu0 %v2403
      %2426 = vmatprep.subr.bf16.mxu0 0
      %2427 = vmatpush1.bf16.msra.mxu0 %v2404
      %2428 = vmatprep.subr.bf16.mxu0 0
      %2429 = vmatpush1.bf16.msra.mxu0 %v2405
      %2430 = vmatprep.subr.bf16.mxu0 0
      %2431 = vmatpush1.bf16.msra.mxu0 0
      %2432 = vmatprep.subr.bf16.mxu0 0
      %2433 = vmatpush1.bf16.msra.mxu0 0
      %2434 = vmatprep.subr.bf16.mxu0 0
      %2435 = vmatpush1.bf16.msra.mxu0 0
      %2436 = vmatprep.subr.bf16.mxu0 0
      %2437 = vmatpush1.bf16.msra.mxu0 0
      %2438 = vmatprep.subr.bf16.mxu0 0
      %2439 = vmatpush1.bf16.msra.mxu0 0
      %2440 = vmatprep.subr.bf16.mxu0 0
      %2441 = vmatpush1.bf16.msra.mxu0 0
      %2442 = vmatprep.subr.bf16.mxu0 0
      %2443 = vmatpush1.bf16.msra.mxu0 0
      %2444 = vmatprep.subr.bf16.mxu0 0
      %2445 = vmatpush1.bf16.msra.mxu0 0
      %2446 = vmatprep.mubr.bf16.mxu0 0
      %2447 = vmatmul.mubr.bf16.gmra.mrb[0].mxu0 %v2345
      %v2448 = vpop.f32.mrb[0].mxu0
      %v2449 = vadd.f32 0.0, %v2448
      %v2450 = vpop.f32.mrb[0].mxu0
      %v2451 = vpop.f32.mrb[0].mxu0
      %v2452 = vadd.f32 0.0, %v2451
      %v2453 = vpop.f32.mrb[0].mxu0
      %2454 = vmatprep.mubr.bf16.mxu0 0
      %2455 = vmatmul.mubr.bf16.gmra.mrb[0].mxu0 %v2346
      %v2456 = vpop.f32.mrb[0].mxu0
      %v2457 = vadd.f32 0.0, %v2456
      %v2458 = vpop.f32.mrb[0].mxu0
      %v2459 = vpop.f32.mrb[0].mxu0
      %v2460 = vadd.f32 0.0, %v2459
      %v2461 = vpop.f32.mrb[0].mxu0
      %2462 = vmatprep.mubr.bf16.mxu0 0
      %2463 = vmatmul.mubr.bf16.gmra.mrb[0].mxu0 %v2347
      %v2464 = vpop.f32.mrb[0].mxu0
      %v2465 = vadd.f32 0.0, %v2464
      %v2466 = vpop.f32.mrb[0].mxu0
      %v2467 = vpop.f32.mrb[0].mxu0
      %v2468 = vadd.f32 0.0, %v2467
      %v2469 = vpop.f32.mrb[0].mxu0
      %2470 = vmatprep.mubr.bf16.mxu0 0
      %2471 = vmatmul.mubr.bf16.gmra.mrb[0].mxu0 %v2348
      %v2472 = vpop.f32.mrb[0].mxu0
      %v2473 = vadd.f32 0.0, %v2472
      %v2474 = vpop.f32.mrb[0].mxu0
      %v2475 = vpop.f32.mrb[0].mxu0
      %v2476 = vadd.f32 0.0, %v2475
      %v2477 = vpop.f32.mrb[0].mxu0
      %2478 = vdwg.mxu0
      %v2479 = vadd.f32 %v2329, %v2449
      %v2480 = vadd.f32 %v2330, %v2452
      %v2481 = vadd.f32 %v2331, %v2457
      %v2482 = vadd.f32 %v2332, %v2460
      %v2483 = vadd.f32 %v2333, %v2465
      %v2484 = vadd.f32 %v2334, %v2468
      %v2485 = vadd.f32 %v2335, %v2473
      %v2486 = vadd.f32 %v2336, %v2476
      %v2487 = vld [vmem:[%s1895 + $0x1] sm:$0xff]
      %v2488 = vld [vmem:[%s1895 + $0x11] sm:$0xff]
      %v2489 = vld [vmem:[%s1895 + $0x21] sm:$0xff]
      %v2490 = vld [vmem:[%s1895 + $0x31] sm:$0xff]
      %v2491 = vld [vmem:[%s1895 + $0x41] sm:$0xff]
      %v2492 = vld [vmem:[%s1895 + $0x51] sm:$0xff]
      %v2493 = vld [vmem:[%s1895 + $0x61] sm:$0xff]
      %v2494 = vld [vmem:[%s1895 + $0x71] sm:$0xff]
      %v2495 = vpack.c.bf16 %v2488, %v2487
      %v2496 = vpack.c.bf16 %v2490, %v2489
      %v2497 = vpack.c.bf16 %v2492, %v2491
      %v2498 = vpack.c.bf16 %v2494, %v2493
      %s2499 = scalar_lea.vmem %s7, 256
      %v2500 = vld [vmem:[%s2499] sm:$0xf]
      %v2501 = vld [vmem:[%s2499 + $0x4] sm:$0xf]
      %v2502 = vld [vmem:[%s2499 + $0x8] sm:$0xf]
      %v2503 = vld [vmem:[%s2499 + $0xc] sm:$0xf]
      %v2504 = vld [vmem:[%s2499 + $0x10] sm:$0xf]
      %v2505 = vld [vmem:[%s2499 + $0x14] sm:$0xf]
      %v2506 = vld [vmem:[%s2499 + $0x18] sm:$0xf]
      %v2507 = vld [vmem:[%s2499 + $0x1c] sm:$0xf]
      %v2508 = vld [vmem:[%s2499 + $0x20] sm:$0xf]
      %v2509 = vld [vmem:[%s2499 + $0x24] sm:$0xf]
      %v2510 = vld [vmem:[%s2499 + $0x28] sm:$0xf]
      %v2511 = vld [vmem:[%s2499 + $0x2c] sm:$0xf]
      %v2512 = vld [vmem:[%s2499 + $0x30] sm:$0xf]
      %v2513 = vld [vmem:[%s2499 + $0x34] sm:$0xf]
      %v2514 = vld [vmem:[%s2499 + $0x38] sm:$0xf]
      %v2515 = vld [vmem:[%s2499 + $0x3c] sm:$0xf]
      %v2532 = vunpack.c.l.b16 %v2500
      %v2533 = vunpack.c.l.b16 %v2501
      %v2534 = vunpack.c.l.b16 %v2502
      %v2535 = vunpack.c.l.b16 %v2503
      %v2536 = vunpack.c.l.b16 %v2504
      %v2537 = vunpack.c.l.b16 %v2505
      %v2538 = vunpack.c.l.b16 %v2506
      %v2539 = vunpack.c.l.b16 %v2507
      %v2540 = vunpack.c.l.b16 %v2508
      %v2541 = vunpack.c.l.b16 %v2509
      %v2542 = vunpack.c.l.b16 %v2510
      %v2543 = vunpack.c.l.b16 %v2511
      %v2544 = vunpack.c.l.b16 %v2512
      %v2545 = vunpack.c.l.b16 %v2513
      %v2546 = vunpack.c.l.b16 %v2514
      %v2547 = vunpack.c.l.b16 %v2515
      %v2548 = vpack.c.b16 %v2533, %v2532
      %v2549 = vpack.c.b16 %v2535, %v2534
      %v2550 = vpack.c.b16 %v2537, %v2536
      %v2551 = vpack.c.b16 %v2539, %v2538
      %v2552 = vpack.c.b16 %v2541, %v2540
      %v2553 = vpack.c.b16 %v2543, %v2542
      %v2554 = vpack.c.b16 %v2545, %v2544
      %v2555 = vpack.c.b16 %v2547, %v2546
      %2564 = vmatprep.subr.bf16.mxu0 0
      %2565 = vmatpush1.bf16.msra.mxu0 %v2548
      %2566 = vmatprep.subr.bf16.mxu0 0
      %2567 = vmatpush1.bf16.msra.mxu0 %v2549
      %2568 = vmatprep.subr.bf16.mxu0 0
      %2569 = vmatpush1.bf16.msra.mxu0 %v2550
      %2570 = vmatprep.subr.bf16.mxu0 0
      %2571 = vmatpush1.bf16.msra.mxu0 %v2551
      %2572 = vmatprep.subr.bf16.mxu0 0
      %2573 = vmatpush1.bf16.msra.mxu0 %v2552
      %2574 = vmatprep.subr.bf16.mxu0 0
      %2575 = vmatpush1.bf16.msra.mxu0 %v2553
      %2576 = vmatprep.subr.bf16.mxu0 0
      %2577 = vmatpush1.bf16.msra.mxu0 %v2554
      %2578 = vmatprep.subr.bf16.mxu0 0
      %2579 = vmatpush1.bf16.msra.mxu0 %v2555
      %2580 = vmatprep.subr.bf16.mxu0 0
      %2581 = vmatpush1.bf16.msra.mxu0 0
      %2582 = vmatprep.subr.bf16.mxu0 0
      %2583 = vmatpush1.bf16.msra.mxu0 0
      %2584 = vmatprep.subr.bf16.mxu0 0
      %2585 = vmatpush1.bf16.msra.mxu0 0
      %2586 = vmatprep.subr.bf16.mxu0 0
      %2587 = vmatpush1.bf16.msra.mxu0 0
      %2588 = vmatprep.subr.bf16.mxu0 0
      %2589 = vmatpush1.bf16.msra.mxu0 0
      %2590 = vmatprep.subr.bf16.mxu0 0
      %2591 = vmatpush1.bf16.msra.mxu0 0
      %2592 = vmatprep.subr.bf16.mxu0 0
      %2593 = vmatpush1.bf16.msra.mxu0 0
      %2594 = vmatprep.subr.bf16.mxu0 0
      %2595 = vmatpush1.bf16.msra.mxu0 0
      %2596 = vmatprep.mubr.bf16.mxu0 0
      %2597 = vmatmul.mubr.bf16.gmra.mrb[0].mxu0 %v2495
      %v2598 = vpop.f32.mrb[0].mxu0
      %v2599 = vadd.f32 0.0, %v2598
      %v2600 = vpop.f32.mrb[0].mxu0
      %v2601 = vpop.f32.mrb[0].mxu0
      %v2602 = vadd.f32 0.0, %v2601
      %v2603 = vpop.f32.mrb[0].mxu0
      %2604 = vmatprep.mubr.bf16.mxu0 0
      %2605 = vmatmul.mubr.bf16.gmra.mrb[0].mxu0 %v2496
      %v2606 = vpop.f32.mrb[0].mxu0
      %v2607 = vadd.f32 0.0, %v2606
      %v2608 = vpop.f32.mrb[0].mxu0
      %v2609 = vpop.f32.mrb[0].mxu0
      %v2610 = vadd.f32 0.0, %v2609
      %v2611 = vpop.f32.mrb[0].mxu0
      %2612 = vmatprep.mubr.bf16.mxu0 0
      %2613 = vmatmul.mubr.bf16.gmra.mrb[0].mxu0 %v2497
      %v2614 = vpop.f32.mrb[0].mxu0
      %v2615 = vadd.f32 0.0, %v2614
      %v2616 = vpop.f32.mrb[0].mxu0
      %v2617 = vpop.f32.mrb[0].mxu0
      %v2618 = vadd.f32 0.0, %v2617
      %v2619 = vpop.f32.mrb[0].mxu0
      %2620 = vmatprep.mubr.bf16.mxu0 0
      %2621 = vmatmul.mubr.bf16.gmra.mrb[0].mxu0 %v2498
      %v2622 = vpop.f32.mrb[0].mxu0
      %v2623 = vadd.f32 0.0, %v2622
      %v2624 = vpop.f32.mrb[0].mxu0
      %v2625 = vpop.f32.mrb[0].mxu0
      %v2626 = vadd.f32 0.0, %v2625
      %v2627 = vpop.f32.mrb[0].mxu0
      %2628 = vdwg.mxu0
      %v2629 = vadd.f32 %v2479, %v2599
      %v2630 = vadd.f32 %v2480, %v2602
      %v2631 = vadd.f32 %v2481, %v2607
      %v2632 = vadd.f32 %v2482, %v2610
      %v2633 = vadd.f32 %v2483, %v2615
      %v2634 = vadd.f32 %v2484, %v2618
      %v2635 = vadd.f32 %v2485, %v2623
      %v2636 = vadd.f32 %v2486, %v2626
      %v2637 = vld [vmem:[%s1895 + $0x2] sm:$0xff]
      %v2638 = vld [vmem:[%s1895 + $0x12] sm:$0xff]
      %v2639 = vld [vmem:[%s1895 + $0x22] sm:$0xff]
      %v2640 = vld [vmem:[%s1895 + $0x32] sm:$0xff]
      %v2641 = vld [vmem:[%s1895 + $0x42] sm:$0xff]
      %v2642 = vld [vmem:[%s1895 + $0x52] sm:$0xff]
      %v2643 = vld [vmem:[%s1895 + $0x62] sm:$0xff]
      %v2644 = vld [vmem:[%s1895 + $0x72] sm:$0xff]
      %v2645 = vpack.c.bf16 %v2638, %v2637
      %v2646 = vpack.c.bf16 %v2640, %v2639
      %v2647 = vpack.c.bf16 %v2642, %v2641
      %v2648 = vpack.c.bf16 %v2644, %v2643
      %s2649 = scalar_lea.vmem %s7, 320
      %v2650 = vld [vmem:[%s2649] sm:$0xf]
      %v2651 = vld [vmem:[%s2649 + $0x4] sm:$0xf]
      %v2652 = vld [vmem:[%s2649 + $0x8] sm:$0xf]
      %v2653 = vld [vmem:[%s2649 + $0xc] sm:$0xf]
      %v2654 = vld [vmem:[%s2649 + $0x10] sm:$0xf]
      %v2655 = vld [vmem:[%s2649 + $0x14] sm:$0xf]
      %v2656 = vld [vmem:[%s2649 + $0x18] sm:$0xf]
      %v2657 = vld [vmem:[%s2649 + $0x1c] sm:$0xf]
      %v2658 = vld [vmem:[%s2649 + $0x20] sm:$0xf]
      %v2659 = vld [vmem:[%s2649 + $0x24] sm:$0xf]
      %v2660 = vld [vmem:[%s2649 + $0x28] sm:$0xf]
      %v2661 = vld [vmem:[%s2649 + $0x2c] sm:$0xf]
      %v2662 = vld [vmem:[%s2649 + $0x30] sm:$0xf]
      %v2663 = vld [vmem:[%s2649 + $0x34] sm:$0xf]
      %v2664 = vld [vmem:[%s2649 + $0x38] sm:$0xf]
      %v2665 = vld [vmem:[%s2649 + $0x3c] sm:$0xf]
      %v2682 = vunpack.c.l.b16 %v2650
      %v2683 = vunpack.c.l.b16 %v2651
      %v2684 = vunpack.c.l.b16 %v2652
      %v2685 = vunpack.c.l.b16 %v2653
      %v2686 = vunpack.c.l.b16 %v2654
      %v2687 = vunpack.c.l.b16 %v2655
      %v2688 = vunpack.c.l.b16 %v2656
      %v2689 = vunpack.c.l.b16 %v2657
      %v2690 = vunpack.c.l.b16 %v2658
      %v2691 = vunpack.c.l.b16 %v2659
      %v2692 = vunpack.c.l.b16 %v2660
      %v2693 = vunpack.c.l.b16 %v2661
      %v2694 = vunpack.c.l.b16 %v2662
      %v2695 = vunpack.c.l.b16 %v2663
      %v2696 = vunpack.c.l.b16 %v2664
      %v2697 = vunpack.c.l.b16 %v2665
      %v2698 = vpack.c.b16 %v2683, %v2682
      %v2699 = vpack.c.b16 %v2685, %v2684
      %v2700 = vpack.c.b16 %v2687, %v2686
      %v2701 = vpack.c.b16 %v2689, %v2688
      %v2702 = vpack.c.b16 %v2691, %v2690
      %v2703 = vpack.c.b16 %v2693, %v2692
      %v2704 = vpack.c.b16 %v2695, %v2694
      %v2705 = vpack.c.b16 %v2697, %v2696
      %2714 = vmatprep.subr.bf16.mxu0 0
      %2715 = vmatpush1.bf16.msra.mxu0 %v2698
      %2716 = vmatprep.subr.bf16.mxu0 0
      %2717 = vmatpush1.bf16.msra.mxu0 %v2699
      %2718 = vmatprep.subr.bf16.mxu0 0
      %2719 = vmatpush1.bf16.msra.mxu0 %v2700
      %2720 = vmatprep.subr.bf16.mxu0 0
      %2721 = vmatpush1.bf16.msra.mxu0 %v2701
      %2722 = vmatprep.subr.bf16.mxu0 0
      %2723 = vmatpush1.bf16.msra.mxu0 %v2702
      %2724 = vmatprep.subr.bf16.mxu0 0
      %2725 = vmatpush1.bf16.msra.mxu0 %v2703
      %2726 = vmatprep.subr.bf16.mxu0 0
      %2727 = vmatpush1.bf16.msra.mxu0 %v2704
      %2728 = vmatprep.subr.bf16.mxu0 0
      %2729 = vmatpush1.bf16.msra.mxu0 %v2705
      %2730 = vmatprep.subr.bf16.mxu0 0
      %2731 = vmatpush1.bf16.msra.mxu0 0
      %2732 = vmatprep.subr.bf16.mxu0 0
      %2733 = vmatpush1.bf16.msra.mxu0 0
      %2734 = vmatprep.subr.bf16.mxu0 0
      %2735 = vmatpush1.bf16.msra.mxu0 0
      %2736 = vmatprep.subr.bf16.mxu0 0
      %2737 = vmatpush1.bf16.msra.mxu0 0
      %2738 = vmatprep.subr.bf16.mxu0 0
      %2739 = vmatpush1.bf16.msra.mxu0 0
      %2740 = vmatprep.subr.bf16.mxu0 0
      %2741 = vmatpush1.bf16.msra.mxu0 0
      %2742 = vmatprep.subr.bf16.mxu0 0
      %2743 = vmatpush1.bf16.msra.mxu0 0
      %2744 = vmatprep.subr.bf16.mxu0 0
      %2745 = vmatpush1.bf16.msra.mxu0 0
      %2746 = vmatprep.mubr.bf16.mxu0 0
      %2747 = vmatmul.mubr.bf16.gmra.mrb[0].mxu0 %v2645
      %v2748 = vpop.f32.mrb[0].mxu0
      %v2749 = vadd.f32 0.0, %v2748
      %v2750 = vpop.f32.mrb[0].mxu0
      %v2751 = vpop.f32.mrb[0].mxu0
      %v2752 = vadd.f32 0.0, %v2751
      %v2753 = vpop.f32.mrb[0].mxu0
      %2754 = vmatprep.mubr.bf16.mxu0 0
      %2755 = vmatmul.mubr.bf16.gmra.mrb[0].mxu0 %v2646
      %v2756 = vpop.f32.mrb[0].mxu0
      %v2757 = vadd.f32 0.0, %v2756
      %v2758 = vpop.f32.mrb[0].mxu0
      %v2759 = vpop.f32.mrb[0].mxu0
      %v2760 = vadd.f32 0.0, %v2759
      %v2761 = vpop.f32.mrb[0].mxu0
      %2762 = vmatprep.mubr.bf16.mxu0 0
      %2763 = vmatmul.mubr.bf16.gmra.mrb[0].mxu0 %v2647
      %v2764 = vpop.f32.mrb[0].mxu0
      %v2765 = vadd.f32 0.0, %v2764
      %v2766 = vpop.f32.mrb[0].mxu0
      %v2767 = vpop.f32.mrb[0].mxu0
      %v2768 = vadd.f32 0.0, %v2767
      %v2769 = vpop.f32.mrb[0].mxu0
      %2770 = vmatprep.mubr.bf16.mxu0 0
      %2771 = vmatmul.mubr.bf16.gmra.mrb[0].mxu0 %v2648
      %v2772 = vpop.f32.mrb[0].mxu0
      %v2773 = vadd.f32 0.0, %v2772
      %v2774 = vpop.f32.mrb[0].mxu0
      %v2775 = vpop.f32.mrb[0].mxu0
      %v2776 = vadd.f32 0.0, %v2775
      %v2777 = vpop.f32.mrb[0].mxu0
      %2778 = vdwg.mxu0
      %v2779 = vadd.f32 %v2629, %v2749
      %v2780 = vadd.f32 %v2630, %v2752
      %v2781 = vadd.f32 %v2631, %v2757
      %v2782 = vadd.f32 %v2632, %v2760
      %v2783 = vadd.f32 %v2633, %v2765
      %v2784 = vadd.f32 %v2634, %v2768
      %v2785 = vadd.f32 %v2635, %v2773
      %v2786 = vadd.f32 %v2636, %v2776
      %s2787 = scalar_lea.vmem [#allocation2], 32
      %v2788 = vld [vmem:[%s2787] sm:$0xff]
      %v2789 = vld [vmem:[%s2787 + $0x10] sm:$0xff]
      %v2790 = vld [vmem:[%s2787 + $0x20] sm:$0xff]
      %v2791 = vld [vmem:[%s2787 + $0x30] sm:$0xff]
      %v2792 = vld [vmem:[%s2787 + $0x40] sm:$0xff]
      %v2793 = vld [vmem:[%s2787 + $0x50] sm:$0xff]
      %v2794 = vld [vmem:[%s2787 + $0x60] sm:$0xff]
      %v2795 = vld [vmem:[%s2787 + $0x70] sm:$0xff]
      %v2796 = vpack.c.bf16 %v2789, %v2788
      %v2797 = vpack.c.bf16 %v2791, %v2790
      %v2798 = vpack.c.bf16 %v2793, %v2792
      %v2799 = vpack.c.bf16 %v2795, %v2794
      %s2800 = scalar_lea.vmem %s7, 384
      %v2801 = vld [vmem:[%s2800] sm:$0xf]
      %v2802 = vld [vmem:[%s2800 + $0x4] sm:$0xf]
      %v2803 = vld [vmem:[%s2800 + $0x8] sm:$0xf]
      %v2804 = vld [vmem:[%s2800 + $0xc] sm:$0xf]
      %v2805 = vld [vmem:[%s2800 + $0x10] sm:$0xf]
      %v2806 = vld [vmem:[%s2800 + $0x14] sm:$0xf]
      %v2807 = vld [vmem:[%s2800 + $0x18] sm:$0xf]
      %v2808 = vld [vmem:[%s2800 + $0x1c] sm:$0xf]
      %v2809 = vld [vmem:[%s2800 + $0x20] sm:$0xf]
      %v2810 = vld [vmem:[%s2800 + $0x24] sm:$0xf]
      %v2811 = vld [vmem:[%s2800 + $0x28] sm:$0xf]
      %v2812 = vld [vmem:[%s2800 + $0x2c] sm:$0xf]
      %v2813 = vld [vmem:[%s2800 + $0x30] sm:$0xf]
      %v2814 = vld [vmem:[%s2800 + $0x34] sm:$0xf]
      %v2815 = vld [vmem:[%s2800 + $0x38] sm:$0xf]
      %v2816 = vld [vmem:[%s2800 + $0x3c] sm:$0xf]
      %v2833 = vunpack.c.l.b16 %v2801
      %v2834 = vunpack.c.l.b16 %v2802
      %v2835 = vunpack.c.l.b16 %v2803
      %v2836 = vunpack.c.l.b16 %v2804
      %v2837 = vunpack.c.l.b16 %v2805
      %v2838 = vunpack.c.l.b16 %v2806
      %v2839 = vunpack.c.l.b16 %v2807
      %v2840 = vunpack.c.l.b16 %v2808
      %v2841 = vunpack.c.l.b16 %v2809
      %v2842 = vunpack.c.l.b16 %v2810
      %v2843 = vunpack.c.l.b16 %v2811
      %v2844 = vunpack.c.l.b16 %v2812
      %v2845 = vunpack.c.l.b16 %v2813
      %v2846 = vunpack.c.l.b16 %v2814
      %v2847 = vunpack.c.l.b16 %v2815
      %v2848 = vunpack.c.l.b16 %v2816
      %v2849 = vpack.c.b16 %v2834, %v2833
      %v2850 = vpack.c.b16 %v2836, %v2835
      %v2851 = vpack.c.b16 %v2838, %v2837
      %v2852 = vpack.c.b16 %v2840, %v2839
      %v2853 = vpack.c.b16 %v2842, %v2841
      %v2854 = vpack.c.b16 %v2844, %v2843
      %v2855 = vpack.c.b16 %v2846, %v2845
      %v2856 = vpack.c.b16 %v2848, %v2847
      %2865 = vmatprep.subr.bf16.mxu0 0
      %2866 = vmatpush1.bf16.msra.mxu0 %v2849
      %2867 = vmatprep.subr.bf16.mxu0 0
      %2868 = vmatpush1.bf16.msra.mxu0 %v2850
      %2869 = vmatprep.subr.bf16.mxu0 0
      %2870 = vmatpush1.bf16.msra.mxu0 %v2851
      %2871 = vmatprep.subr.bf16.mxu0 0
      %2872 = vmatpush1.bf16.msra.mxu0 %v2852
      %2873 = vmatprep.subr.bf16.mxu0 0
      %2874 = vmatpush1.bf16.msra.mxu0 %v2853
      %2875 = vmatprep.subr.bf16.mxu0 0
      %2876 = vmatpush1.bf16.msra.mxu0 %v2854
      %2877 = vmatprep.subr.bf16.mxu0 0
      %2878 = vmatpush1.bf16.msra.mxu0 %v2855
      %2879 = vmatprep.subr.bf16.mxu0 0
      %2880 = vmatpush1.bf16.msra.mxu0 %v2856
      %2881 = vmatprep.subr.bf16.mxu0 0
      %2882 = vmatpush1.bf16.msra.mxu0 0
      %2883 = vmatprep.subr.bf16.mxu0 0
      %2884 = vmatpush1.bf16.msra.mxu0 0
      %2885 = vmatprep.subr.bf16.mxu0 0
      %2886 = vmatpush1.bf16.msra.mxu0 0
      %2887 = vmatprep.subr.bf16.mxu0 0
      %2888 = vmatpush1.bf16.msra.mxu0 0
      %2889 = vmatprep.subr.bf16.mxu0 0
      %2890 = vmatpush1.bf16.msra.mxu0 0
      %2891 = vmatprep.subr.bf16.mxu0 0
      %2892 = vmatpush1.bf16.msra.mxu0 0
      %2893 = vmatprep.subr.bf16.mxu0 0
      %2894 = vmatpush1.bf16.msra.mxu0 0
      %2895 = vmatprep.subr.bf16.mxu0 0
      %2896 = vmatpush1.bf16.msra.mxu0 0
      %2897 = vmatprep.mubr.bf16.mxu0 0
      %2898 = vmatmul.mubr.bf16.gmra.mrb[0].mxu0 %v2796
      %v2899 = vpop.f32.mrb[0].mxu0
      %v2900 = vadd.f32 0.0, %v2899
      %v2901 = vpop.f32.mrb[0].mxu0
      %v2902 = vpop.f32.mrb[0].mxu0
      %v2903 = vadd.f32 0.0, %v2902
      %v2904 = vpop.f32.mrb[0].mxu0
      %2905 = vmatprep.mubr.bf16.mxu0 0
      %2906 = vmatmul.mubr.bf16.gmra.mrb[0].mxu0 %v2797
      %v2907 = vpop.f32.mrb[0].mxu0
      %v2908 = vadd.f32 0.0, %v2907
      %v2909 = vpop.f32.mrb[0].mxu0
      %v2910 = vpop.f32.mrb[0].mxu0
      %v2911 = vadd.f32 0.0, %v2910
      %v2912 = vpop.f32.mrb[0].mxu0
      %2913 = vmatprep.mubr.bf16.mxu0 0
      %2914 = vmatmul.mubr.bf16.gmra.mrb[0].mxu0 %v2798
      %v2915 = vpop.f32.mrb[0].mxu0
      %v2916 = vadd.f32 0.0, %v2915
      %v2917 = vpop.f32.mrb[0].mxu0
      %v2918 = vpop.f32.mrb[0].mxu0
      %v2919 = vadd.f32 0.0, %v2918
      %v2920 = vpop.f32.mrb[0].mxu0
      %2921 = vmatprep.mubr.bf16.mxu0 0
      %2922 = vmatmul.mubr.bf16.gmra.mrb[0].mxu0 %v2799
      %v2923 = vpop.f32.mrb[0].mxu0
      %v2924 = vadd.f32 0.0, %v2923
      %v2925 = vpop.f32.mrb[0].mxu0
      %v2926 = vpop.f32.mrb[0].mxu0
      %v2927 = vadd.f32 0.0, %v2926
      %v2928 = vpop.f32.mrb[0].mxu0
      %2929 = vdwg.mxu0
      %v2930 = vadd.f32 %v2779, %v2900
      %v2931 = vadd.f32 %v2780, %v2903
      %v2932 = vadd.f32 %v2781, %v2908
      %v2933 = vadd.f32 %v2782, %v2911
      %v2934 = vadd.f32 %v2783, %v2916
      %v2935 = vadd.f32 %v2784, %v2919
      %v2936 = vadd.f32 %v2785, %v2924
      %v2937 = vadd.f32 %v2786, %v2927
      %v2938 = vld [vmem:[%s2787 + $0x1] sm:$0xff]
      %v2939 = vld [vmem:[%s2787 + $0x11] sm:$0xff]
      %v2940 = vld [vmem:[%s2787 + $0x21] sm:$0xff]
      %v2941 = vld [vmem:[%s2787 + $0x31] sm:$0xff]
      %v2942 = vld [vmem:[%s2787 + $0x41] sm:$0xff]
      %v2943 = vld [vmem:[%s2787 + $0x51] sm:$0xff]
      %v2944 = vld [vmem:[%s2787 + $0x61] sm:$0xff]
      %v2945 = vld [vmem:[%s2787 + $0x71] sm:$0xff]
      %v2946 = vpack.c.bf16 %v2939, %v2938
      %v2947 = vpack.c.bf16 %v2941, %v2940
      %v2948 = vpack.c.bf16 %v2943, %v2942
      %v2949 = vpack.c.bf16 %v2945, %v2944
      %s2950 = scalar_lea.vmem %s7, 448
      %v2951 = vld [vmem:[%s2950] sm:$0xf]
      %v2952 = vld [vmem:[%s2950 + $0x4] sm:$0xf]
      %v2953 = vld [vmem:[%s2950 + $0x8] sm:$0xf]
      %v2954 = vld [vmem:[%s2950 + $0xc] sm:$0xf]
      %v2955 = vld [vmem:[%s2950 + $0x10] sm:$0xf]
      %v2956 = vld [vmem:[%s2950 + $0x14] sm:$0xf]
      %v2957 = vld [vmem:[%s2950 + $0x18] sm:$0xf]
      %v2958 = vld [vmem:[%s2950 + $0x1c] sm:$0xf]
      %v2959 = vld [vmem:[%s2950 + $0x20] sm:$0xf]
      %v2960 = vld [vmem:[%s2950 + $0x24] sm:$0xf]
      %v2961 = vld [vmem:[%s2950 + $0x28] sm:$0xf]
      %v2962 = vld [vmem:[%s2950 + $0x2c] sm:$0xf]
      %v2963 = vld [vmem:[%s2950 + $0x30] sm:$0xf]
      %v2964 = vld [vmem:[%s2950 + $0x34] sm:$0xf]
      %v2965 = vld [vmem:[%s2950 + $0x38] sm:$0xf]
      %v2966 = vld [vmem:[%s2950 + $0x3c] sm:$0xf]
      %v2983 = vunpack.c.l.b16 %v2951
      %v2984 = vunpack.c.l.b16 %v2952
      %v2985 = vunpack.c.l.b16 %v2953
      %v2986 = vunpack.c.l.b16 %v2954
      %v2987 = vunpack.c.l.b16 %v2955
      %v2988 = vunpack.c.l.b16 %v2956
      %v2989 = vunpack.c.l.b16 %v2957
      %v2990 = vunpack.c.l.b16 %v2958
      %v2991 = vunpack.c.l.b16 %v2959
      %v2992 = vunpack.c.l.b16 %v2960
      %v2993 = vunpack.c.l.b16 %v2961
      %v2994 = vunpack.c.l.b16 %v2962
      %v2995 = vunpack.c.l.b16 %v2963
      %v2996 = vunpack.c.l.b16 %v2964
      %v2997 = vunpack.c.l.b16 %v2965
      %v2998 = vunpack.c.l.b16 %v2966
      %v2999 = vpack.c.b16 %v2984, %v2983
      %v3000 = vpack.c.b16 %v2986, %v2985
      %v3001 = vpack.c.b16 %v2988, %v2987
      %v3002 = vpack.c.b16 %v2990, %v2989
      %v3003 = vpack.c.b16 %v2992, %v2991
      %v3004 = vpack.c.b16 %v2994, %v2993
      %v3005 = vpack.c.b16 %v2996, %v2995
      %v3006 = vpack.c.b16 %v2998, %v2997
      %3015 = vmatprep.subr.bf16.mxu0 0
      %3016 = vmatpush1.bf16.msra.mxu0 %v2999
      %3017 = vmatprep.subr.bf16.mxu0 0
      %3018 = vmatpush1.bf16.msra.mxu0 %v3000
      %3019 = vmatprep.subr.bf16.mxu0 0
      %3020 = vmatpush1.bf16.msra.mxu0 %v3001
      %3021 = vmatprep.subr.bf16.mxu0 0
      %3022 = vmatpush1.bf16.msra.mxu0 %v3002
      %3023 = vmatprep.subr.bf16.mxu0 0
      %3024 = vmatpush1.bf16.msra.mxu0 %v3003
      %3025 = vmatprep.subr.bf16.mxu0 0
      %3026 = vmatpush1.bf16.msra.mxu0 %v3004
      %3027 = vmatprep.subr.bf16.mxu0 0
      %3028 = vmatpush1.bf16.msra.mxu0 %v3005
      %3029 = vmatprep.subr.bf16.mxu0 0
      %3030 = vmatpush1.bf16.msra.mxu0 %v3006
      %3031 = vmatprep.subr.bf16.mxu0 0
      %3032 = vmatpush1.bf16.msra.mxu0 0
      %3033 = vmatprep.subr.bf16.mxu0 0
      %3034 = vmatpush1.bf16.msra.mxu0 0
      %3035 = vmatprep.subr.bf16.mxu0 0
      %3036 = vmatpush1.bf16.msra.mxu0 0
      %3037 = vmatprep.subr.bf16.mxu0 0
      %3038 = vmatpush1.bf16.msra.mxu0 0
      %3039 = vmatprep.subr.bf16.mxu0 0
      %3040 = vmatpush1.bf16.msra.mxu0 0
      %3041 = vmatprep.subr.bf16.mxu0 0
      %3042 = vmatpush1.bf16.msra.mxu0 0
      %3043 = vmatprep.subr.bf16.mxu0 0
      %3044 = vmatpush1.bf16.msra.mxu0 0
      %3045 = vmatprep.subr.bf16.mxu0 0
      %3046 = vmatpush1.bf16.msra.mxu0 0
      %3047 = vmatprep.mubr.bf16.mxu0 0
      %3048 = vmatmul.mubr.bf16.gmra.mrb[0].mxu0 %v2946
      %v3049 = vpop.f32.mrb[0].mxu0
      %v3050 = vadd.f32 0.0, %v3049
      %v3051 = vpop.f32.mrb[0].mxu0
      %v3052 = vpop.f32.mrb[0].mxu0
      %v3053 = vadd.f32 0.0, %v3052
      %v3054 = vpop.f32.mrb[0].mxu0
      %3055 = vmatprep.mubr.bf16.mxu0 0
      %3056 = vmatmul.mubr.bf16.gmra.mrb[0].mxu0 %v2947
      %v3057 = vpop.f32.mrb[0].mxu0
      %v3058 = vadd.f32 0.0, %v3057
      %v3059 = vpop.f32.mrb[0].mxu0
      %v3060 = vpop.f32.mrb[0].mxu0
      %v3061 = vadd.f32 0.0, %v3060
      %v3062 = vpop.f32.mrb[0].mxu0
      %3063 = vmatprep.mubr.bf16.mxu0 0
      %3064 = vmatmul.mubr.bf16.gmra.mrb[0].mxu0 %v2948
      %v3065 = vpop.f32.mrb[0].mxu0
      %v3066 = vadd.f32 0.0, %v3065
      %v3067 = vpop.f32.mrb[0].mxu0
      %v3068 = vpop.f32.mrb[0].mxu0
      %v3069 = vadd.f32 0.0, %v3068
      %v3070 = vpop.f32.mrb[0].mxu0
      %3071 = vmatprep.mubr.bf16.mxu0 0
      %3072 = vmatmul.mubr.bf16.gmra.mrb[0].mxu0 %v2949
      %v3073 = vpop.f32.mrb[0].mxu0
      %v3074 = vadd.f32 0.0, %v3073
      %v3075 = vpop.f32.mrb[0].mxu0
      %v3076 = vpop.f32.mrb[0].mxu0
      %v3077 = vadd.f32 0.0, %v3076
      %v3078 = vpop.f32.mrb[0].mxu0
      %3079 = vdwg.mxu0
      %v3080 = vadd.f32 %v2930, %v3050
      %v3081 = vadd.f32 %v2931, %v3053
      %v3082 = vadd.f32 %v2932, %v3058
      %v3083 = vadd.f32 %v2933, %v3061
      %v3084 = vadd.f32 %v2934, %v3066
      %v3085 = vadd.f32 %v2935, %v3069
      %v3086 = vadd.f32 %v2936, %v3074
      %v3087 = vadd.f32 %v2937, %v3077
      %v3088 = vld [vmem:[%s2787 + $0x2] sm:$0xff]
      %v3089 = vld [vmem:[%s2787 + $0x12] sm:$0xff]
      %v3090 = vld [vmem:[%s2787 + $0x22] sm:$0xff]
      %v3091 = vld [vmem:[%s2787 + $0x32] sm:$0xff]
      %v3092 = vld [vmem:[%s2787 + $0x42] sm:$0xff]
      %v3093 = vld [vmem:[%s2787 + $0x52] sm:$0xff]
      %v3094 = vld [vmem:[%s2787 + $0x62] sm:$0xff]
      %v3095 = vld [vmem:[%s2787 + $0x72] sm:$0xff]
      %v3096 = vpack.c.bf16 %v3089, %v3088
      %v3097 = vpack.c.bf16 %v3091, %v3090
      %v3098 = vpack.c.bf16 %v3093, %v3092
      %v3099 = vpack.c.bf16 %v3095, %v3094
      %s3100 = scalar_lea.vmem %s7, 512
      %v3101 = vld [vmem:[%s3100] sm:$0xf]
      %v3102 = vld [vmem:[%s3100 + $0x4] sm:$0xf]
      %v3103 = vld [vmem:[%s3100 + $0x8] sm:$0xf]
      %v3104 = vld [vmem:[%s3100 + $0xc] sm:$0xf]
      %v3105 = vld [vmem:[%s3100 + $0x10] sm:$0xf]
      %v3106 = vld [vmem:[%s3100 + $0x14] sm:$0xf]
      %v3107 = vld [vmem:[%s3100 + $0x18] sm:$0xf]
      %v3108 = vld [vmem:[%s3100 + $0x1c] sm:$0xf]
      %v3109 = vld [vmem:[%s3100 + $0x20] sm:$0xf]
      %v3110 = vld [vmem:[%s3100 + $0x24] sm:$0xf]
      %v3111 = vld [vmem:[%s3100 + $0x28] sm:$0xf]
      %v3112 = vld [vmem:[%s3100 + $0x2c] sm:$0xf]
      %v3113 = vld [vmem:[%s3100 + $0x30] sm:$0xf]
      %v3114 = vld [vmem:[%s3100 + $0x34] sm:$0xf]
      %v3115 = vld [vmem:[%s3100 + $0x38] sm:$0xf]
      %v3116 = vld [vmem:[%s3100 + $0x3c] sm:$0xf]
      %v3133 = vunpack.c.l.b16 %v3101
      %v3134 = vunpack.c.l.b16 %v3102
      %v3135 = vunpack.c.l.b16 %v3103
      %v3136 = vunpack.c.l.b16 %v3104
      %v3137 = vunpack.c.l.b16 %v3105
      %v3138 = vunpack.c.l.b16 %v3106
      %v3139 = vunpack.c.l.b16 %v3107
      %v3140 = vunpack.c.l.b16 %v3108
      %v3141 = vunpack.c.l.b16 %v3109
      %v3142 = vunpack.c.l.b16 %v3110
      %v3143 = vunpack.c.l.b16 %v3111
      %v3144 = vunpack.c.l.b16 %v3112
      %v3145 = vunpack.c.l.b16 %v3113
      %v3146 = vunpack.c.l.b16 %v3114
      %v3147 = vunpack.c.l.b16 %v3115
      %v3148 = vunpack.c.l.b16 %v3116
      %v3149 = vpack.c.b16 %v3134, %v3133
      %v3150 = vpack.c.b16 %v3136, %v3135
      %v3151 = vpack.c.b16 %v3138, %v3137
      %v3152 = vpack.c.b16 %v3140, %v3139
      %v3153 = vpack.c.b16 %v3142, %v3141
      %v3154 = vpack.c.b16 %v3144, %v3143
      %v3155 = vpack.c.b16 %v3146, %v3145
      %v3156 = vpack.c.b16 %v3148, %v3147
      %3165 = vmatprep.subr.bf16.mxu0 0
      %3166 = vmatpush1.bf16.msra.mxu0 %v3149
      %3167 = vmatprep.subr.bf16.mxu0 0
      %3168 = vmatpush1.bf16.msra.mxu0 %v3150
      %3169 = vmatprep.subr.bf16.mxu0 0
      %3170 = vmatpush1.bf16.msra.mxu0 %v3151
      %3171 = vmatprep.subr.bf16.mxu0 0
      %3172 = vmatpush1.bf16.msra.mxu0 %v3152
      %3173 = vmatprep.subr.bf16.mxu0 0
      %3174 = vmatpush1.bf16.msra.mxu0 %v3153
      %3175 = vmatprep.subr.bf16.mxu0 0
      %3176 = vmatpush1.bf16.msra.mxu0 %v3154
      %3177 = vmatprep.subr.bf16.mxu0 0
      %3178 = vmatpush1.bf16.msra.mxu0 %v3155
      %3179 = vmatprep.subr.bf16.mxu0 0
      %3180 = vmatpush1.bf16.msra.mxu0 %v3156
      %3181 = vmatprep.subr.bf16.mxu0 0
      %3182 = vmatpush1.bf16.msra.mxu0 0
      %3183 = vmatprep.subr.bf16.mxu0 0
      %3184 = vmatpush1.bf16.msra.mxu0 0
      %3185 = vmatprep.subr.bf16.mxu0 0
      %3186 = vmatpush1.bf16.msra.mxu0 0
      %3187 = vmatprep.subr.bf16.mxu0 0
      %3188 = vmatpush1.bf16.msra.mxu0 0
      %3189 = vmatprep.subr.bf16.mxu0 0
      %3190 = vmatpush1.bf16.msra.mxu0 0
      %3191 = vmatprep.subr.bf16.mxu0 0
      %3192 = vmatpush1.bf16.msra.mxu0 0
      %3193 = vmatprep.subr.bf16.mxu0 0
      %3194 = vmatpush1.bf16.msra.mxu0 0
      %3195 = vmatprep.subr.bf16.mxu0 0
      %3196 = vmatpush1.bf16.msra.mxu0 0
      %3197 = vmatprep.mubr.bf16.mxu0 0
      %3198 = vmatmul.mubr.bf16.gmra.mrb[0].mxu0 %v3096
      %v3199 = vpop.f32.mrb[0].mxu0
      %v3200 = vadd.f32 0.0, %v3199
      %v3201 = vpop.f32.mrb[0].mxu0
      %v3202 = vpop.f32.mrb[0].mxu0
      %v3203 = vadd.f32 0.0, %v3202
      %v3204 = vpop.f32.mrb[0].mxu0
      %3205 = vmatprep.mubr.bf16.mxu0 0
      %3206 = vmatmul.mubr.bf16.gmra.mrb[0].mxu0 %v3097
      %v3207 = vpop.f32.mrb[0].mxu0
      %v3208 = vadd.f32 0.0, %v3207
      %v3209 = vpop.f32.mrb[0].mxu0
      %v3210 = vpop.f32.mrb[0].mxu0
      %v3211 = vadd.f32 0.0, %v3210
      %v3212 = vpop.f32.mrb[0].mxu0
      %3213 = vmatprep.mubr.bf16.mxu0 0
      %3214 = vmatmul.mubr.bf16.gmra.mrb[0].mxu0 %v3098
      %v3215 = vpop.f32.mrb[0].mxu0
      %v3216 = vadd.f32 0.0, %v3215
      %v3217 = vpop.f32.mrb[0].mxu0
      %v3218 = vpop.f32.mrb[0].mxu0
      %v3219 = vadd.f32 0.0, %v3218
      %v3220 = vpop.f32.mrb[0].mxu0
      %3221 = vmatprep.mubr.bf16.mxu0 0
      %3222 = vmatmul.mubr.bf16.gmra.mrb[0].mxu0 %v3099
      %v3223 = vpop.f32.mrb[0].mxu0
      %v3224 = vadd.f32 0.0, %v3223
      %v3225 = vpop.f32.mrb[0].mxu0
      %v3226 = vpop.f32.mrb[0].mxu0
      %v3227 = vadd.f32 0.0, %v3226
      %v3228 = vpop.f32.mrb[0].mxu0
      %3229 = vdwg.mxu0
      %v3230 = vadd.f32 %v3080, %v3200
      %v3231 = vadd.f32 %v3081, %v3203
      %v3232 = vadd.f32 %v3082, %v3208
      %v3233 = vadd.f32 %v3083, %v3211
      %v3234 = vadd.f32 %v3084, %v3216
      %v3235 = vadd.f32 %v3085, %v3219
      %v3236 = vadd.f32 %v3086, %v3224
      %v3237 = vadd.f32 %v3087, %v3227
      %v3238 = vld [vmem:[%s8] sm:$0x1]
      %v3240 = vlaneseq
      %v3241 = vshrl.u32 %v3240, 7
      %v3242 = vsub.s32 0, %v3241
      %v3243 = vrot.slane %v3238, %v3242
      %v3245 = vmul.f32 %v3230, %v3243
      %v3246 = vmul.f32 %v3231, %v3243
      %v3247 = vmul.f32 %v3232, %v3243
      %v3248 = vmul.f32 %v3233, %v3243
      %v3249 = vmul.f32 %v3234, %v3243
      %v3250 = vmul.f32 %v3235, %v3243
      %v3251 = vmul.f32 %v3236, %v3243
      %v3252 = vmul.f32 %v3237, %v3243
      %v3253 = vld [vmem:[%s9] sm:$0x1]
      %v3255 = vlaneseq
      %v3256 = vshrl.u32 %v3255, 7
      %v3257 = vsub.s32 0, %v3256
      %v3258 = vrot.slane %v3253, %v3257
      %v3260 = vadd.f32 %v3245, %v3258
      %v3261 = vadd.f32 %v3246, %v3258
      %v3262 = vadd.f32 %v3247, %v3258
      %v3263 = vadd.f32 %v3248, %v3258
      %v3264 = vadd.f32 %v3249, %v3258
      %v3265 = vadd.f32 %v3250, %v3258
      %v3266 = vadd.f32 %v3251, %v3258
      %v3267 = vadd.f32 %v3252, %v3258
      %v3268 = vld [vmem:[%s1084 + $0x1] sm:$0xff]
      %v3269 = vld [vmem:[%s1084 + $0x11] sm:$0xff]
      %v3270 = vld [vmem:[%s1084 + $0x21] sm:$0xff]
      %v3271 = vld [vmem:[%s1084 + $0x31] sm:$0xff]
      %v3272 = vld [vmem:[%s1084 + $0x41] sm:$0xff]
      %v3273 = vld [vmem:[%s1084 + $0x51] sm:$0xff]
      %v3274 = vld [vmem:[%s1084 + $0x61] sm:$0xff]
      %v3275 = vld [vmem:[%s1084 + $0x71] sm:$0xff]
      %v3276 = vpack.c.bf16 %v3269, %v3268
      %v3277 = vpack.c.bf16 %v3271, %v3270
      %v3278 = vpack.c.bf16 %v3273, %v3272
      %v3279 = vpack.c.bf16 %v3275, %v3274
      %v3280 = vld [vmem:[%s10] sm:$0xf]
      %v3281 = vld [vmem:[%s10 + $0x4] sm:$0xf]
      %v3282 = vld [vmem:[%s10 + $0x8] sm:$0xf]
      %v3283 = vld [vmem:[%s10 + $0xc] sm:$0xf]
      %v3284 = vld [vmem:[%s10 + $0x10] sm:$0xf]
      %v3285 = vld [vmem:[%s10 + $0x14] sm:$0xf]
      %v3286 = vld [vmem:[%s10 + $0x18] sm:$0xf]
      %v3287 = vld [vmem:[%s10 + $0x1c] sm:$0xf]
      %v3288 = vld [vmem:[%s10 + $0x20] sm:$0xf]
      %v3289 = vld [vmem:[%s10 + $0x24] sm:$0xf]
      %v3290 = vld [vmem:[%s10 + $0x28] sm:$0xf]
      %v3291 = vld [vmem:[%s10 + $0x2c] sm:$0xf]
      %v3292 = vld [vmem:[%s10 + $0x30] sm:$0xf]
      %v3293 = vld [vmem:[%s10 + $0x34] sm:$0xf]
      %v3294 = vld [vmem:[%s10 + $0x38] sm:$0xf]
      %v3295 = vld [vmem:[%s10 + $0x3c] sm:$0xf]
      %v3312 = vunpack.c.l.b16 %v3280
      %v3313 = vunpack.c.l.b16 %v3281
      %v3314 = vunpack.c.l.b16 %v3282
      %v3315 = vunpack.c.l.b16 %v3283
      %v3316 = vunpack.c.l.b16 %v3284
      %v3317 = vunpack.c.l.b16 %v3285
      %v3318 = vunpack.c.l.b16 %v3286
      %v3319 = vunpack.c.l.b16 %v3287
      %v3320 = vunpack.c.l.b16 %v3288
      %v3321 = vunpack.c.l.b16 %v3289
      %v3322 = vunpack.c.l.b16 %v3290
      %v3323 = vunpack.c.l.b16 %v3291
      %v3324 = vunpack.c.l.b16 %v3292
      %v3325 = vunpack.c.l.b16 %v3293
      %v3326 = vunpack.c.l.b16 %v3294
      %v3327 = vunpack.c.l.b16 %v3295
      %v3328 = vpack.c.b16 %v3313, %v3312
      %v3329 = vpack.c.b16 %v3315, %v3314
      %v3330 = vpack.c.b16 %v3317, %v3316
      %v3331 = vpack.c.b16 %v3319, %v3318
      %v3332 = vpack.c.b16 %v3321, %v3320
      %v3333 = vpack.c.b16 %v3323, %v3322
      %v3334 = vpack.c.b16 %v3325, %v3324
      %v3335 = vpack.c.b16 %v3327, %v3326
      %3344 = vmatprep.subr.bf16.mxu0 0
      %3345 = vmatpush1.bf16.msra.mxu0 %v3328
      %3346 = vmatprep.subr.bf16.mxu0 0
      %3347 = vmatpush1.bf16.msra.mxu0 %v3329
      %3348 = vmatprep.subr.bf16.mxu0 0
      %3349 = vmatpush1.bf16.msra.mxu0 %v3330
      %3350 = vmatprep.subr.bf16.mxu0 0
      %3351 = vmatpush1.bf16.msra.mxu0 %v3331
      %3352 = vmatprep.subr.bf16.mxu0 0
      %3353 = vmatpush1.bf16.msra.mxu0 %v3332
      %3354 = vmatprep.subr.bf16.mxu0 0
      %3355 = vmatpush1.bf16.msra.mxu0 %v3333
      %3356 = vmatprep.subr.bf16.mxu0 0
      %3357 = vmatpush1.bf16.msra.mxu0 %v3334
      %3358 = vmatprep.subr.bf16.mxu0 0
      %3359 = vmatpush1.bf16.msra.mxu0 %v3335
      %3360 = vmatprep.subr.bf16.mxu0 0
      %3361 = vmatpush1.bf16.msra.mxu0 0
      %3362 = vmatprep.subr.bf16.mxu0 0
      %3363 = vmatpush1.bf16.msra.mxu0 0
      %3364 = vmatprep.subr.bf16.mxu0 0
      %3365 = vmatpush1.bf16.msra.mxu0 0
      %3366 = vmatprep.subr.bf16.mxu0 0
      %3367 = vmatpush1.bf16.msra.mxu0 0
      %3368 = vmatprep.subr.bf16.mxu0 0
      %3369 = vmatpush1.bf16.msra.mxu0 0
      %3370 = vmatprep.subr.bf16.mxu0 0
      %3371 = vmatpush1.bf16.msra.mxu0 0
      %3372 = vmatprep.subr.bf16.mxu0 0
      %3373 = vmatpush1.bf16.msra.mxu0 0
      %3374 = vmatprep.subr.bf16.mxu0 0
      %3375 = vmatpush1.bf16.msra.mxu0 0
      %3376 = vmatprep.mubr.bf16.mxu0 0
      %3377 = vmatmul.mubr.bf16.gmra.mrb[0].mxu0 %v3276
      %v3378 = vpop.f32.mrb[0].mxu0
      %v3379 = vadd.f32 0.0, %v3378
      %v3380 = vpop.f32.mrb[0].mxu0
      %v3381 = vpop.f32.mrb[0].mxu0
      %v3382 = vadd.f32 0.0, %v3381
      %v3383 = vpop.f32.mrb[0].mxu0
      %3384 = vmatprep.mubr.bf16.mxu0 0
      %3385 = vmatmul.mubr.bf16.gmra.mrb[0].mxu0 %v3277
      %v3386 = vpop.f32.mrb[0].mxu0
      %v3387 = vadd.f32 0.0, %v3386
      %v3388 = vpop.f32.mrb[0].mxu0
      %v3389 = vpop.f32.mrb[0].mxu0
      %v3390 = vadd.f32 0.0, %v3389
      %v3391 = vpop.f32.mrb[0].mxu0
      %3392 = vmatprep.mubr.bf16.mxu0 0
      %3393 = vmatmul.mubr.bf16.gmra.mrb[0].mxu0 %v3278
      %v3394 = vpop.f32.mrb[0].mxu0
      %v3395 = vadd.f32 0.0, %v3394
      %v3396 = vpop.f32.mrb[0].mxu0
      %v3397 = vpop.f32.mrb[0].mxu0
      %v3398 = vadd.f32 0.0, %v3397
      %v3399 = vpop.f32.mrb[0].mxu0
      %3400 = vmatprep.mubr.bf16.mxu0 0
      %3401 = vmatmul.mubr.bf16.gmra.mrb[0].mxu0 %v3279
      %v3402 = vpop.f32.mrb[0].mxu0
      %v3403 = vadd.f32 0.0, %v3402
      %v3404 = vpop.f32.mrb[0].mxu0
      %v3405 = vpop.f32.mrb[0].mxu0
      %v3406 = vadd.f32 0.0, %v3405
      %v3407 = vpop.f32.mrb[0].mxu0
      %3408 = vdwg.mxu0
      %v3409 = vld [vmem:[%s11] sm:$0x1]
      %v3411 = vlaneseq
      %v3412 = vshrl.u32 %v3411, 7
      %v3413 = vsub.s32 0, %v3412
      %v3414 = vrot.slane %v3409, %v3413
      %v3416 = vmul.f32 %v3379, %v3414
      %v3417 = vmul.f32 %v3382, %v3414
      %v3418 = vmul.f32 %v3387, %v3414
      %v3419 = vmul.f32 %v3390, %v3414
      %v3420 = vmul.f32 %v3395, %v3414
      %v3421 = vmul.f32 %v3398, %v3414
      %v3422 = vmul.f32 %v3403, %v3414
      %v3423 = vmul.f32 %v3406, %v3414
      %v3424 = vld [vmem:[%s12] sm:$0x1]
      %v3426 = vlaneseq
      %v3427 = vshrl.u32 %v3426, 7
      %v3428 = vsub.s32 0, %v3427
      %v3429 = vrot.slane %v3424, %v3428
      %v3431 = vadd.f32 %v3416, %v3429
      %v3432 = vadd.f32 %v3417, %v3429
      %v3433 = vadd.f32 %v3418, %v3429
      %v3434 = vadd.f32 %v3419, %v3429
      %v3435 = vadd.f32 %v3420, %v3429
      %v3436 = vadd.f32 %v3421, %v3429
      %v3437 = vadd.f32 %v3422, %v3429
      %v3438 = vadd.f32 %v3423, %v3429
      %v3439 = vadd.f32 %v3260, %v3431
      %v3440 = vadd.f32 %v3261, %v3432
      %v3441 = vadd.f32 %v3262, %v3433
      %v3442 = vadd.f32 %v3263, %v3434
      %v3443 = vadd.f32 %v3264, %v3435
      %v3444 = vadd.f32 %v3265, %v3436
      %v3445 = vadd.f32 %v3266, %v3437
      %v3446 = vadd.f32 %v3267, %v3438
      %v3447 = vmax.f32 %v3439, 0.0
      %v3448 = vmax.f32 %v3440, 0.0
      %v3449 = vmax.f32 %v3441, 0.0
      %v3450 = vmax.f32 %v3442, 0.0
      %v3451 = vmax.f32 %v3443, 0.0
      %v3452 = vmax.f32 %v3444, 0.0
      %v3453 = vmax.f32 %v3445, 0.0
      %v3454 = vmax.f32 %v3446, 0.0
      %v3455 = vadd.f32 %v3447, %v3448
      %v3456 = vadd.f32 %v3455, %v3449
      %v3457 = vadd.f32 %v3456, %v3450
      %v3458 = vadd.f32 %v3457, %v3451
      %v3459 = vadd.f32 %v3458, %v3452
      %v3460 = vadd.f32 %v3459, %v3453
      %v3461 = vadd.f32 %v3460, %v3454
      %v3462 = vrot.slane %v3461, 4
      %v3463 = vadd.f32 %v3461, %v3462
      %v3464 = vrot.slane %v3463, 2
      %v3465 = vadd.f32 %v3463, %v3464
      %v3466 = vrot.slane %v3465, 1
      %v3467 = vadd.f32 %v3465, %v3466
      %v3468 = vrcp.pop 64.0
      %v3469 = vmul.f32 %v3467, %v3468
      %3470 = vst [vmem:[%s498] sm:$0xff] %v3469
      %p3471 = scmp.lt.s32.totalorder %s24, 1
      %s3472 = scalar_select %p3471, %s24, 1
      %s3473 = smul.addr %s3472, 8
      %s3474 = scalar_lea.vmem %s13, %s3473
      // Predicated region
      $region73: #{image_encoder_forward.3} parent=71 // pred_check
        %p3475 = pneg %p335
      $region74: #{image_encoder_forward.3} parent=71 // pred_check_branch
        %3477 = sbr.rel (%p3475) target = $region76
      $region75: #{image_encoder_forward.3} parent=71 // pred_region
        _
      $region76: #{image_encoder_forward.3} parent=71 // pred_fallthru
        _
    $region72: #{image_encoder_forward.3} parent=5 // pred_fallthru
      _
    %p3478 = scmp.le.s32.totalorder 2, %s19
    // Predicated region
    $region77: #{image_encoder_forward.3} parent=5 // pred_check
      %p3479 = pneg %p3478
    $region78: #{image_encoder_forward.3} parent=5 // pred_check_branch
      %3481 = sbr.rel (%p3479) target = $region80
    $region79: #{image_encoder_forward.3} parent=5 // pred_region
      %s3482 = ssub.s32 %s19, 2
      // Predicated region
      $region81: #{image_encoder_forward.3} parent=79 // pred_check
        %p3483 = pneg %p341
      $region82: #{image_encoder_forward.3} parent=79 // pred_check_branch
        %3485 = sbr.rel (%p3483) target = $region84
      $region83: #{image_encoder_forward.3} parent=79 // pred_region
        %p3486 = scmp.lt.s32.totalorder %s25, 1
        %s3487 = scalar_select %p3486, %s25, 1
        %s3488 = smul.addr %s3487, 8
        %s3489 = scalar_lea.vmem %s13, %s3488
      $region84: #{image_encoder_forward.3} parent=79 // pred_fallthru
        _
    $region80: #{image_encoder_forward.3} parent=5 // pred_fallthru
      _
  $region6: #{image_encoder_forward.3} parent=0 // loop_footer
    %s23 = sadd.s32 1, %s19
  $region7: #{image_encoder_forward.3} parent=0 // loop_footer_branch
    %18 = sbr.rel target = $region3
  $region8: #{image_encoder_forward.3} parent=0 // loop_exit
    _

// kernel: image_encoder_forward.2
$region0: #{image_encoder_forward.2}
  #allocation0 [shape = 'u32[]', space=smem, size = 0x4, offset = 0x4, fixed_abs, tag = 'smem constant byte address 0x4 - core index']
  #allocation1 [shape = 'u32[144,128]{1,0:T(1,128)}', space=vmem, size = 0x12000, scoped, tag = 'internal scratch']
  #allocation2 [shape = 'f32[18,18,128]{2,1,0:T(8,128)}', space=vmem, size = 0x36000, scoped, tag = 'scratch operand']
  #allocation3 [shape = 'f32[18,18,128]{2,1,0:T(8,128)}', space=vmem, size = 0x36000, scoped, tag = 'scratch operand']
  %s0 = inlined_call_operand.vmem [shape: f32[2,16,16,128], index: 0, kind: input, shape index: {}]
  %s1 = inlined_call_operand.vmem [shape: f32[1,128], index: 1, kind: input, shape index: {}]
  %s2 = inlined_call_operand.vmem [shape: f32[1,128], index: 2, kind: input, shape index: {}]
  %s3 = inlined_call_operand.vmem [shape: bf16[9,128,128], index: 3, kind: input, shape index: {}]
  %s4 = inlined_call_operand.vmem [shape: f32[1,128], index: 4, kind: input, shape index: {}]
  %s5 = inlined_call_operand.vmem [shape: f32[1,128], index: 5, kind: input, shape index: {}]
  %s6 = inlined_call_operand.vmem [shape: bf16[9,128,128], index: 6, kind: input, shape index: {}]
  %s7 = inlined_call_operand.vmem [shape: f32[1,128], index: 7, kind: input, shape index: {}]
  %s8 = inlined_call_operand.vmem [shape: f32[1,128], index: 8, kind: input, shape index: {}]
  %s9 = inlined_call_operand.vmem [shape: bf16[2,16,16,128], index: 9, kind: output, shape index: {}]
  %s10 = sld [smem:[#allocation0]]
  $region69: #{image_encoder_forward.2} parent=0
    _
  %s12 = ssub.s32 1, %s10
  %s13 = scalar_select 0, %s12, %s10
  loop: start=0, step=1, limit=4
  $region2: #{image_encoder_forward.2} parent=0 // loop_pre_header
    _
  $region3: #{image_encoder_forward.2} parent=0 // loop_header
    %s15 = sphi 0, %s19
    %p16 = scmp.ge.s32.totalorder %s15, 4
    %s25 = sphi 0, %s27
    %s28 = sphi 0, %s25
    %s29 = sphi 0, %s28
    %s45 = sphi 0, %s29
    %s49 = sphi 0, %s49
    %s51 = sphi 0, %s49
    %s52 = sphi 0, %s51
    %s66 = sphi 0, %s52
    %s70 = sphi 0, %s70
    %s72 = sphi 0, %s70
    %s73 = sphi 0, %s72
    %s87 = sphi 0, %s73
    %s91 = sphi 0, %s91
    %s93 = sphi 0, %s91
    %s94 = sphi 0, %s93
    %s108 = sphi 0, %s94
    %s112 = sphi 0, %s112
    %s114 = sphi 0, %s112
    %s115 = sphi 0, %s114
    %s129 = sphi 0, %s115
    %s133 = sphi 0, %s133
    %s135 = sphi 0, %s133
    %s136 = sphi 0, %s135
    %s150 = sphi 0, %s136
    %s154 = sphi 0, %s154
    %s156 = sphi 0, %s154
    %s157 = sphi 0, %s156
    %s171 = sphi 0, %s157
    %s175 = sphi 0, %s175
    %s177 = sphi 0, %s175
    %s178 = sphi 0, %s177
    %s192 = sphi 0, %s178
    %s196 = sphi 0, %s196
    %s198 = sphi 0, %s196
    %s199 = sphi 0, %s198
    %s213 = sphi 0, %s199
    %s219 = sphi 0, %s221
    %s222 = sphi 0, %s219
    %s223 = sphi 0, %s222
    %s239 = sphi 0, %s223
  $region4: #{image_encoder_forward.2} parent=0 // loop_header_branch
    %18 = sbr.rel (%p16) target = $region8
  $region5: #{image_encoder_forward.2} parent=0 // loop_body
    %s20 = ssub.s32 %s15, 1
    %s21 = ssub.s32 %s15, 2
    %s22 = sadd.s32 %s15, 1
    %s23 = ssub.s32 %s15, %s22
    %p24 = scmp.eq.s32.totalorder %s23, 0
    %s26 = sadd.s32 %s25, 1
    %s27 = scalar_select %p24, %s25, %s26
    %p30 = pneg %p24
    %p31 = scmp.eq.s32.totalorder %s15, 1
    %p32 = por %p30, %p31
    %p33 = scmp.ne.s32.totalorder %s25, %s28
    %p34 = scmp.eq.s32.totalorder %s15, 0
    %p35 = por %p33, %p34
    %p36 = scmp.ne.s32.totalorder %s25, %s28
    %p37 = scmp.eq.s32.totalorder %s20, 1
    %p38 = por %p36, %p37
    %p39 = scmp.ne.s32.totalorder %s28, %s29
    %p40 = scmp.eq.s32.totalorder %s20, 0
    %p41 = por %p39, %p40
    %p42 = scmp.ne.s32.totalorder %s28, %s29
    %p43 = scmp.eq.s32.totalorder %s21, 1
    %p44 = por %p42, %p43
    %p46 = scmp.ne.s32.totalorder %s29, %s45
    %p47 = scmp.eq.s32.totalorder %s21, 0
    %p48 = por %p46, %p47
    %s50 = sadd.s32 %s49, 1
    %p53 = scmp.eq.s32.totalorder %s15, 1
    %p54 = scmp.ne.s32.totalorder %s49, %s51
    %p55 = scmp.eq.s32.totalorder %s15, 0
    %p56 = por %p54, %p55
    %p57 = scmp.ne.s32.totalorder %s49, %s51
    %p58 = scmp.eq.s32.totalorder %s20, 1
    %p59 = por %p57, %p58
    %p60 = scmp.ne.s32.totalorder %s51, %s52
    %p61 = scmp.eq.s32.totalorder %s20, 0
    %p62 = por %p60, %p61
    %p63 = scmp.ne.s32.totalorder %s51, %s52
    %p64 = scmp.eq.s32.totalorder %s21, 1
    %p65 = por %p63, %p64
    %p67 = scmp.ne.s32.totalorder %s52, %s66
    %p68 = scmp.eq.s32.totalorder %s21, 0
    %p69 = por %p67, %p68
    %s71 = sadd.s32 %s70, 1
    %p74 = scmp.eq.s32.totalorder %s15, 1
    %p75 = scmp.ne.s32.totalorder %s70, %s72
    %p76 = scmp.eq.s32.totalorder %s15, 0
    %p77 = por %p75, %p76
    %p78 = scmp.ne.s32.totalorder %s70, %s72
    %p79 = scmp.eq.s32.totalorder %s20, 1
    %p80 = por %p78, %p79
    %p81 = scmp.ne.s32.totalorder %s72, %s73
    %p82 = scmp.eq.s32.totalorder %s20, 0
    %p83 = por %p81, %p82
    %p84 = scmp.ne.s32.totalorder %s72, %s73
    %p85 = scmp.eq.s32.totalorder %s21, 1
    %p86 = por %p84, %p85
    %p88 = scmp.ne.s32.totalorder %s73, %s87
    %p89 = scmp.eq.s32.totalorder %s21, 0
    %p90 = por %p88, %p89
    %s92 = sadd.s32 %s91, 1
    %p95 = scmp.eq.s32.totalorder %s15, 1
    %p96 = scmp.ne.s32.totalorder %s91, %s93
    %p97 = scmp.eq.s32.totalorder %s15, 0
    %p98 = por %p96, %p97
    %p99 = scmp.ne.s32.totalorder %s91, %s93
    %p100 = scmp.eq.s32.totalorder %s20, 1
    %p101 = por %p99, %p100
    %p102 = scmp.ne.s32.totalorder %s93, %s94
    %p103 = scmp.eq.s32.totalorder %s20, 0
    %p104 = por %p102, %p103
    %p105 = scmp.ne.s32.totalorder %s93, %s94
    %p106 = scmp.eq.s32.totalorder %s21, 1
    %p107 = por %p105, %p106
    %p109 = scmp.ne.s32.totalorder %s94, %s108
    %p110 = scmp.eq.s32.totalorder %s21, 0
    %p111 = por %p109, %p110
    %s113 = sadd.s32 %s112, 1
    %p116 = scmp.eq.s32.totalorder %s15, 1
    %p117 = scmp.ne.s32.totalorder %s112, %s114
    %p118 = scmp.eq.s32.totalorder %s15, 0
    %p119 = por %p117, %p118
    %p120 = scmp.ne.s32.totalorder %s112, %s114
    %p121 = scmp.eq.s32.totalorder %s20, 1
    %p122 = por %p120, %p121
    %p123 = scmp.ne.s32.totalorder %s114, %s115
    %p124 = scmp.eq.s32.totalorder %s20, 0
    %p125 = por %p123, %p124
    %p126 = scmp.ne.s32.totalorder %s114, %s115
    %p127 = scmp.eq.s32.totalorder %s21, 1
    %p128 = por %p126, %p127
    %p130 = scmp.ne.s32.totalorder %s115, %s129
    %p131 = scmp.eq.s32.totalorder %s21, 0
    %p132 = por %p130, %p131
    %s134 = sadd.s32 %s133, 1
    %p137 = scmp.eq.s32.totalorder %s15, 1
    %p138 = scmp.ne.s32.totalorder %s133, %s135
    %p139 = scmp.eq.s32.totalorder %s15, 0
    %p140 = por %p138, %p139
    %p141 = scmp.ne.s32.totalorder %s133, %s135
    %p142 = scmp.eq.s32.totalorder %s20, 1
    %p143 = por %p141, %p142
    %p144 = scmp.ne.s32.totalorder %s135, %s136
    %p145 = scmp.eq.s32.totalorder %s20, 0
    %p146 = por %p144, %p145
    %p147 = scmp.ne.s32.totalorder %s135, %s136
    %p148 = scmp.eq.s32.totalorder %s21, 1
    %p149 = por %p147, %p148
    %p151 = scmp.ne.s32.totalorder %s136, %s150
    %p152 = scmp.eq.s32.totalorder %s21, 0
    %p153 = por %p151, %p152
    %s155 = sadd.s32 %s154, 1
    %p158 = scmp.eq.s32.totalorder %s15, 1
    %p159 = scmp.ne.s32.totalorder %s154, %s156
    %p160 = scmp.eq.s32.totalorder %s15, 0
    %p161 = por %p159, %p160
    %p162 = scmp.ne.s32.totalorder %s154, %s156
    %p163 = scmp.eq.s32.totalorder %s20, 1
    %p164 = por %p162, %p163
    %p165 = scmp.ne.s32.totalorder %s156, %s157
    %p166 = scmp.eq.s32.totalorder %s20, 0
    %p167 = por %p165, %p166
    %p168 = scmp.ne.s32.totalorder %s156, %s157
    %p169 = scmp.eq.s32.totalorder %s21, 1
    %p170 = por %p168, %p169
    %p172 = scmp.ne.s32.totalorder %s157, %s171
    %p173 = scmp.eq.s32.totalorder %s21, 0
    %p174 = por %p172, %p173
    %s176 = sadd.s32 %s175, 1
    %p179 = scmp.eq.s32.totalorder %s15, 1
    %p180 = scmp.ne.s32.totalorder %s175, %s177
    %p181 = scmp.eq.s32.totalorder %s15, 0
    %p182 = por %p180, %p181
    %p183 = scmp.ne.s32.totalorder %s175, %s177
    %p184 = scmp.eq.s32.totalorder %s20, 1
    %p185 = por %p183, %p184
    %p186 = scmp.ne.s32.totalorder %s177, %s178
    %p187 = scmp.eq.s32.totalorder %s20, 0
    %p188 = por %p186, %p187
    %p189 = scmp.ne.s32.totalorder %s177, %s178
    %p190 = scmp.eq.s32.totalorder %s21, 1
    %p191 = por %p189, %p190
    %p193 = scmp.ne.s32.totalorder %s178, %s192
    %p194 = scmp.eq.s32.totalorder %s21, 0
    %p195 = por %p193, %p194
    %s197 = sadd.s32 %s196, 1
    %p200 = scmp.eq.s32.totalorder %s15, 1
    %p201 = scmp.ne.s32.totalorder %s196, %s198
    %p202 = scmp.eq.s32.totalorder %s15, 0
    %p203 = por %p201, %p202
    %p204 = scmp.ne.s32.totalorder %s196, %s198
    %p205 = scmp.eq.s32.totalorder %s20, 1
    %p206 = por %p204, %p205
    %p207 = scmp.ne.s32.totalorder %s198, %s199
    %p208 = scmp.eq.s32.totalorder %s20, 0
    %p209 = por %p207, %p208
    %p210 = scmp.ne.s32.totalorder %s198, %s199
    %p211 = scmp.eq.s32.totalorder %s21, 1
    %p212 = por %p210, %p211
    %p214 = scmp.ne.s32.totalorder %s199, %s213
    %p215 = scmp.eq.s32.totalorder %s21, 0
    %p216 = por %p214, %p215
    %s217 = ssub.s32 %s15, %s22
    %p218 = scmp.eq.s32.totalorder %s217, 0
    %s220 = sadd.s32 %s219, 1
    %s221 = scalar_select %p218, %s219, %s220
    %p224 = pneg %p218
    %p225 = scmp.eq.s32.totalorder %s15, 1
    %p226 = por %p224, %p225
    %p227 = scmp.ne.s32.totalorder %s219, %s222
    %p228 = scmp.eq.s32.totalorder %s15, 0
    %p229 = por %p227, %p228
    %p230 = scmp.ne.s32.totalorder %s219, %s222
    %p231 = scmp.eq.s32.totalorder %s20, 1
    %p232 = por %p230, %p231
    %p233 = scmp.ne.s32.totalorder %s222, %s223
    %p234 = scmp.eq.s32.totalorder %s20, 0
    %p235 = por %p233, %p234
    %p236 = scmp.ne.s32.totalorder %s222, %s223
    %p237 = scmp.eq.s32.totalorder %s21, 1
    %p238 = por %p236, %p237
    %p240 = scmp.ne.s32.totalorder %s223, %s239
    %p241 = scmp.eq.s32.totalorder %s21, 0
    %p242 = por %p240, %p241
    %p243 = scmp.le.s32.totalorder 1, %s15
    %p244 = scmp.lt.s32.totalorder %s15, 3
    %p245 = pnand %p243, %p244
    %p246 = pneg %p245
    // Predicated region
    $region9: #{image_encoder_forward.2} parent=5 // pred_check
      _
    $region10: #{image_encoder_forward.2} parent=5 // pred_check_branch
      %248 = sbr.rel (%p245) target = $region12
    $region11: #{image_encoder_forward.2} parent=5 // pred_region
      %s249 = ssub.s32 %s15, 1
      // Predicated region
      $region13: #{image_encoder_forward.2} parent=11 // pred_check
        %p250 = pneg %p62
      $region14: #{image_encoder_forward.2} parent=11 // pred_check_branch
        %252 = sbr.rel (%p250) target = $region16
      $region15: #{image_encoder_forward.2} parent=11 // pred_region
        _
      $region16: #{image_encoder_forward.2} parent=11 // pred_fallthru
        _
      // Predicated region
      $region17: #{image_encoder_forward.2} parent=11 // pred_check
        %p253 = pneg %p83
      $region18: #{image_encoder_forward.2} parent=11 // pred_check_branch
        %255 = sbr.rel (%p253) target = $region20
      $region19: #{image_encoder_forward.2} parent=11 // pred_region
        _
      $region20: #{image_encoder_forward.2} parent=11 // pred_fallthru
        _
      // Predicated region
      $region21: #{image_encoder_forward.2} parent=11 // pred_check
        %p256 = pneg %p104
      $region22: #{image_encoder_forward.2} parent=11 // pred_check_branch
        %258 = sbr.rel (%p256) target = $region24
      $region23: #{image_encoder_forward.2} parent=11 // pred_region
        _
      $region24: #{image_encoder_forward.2} parent=11 // pred_fallthru
        _
      // Predicated region
      $region25: #{image_encoder_forward.2} parent=11 // pred_check
        %p259 = pneg %p125
      $region26: #{image_encoder_forward.2} parent=11 // pred_check_branch
        %261 = sbr.rel (%p259) target = $region28
      $region27: #{image_encoder_forward.2} parent=11 // pred_region
        _
      $region28: #{image_encoder_forward.2} parent=11 // pred_fallthru
        _
      // Predicated region
      $region29: #{image_encoder_forward.2} parent=11 // pred_check
        %p262 = pneg %p146
      $region30: #{image_encoder_forward.2} parent=11 // pred_check_branch
        %264 = sbr.rel (%p262) target = $region32
      $region31: #{image_encoder_forward.2} parent=11 // pred_region
        _
      $region32: #{image_encoder_forward.2} parent=11 // pred_fallthru
        _
      // Predicated region
      $region33: #{image_encoder_forward.2} parent=11 // pred_check
        %p265 = pneg %p167
      $region34: #{image_encoder_forward.2} parent=11 // pred_check_branch
        %267 = sbr.rel (%p265) target = $region36
      $region35: #{image_encoder_forward.2} parent=11 // pred_region
        _
      $region36: #{image_encoder_forward.2} parent=11 // pred_fallthru
        _
      // Predicated region
      $region37: #{image_encoder_forward.2} parent=11 // pred_check
        %p268 = pneg %p188
      $region38: #{image_encoder_forward.2} parent=11 // pred_check_branch
        %270 = sbr.rel (%p268) target = $region40
      $region39: #{image_encoder_forward.2} parent=11 // pred_region
        _
      $region40: #{image_encoder_forward.2} parent=11 // pred_fallthru
        _
      // Predicated region
      $region41: #{image_encoder_forward.2} parent=11 // pred_check
        %p271 = pneg %p209
      $region42: #{image_encoder_forward.2} parent=11 // pred_check_branch
        %273 = sbr.rel (%p271) target = $region44
      $region43: #{image_encoder_forward.2} parent=11 // pred_region
        _
      $region44: #{image_encoder_forward.2} parent=11 // pred_fallthru
        _
    $region12: #{image_encoder_forward.2} parent=5 // pred_fallthru
      _
    %p274 = scmp.lt.s32.totalorder %s15, 2
    // Predicated region
    $region45: #{image_encoder_forward.2} parent=5 // pred_check
      %p275 = pneg %p274
    $region46: #{image_encoder_forward.2} parent=5 // pred_check_branch
      %277 = sbr.rel (%p275) target = $region48
    $region47: #{image_encoder_forward.2} parent=5 // pred_region
      // Predicated region
      $region49: #{image_encoder_forward.2} parent=47 // pred_check
        %p278 = pneg %p35
      $region50: #{image_encoder_forward.2} parent=47 // pred_check_branch
        %280 = sbr.rel (%p278) target = $region52
      $region51: #{image_encoder_forward.2} parent=47 // pred_region
        %p281 = scmp.lt.s32.totalorder %s15, 1
        %s282 = scalar_select %p281, %s15, 1
        %s283 = smul.addr %s282, 32
        %s284 = smul.addr %s283, 8
        %s285 = scalar_lea.vmem %s0, %s284
      $region52: #{image_encoder_forward.2} parent=47 // pred_fallthru
        _
    $region48: #{image_encoder_forward.2} parent=5 // pred_fallthru
      _
    %p286 = scmp.le.s32.totalorder 1, %s15
    %p287 = scmp.lt.s32.totalorder %s15, 3
    %p288 = pnand %p286, %p287
    %p289 = pneg %p288
    // Predicated region
    $region53: #{image_encoder_forward.2} parent=5 // pred_check
      _
    $region54: #{image_encoder_forward.2} parent=5 // pred_check_branch
      %291 = sbr.rel (%p288) target = $region56
    $region55: #{image_encoder_forward.2} parent=5 // pred_region
      %s292 = ssub.s32 %s15, 1
      %p293 = scmp.lt.s32.totalorder %s20, 1
      %s294 = scalar_select %p293, %s20, 1
      %s295 = smul.addr %s294, 32
      %s296 = smul.addr %s295, 8
      %s297 = scalar_lea.vmem %s0, %s296
      %p298 = pneg %p41
      %p299 = pneg %p38
      %p300 = pneg %p62
      %p301 = pneg %p59
      %p302 = pneg %p83
      %p303 = pneg %p80
      %p304 = pneg %p104
      %p305 = pneg %p101
      %p306 = pneg %p125
      %p307 = pneg %p122
      %p308 = pneg %p146
      %p309 = pneg %p143
      %p310 = pneg %p167
      %p311 = pneg %p164
      %p312 = pneg %p188
      %p313 = pneg %p185
      %p314 = pneg %p209
      %p315 = pneg %p206
      %p316 = pneg %p235
      %p317 = pneg %p232
      %p318 = scmp.lt.s32.totalorder %s20, 1
      %s319 = scalar_select %p318, %s20, 1
      %s320 = smul.addr %s319, 32
      %s321 = smul.addr %s320, 4
      %s322 = scalar_lea.vmem %s9, %s321
      %p323 = scmp.lt.s32.totalorder %s20, 1
      %s324 = scalar_select %p323, %s20, 1
      %s325 = smul.addr %s324, 32
      %s326 = smul.addr %s325, 8
      %s327 = scalar_lea.vmem %s0, %s326
      %p328 = scmp.lt.s32.totalorder %s20, 1
      %s329 = scalar_select %p328, %s20, 1
      %s330 = smul.addr %s329, 32
      %s331 = smul.addr %s330, 4
      %s332 = scalar_lea.vmem %s9, %s331
      %v334 = vld [vmem:[%s327] sm:$0xff]
      %v335 = vld [vmem:[%s327 + $0x8] sm:$0xff]
      %v336 = vld [vmem:[%s327 + $0x10] sm:$0xff]
      %v337 = vld [vmem:[%s327 + $0x18] sm:$0xff]
      %v338 = vld [vmem:[%s327 + $0x20] sm:$0xff]
      %v339 = vld [vmem:[%s327 + $0x28] sm:$0xff]
      %v340 = vld [vmem:[%s327 + $0x30] sm:$0xff]
      %v341 = vld [vmem:[%s327 + $0x38] sm:$0xff]
      %v342 = vld [vmem:[%s327 + $0x40] sm:$0xff]
      %v343 = vld [vmem:[%s327 + $0x48] sm:$0xff]
      %v344 = vld [vmem:[%s327 + $0x50] sm:$0xff]
      %v345 = vld [vmem:[%s327 + $0x58] sm:$0xff]
      %v346 = vld [vmem:[%s327 + $0x60] sm:$0xff]
      %v347 = vld [vmem:[%s327 + $0x68] sm:$0xff]
      %v348 = vld [vmem:[%s327 + $0x70] sm:$0xff]
      %v349 = vld [vmem:[%s327 + $0x78] sm:$0xff]
      %v350 = vld [vmem:[%s327 + $0x80] sm:$0xff]
      %v351 = vld [vmem:[%s327 + $0x88] sm:$0xff]
      %v352 = vld [vmem:[%s327 + $0x90] sm:$0xff]
      %v353 = vld [vmem:[%s327 + $0x98] sm:$0xff]
      %v354 = vld [vmem:[%s327 + $0xa0] sm:$0xff]
      %v355 = vld [vmem:[%s327 + $0xa8] sm:$0xff]
      %v356 = vld [vmem:[%s327 + $0xb0] sm:$0xff]
      %v357 = vld [vmem:[%s327 + $0xb8] sm:$0xff]
      %v358 = vld [vmem:[%s327 + $0xc0] sm:$0xff]
      %v359 = vld [vmem:[%s327 + $0xc8] sm:$0xff]
      %v360 = vld [vmem:[%s327 + $0xd0] sm:$0xff]
      %v361 = vld [vmem:[%s327 + $0xd8] sm:$0xff]
      %v362 = vld [vmem:[%s327 + $0xe0] sm:$0xff]
      %v363 = vld [vmem:[%s327 + $0xe8] sm:$0xff]
      %v364 = vld [vmem:[%s327 + $0xf0] sm:$0xff]
      %v365 = vld [vmem:[%s327 + $0xf8] sm:$0xff]
      %v366 = vld [vmem:[%s1] sm:$0x1]
      %v368 = vlaneseq
      %v369 = vshrl.u32 %v368, 7
      %v370 = vsub.s32 0, %v369
      %v371 = vrot.slane %v366, %v370
      %v373 = vmul.f32 %v334, %v371
      %v374 = vmul.f32 %v335, %v371
      %v375 = vmul.f32 %v336, %v371
      %v376 = vmul.f32 %v337, %v371
      %v377 = vmul.f32 %v338, %v371
      %v378 = vmul.f32 %v339, %v371
      %v379 = vmul.f32 %v340, %v371
      %v380 = vmul.f32 %v341, %v371
      %v381 = vmul.f32 %v342, %v371
      %v382 = vmul.f32 %v343, %v371
      %v383 = vmul.f32 %v344, %v371
      %v384 = vmul.f32 %v345, %v371
      %v385 = vmul.f32 %v346, %v371
      %v386 = vmul.f32 %v347, %v371
      %v387 = vmul.f32 %v348, %v371
      %v388 = vmul.f32 %v349, %v371
      %v389 = vmul.f32 %v350, %v371
      %v390 = vmul.f32 %v351, %v371
      %v391 = vmul.f32 %v352, %v371
      %v392 = vmul.f32 %v353, %v371
      %v393 = vmul.f32 %v354, %v371
      %v394 = vmul.f32 %v355, %v371
      %v395 = vmul.f32 %v356, %v371
      %v396 = vmul.f32 %v357, %v371
      %v397 = vmul.f32 %v358, %v371
      %v398 = vmul.f32 %v359, %v371
      %v399 = vmul.f32 %v360, %v371
      %v400 = vmul.f32 %v361, %v371
      %v401 = vmul.f32 %v362, %v371
      %v402 = vmul.f32 %v363, %v371
      %v403 = vmul.f32 %v364, %v371
      %v404 = vmul.f32 %v365, %v371
      %v405 = vld [vmem:[%s2] sm:$0x1]
      %v407 = vlaneseq
      %v408 = vshrl.u32 %v407, 7
      %v409 = vsub.s32 0, %v408
      %v410 = vrot.slane %v405, %v409
      %v412 = vadd.f32 %v373, %v410
      %v413 = vadd.f32 %v374, %v410
      %v414 = vadd.f32 %v375, %v410
      %v415 = vadd.f32 %v376, %v410
      %v416 = vadd.f32 %v377, %v410
      %v417 = vadd.f32 %v378, %v410
      %v418 = vadd.f32 %v379, %v410
      %v419 = vadd.f32 %v380, %v410
      %v420 = vadd.f32 %v381, %v410
      %v421 = vadd.f32 %v382, %v410
      %v422 = vadd.f32 %v383, %v410
      %v423 = vadd.f32 %v384, %v410
      %v424 = vadd.f32 %v385, %v410
      %v425 = vadd.f32 %v386, %v410
      %v426 = vadd.f32 %v387, %v410
      %v427 = vadd.f32 %v388, %v410
      %v428 = vadd.f32 %v389, %v410
      %v429 = vadd.f32 %v390, %v410
      %v430 = vadd.f32 %v391, %v410
      %v431 = vadd.f32 %v392, %v410
      %v432 = vadd.f32 %v393, %v410
      %v433 = vadd.f32 %v394, %v410
      %v434 = vadd.f32 %v395, %v410
      %v435 = vadd.f32 %v396, %v410
      %v436 = vadd.f32 %v397, %v410
      %v437 = vadd.f32 %v398, %v410
      %v438 = vadd.f32 %v399, %v410
      %v439 = vadd.f32 %v400, %v410
      %v440 = vadd.f32 %v401, %v410
      %v441 = vadd.f32 %v402, %v410
      %v442 = vadd.f32 %v403, %v410
      %v443 = vadd.f32 %v404, %v410
      %v444 = vmax.f32 %v412, 0.0
      %v445 = vmax.f32 %v413, 0.0
      %v446 = vmax.f32 %v414, 0.0
      %v447 = vmax.f32 %v415, 0.0
      %v448 = vmax.f32 %v416, 0.0
      %v449 = vmax.f32 %v417, 0.0
      %v450 = vmax.f32 %v418, 0.0
      %v451 = vmax.f32 %v419, 0.0
      %v452 = vmax.f32 %v420, 0.0
      %v453 = vmax.f32 %v421, 0.0
      %v454 = vmax.f32 %v422, 0.0
      %v455 = vmax.f32 %v423, 0.0
      %v456 = vmax.f32 %v424, 0.0
      %v457 = vmax.f32 %v425, 0.0
      %v458 = vmax.f32 %v426, 0.0
      %v459 = vmax.f32 %v427, 0.0
      %v460 = vmax.f32 %v428, 0.0
      %v461 = vmax.f32 %v429, 0.0
      %v462 = vmax.f32 %v430, 0.0
      %v463 = vmax.f32 %v431, 0.0
      %v464 = vmax.f32 %v432, 0.0
      %v465 = vmax.f32 %v433, 0.0
      %v466 = vmax.f32 %v434, 0.0
      %v467 = vmax.f32 %v435, 0.0
      %v468 = vmax.f32 %v436, 0.0
      %v469 = vmax.f32 %v437, 0.0
      %v470 = vmax.f32 %v438, 0.0
      %v471 = vmax.f32 %v439, 0.0
      %v472 = vmax.f32 %v440, 0.0
      %v473 = vmax.f32 %v441, 0.0
      %v474 = vmax.f32 %v442, 0.0
      %v475 = vmax.f32 %v443, 0.0
      %476 = vst [vmem:[#allocation2] sm:$0xff] 0.0
      %477 = vst [vmem:[#allocation2 + $0x8] sm:$0xff] 0.0
      %478 = vst [vmem:[#allocation2 + $0x10] sm:$0x3] 0.0
      %479 = vst [vmem:[#allocation2 + $0x18] sm:$0xff] 0.0
      %480 = vst [vmem:[#allocation2 + $0x20] sm:$0xff] 0.0
      %481 = vst [vmem:[#allocation2 + $0x28] sm:$0x3] 0.0
      %482 = vst [vmem:[#allocation2 + $0x30] sm:$0xff] 0.0
      %483 = vst [vmem:[#allocation2 + $0x38] sm:$0xff] 0.0
      %484 = vst [vmem:[#allocation2 + $0x40] sm:$0x3] 0.0
      %485 = vst [vmem:[#allocation2 + $0x48] sm:$0xff] 0.0
      %486 = vst [vmem:[#allocation2 + $0x50] sm:$0xff] 0.0
      %487 = vst [vmem:[#allocation2 + $0x58] sm:$0x3] 0.0
      %488 = vst [vmem:[#allocation2 + $0x60] sm:$0xff] 0.0
      %489 = vst [vmem:[#allocation2 + $0x68] sm:$0xff] 0.0
      %490 = vst [vmem:[#allocation2 + $0x70] sm:$0x3] 0.0
      %491 = vst [vmem:[#allocation2 + $0x78] sm:$0xff] 0.0
      %492 = vst [vmem:[#allocation2 + $0x80] sm:$0xff] 0.0
      %493 = vst [vmem:[#allocation2 + $0x88] sm:$0x3] 0.0
      %494 = vst [vmem:[#allocation2 + $0x90] sm:$0xff] 0.0
      %495 = vst [vmem:[#allocation2 + $0x98] sm:$0xff] 0.0
      %496 = vst [vmem:[#allocation2 + $0xa0] sm:$0x3] 0.0
      %497 = vst [vmem:[#allocation2 + $0xa8] sm:$0xff] 0.0
      %498 = vst [vmem:[#allocation2 + $0xb0] sm:$0xff] 0.0
      %499 = vst [vmem:[#allocation2 + $0xb8] sm:$0x3] 0.0
      %500 = vst [vmem:[#allocation2 + $0xc0] sm:$0xff] 0.0
      %501 = vst [vmem:[#allocation2 + $0xc8] sm:$0xff] 0.0
      %502 = vst [vmem:[#allocation2 + $0xd0] sm:$0x3] 0.0
      %503 = vst [vmem:[#allocation2 + $0xd8] sm:$0xff] 0.0
      %504 = vst [vmem:[#allocation2 + $0xe0] sm:$0xff] 0.0
      %505 = vst [vmem:[#allocation2 + $0xe8] sm:$0x3] 0.0
      %506 = vst [vmem:[#allocation2 + $0xf0] sm:$0xff] 0.0
      %507 = vst [vmem:[#allocation2 + $0xf8] sm:$0xff] 0.0
      %508 = vst [vmem:[#allocation2 + $0x100] sm:$0x3] 0.0
      %509 = vst [vmem:[#allocation2 + $0x108] sm:$0xff] 0.0
      %510 = vst [vmem:[#allocation2 + $0x110] sm:$0xff] 0.0
      %511 = vst [vmem:[#allocation2 + $0x118] sm:$0x3] 0.0
      %512 = vst [vmem:[#allocation2 + $0x120] sm:$0xff] 0.0
      %513 = vst [vmem:[#allocation2 + $0x128] sm:$0xff] 0.0
      %514 = vst [vmem:[#allocation2 + $0x130] sm:$0x3] 0.0
      %515 = vst [vmem:[#allocation2 + $0x138] sm:$0xff] 0.0
      %516 = vst [vmem:[#allocation2 + $0x140] sm:$0xff] 0.0
      %517 = vst [vmem:[#allocation2 + $0x148] sm:$0x3] 0.0
      %518 = vst [vmem:[#allocation2 + $0x150] sm:$0xff] 0.0
      %519 = vst [vmem:[#allocation2 + $0x158] sm:$0xff] 0.0
      %520 = vst [vmem:[#allocation2 + $0x160] sm:$0x3] 0.0
      %521 = vst [vmem:[#allocation2 + $0x168] sm:$0xff] 0.0
      %522 = vst [vmem:[#allocation2 + $0x170] sm:$0xff] 0.0
      %523 = vst [vmem:[#allocation2 + $0x178] sm:$0x3] 0.0
      %524 = vst [vmem:[#allocation2 + $0x180] sm:$0xff] 0.0
      %525 = vst [vmem:[#allocation2 + $0x188] sm:$0xff] 0.0
      %526 = vst [vmem:[#allocation2 + $0x190] sm:$0x3] 0.0
      %527 = vst [vmem:[#allocation2 + $0x198] sm:$0xff] 0.0
      %528 = vst [vmem:[#allocation2 + $0x1a0] sm:$0xff] 0.0
      %529 = vst [vmem:[#allocation2 + $0x1a8] sm:$0x3] 0.0
      %s530 = scalar_lea.vmem [#allocation2], 24
      %531 = vst [vmem:[%s530 + $0x1] sm:$0xff] %v444
      %532 = vst [vmem:[%s530 + $0x9] sm:$0xff] %v445
      %533 = vst [vmem:[%s530 + $0x19] sm:$0xff] %v446
      %534 = vst [vmem:[%s530 + $0x21] sm:$0xff] %v447
      %535 = vst [vmem:[%s530 + $0x31] sm:$0xff] %v448
      %536 = vst [vmem:[%s530 + $0x39] sm:$0xff] %v449
      %537 = vst [vmem:[%s530 + $0x49] sm:$0xff] %v450
      %538 = vst [vmem:[%s530 + $0x51] sm:$0xff] %v451
      %539 = vst [vmem:[%s530 + $0x61] sm:$0xff] %v452
      %540 = vst [vmem:[%s530 + $0x69] sm:$0xff] %v453
      %541 = vst [vmem:[%s530 + $0x79] sm:$0xff] %v454
      %542 = vst [vmem:[%s530 + $0x81] sm:$0xff] %v455
      %543 = vst [vmem:[%s530 + $0x91] sm:$0xff] %v456
      %544 = vst [vmem:[%s530 + $0x99] sm:$0xff] %v457
      %545 = vst [vmem:[%s530 + $0xa9] sm:$0xff] %v458
      %546 = vst [vmem:[%s530 + $0xb1] sm:$0xff] %v459
      %547 = vst [vmem:[%s530 + $0xc1] sm:$0xff] %v460
      %548 = vst [vmem:[%s530 + $0xc9] sm:$0xff] %v461
      %549 = vst [vmem:[%s530 + $0xd9] sm:$0xff] %v462
      %550 = vst [vmem:[%s530 + $0xe1] sm:$0xff] %v463
      %551 = vst [vmem:[%s530 + $0xf1] sm:$0xff] %v464
      %552 = vst [vmem:[%s530 + $0xf9] sm:$0xff] %v465
      %553 = vst [vmem:[%s530 + $0x109] sm:$0xff] %v466
      %554 = vst [vmem:[%s530 + $0x111] sm:$0xff] %v467
      %555 = vst [vmem:[%s530 + $0x121] sm:$0xff] %v468
      %556 = vst [vmem:[%s530 + $0x129] sm:$0xff] %v469
      %557 = vst [vmem:[%s530 + $0x139] sm:$0xff] %v470
      %558 = vst [vmem:[%s530 + $0x141] sm:$0xff] %v471
      %559 = vst [vmem:[%s530 + $0x151] sm:$0xff] %v472
      %560 = vst [vmem:[%s530 + $0x159] sm:$0xff] %v473
      %561 = vst [vmem:[%s530 + $0x169] sm:$0xff] %v474
      %562 = vst [vmem:[%s530 + $0x171] sm:$0xff] %v475
      %v563 = vld [vmem:[#allocation2] sm:$0xff]
      %v564 = vld [vmem:[#allocation2 + $0x8] sm:$0xff]
      %v565 = vld [vmem:[#allocation2 + $0x18] sm:$0xff]
      %v566 = vld [vmem:[#allocation2 + $0x20] sm:$0xff]
      %v567 = vld [vmem:[#allocation2 + $0x30] sm:$0xff]
      %v568 = vld [vmem:[#allocation2 + $0x38] sm:$0xff]
      %v569 = vld [vmem:[#allocation2 + $0x48] sm:$0xff]
      %v570 = vld [vmem:[#allocation2 + $0x50] sm:$0xff]
      %v571 = vld [vmem:[#allocation2 + $0x60] sm:$0xff]
      %v572 = vld [vmem:[#allocation2 + $0x68] sm:$0xff]
      %v573 = vld [vmem:[#allocation2 + $0x78] sm:$0xff]
      %v574 = vld [vmem:[#allocation2 + $0x80] sm:$0xff]
      %v575 = vld [vmem:[#allocation2 + $0x90] sm:$0xff]
      %v576 = vld [vmem:[#allocation2 + $0x98] sm:$0xff]
      %v577 = vld [vmem:[#allocation2 + $0xa8] sm:$0xff]
      %v578 = vld [vmem:[#allocation2 + $0xb0] sm:$0xff]
      %v579 = vld [vmem:[#allocation2 + $0xc0] sm:$0xff]
      %v580 = vld [vmem:[#allocation2 + $0xc8] sm:$0xff]
      %v581 = vld [vmem:[#allocation2 + $0xd8] sm:$0xff]
      %v582 = vld [vmem:[#allocation2 + $0xe0] sm:$0xff]
      %v583 = vld [vmem:[#allocation2 + $0xf0] sm:$0xff]
      %v584 = vld [vmem:[#allocation2 + $0xf8] sm:$0xff]
      %v585 = vld [vmem:[#allocation2 + $0x108] sm:$0xff]
      %v586 = vld [vmem:[#allocation2 + $0x110] sm:$0xff]
      %v587 = vld [vmem:[#allocation2 + $0x120] sm:$0xff]
      %v588 = vld [vmem:[#allocation2 + $0x128] sm:$0xff]
      %v589 = vld [vmem:[#allocation2 + $0x138] sm:$0xff]
      %v590 = vld [vmem:[#allocation2 + $0x140] sm:$0xff]
      %v591 = vld [vmem:[#allocation2 + $0x150] sm:$0xff]
      %v592 = vld [vmem:[#allocation2 + $0x158] sm:$0xff]
      %v593 = vld [vmem:[#allocation2 + $0x168] sm:$0xff]
      %v594 = vld [vmem:[#allocation2 + $0x170] sm:$0xff]
      %v595 = vpack.c.bf16 %v564, %v563
      %v596 = vpack.c.bf16 %v566, %v565
      %v597 = vpack.c.bf16 %v568, %v567
      %v598 = vpack.c.bf16 %v570, %v569
      %v599 = vpack.c.bf16 %v572, %v571
      %v600 = vpack.c.bf16 %v574, %v573
      %v601 = vpack.c.bf16 %v576, %v575
      %v602 = vpack.c.bf16 %v578, %v577
      %v603 = vpack.c.bf16 %v580, %v579
      %v604 = vpack.c.bf16 %v582, %v581
      %v605 = vpack.c.bf16 %v584, %v583
      %v606 = vpack.c.bf16 %v586, %v585
      %v607 = vpack.c.bf16 %v588, %v587
      %v608 = vpack.c.bf16 %v590, %v589
      %v609 = vpack.c.bf16 %v592, %v591
      %v610 = vpack.c.bf16 %v594, %v593
      %v611 = vld [vmem:[%s3] sm:$0xf]
      %v612 = vld [vmem:[%s3 + $0x4] sm:$0xf]
      %v613 = vld [vmem:[%s3 + $0x8] sm:$0xf]
      %v614 = vld [vmem:[%s3 + $0xc] sm:$0xf]
      %v615 = vld [vmem:[%s3 + $0x10] sm:$0xf]
      %v616 = vld [vmem:[%s3 + $0x14] sm:$0xf]
      %v617 = vld [vmem:[%s3 + $0x18] sm:$0xf]
      %v618 = vld [vmem:[%s3 + $0x1c] sm:$0xf]
      %v619 = vld [vmem:[%s3 + $0x20] sm:$0xf]
      %v620 = vld [vmem:[%s3 + $0x24] sm:$0xf]
      %v621 = vld [vmem:[%s3 + $0x28] sm:$0xf]
      %v622 = vld [vmem:[%s3 + $0x2c] sm:$0xf]
      %v623 = vld [vmem:[%s3 + $0x30] sm:$0xf]
      %v624 = vld [vmem:[%s3 + $0x34] sm:$0xf]
      %v625 = vld [vmem:[%s3 + $0x38] sm:$0xf]
      %v626 = vld [vmem:[%s3 + $0x3c] sm:$0xf]
      %v627 = vld [vmem:[#allocation2 + $0x1] sm:$0xff]
      %v628 = vld [vmem:[#allocation2 + $0x9] sm:$0xff]
      %v629 = vld [vmem:[#allocation2 + $0x19] sm:$0xff]
      %v630 = vld [vmem:[#allocation2 + $0x21] sm:$0xff]
      %v631 = vld [vmem:[#allocation2 + $0x31] sm:$0xff]
      %v632 = vld [vmem:[#allocation2 + $0x39] sm:$0xff]
      %v633 = vld [vmem:[#allocation2 + $0x49] sm:$0xff]
      %v634 = vld [vmem:[#allocation2 + $0x51] sm:$0xff]
      %v635 = vld [vmem:[#allocation2 + $0x61] sm:$0xff]
      %v636 = vld [vmem:[#allocation2 + $0x69] sm:$0xff]
      %v637 = vld [vmem:[#allocation2 + $0x79] sm:$0xff]
      %v638 = vld [vmem:[#allocation2 + $0x81] sm:$0xff]
      %v639 = vld [vmem:[#allocation2 + $0x91] sm:$0xff]
      %v640 = vld [vmem:[#allocation2 + $0x99] sm:$0xff]
      %v641 = vld [vmem:[#allocation2 + $0xa9] sm:$0xff]
      %v642 = vld [vmem:[#allocation2 + $0xb1] sm:$0xff]
      %v643 = vld [vmem:[#allocation2 + $0xc1] sm:$0xff]
      %v644 = vld [vmem:[#allocation2 + $0xc9] sm:$0xff]
      %v645 = vld [vmem:[#allocation2 + $0xd9] sm:$0xff]
      %v646 = vld [vmem:[#allocation2 + $0xe1] sm:$0xff]
      %v647 = vld [vmem:[#allocation2 + $0xf1] sm:$0xff]
      %v648 = vld [vmem:[#allocation2 + $0xf9] sm:$0xff]
      %v649 = vld [vmem:[#allocation2 + $0x109] sm:$0xff]
      %v650 = vld [vmem:[#allocation2 + $0x111] sm:$0xff]
      %v651 = vld [vmem:[#allocation2 + $0x121] sm:$0xff]
      %v652 = vld [vmem:[#allocation2 + $0x129] sm:$0xff]
      %v653 = vld [vmem:[#allocation2 + $0x139] sm:$0xff]
      %v654 = vld [vmem:[#allocation2 + $0x141] sm:$0xff]
      %v655 = vld [vmem:[#allocation2 + $0x151] sm:$0xff]
      %v656 = vld [vmem:[#allocation2 + $0x159] sm:$0xff]
      %v657 = vld [vmem:[#allocation2 + $0x169] sm:$0xff]
      %v658 = vld [vmem:[#allocation2 + $0x171] sm:$0xff]
      %v659 = vpack.c.bf16 %v628, %v627
      %v660 = vpack.c.bf16 %v630, %v629
      %v661 = vpack.c.bf16 %v632, %v631
      %v662 = vpack.c.bf16 %v634, %v633
      %v663 = vpack.c.bf16 %v636, %v635
      %v664 = vpack.c.bf16 %v638, %v637
      %v665 = vpack.c.bf16 %v640, %v639
      %v666 = vpack.c.bf16 %v642, %v641
      %v667 = vpack.c.bf16 %v644, %v643
      %v668 = vpack.c.bf16 %v646, %v645
      %v669 = vpack.c.bf16 %v648, %v647
      %v670 = vpack.c.bf16 %v650, %v649
      %v671 = vpack.c.bf16 %v652, %v651
      %v672 = vpack.c.bf16 %v654, %v653
      %v673 = vpack.c.bf16 %v656, %v655
      %v674 = vpack.c.bf16 %v658, %v657
      %s675 = scalar_lea.vmem %s3, 64
      %v676 = vld [vmem:[%s675] sm:$0xf]
      %v677 = vld [vmem:[%s675 + $0x4] sm:$0xf]
      %v678 = vld [vmem:[%s675 + $0x8] sm:$0xf]
      %v679 = vld [vmem:[%s675 + $0xc] sm:$0xf]
      %v680 = vld [vmem:[%s675 + $0x10] sm:$0xf]
      %v681 = vld [vmem:[%s675 + $0x14] sm:$0xf]
      %v682 = vld [vmem:[%s675 + $0x18] sm:$0xf]
      %v683 = vld [vmem:[%s675 + $0x1c] sm:$0xf]
      %v684 = vld [vmem:[%s675 + $0x20] sm:$0xf]
      %v685 = vld [vmem:[%s675 + $0x24] sm:$0xf]
      %v686 = vld [vmem:[%s675 + $0x28] sm:$0xf]
      %v687 = vld [vmem:[%s675 + $0x2c] sm:$0xf]
      %v688 = vld [vmem:[%s675 + $0x30] sm:$0xf]
      %v689 = vld [vmem:[%s675 + $0x34] sm:$0xf]
      %v690 = vld [vmem:[%s675 + $0x38] sm:$0xf]
      %v691 = vld [vmem:[%s675 + $0x3c] sm:$0xf]
      %v708 = vunpack.c.l.b16 %v676
      %v709 = vunpack.c.l.b16 %v677
      %v710 = vunpack.c.l.b16 %v678
      %v711 = vunpack.c.l.b16 %v679
      %v712 = vunpack.c.l.b16 %v680
      %v713 = vunpack.c.l.b16 %v681
      %v714 = vunpack.c.l.b16 %v682
      %v715 = vunpack.c.l.b16 %v683
      %v716 = vunpack.c.l.b16 %v684
      %v717 = vunpack.c.l.b16 %v685
      %v718 = vunpack.c.l.b16 %v686
      %v719 = vunpack.c.l.b16 %v687
      %v720 = vunpack.c.l.b16 %v688
      %v721 = vunpack.c.l.b16 %v689
      %v722 = vunpack.c.l.b16 %v690
      %v723 = vunpack.c.l.b16 %v691
      %v724 = vpack.c.b16 %v709, %v708
      %v725 = vpack.c.b16 %v711, %v710
      %v726 = vpack.c.b16 %v713, %v712
      %v727 = vpack.c.b16 %v715, %v714
      %v728 = vpack.c.b16 %v717, %v716
      %v729 = vpack.c.b16 %v719, %v718
      %v730 = vpack.c.b16 %v721, %v720
      %v731 = vpack.c.b16 %v723, %v722
      %740 = vmatprep.subr.bf16.mxu0 0
      %741 = vmatpush1.bf16.msra.mxu0 %v724
      %742 = vmatprep.subr.bf16.mxu0 0
      %743 = vmatpush1.bf16.msra.mxu0 %v725
      %744 = vmatprep.subr.bf16.mxu0 0
      %745 = vmatpush1.bf16.msra.mxu0 %v726
      %746 = vmatprep.subr.bf16.mxu0 0
      %747 = vmatpush1.bf16.msra.mxu0 %v727
      %748 = vmatprep.subr.bf16.mxu0 0
      %749 = vmatpush1.bf16.msra.mxu0 %v728
      %750 = vmatprep.subr.bf16.mxu0 0
      %751 = vmatpush1.bf16.msra.mxu0 %v729
      %752 = vmatprep.subr.bf16.mxu0 0
      %753 = vmatpush1.bf16.msra.mxu0 %v730
      %754 = vmatprep.subr.bf16.mxu0 0
      %755 = vmatpush1.bf16.msra.mxu0 %v731
      %756 = vmatprep.subr.bf16.mxu0 0
      %757 = vmatpush1.bf16.msra.mxu0 0
      %758 = vmatprep.subr.bf16.mxu0 0
      %759 = vmatpush1.bf16.msra.mxu0 0
      %760 = vmatprep.subr.bf16.mxu0 0
      %761 = vmatpush1.bf16.msra.mxu0 0
      %762 = vmatprep.subr.bf16.mxu0 0
      %763 = vmatpush1.bf16.msra.mxu0 0
      %764 = vmatprep.subr.bf16.mxu0 0
      %765 = vmatpush1.bf16.msra.mxu0 0
      %766 = vmatprep.subr.bf16.mxu0 0
      %767 = vmatpush1.bf16.msra.mxu0 0
      %768 = vmatprep.subr.bf16.mxu0 0
      %769 = vmatpush1.bf16.msra.mxu0 0
      %770 = vmatprep.subr.bf16.mxu0 0
      %771 = vmatpush1.bf16.msra.mxu0 0
      %772 = vmatprep.mubr.bf16.mxu0 0
      %773 = vmatmul.mubr.bf16.gmra.mrb[0].mxu0 %v659
      %v774 = vpop.f32.mrb[0].mxu0
      %v775 = vadd.f32 0.0, %v774
      %v776 = vpop.f32.mrb[0].mxu0
      %v777 = vpop.f32.mrb[0].mxu0
      %v778 = vadd.f32 0.0, %v777
      %v779 = vpop.f32.mrb[0].mxu0
      %780 = vmatprep.mubr.bf16.mxu0 0
      %781 = vmatmul.mubr.bf16.gmra.mrb[0].mxu0 %v660
      %v782 = vpop.f32.mrb[0].mxu0
      %v783 = vadd.f32 0.0, %v782
      %v784 = vpop.f32.mrb[0].mxu0
      %v785 = vpop.f32.mrb[0].mxu0
      %v786 = vadd.f32 0.0, %v785
      %v787 = vpop.f32.mrb[0].mxu0
      %788 = vmatprep.mubr.bf16.mxu0 0
      %789 = vmatmul.mubr.bf16.gmra.mrb[0].mxu0 %v661
      %v790 = vpop.f32.mrb[0].mxu0
      %v791 = vadd.f32 0.0, %v790
      %v792 = vpop.f32.mrb[0].mxu0
      %v793 = vpop.f32.mrb[0].mxu0
      %v794 = vadd.f32 0.0, %v793
      %v795 = vpop.f32.mrb[0].mxu0
      %796 = vmatprep.mubr.bf16.mxu0 0
      %797 = vmatmul.mubr.bf16.gmra.mrb[0].mxu0 %v662
      %v798 = vpop.f32.mrb[0].mxu0
      %v799 = vadd.f32 0.0, %v798
      %v800 = vpop.f32.mrb[0].mxu0
      %v801 = vpop.f32.mrb[0].mxu0
      %v802 = vadd.f32 0.0, %v801
      %v803 = vpop.f32.mrb[0].mxu0
      %804 = vmatprep.mubr.bf16.mxu0 0
      %805 = vmatmul.mubr.bf16.gmra.mrb[0].mxu0 %v663
      %v806 = vpop.f32.mrb[0].mxu0
      %v807 = vadd.f32 0.0, %v806
      %v808 = vpop.f32.mrb[0].mxu0
      %v809 = vpop.f32.mrb[0].mxu0
      %v810 = vadd.f32 0.0, %v809
      %v811 = vpop.f32.mrb[0].mxu0
      %812 = vmatprep.mubr.bf16.mxu0 0
      %813 = vmatmul.mubr.bf16.gmra.mrb[0].mxu0 %v664
      %v814 = vpop.f32.mrb[0].mxu0
      %v815 = vadd.f32 0.0, %v814
      %v816 = vpop.f32.mrb[0].mxu0
      %v817 = vpop.f32.mrb[0].mxu0
      %v818 = vadd.f32 0.0, %v817
      %v819 = vpop.f32.mrb[0].mxu0
      %820 = vmatprep.mubr.bf16.mxu0 0
      %821 = vmatmul.mubr.bf16.gmra.mrb[0].mxu0 %v665
      %v822 = vpop.f32.mrb[0].mxu0
      %v823 = vadd.f32 0.0, %v822
      %v824 = vpop.f32.mrb[0].mxu0
      %v825 = vpop.f32.mrb[0].mxu0
      %v826 = vadd.f32 0.0, %v825
      %v827 = vpop.f32.mrb[0].mxu0
      %828 = vmatprep.mubr.bf16.mxu0 0
      %829 = vmatmul.mubr.bf16.gmra.mrb[0].mxu0 %v666
      %v830 = vpop.f32.mrb[0].mxu0
      %v831 = vadd.f32 0.0, %v830
      %v832 = vpop.f32.mrb[0].mxu0
      %v833 = vpop.f32.mrb[0].mxu0
      %v834 = vadd.f32 0.0, %v833
      %v835 = vpop.f32.mrb[0].mxu0
      %836 = vmatprep.mubr.bf16.mxu0 0
      %837 = vmatmul.mubr.bf16.gmra.mrb[0].mxu0 %v667
      %v838 = vpop.f32.mrb[0].mxu0
      %v839 = vadd.f32 0.0, %v838
      %v840 = vpop.f32.mrb[0].mxu0
      %v841 = vpop.f32.mrb[0].mxu0
      %v842 = vadd.f32 0.0, %v841
      %v843 = vpop.f32.mrb[0].mxu0
      %844 = vmatprep.mubr.bf16.mxu0 0
      %845 = vmatmul.mubr.bf16.gmra.mrb[0].mxu0 %v668
      %v846 = vpop.f32.mrb[0].mxu0
      %v847 = vadd.f32 0.0, %v846
      %v848 = vpop.f32.mrb[0].mxu0
      %v849 = vpop.f32.mrb[0].mxu0
      %v850 = vadd.f32 0.0, %v849
      %v851 = vpop.f32.mrb[0].mxu0
      %852 = vmatprep.mubr.bf16.mxu0 0
      %853 = vmatmul.mubr.bf16.gmra.mrb[0].mxu0 %v669
      %v854 = vpop.f32.mrb[0].mxu0
      %v855 = vadd.f32 0.0, %v854
      %v856 = vpop.f32.mrb[0].mxu0
      %v857 = vpop.f32.mrb[0].mxu0
      %v858 = vadd.f32 0.0, %v857
      %v859 = vpop.f32.mrb[0].mxu0
      %860 = vmatprep.mubr.bf16.mxu0 0
      %861 = vmatmul.mubr.bf16.gmra.mrb[0].mxu0 %v670
      %v862 = vpop.f32.mrb[0].mxu0
      %v863 = vadd.f32 0.0, %v862
      %v864 = vpop.f32.mrb[0].mxu0
      %v865 = vpop.f32.mrb[0].mxu0
      %v866 = vadd.f32 0.0, %v865
      %v867 = vpop.f32.mrb[0].mxu0
      %868 = vmatprep.mubr.bf16.mxu0 0
      %869 = vmatmul.mubr.bf16.gmra.mrb[0].mxu0 %v671
      %v870 = vpop.f32.mrb[0].mxu0
      %v871 = vadd.f32 0.0, %v870
      %v872 = vpop.f32.mrb[0].mxu0
      %v873 = vpop.f32.mrb[0].mxu0
      %v874 = vadd.f32 0.0, %v873
      %v875 = vpop.f32.mrb[0].mxu0
      %876 = vmatprep.mubr.bf16.mxu0 0
      %877 = vmatmul.mubr.bf16.gmra.mrb[0].mxu0 %v672
      %v878 = vpop.f32.mrb[0].mxu0
      %v879 = vadd.f32 0.0, %v878
      %v880 = vpop.f32.mrb[0].mxu0
      %v881 = vpop.f32.mrb[0].mxu0
      %v882 = vadd.f32 0.0, %v881
      %v883 = vpop.f32.mrb[0].mxu0
      %884 = vmatprep.mubr.bf16.mxu0 0
      %885 = vmatmul.mubr.bf16.gmra.mrb[0].mxu0 %v673
      %v886 = vpop.f32.mrb[0].mxu0
      %v887 = vadd.f32 0.0, %v886
      %v888 = vpop.f32.mrb[0].mxu0
      %v889 = vpop.f32.mrb[0].mxu0
      %v890 = vadd.f32 0.0, %v889
      %v891 = vpop.f32.mrb[0].mxu0
      %892 = vmatprep.mubr.bf16.mxu0 0
      %893 = vmatmul.mubr.bf16.gmra.mrb[0].mxu0 %v674
      %v894 = vpop.f32.mrb[0].mxu0
      %v895 = vadd.f32 0.0, %v894
      %v896 = vpop.f32.mrb[0].mxu0
      %v897 = vpop.f32.mrb[0].mxu0
      %v898 = vadd.f32 0.0, %v897
      %v899 = vpop.f32.mrb[0].mxu0
      %900 = vdwg.mxu0
      %v917 = vunpack.c.l.b16 %v611
      %v918 = vunpack.c.l.b16 %v612
      %v919 = vunpack.c.l.b16 %v613
      %v920 = vunpack.c.l.b16 %v614
      %v921 = vunpack.c.l.b16 %v615
      %v922 = vunpack.c.l.b16 %v616
      %v923 = vunpack.c.l.b16 %v617
      %v924 = vunpack.c.l.b16 %v618
      %v925 = vunpack.c.l.b16 %v619
      %v926 = vunpack.c.l.b16 %v620
      %v927 = vunpack.c.l.b16 %v621
      %v928 = vunpack.c.l.b16 %v622
      %v929 = vunpack.c.l.b16 %v623
      %v930 = vunpack.c.l.b16 %v624
      %v931 = vunpack.c.l.b16 %v625
      %v932 = vunpack.c.l.b16 %v626
      %v933 = vpack.c.b16 %v918, %v917
      %v934 = vpack.c.b16 %v920, %v919
      %v935 = vpack.c.b16 %v922, %v921
      %v936 = vpack.c.b16 %v924, %v923
      %v937 = vpack.c.b16 %v926, %v925
      %v938 = vpack.c.b16 %v928, %v927
      %v939 = vpack.c.b16 %v930, %v929
      %v940 = vpack.c.b16 %v932, %v931
      %949 = vmatprep.subr.bf16.mxu0 0
      %950 = vmatpush1.bf16.msra.mxu0 %v933
      %951 = vmatprep.subr.bf16.mxu0 0
      %952 = vmatpush1.bf16.msra.mxu0 %v934
      %953 = vmatprep.subr.bf16.mxu0 0
      %954 = vmatpush1.bf16.msra.mxu0 %v935
      %955 = vmatprep.subr.bf16.mxu0 0
      %956 = vmatpush1.bf16.msra.mxu0 %v936
      %957 = vmatprep.subr.bf16.mxu0 0
      %958 = vmatpush1.bf16.msra.mxu0 %v937
      %959 = vmatprep.subr.bf16.mxu0 0
      %960 = vmatpush1.bf16.msra.mxu0 %v938
      %961 = vmatprep.subr.bf16.mxu0 0
      %962 = vmatpush1.bf16.msra.mxu0 %v939
      %963 = vmatprep.subr.bf16.mxu0 0
      %964 = vmatpush1.bf16.msra.mxu0 %v940
      %965 = vmatprep.subr.bf16.mxu0 0
      %966 = vmatpush1.bf16.msra.mxu0 0
      %967 = vmatprep.subr.bf16.mxu0 0
      %968 = vmatpush1.bf16.msra.mxu0 0
      %969 = vmatprep.subr.bf16.mxu0 0
      %970 = vmatpush1.bf16.msra.mxu0 0
      %971 = vmatprep.subr.bf16.mxu0 0
      %972 = vmatpush1.bf16.msra.mxu0 0
      %973 = vmatprep.subr.bf16.mxu0 0
      %974 = vmatpush1.bf16.msra.mxu0 0
      %975 = vmatprep.subr.bf16.mxu0 0
      %976 = vmatpush1.bf16.msra.mxu0 0
      %977 = vmatprep.subr.bf16.mxu0 0
      %978 = vmatpush1.bf16.msra.mxu0 0
      %979 = vmatprep.subr.bf16.mxu0 0
      %980 = vmatpush1.bf16.msra.mxu0 0
      %981 = vmatprep.mubr.bf16.mxu0 0
      %982 = vmatmul.mubr.bf16.gmra.mrb[0].mxu0 %v595
      %v983 = vpop.f32.mrb[0].mxu0
      %v984 = vadd.f32 %v775, %v983
      %v985 = vpop.f32.mrb[0].mxu0
      %v986 = vpop.f32.mrb[0].mxu0
      %v987 = vadd.f32 %v778, %v986
      %v988 = vpop.f32.mrb[0].mxu0
      %989 = vmatprep.mubr.bf16.mxu0 0
      %990 = vmatmul.mubr.bf16.gmra.mrb[0].mxu0 %v596
      %v991 = vpop.f32.mrb[0].mxu0
      %v992 = vadd.f32 %v783, %v991
      %v993 = vpop.f32.mrb[0].mxu0
      %v994 = vpop.f32.mrb[0].mxu0
      %v995 = vadd.f32 %v786, %v994
      %v996 = vpop.f32.mrb[0].mxu0
      %997 = vmatprep.mubr.bf16.mxu0 0
      %998 = vmatmul.mubr.bf16.gmra.mrb[0].mxu0 %v597
      %v999 = vpop.f32.mrb[0].mxu0
      %v1000 = vadd.f32 %v791, %v999
      %v1001 = vpop.f32.mrb[0].mxu0
      %v1002 = vpop.f32.mrb[0].mxu0
      %v1003 = vadd.f32 %v794, %v1002
      %v1004 = vpop.f32.mrb[0].mxu0
      %1005 = vmatprep.mubr.bf16.mxu0 0
      %1006 = vmatmul.mubr.bf16.gmra.mrb[0].mxu0 %v598
      %v1007 = vpop.f32.mrb[0].mxu0
      %v1008 = vadd.f32 %v799, %v1007
      %v1009 = vpop.f32.mrb[0].mxu0
      %v1010 = vpop.f32.mrb[0].mxu0
      %v1011 = vadd.f32 %v802, %v1010
      %v1012 = vpop.f32.mrb[0].mxu0
      %1013 = vmatprep.mubr.bf16.mxu0 0
      %1014 = vmatmul.mubr.bf16.gmra.mrb[0].mxu0 %v599
      %v1015 = vpop.f32.mrb[0].mxu0
      %v1016 = vadd.f32 %v807, %v1015
      %v1017 = vpop.f32.mrb[0].mxu0
      %v1018 = vpop.f32.mrb[0].mxu0
      %v1019 = vadd.f32 %v810, %v1018
      %v1020 = vpop.f32.mrb[0].mxu0
      %1021 = vmatprep.mubr.bf16.mxu0 0
      %1022 = vmatmul.mubr.bf16.gmra.mrb[0].mxu0 %v600
      %v1023 = vpop.f32.mrb[0].mxu0
      %v1024 = vadd.f32 %v815, %v1023
      %v1025 = vpop.f32.mrb[0].mxu0
      %v1026 = vpop.f32.mrb[0].mxu0
      %v1027 = vadd.f32 %v818, %v1026
      %v1028 = vpop.f32.mrb[0].mxu0
      %1029 = vmatprep.mubr.bf16.mxu0 0
      %1030 = vmatmul.mubr.bf16.gmra.mrb[0].mxu0 %v601
      %v1031 = vpop.f32.mrb[0].mxu0
      %v1032 = vadd.f32 %v823, %v1031
      %v1033 = vpop.f32.mrb[0].mxu0
      %v1034 = vpop.f32.mrb[0].mxu0
      %v1035 = vadd.f32 %v826, %v1034
      %v1036 = vpop.f32.mrb[0].mxu0
      %1037 = vmatprep.mubr.bf16.mxu0 0
      %1038 = vmatmul.mubr.bf16.gmra.mrb[0].mxu0 %v602
      %v1039 = vpop.f32.mrb[0].mxu0
      %v1040 = vadd.f32 %v831, %v1039
      %v1041 = vpop.f32.mrb[0].mxu0
      %v1042 = vpop.f32.mrb[0].mxu0
      %v1043 = vadd.f32 %v834, %v1042
      %v1044 = vpop.f32.mrb[0].mxu0
      %1045 = vmatprep.mubr.bf16.mxu0 0
      %1046 = vmatmul.mubr.bf16.gmra.mrb[0].mxu0 %v603
      %v1047 = vpop.f32.mrb[0].mxu0
      %v1048 = vadd.f32 %v839, %v1047
      %v1049 = vpop.f32.mrb[0].mxu0
      %v1050 = vpop.f32.mrb[0].mxu0
      %v1051 = vadd.f32 %v842, %v1050
      %v1052 = vpop.f32.mrb[0].mxu0
      %1053 = vmatprep.mubr.bf16.mxu0 0
      %1054 = vmatmul.mubr.bf16.gmra.mrb[0].mxu0 %v604
      %v1055 = vpop.f32.mrb[0].mxu0
      %v1056 = vadd.f32 %v847, %v1055
      %v1057 = vpop.f32.mrb[0].mxu0
      %v1058 = vpop.f32.mrb[0].mxu0
      %v1059 = vadd.f32 %v850, %v1058
      %v1060 = vpop.f32.mrb[0].mxu0
      %1061 = vmatprep.mubr.bf16.mxu0 0
      %1062 = vmatmul.mubr.bf16.gmra.mrb[0].mxu0 %v605
      %v1063 = vpop.f32.mrb[0].mxu0
      %v1064 = vadd.f32 %v855, %v1063
      %v1065 = vpop.f32.mrb[0].mxu0
      %v1066 = vpop.f32.mrb[0].mxu0
      %v1067 = vadd.f32 %v858, %v1066
      %v1068 = vpop.f32.mrb[0].mxu0
      %1069 = vmatprep.mubr.bf16.mxu0 0
      %1070 = vmatmul.mubr.bf16.gmra.mrb[0].mxu0 %v606
      %v1071 = vpop.f32.mrb[0].mxu0
      %v1072 = vadd.f32 %v863, %v1071
      %v1073 = vpop.f32.mrb[0].mxu0
      %v1074 = vpop.f32.mrb[0].mxu0
      %v1075 = vadd.f32 %v866, %v1074
      %v1076 = vpop.f32.mrb[0].mxu0
      %1077 = vmatprep.mubr.bf16.mxu0 0
      %1078 = vmatmul.mubr.bf16.gmra.mrb[0].mxu0 %v607
      %v1079 = vpop.f32.mrb[0].mxu0
      %v1080 = vadd.f32 %v871, %v1079
      %v1081 = vpop.f32.mrb[0].mxu0
      %v1082 = vpop.f32.mrb[0].mxu0
      %v1083 = vadd.f32 %v874, %v1082
      %v1084 = vpop.f32.mrb[0].mxu0
      %1085 = vmatprep.mubr.bf16.mxu0 0
      %1086 = vmatmul.mubr.bf16.gmra.mrb[0].mxu0 %v608
      %v1087 = vpop.f32.mrb[0].mxu0
      %v1088 = vadd.f32 %v879, %v1087
      %v1089 = vpop.f32.mrb[0].mxu0
      %v1090 = vpop.f32.mrb[0].mxu0
      %v1091 = vadd.f32 %v882, %v1090
      %v1092 = vpop.f32.mrb[0].mxu0
      %1093 = vmatprep.mubr.bf16.mxu0 0
      %1094 = vmatmul.mubr.bf16.gmra.mrb[0].mxu0 %v609
      %v1095 = vpop.f32.mrb[0].mxu0
      %v1096 = vadd.f32 %v887, %v1095
      %v1097 = vpop.f32.mrb[0].mxu0
      %v1098 = vpop.f32.mrb[0].mxu0
      %v1099 = vadd.f32 %v890, %v1098
      %v1100 = vpop.f32.mrb[0].mxu0
      %1101 = vmatprep.mubr.bf16.mxu0 0
      %1102 = vmatmul.mubr.bf16.gmra.mrb[0].mxu0 %v610
      %v1103 = vpop.f32.mrb[0].mxu0
      %v1104 = vadd.f32 %v895, %v1103
      %v1105 = vpop.f32.mrb[0].mxu0
      %v1106 = vpop.f32.mrb[0].mxu0
      %v1107 = vadd.f32 %v898, %v1106
      %v1108 = vpop.f32.mrb[0].mxu0
      %1109 = vdwg.mxu0
      %v1110 = vld [vmem:[#allocation2 + $0x2] sm:$0xff]
      %v1111 = vld [vmem:[#allocation2 + $0xa] sm:$0xff]
      %v1112 = vld [vmem:[#allocation2 + $0x1a] sm:$0xff]
      %v1113 = vld [vmem:[#allocation2 + $0x22] sm:$0xff]
      %v1114 = vld [vmem:[#allocation2 + $0x32] sm:$0xff]
      %v1115 = vld [vmem:[#allocation2 + $0x3a] sm:$0xff]
      %v1116 = vld [vmem:[#allocation2 + $0x4a] sm:$0xff]
      %v1117 = vld [vmem:[#allocation2 + $0x52] sm:$0xff]
      %v1118 = vld [vmem:[#allocation2 + $0x62] sm:$0xff]
      %v1119 = vld [vmem:[#allocation2 + $0x6a] sm:$0xff]
      %v1120 = vld [vmem:[#allocation2 + $0x7a] sm:$0xff]
      %v1121 = vld [vmem:[#allocation2 + $0x82] sm:$0xff]
      %v1122 = vld [vmem:[#allocation2 + $0x92] sm:$0xff]
      %v1123 = vld [vmem:[#allocation2 + $0x9a] sm:$0xff]
      %v1124 = vld [vmem:[#allocation2 + $0xaa] sm:$0xff]
      %v1125 = vld [vmem:[#allocation2 + $0xb2] sm:$0xff]
      %v1126 = vld [vmem:[#allocation2 + $0xc2] sm:$0xff]
      %v1127 = vld [vmem:[#allocation2 + $0xca] sm:$0xff]
      %v1128 = vld [vmem:[#allocation2 + $0xda] sm:$0xff]
      %v1129 = vld [vmem:[#allocation2 + $0xe2] sm:$0xff]
      %v1130 = vld [vmem:[#allocation2 + $0xf2] sm:$0xff]
      %v1131 = vld [vmem:[#allocation2 + $0xfa] sm:$0xff]
      %v1132 = vld [vmem:[#allocation2 + $0x10a] sm:$0xff]
      %v1133 = vld [vmem:[#allocation2 + $0x112] sm:$0xff]
      %v1134 = vld [vmem:[#allocation2 + $0x122] sm:$0xff]
      %v1135 = vld [vmem:[#allocation2 + $0x12a] sm:$0xff]
      %v1136 = vld [vmem:[#allocation2 + $0x13a] sm:$0xff]
      %v1137 = vld [vmem:[#allocation2 + $0x142] sm:$0xff]
      %v1138 = vld [vmem:[#allocation2 + $0x152] sm:$0xff]
      %v1139 = vld [vmem:[#allocation2 + $0x15a] sm:$0xff]
      %v1140 = vld [vmem:[#allocation2 + $0x16a] sm:$0xff]
      %v1141 = vld [vmem:[#allocation2 + $0x172] sm:$0xff]
      %v1142 = vpack.c.bf16 %v1111, %v1110
      %v1143 = vpack.c.bf16 %v1113, %v1112
      %v1144 = vpack.c.bf16 %v1115, %v1114
      %v1145 = vpack.c.bf16 %v1117, %v1116
      %v1146 = vpack.c.bf16 %v1119, %v1118
      %v1147 = vpack.c.bf16 %v1121, %v1120
      %v1148 = vpack.c.bf16 %v1123, %v1122
      %v1149 = vpack.c.bf16 %v1125, %v1124
      %v1150 = vpack.c.bf16 %v1127, %v1126
      %v1151 = vpack.c.bf16 %v1129, %v1128
      %v1152 = vpack.c.bf16 %v1131, %v1130
      %v1153 = vpack.c.bf16 %v1133, %v1132
      %v1154 = vpack.c.bf16 %v1135, %v1134
      %v1155 = vpack.c.bf16 %v1137, %v1136
      %v1156 = vpack.c.bf16 %v1139, %v1138
      %v1157 = vpack.c.bf16 %v1141, %v1140
      %s1158 = scalar_lea.vmem %s3, 128
      %v1159 = vld [vmem:[%s1158] sm:$0xf]
      %v1160 = vld [vmem:[%s1158 + $0x4] sm:$0xf]
      %v1161 = vld [vmem:[%s1158 + $0x8] sm:$0xf]
      %v1162 = vld [vmem:[%s1158 + $0xc] sm:$0xf]
      %v1163 = vld [vmem:[%s1158 + $0x10] sm:$0xf]
      %v1164 = vld [vmem:[%s1158 + $0x14] sm:$0xf]
      %v1165 = vld [vmem:[%s1158 + $0x18] sm:$0xf]
      %v1166 = vld [vmem:[%s1158 + $0x1c] sm:$0xf]
      %v1167 = vld [vmem:[%s1158 + $0x20] sm:$0xf]
      %v1168 = vld [vmem:[%s1158 + $0x24] sm:$0xf]
      %v1169 = vld [vmem:[%s1158 + $0x28] sm:$0xf]
      %v1170 = vld [vmem:[%s1158 + $0x2c] sm:$0xf]
      %v1171 = vld [vmem:[%s1158 + $0x30] sm:$0xf]
      %v1172 = vld [vmem:[%s1158 + $0x34] sm:$0xf]
      %v1173 = vld [vmem:[%s1158 + $0x38] sm:$0xf]
      %v1174 = vld [vmem:[%s1158 + $0x3c] sm:$0xf]
      %v1191 = vunpack.c.l.b16 %v1159
      %v1192 = vunpack.c.l.b16 %v1160
      %v1193 = vunpack.c.l.b16 %v1161
      %v1194 = vunpack.c.l.b16 %v1162
      %v1195 = vunpack.c.l.b16 %v1163
      %v1196 = vunpack.c.l.b16 %v1164
      %v1197 = vunpack.c.l.b16 %v1165
      %v1198 = vunpack.c.l.b16 %v1166
      %v1199 = vunpack.c.l.b16 %v1167
      %v1200 = vunpack.c.l.b16 %v1168
      %v1201 = vunpack.c.l.b16 %v1169
      %v1202 = vunpack.c.l.b16 %v1170
      %v1203 = vunpack.c.l.b16 %v1171
      %v1204 = vunpack.c.l.b16 %v1172
      %v1205 = vunpack.c.l.b16 %v1173
      %v1206 = vunpack.c.l.b16 %v1174
      %v1207 = vpack.c.b16 %v1192, %v1191
      %v1208 = vpack.c.b16 %v1194, %v1193
      %v1209 = vpack.c.b16 %v1196, %v1195
      %v1210 = vpack.c.b16 %v1198, %v1197
      %v1211 = vpack.c.b16 %v1200, %v1199
      %v1212 = vpack.c.b16 %v1202, %v1201
      %v1213 = vpack.c.b16 %v1204, %v1203
      %v1214 = vpack.c.b16 %v1206, %v1205
      %1223 = vmatprep.subr.bf16.mxu0 0
      %1224 = vmatpush1.bf16.msra.mxu0 %v1207
      %1225 = vmatprep.subr.bf16.mxu0 0
      %1226 = vmatpush1.bf16.msra.mxu0 %v1208
      %1227 = vmatprep.subr.bf16.mxu0 0
      %1228 = vmatpush1.bf16.msra.mxu0 %v1209
      %1229 = vmatprep.subr.bf16.mxu0 0
      %1230 = vmatpush1.bf16.msra.mxu0 %v1210
      %1231 = vmatprep.subr.bf16.mxu0 0
      %1232 = vmatpush1.bf16.msra.mxu0 %v1211
      %1233 = vmatprep.subr.bf16.mxu0 0
      %1234 = vmatpush1.bf16.msra.mxu0 %v1212
      %1235 = vmatprep.subr.bf16.mxu0 0
      %1236 = vmatpush1.bf16.msra.mxu0 %v1213
      %1237 = vmatprep.subr.bf16.mxu0 0
      %1238 = vmatpush1.bf16.msra.mxu0 %v1214
      %1239 = vmatprep.subr.bf16.mxu0 0
      %1240 = vmatpush1.bf16.msra.mxu0 0
      %1241 = vmatprep.subr.bf16.mxu0 0
      %1242 = vmatpush1.bf16.msra.mxu0 0
      %1243 = vmatprep.subr.bf16.mxu0 0
      %1244 = vmatpush1.bf16.msra.mxu0 0
      %1245 = vmatprep.subr.bf16.mxu0 0
      %1246 = vmatpush1.bf16.msra.mxu0 0
      %1247 = vmatprep.subr.bf16.mxu0 0
      %1248 = vmatpush1.bf16.msra.mxu0 0
      %1249 = vmatprep.subr.bf16.mxu0 0
      %1250 = vmatpush1.bf16.msra.mxu0 0
      %1251 = vmatprep.subr.bf16.mxu0 0
      %1252 = vmatpush1.bf16.msra.mxu0 0
      %1253 = vmatprep.subr.bf16.mxu0 0
      %1254 = vmatpush1.bf16.msra.mxu0 0
      %1255 = vmatprep.mubr.bf16.mxu0 0
      %1256 = vmatmul.mubr.bf16.gmra.mrb[0].mxu0 %v1142
      %v1257 = vpop.f32.mrb[0].mxu0
      %v1258 = vadd.f32 0.0, %v1257
      %v1259 = vpop.f32.mrb[0].mxu0
      %v1260 = vpop.f32.mrb[0].mxu0
      %v1261 = vadd.f32 0.0, %v1260
      %v1262 = vpop.f32.mrb[0].mxu0
      %1263 = vmatprep.mubr.bf16.mxu0 0
      %1264 = vmatmul.mubr.bf16.gmra.mrb[0].mxu0 %v1143
      %v1265 = vpop.f32.mrb[0].mxu0
      %v1266 = vadd.f32 0.0, %v1265
      %v1267 = vpop.f32.mrb[0].mxu0
      %v1268 = vpop.f32.mrb[0].mxu0
      %v1269 = vadd.f32 0.0, %v1268
      %v1270 = vpop.f32.mrb[0].mxu0
      %1271 = vmatprep.mubr.bf16.mxu0 0
      %1272 = vmatmul.mubr.bf16.gmra.mrb[0].mxu0 %v1144
      %v1273 = vpop.f32.mrb[0].mxu0
      %v1274 = vadd.f32 0.0, %v1273
      %v1275 = vpop.f32.mrb[0].mxu0
      %v1276 = vpop.f32.mrb[0].mxu0
      %v1277 = vadd.f32 0.0, %v1276
      %v1278 = vpop.f32.mrb[0].mxu0
      %1279 = vmatprep.mubr.bf16.mxu0 0
      %1280 = vmatmul.mubr.bf16.gmra.mrb[0].mxu0 %v1145
      %v1281 = vpop.f32.mrb[0].mxu0
      %v1282 = vadd.f32 0.0, %v1281
      %v1283 = vpop.f32.mrb[0].mxu0
      %v1284 = vpop.f32.mrb[0].mxu0
      %v1285 = vadd.f32 0.0, %v1284
      %v1286 = vpop.f32.mrb[0].mxu0
      %1287 = vmatprep.mubr.bf16.mxu0 0
      %1288 = vmatmul.mubr.bf16.gmra.mrb[0].mxu0 %v1146
      %v1289 = vpop.f32.mrb[0].mxu0
      %v1290 = vadd.f32 0.0, %v1289
      %v1291 = vpop.f32.mrb[0].mxu0
      %v1292 = vpop.f32.mrb[0].mxu0
      %v1293 = vadd.f32 0.0, %v1292
      %v1294 = vpop.f32.mrb[0].mxu0
      %1295 = vmatprep.mubr.bf16.mxu0 0
      %1296 = vmatmul.mubr.bf16.gmra.mrb[0].mxu0 %v1147
      %v1297 = vpop.f32.mrb[0].mxu0
      %v1298 = vadd.f32 0.0, %v1297
      %v1299 = vpop.f32.mrb[0].mxu0
      %v1300 = vpop.f32.mrb[0].mxu0
      %v1301 = vadd.f32 0.0, %v1300
      %v1302 = vpop.f32.mrb[0].mxu0
      %1303 = vmatprep.mubr.bf16.mxu0 0
      %1304 = vmatmul.mubr.bf16.gmra.mrb[0].mxu0 %v1148
      %v1305 = vpop.f32.mrb[0].mxu0
      %v1306 = vadd.f32 0.0, %v1305
      %v1307 = vpop.f32.mrb[0].mxu0
      %v1308 = vpop.f32.mrb[0].mxu0
      %v1309 = vadd.f32 0.0, %v1308
      %v1310 = vpop.f32.mrb[0].mxu0
      %1311 = vmatprep.mubr.bf16.mxu0 0
      %1312 = vmatmul.mubr.bf16.gmra.mrb[0].mxu0 %v1149
      %v1313 = vpop.f32.mrb[0].mxu0
      %v1314 = vadd.f32 0.0, %v1313
      %v1315 = vpop.f32.mrb[0].mxu0
      %v1316 = vpop.f32.mrb[0].mxu0
      %v1317 = vadd.f32 0.0, %v1316
      %v1318 = vpop.f32.mrb[0].mxu0
      %1319 = vmatprep.mubr.bf16.mxu0 0
      %1320 = vmatmul.mubr.bf16.gmra.mrb[0].mxu0 %v1150
      %v1321 = vpop.f32.mrb[0].mxu0
      %v1322 = vadd.f32 0.0, %v1321
      %v1323 = vpop.f32.mrb[0].mxu0
      %v1324 = vpop.f32.mrb[0].mxu0
      %v1325 = vadd.f32 0.0, %v1324
      %v1326 = vpop.f32.mrb[0].mxu0
      %1327 = vmatprep.mubr.bf16.mxu0 0
      %1328 = vmatmul.mubr.bf16.gmra.mrb[0].mxu0 %v1151
      %v1329 = vpop.f32.mrb[0].mxu0
      %v1330 = vadd.f32 0.0, %v1329
      %v1331 = vpop.f32.mrb[0].mxu0
      %v1332 = vpop.f32.mrb[0].mxu0
      %v1333 = vadd.f32 0.0, %v1332
      %v1334 = vpop.f32.mrb[0].mxu0
      %1335 = vmatprep.mubr.bf16.mxu0 0
      %1336 = vmatmul.mubr.bf16.gmra.mrb[0].mxu0 %v1152
      %v1337 = vpop.f32.mrb[0].mxu0
      %v1338 = vadd.f32 0.0, %v1337
      %v1339 = vpop.f32.mrb[0].mxu0
      %v1340 = vpop.f32.mrb[0].mxu0
      %v1341 = vadd.f32 0.0, %v1340
      %v1342 = vpop.f32.mrb[0].mxu0
      %1343 = vmatprep.mubr.bf16.mxu0 0
      %1344 = vmatmul.mubr.bf16.gmra.mrb[0].mxu0 %v1153
      %v1345 = vpop.f32.mrb[0].mxu0
      %v1346 = vadd.f32 0.0, %v1345
      %v1347 = vpop.f32.mrb[0].mxu0
      %v1348 = vpop.f32.mrb[0].mxu0
      %v1349 = vadd.f32 0.0, %v1348
      %v1350 = vpop.f32.mrb[0].mxu0
      %1351 = vmatprep.mubr.bf16.mxu0 0
      %1352 = vmatmul.mubr.bf16.gmra.mrb[0].mxu0 %v1154
      %v1353 = vpop.f32.mrb[0].mxu0
      %v1354 = vadd.f32 0.0, %v1353
      %v1355 = vpop.f32.mrb[0].mxu0
      %v1356 = vpop.f32.mrb[0].mxu0
      %v1357 = vadd.f32 0.0, %v1356
      %v1358 = vpop.f32.mrb[0].mxu0
      %1359 = vmatprep.mubr.bf16.mxu0 0
      %1360 = vmatmul.mubr.bf16.gmra.mrb[0].mxu0 %v1155
      %v1361 = vpop.f32.mrb[0].mxu0
      %v1362 = vadd.f32 0.0, %v1361
      %v1363 = vpop.f32.mrb[0].mxu0
      %v1364 = vpop.f32.mrb[0].mxu0
      %v1365 = vadd.f32 0.0, %v1364
      %v1366 = vpop.f32.mrb[0].mxu0
      %1367 = vmatprep.mubr.bf16.mxu0 0
      %1368 = vmatmul.mubr.bf16.gmra.mrb[0].mxu0 %v1156
      %v1369 = vpop.f32.mrb[0].mxu0
      %v1370 = vadd.f32 0.0, %v1369
      %v1371 = vpop.f32.mrb[0].mxu0
      %v1372 = vpop.f32.mrb[0].mxu0
      %v1373 = vadd.f32 0.0, %v1372
      %v1374 = vpop.f32.mrb[0].mxu0
      %1375 = vmatprep.mubr.bf16.mxu0 0
      %1376 = vmatmul.mubr.bf16.gmra.mrb[0].mxu0 %v1157
      %v1377 = vpop.f32.mrb[0].mxu0
      %v1378 = vadd.f32 0.0, %v1377
      %v1379 = vpop.f32.mrb[0].mxu0
      %v1380 = vpop.f32.mrb[0].mxu0
      %v1381 = vadd.f32 0.0, %v1380
      %v1382 = vpop.f32.mrb[0].mxu0
      %1383 = vdwg.mxu0
      %v1384 = vadd.f32 %v984, %v1258
      %v1385 = vadd.f32 %v987, %v1261
      %v1386 = vadd.f32 %v992, %v1266
      %v1387 = vadd.f32 %v995, %v1269
      %v1388 = vadd.f32 %v1000, %v1274
      %v1389 = vadd.f32 %v1003, %v1277
      %v1390 = vadd.f32 %v1008, %v1282
      %v1391 = vadd.f32 %v1011, %v1285
      %v1392 = vadd.f32 %v1016, %v1290
      %v1393 = vadd.f32 %v1019, %v1293
      %v1394 = vadd.f32 %v1024, %v1298
      %v1395 = vadd.f32 %v1027, %v1301
      %v1396 = vadd.f32 %v1032, %v1306
      %v1397 = vadd.f32 %v1035, %v1309
      %v1398 = vadd.f32 %v1040, %v1314
      %v1399 = vadd.f32 %v1043, %v1317
      %v1400 = vadd.f32 %v1048, %v1322
      %v1401 = vadd.f32 %v1051, %v1325
      %v1402 = vadd.f32 %v1056, %v1330
      %v1403 = vadd.f32 %v1059, %v1333
      %v1404 = vadd.f32 %v1064, %v1338
      %v1405 = vadd.f32 %v1067, %v1341
      %v1406 = vadd.f32 %v1072, %v1346
      %v1407 = vadd.f32 %v1075, %v1349
      %v1408 = vadd.f32 %v1080, %v1354
      %v1409 = vadd.f32 %v1083, %v1357
      %v1410 = vadd.f32 %v1088, %v1362
      %v1411 = vadd.f32 %v1091, %v1365
      %v1412 = vadd.f32 %v1096, %v1370
      %v1413 = vadd.f32 %v1099, %v1373
      %v1414 = vadd.f32 %v1104, %v1378
      %v1415 = vadd.f32 %v1107, %v1381
      %v1416 = vld [vmem:[%s530] sm:$0xff]
      %v1417 = vld [vmem:[%s530 + $0x8] sm:$0xff]
      %v1418 = vld [vmem:[%s530 + $0x18] sm:$0xff]
      %v1419 = vld [vmem:[%s530 + $0x20] sm:$0xff]
      %v1420 = vld [vmem:[%s530 + $0x30] sm:$0xff]
      %v1421 = vld [vmem:[%s530 + $0x38] sm:$0xff]
      %v1422 = vld [vmem:[%s530 + $0x48] sm:$0xff]
      %v1423 = vld [vmem:[%s530 + $0x50] sm:$0xff]
      %v1424 = vld [vmem:[%s530 + $0x60] sm:$0xff]
      %v1425 = vld [vmem:[%s530 + $0x68] sm:$0xff]
      %v1426 = vld [vmem:[%s530 + $0x78] sm:$0xff]
      %v1427 = vld [vmem:[%s530 + $0x80] sm:$0xff]
      %v1428 = vld [vmem:[%s530 + $0x90] sm:$0xff]
      %v1429 = vld [vmem:[%s530 + $0x98] sm:$0xff]
      %v1430 = vld [vmem:[%s530 + $0xa8] sm:$0xff]
      %v1431 = vld [vmem:[%s530 + $0xb0] sm:$0xff]
      %v1432 = vld [vmem:[%s530 + $0xc0] sm:$0xff]
      %v1433 = vld [vmem:[%s530 + $0xc8] sm:$0xff]
      %v1434 = vld [vmem:[%s530 + $0xd8] sm:$0xff]
      %v1435 = vld [vmem:[%s530 + $0xe0] sm:$0xff]
      %v1436 = vld [vmem:[%s530 + $0xf0] sm:$0xff]
      %v1437 = vld [vmem:[%s530 + $0xf8] sm:$0xff]
      %v1438 = vld [vmem:[%s530 + $0x108] sm:$0xff]
      %v1439 = vld [vmem:[%s530 + $0x110] sm:$0xff]
      %v1440 = vld [vmem:[%s530 + $0x120] sm:$0xff]
      %v1441 = vld [vmem:[%s530 + $0x128] sm:$0xff]
      %v1442 = vld [vmem:[%s530 + $0x138] sm:$0xff]
      %v1443 = vld [vmem:[%s530 + $0x140] sm:$0xff]
      %v1444 = vld [vmem:[%s530 + $0x150] sm:$0xff]
      %v1445 = vld [vmem:[%s530 + $0x158] sm:$0xff]
      %v1446 = vld [vmem:[%s530 + $0x168] sm:$0xff]
      %v1447 = vld [vmem:[%s530 + $0x170] sm:$0xff]
      %v1448 = vpack.c.bf16 %v1417, %v1416
      %v1449 = vpack.c.bf16 %v1419, %v1418
      %v1450 = vpack.c.bf16 %v1421, %v1420
      %v1451 = vpack.c.bf16 %v1423, %v1422
      %v1452 = vpack.c.bf16 %v1425, %v1424
      %v1453 = vpack.c.bf16 %v1427, %v1426
      %v1454 = vpack.c.bf16 %v1429, %v1428
      %v1455 = vpack.c.bf16 %v1431, %v1430
      %v1456 = vpack.c.bf16 %v1433, %v1432
      %v1457 = vpack.c.bf16 %v1435, %v1434
      %v1458 = vpack.c.bf16 %v1437, %v1436
      %v1459 = vpack.c.bf16 %v1439, %v1438
      %v1460 = vpack.c.bf16 %v1441, %v1440
      %v1461 = vpack.c.bf16 %v1443, %v1442
      %v1462 = vpack.c.bf16 %v1445, %v1444
      %v1463 = vpack.c.bf16 %v1447, %v1446
      %s1464 = scalar_lea.vmem %s3, 192
      %v1465 = vld [vmem:[%s1464] sm:$0xf]
      %v1466 = vld [vmem:[%s1464 + $0x4] sm:$0xf]
      %v1467 = vld [vmem:[%s1464 + $0x8] sm:$0xf]
      %v1468 = vld [vmem:[%s1464 + $0xc] sm:$0xf]
      %v1469 = vld [vmem:[%s1464 + $0x10] sm:$0xf]
      %v1470 = vld [vmem:[%s1464 + $0x14] sm:$0xf]
      %v1471 = vld [vmem:[%s1464 + $0x18] sm:$0xf]
      %v1472 = vld [vmem:[%s1464 + $0x1c] sm:$0xf]
      %v1473 = vld [vmem:[%s1464 + $0x20] sm:$0xf]
      %v1474 = vld [vmem:[%s1464 + $0x24] sm:$0xf]
      %v1475 = vld [vmem:[%s1464 + $0x28] sm:$0xf]
      %v1476 = vld [vmem:[%s1464 + $0x2c] sm:$0xf]
      %v1477 = vld [vmem:[%s1464 + $0x30] sm:$0xf]
      %v1478 = vld [vmem:[%s1464 + $0x34] sm:$0xf]
      %v1479 = vld [vmem:[%s1464 + $0x38] sm:$0xf]
      %v1480 = vld [vmem:[%s1464 + $0x3c] sm:$0xf]
      %v1497 = vunpack.c.l.b16 %v1465
      %v1498 = vunpack.c.l.b16 %v1466
      %v1499 = vunpack.c.l.b16 %v1467
      %v1500 = vunpack.c.l.b16 %v1468
      %v1501 = vunpack.c.l.b16 %v1469
      %v1502 = vunpack.c.l.b16 %v1470
      %v1503 = vunpack.c.l.b16 %v1471
      %v1504 = vunpack.c.l.b16 %v1472
      %v1505 = vunpack.c.l.b16 %v1473
      %v1506 = vunpack.c.l.b16 %v1474
      %v1507 = vunpack.c.l.b16 %v1475
      %v1508 = vunpack.c.l.b16 %v1476
      %v1509 = vunpack.c.l.b16 %v1477
      %v1510 = vunpack.c.l.b16 %v1478
      %v1511 = vunpack.c.l.b16 %v1479
      %v1512 = vunpack.c.l.b16 %v1480
      %v1513 = vpack.c.b16 %v1498, %v1497
      %v1514 = vpack.c.b16 %v1500, %v1499
      %v1515 = vpack.c.b16 %v1502, %v1501
      %v1516 = vpack.c.b16 %v1504, %v1503
      %v1517 = vpack.c.b16 %v1506, %v1505
      %v1518 = vpack.c.b16 %v1508, %v1507
      %v1519 = vpack.c.b16 %v1510, %v1509
      %v1520 = vpack.c.b16 %v1512, %v1511
      %1529 = vmatprep.subr.bf16.mxu0 0
      %1530 = vmatpush1.bf16.msra.mxu0 %v1513
      %1531 = vmatprep.subr.bf16.mxu0 0
      %1532 = vmatpush1.bf16.msra.mxu0 %v1514
      %1533 = vmatprep.subr.bf16.mxu0 0
      %1534 = vmatpush1.bf16.msra.mxu0 %v1515
      %1535 = vmatprep.subr.bf16.mxu0 0
      %1536 = vmatpush1.bf16.msra.mxu0 %v1516
      %1537 = vmatprep.subr.bf16.mxu0 0
      %1538 = vmatpush1.bf16.msra.mxu0 %v1517
      %1539 = vmatprep.subr.bf16.mxu0 0
      %1540 = vmatpush1.bf16.msra.mxu0 %v1518
      %1541 = vmatprep.subr.bf16.mxu0 0
      %1542 = vmatpush1.bf16.msra.mxu0 %v1519
      %1543 = vmatprep.subr.bf16.mxu0 0
      %1544 = vmatpush1.bf16.msra.mxu0 %v1520
      %1545 = vmatprep.subr.bf16.mxu0 0
      %1546 = vmatpush1.bf16.msra.mxu0 0
      %1547 = vmatprep.subr.bf16.mxu0 0
      %1548 = vmatpush1.bf16.msra.mxu0 0
      %1549 = vmatprep.subr.bf16.mxu0 0
      %1550 = vmatpush1.bf16.msra.mxu0 0
      %1551 = vmatprep.subr.bf16.mxu0 0
      %1552 = vmatpush1.bf16.msra.mxu0 0
      %1553 = vmatprep.subr.bf16.mxu0 0
      %1554 = vmatpush1.bf16.msra.mxu0 0
      %1555 = vmatprep.subr.bf16.mxu0 0
      %1556 = vmatpush1.bf16.msra.mxu0 0
      %1557 = vmatprep.subr.bf16.mxu0 0
      %1558 = vmatpush1.bf16.msra.mxu0 0
      %1559 = vmatprep.subr.bf16.mxu0 0
      %1560 = vmatpush1.bf16.msra.mxu0 0
      %1561 = vmatprep.mubr.bf16.mxu0 0
      %1562 = vmatmul.mubr.bf16.gmra.mrb[0].mxu0 %v1448
      %v1563 = vpop.f32.mrb[0].mxu0
      %v1564 = vadd.f32 0.0, %v1563
      %v1565 = vpop.f32.mrb[0].mxu0
      %v1566 = vpop.f32.mrb[0].mxu0
      %v1567 = vadd.f32 0.0, %v1566
      %v1568 = vpop.f32.mrb[0].mxu0
      %1569 = vmatprep.mubr.bf16.mxu0 0
      %1570 = vmatmul.mubr.bf16.gmra.mrb[0].mxu0 %v1449
      %v1571 = vpop.f32.mrb[0].mxu0
      %v1572 = vadd.f32 0.0, %v1571
      %v1573 = vpop.f32.mrb[0].mxu0
      %v1574 = vpop.f32.mrb[0].mxu0
      %v1575 = vadd.f32 0.0, %v1574
      %v1576 = vpop.f32.mrb[0].mxu0
      %1577 = vmatprep.mubr.bf16.mxu0 0
      %1578 = vmatmul.mubr.bf16.gmra.mrb[0].mxu0 %v1450
      %v1579 = vpop.f32.mrb[0].mxu0
      %v1580 = vadd.f32 0.0, %v1579
      %v1581 = vpop.f32.mrb[0].mxu0
      %v1582 = vpop.f32.mrb[0].mxu0
      %v1583 = vadd.f32 0.0, %v1582
      %v1584 = vpop.f32.mrb[0].mxu0
      %1585 = vmatprep.mubr.bf16.mxu0 0
      %1586 = vmatmul.mubr.bf16.gmra.mrb[0].mxu0 %v1451
      %v1587 = vpop.f32.mrb[0].mxu0
      %v1588 = vadd.f32 0.0, %v1587
      %v1589 = vpop.f32.mrb[0].mxu0
      %v1590 = vpop.f32.mrb[0].mxu0
      %v1591 = vadd.f32 0.0, %v1590
      %v1592 = vpop.f32.mrb[0].mxu0
      %1593 = vmatprep.mubr.bf16.mxu0 0
      %1594 = vmatmul.mubr.bf16.gmra.mrb[0].mxu0 %v1452
      %v1595 = vpop.f32.mrb[0].mxu0
      %v1596 = vadd.f32 0.0, %v1595
      %v1597 = vpop.f32.mrb[0].mxu0
      %v1598 = vpop.f32.mrb[0].mxu0
      %v1599 = vadd.f32 0.0, %v1598
      %v1600 = vpop.f32.mrb[0].mxu0
      %1601 = vmatprep.mubr.bf16.mxu0 0
      %1602 = vmatmul.mubr.bf16.gmra.mrb[0].mxu0 %v1453
      %v1603 = vpop.f32.mrb[0].mxu0
      %v1604 = vadd.f32 0.0, %v1603
      %v1605 = vpop.f32.mrb[0].mxu0
      %v1606 = vpop.f32.mrb[0].mxu0
      %v1607 = vadd.f32 0.0, %v1606
      %v1608 = vpop.f32.mrb[0].mxu0
      %1609 = vmatprep.mubr.bf16.mxu0 0
      %1610 = vmatmul.mubr.bf16.gmra.mrb[0].mxu0 %v1454
      %v1611 = vpop.f32.mrb[0].mxu0
      %v1612 = vadd.f32 0.0, %v1611
      %v1613 = vpop.f32.mrb[0].mxu0
      %v1614 = vpop.f32.mrb[0].mxu0
      %v1615 = vadd.f32 0.0, %v1614
      %v1616 = vpop.f32.mrb[0].mxu0
      %1617 = vmatprep.mubr.bf16.mxu0 0
      %1618 = vmatmul.mubr.bf16.gmra.mrb[0].mxu0 %v1455
      %v1619 = vpop.f32.mrb[0].mxu0
      %v1620 = vadd.f32 0.0, %v1619
      %v1621 = vpop.f32.mrb[0].mxu0
      %v1622 = vpop.f32.mrb[0].mxu0
      %v1623 = vadd.f32 0.0, %v1622
      %v1624 = vpop.f32.mrb[0].mxu0
      %1625 = vmatprep.mubr.bf16.mxu0 0
      %1626 = vmatmul.mubr.bf16.gmra.mrb[0].mxu0 %v1456
      %v1627 = vpop.f32.mrb[0].mxu0
      %v1628 = vadd.f32 0.0, %v1627
      %v1629 = vpop.f32.mrb[0].mxu0
      %v1630 = vpop.f32.mrb[0].mxu0
      %v1631 = vadd.f32 0.0, %v1630
      %v1632 = vpop.f32.mrb[0].mxu0
      %1633 = vmatprep.mubr.bf16.mxu0 0
      %1634 = vmatmul.mubr.bf16.gmra.mrb[0].mxu0 %v1457
      %v1635 = vpop.f32.mrb[0].mxu0
      %v1636 = vadd.f32 0.0, %v1635
      %v1637 = vpop.f32.mrb[0].mxu0
      %v1638 = vpop.f32.mrb[0].mxu0
      %v1639 = vadd.f32 0.0, %v1638
      %v1640 = vpop.f32.mrb[0].mxu0
      %1641 = vmatprep.mubr.bf16.mxu0 0
      %1642 = vmatmul.mubr.bf16.gmra.mrb[0].mxu0 %v1458
      %v1643 = vpop.f32.mrb[0].mxu0
      %v1644 = vadd.f32 0.0, %v1643
      %v1645 = vpop.f32.mrb[0].mxu0
      %v1646 = vpop.f32.mrb[0].mxu0
      %v1647 = vadd.f32 0.0, %v1646
      %v1648 = vpop.f32.mrb[0].mxu0
      %1649 = vmatprep.mubr.bf16.mxu0 0
      %1650 = vmatmul.mubr.bf16.gmra.mrb[0].mxu0 %v1459
      %v1651 = vpop.f32.mrb[0].mxu0
      %v1652 = vadd.f32 0.0, %v1651
      %v1653 = vpop.f32.mrb[0].mxu0
      %v1654 = vpop.f32.mrb[0].mxu0
      %v1655 = vadd.f32 0.0, %v1654
      %v1656 = vpop.f32.mrb[0].mxu0
      %1657 = vmatprep.mubr.bf16.mxu0 0
      %1658 = vmatmul.mubr.bf16.gmra.mrb[0].mxu0 %v1460
      %v1659 = vpop.f32.mrb[0].mxu0
      %v1660 = vadd.f32 0.0, %v1659
      %v1661 = vpop.f32.mrb[0].mxu0
      %v1662 = vpop.f32.mrb[0].mxu0
      %v1663 = vadd.f32 0.0, %v1662
      %v1664 = vpop.f32.mrb[0].mxu0
      %1665 = vmatprep.mubr.bf16.mxu0 0
      %1666 = vmatmul.mubr.bf16.gmra.mrb[0].mxu0 %v1461
      %v1667 = vpop.f32.mrb[0].mxu0
      %v1668 = vadd.f32 0.0, %v1667
      %v1669 = vpop.f32.mrb[0].mxu0
      %v1670 = vpop.f32.mrb[0].mxu0
      %v1671 = vadd.f32 0.0, %v1670
      %v1672 = vpop.f32.mrb[0].mxu0
      %1673 = vmatprep.mubr.bf16.mxu0 0
      %1674 = vmatmul.mubr.bf16.gmra.mrb[0].mxu0 %v1462
      %v1675 = vpop.f32.mrb[0].mxu0
      %v1676 = vadd.f32 0.0, %v1675
      %v1677 = vpop.f32.mrb[0].mxu0
      %v1678 = vpop.f32.mrb[0].mxu0
      %v1679 = vadd.f32 0.0, %v1678
      %v1680 = vpop.f32.mrb[0].mxu0
      %1681 = vmatprep.mubr.bf16.mxu0 0
      %1682 = vmatmul.mubr.bf16.gmra.mrb[0].mxu0 %v1463
      %v1683 = vpop.f32.mrb[0].mxu0
      %v1684 = vadd.f32 0.0, %v1683
      %v1685 = vpop.f32.mrb[0].mxu0
      %v1686 = vpop.f32.mrb[0].mxu0
      %v1687 = vadd.f32 0.0, %v1686
      %v1688 = vpop.f32.mrb[0].mxu0
      %1689 = vdwg.mxu0
      %v1690 = vadd.f32 %v1384, %v1564
      %v1691 = vadd.f32 %v1385, %v1567
      %v1692 = vadd.f32 %v1386, %v1572
      %v1693 = vadd.f32 %v1387, %v1575
      %v1694 = vadd.f32 %v1388, %v1580
      %v1695 = vadd.f32 %v1389, %v1583
      %v1696 = vadd.f32 %v1390, %v1588
      %v1697 = vadd.f32 %v1391, %v1591
      %v1698 = vadd.f32 %v1392, %v1596
      %v1699 = vadd.f32 %v1393, %v1599
      %v1700 = vadd.f32 %v1394, %v1604
      %v1701 = vadd.f32 %v1395, %v1607
      %v1702 = vadd.f32 %v1396, %v1612
      %v1703 = vadd.f32 %v1397, %v1615
      %v1704 = vadd.f32 %v1398, %v1620
      %v1705 = vadd.f32 %v1399, %v1623
      %v1706 = vadd.f32 %v1400, %v1628
      %v1707 = vadd.f32 %v1401, %v1631
      %v1708 = vadd.f32 %v1402, %v1636
      %v1709 = vadd.f32 %v1403, %v1639
      %v1710 = vadd.f32 %v1404, %v1644
      %v1711 = vadd.f32 %v1405, %v1647
      %v1712 = vadd.f32 %v1406, %v1652
      %v1713 = vadd.f32 %v1407, %v1655
      %v1714 = vadd.f32 %v1408, %v1660
      %v1715 = vadd.f32 %v1409, %v1663
      %v1716 = vadd.f32 %v1410, %v1668
      %v1717 = vadd.f32 %v1411, %v1671
      %v1718 = vadd.f32 %v1412, %v1676
      %v1719 = vadd.f32 %v1413, %v1679
      %v1720 = vadd.f32 %v1414, %v1684
      %v1721 = vadd.f32 %v1415, %v1687
      %v1722 = vld [vmem:[%s530 + $0x1] sm:$0xff]
      %v1723 = vld [vmem:[%s530 + $0x9] sm:$0xff]
      %v1724 = vld [vmem:[%s530 + $0x19] sm:$0xff]
      %v1725 = vld [vmem:[%s530 + $0x21] sm:$0xff]
      %v1726 = vld [vmem:[%s530 + $0x31] sm:$0xff]
      %v1727 = vld [vmem:[%s530 + $0x39] sm:$0xff]
      %v1728 = vld [vmem:[%s530 + $0x49] sm:$0xff]
      %v1729 = vld [vmem:[%s530 + $0x51] sm:$0xff]
      %v1730 = vld [vmem:[%s530 + $0x61] sm:$0xff]
      %v1731 = vld [vmem:[%s530 + $0x69] sm:$0xff]
      %v1732 = vld [vmem:[%s530 + $0x79] sm:$0xff]
      %v1733 = vld [vmem:[%s530 + $0x81] sm:$0xff]
      %v1734 = vld [vmem:[%s530 + $0x91] sm:$0xff]
      %v1735 = vld [vmem:[%s530 + $0x99] sm:$0xff]
      %v1736 = vld [vmem:[%s530 + $0xa9] sm:$0xff]
      %v1737 = vld [vmem:[%s530 + $0xb1] sm:$0xff]
      %v1738 = vld [vmem:[%s530 + $0xc1] sm:$0xff]
      %v1739 = vld [vmem:[%s530 + $0xc9] sm:$0xff]
      %v1740 = vld [vmem:[%s530 + $0xd9] sm:$0xff]
      %v1741 = vld [vmem:[%s530 + $0xe1] sm:$0xff]
      %v1742 = vld [vmem:[%s530 + $0xf1] sm:$0xff]
      %v1743 = vld [vmem:[%s530 + $0xf9] sm:$0xff]
      %v1744 = vld [vmem:[%s530 + $0x109] sm:$0xff]
      %v1745 = vld [vmem:[%s530 + $0x111] sm:$0xff]
      %v1746 = vld [vmem:[%s530 + $0x121] sm:$0xff]
      %v1747 = vld [vmem:[%s530 + $0x129] sm:$0xff]
      %v1748 = vld [vmem:[%s530 + $0x139] sm:$0xff]
      %v1749 = vld [vmem:[%s530 + $0x141] sm:$0xff]
      %v1750 = vld [vmem:[%s530 + $0x151] sm:$0xff]
      %v1751 = vld [vmem:[%s530 + $0x159] sm:$0xff]
      %v1752 = vld [vmem:[%s530 + $0x169] sm:$0xff]
      %v1753 = vld [vmem:[%s530 + $0x171] sm:$0xff]
      %v1754 = vpack.c.bf16 %v1723, %v1722
      %v1755 = vpack.c.bf16 %v1725, %v1724
      %v1756 = vpack.c.bf16 %v1727, %v1726
      %v1757 = vpack.c.bf16 %v1729, %v1728
      %v1758 = vpack.c.bf16 %v1731, %v1730
      %v1759 = vpack.c.bf16 %v1733, %v1732
      %v1760 = vpack.c.bf16 %v1735, %v1734
      %v1761 = vpack.c.bf16 %v1737, %v1736
      %v1762 = vpack.c.bf16 %v1739, %v1738
      %v1763 = vpack.c.bf16 %v1741, %v1740
      %v1764 = vpack.c.bf16 %v1743, %v1742
      %v1765 = vpack.c.bf16 %v1745, %v1744
      %v1766 = vpack.c.bf16 %v1747, %v1746
      %v1767 = vpack.c.bf16 %v1749, %v1748
      %v1768 = vpack.c.bf16 %v1751, %v1750
      %v1769 = vpack.c.bf16 %v1753, %v1752
      %s1770 = scalar_lea.vmem %s3, 256
      %v1771 = vld [vmem:[%s1770] sm:$0xf]
      %v1772 = vld [vmem:[%s1770 + $0x4] sm:$0xf]
      %v1773 = vld [vmem:[%s1770 + $0x8] sm:$0xf]
      %v1774 = vld [vmem:[%s1770 + $0xc] sm:$0xf]
      %v1775 = vld [vmem:[%s1770 + $0x10] sm:$0xf]
      %v1776 = vld [vmem:[%s1770 + $0x14] sm:$0xf]
      %v1777 = vld [vmem:[%s1770 + $0x18] sm:$0xf]
      %v1778 = vld [vmem:[%s1770 + $0x1c] sm:$0xf]
      %v1779 = vld [vmem:[%s1770 + $0x20] sm:$0xf]
      %v1780 = vld [vmem:[%s1770 + $0x24] sm:$0xf]
      %v1781 = vld [vmem:[%s1770 + $0x28] sm:$0xf]
      %v1782 = vld [vmem:[%s1770 + $0x2c] sm:$0xf]
      %v1783 = vld [vmem:[%s1770 + $0x30] sm:$0xf]
      %v1784 = vld [vmem:[%s1770 + $0x34] sm:$0xf]
      %v1785 = vld [vmem:[%s1770 + $0x38] sm:$0xf]
      %v1786 = vld [vmem:[%s1770 + $0x3c] sm:$0xf]
      %v1803 = vunpack.c.l.b16 %v1771
      %v1804 = vunpack.c.l.b16 %v1772
      %v1805 = vunpack.c.l.b16 %v1773
      %v1806 = vunpack.c.l.b16 %v1774
      %v1807 = vunpack.c.l.b16 %v1775
      %v1808 = vunpack.c.l.b16 %v1776
      %v1809 = vunpack.c.l.b16 %v1777
      %v1810 = vunpack.c.l.b16 %v1778
      %v1811 = vunpack.c.l.b16 %v1779
      %v1812 = vunpack.c.l.b16 %v1780
      %v1813 = vunpack.c.l.b16 %v1781
      %v1814 = vunpack.c.l.b16 %v1782
      %v1815 = vunpack.c.l.b16 %v1783
      %v1816 = vunpack.c.l.b16 %v1784
      %v1817 = vunpack.c.l.b16 %v1785
      %v1818 = vunpack.c.l.b16 %v1786
      %v1819 = vpack.c.b16 %v1804, %v1803
      %v1820 = vpack.c.b16 %v1806, %v1805
      %v1821 = vpack.c.b16 %v1808, %v1807
      %v1822 = vpack.c.b16 %v1810, %v1809
      %v1823 = vpack.c.b16 %v1812, %v1811
      %v1824 = vpack.c.b16 %v1814, %v1813
      %v1825 = vpack.c.b16 %v1816, %v1815
      %v1826 = vpack.c.b16 %v1818, %v1817
      %1835 = vmatprep.subr.bf16.mxu0 0
      %1836 = vmatpush1.bf16.msra.mxu0 %v1819
      %1837 = vmatprep.subr.bf16.mxu0 0
      %1838 = vmatpush1.bf16.msra.mxu0 %v1820
      %1839 = vmatprep.subr.bf16.mxu0 0
      %1840 = vmatpush1.bf16.msra.mxu0 %v1821
      %1841 = vmatprep.subr.bf16.mxu0 0
      %1842 = vmatpush1.bf16.msra.mxu0 %v1822
      %1843 = vmatprep.subr.bf16.mxu0 0
      %1844 = vmatpush1.bf16.msra.mxu0 %v1823
      %1845 = vmatprep.subr.bf16.mxu0 0
      %1846 = vmatpush1.bf16.msra.mxu0 %v1824
      %1847 = vmatprep.subr.bf16.mxu0 0
      %1848 = vmatpush1.bf16.msra.mxu0 %v1825
      %1849 = vmatprep.subr.bf16.mxu0 0
      %1850 = vmatpush1.bf16.msra.mxu0 %v1826
      %1851 = vmatprep.subr.bf16.mxu0 0
      %1852 = vmatpush1.bf16.msra.mxu0 0
      %1853 = vmatprep.subr.bf16.mxu0 0
      %1854 = vmatpush1.bf16.msra.mxu0 0
      %1855 = vmatprep.subr.bf16.mxu0 0
      %1856 = vmatpush1.bf16.msra.mxu0 0
      %1857 = vmatprep.subr.bf16.mxu0 0
      %1858 = vmatpush1.bf16.msra.mxu0 0
      %1859 = vmatprep.subr.bf16.mxu0 0
      %1860 = vmatpush1.bf16.msra.mxu0 0
      %1861 = vmatprep.subr.bf16.mxu0 0
      %1862 = vmatpush1.bf16.msra.mxu0 0
      %1863 = vmatprep.subr.bf16.mxu0 0
      %1864 = vmatpush1.bf16.msra.mxu0 0
      %1865 = vmatprep.subr.bf16.mxu0 0
      %1866 = vmatpush1.bf16.msra.mxu0 0
      %1867 = vmatprep.mubr.bf16.mxu0 0
      %1868 = vmatmul.mubr.bf16.gmra.mrb[0].mxu0 %v1754
      %v1869 = vpop.f32.mrb[0].mxu0
      %v1870 = vadd.f32 0.0, %v1869
      %v1871 = vpop.f32.mrb[0].mxu0
      %v1872 = vpop.f32.mrb[0].mxu0
      %v1873 = vadd.f32 0.0, %v1872
      %v1874 = vpop.f32.mrb[0].mxu0
      %1875 = vmatprep.mubr.bf16.mxu0 0
      %1876 = vmatmul.mubr.bf16.gmra.mrb[0].mxu0 %v1755
      %v1877 = vpop.f32.mrb[0].mxu0
      %v1878 = vadd.f32 0.0, %v1877
      %v1879 = vpop.f32.mrb[0].mxu0
      %v1880 = vpop.f32.mrb[0].mxu0
      %v1881 = vadd.f32 0.0, %v1880
      %v1882 = vpop.f32.mrb[0].mxu0
      %1883 = vmatprep.mubr.bf16.mxu0 0
      %1884 = vmatmul.mubr.bf16.gmra.mrb[0].mxu0 %v1756
      %v1885 = vpop.f32.mrb[0].mxu0
      %v1886 = vadd.f32 0.0, %v1885
      %v1887 = vpop.f32.mrb[0].mxu0
      %v1888 = vpop.f32.mrb[0].mxu0
      %v1889 = vadd.f32 0.0, %v1888
      %v1890 = vpop.f32.mrb[0].mxu0
      %1891 = vmatprep.mubr.bf16.mxu0 0
      %1892 = vmatmul.mubr.bf16.gmra.mrb[0].mxu0 %v1757
      %v1893 = vpop.f32.mrb[0].mxu0
      %v1894 = vadd.f32 0.0, %v1893
      %v1895 = vpop.f32.mrb[0].mxu0
      %v1896 = vpop.f32.mrb[0].mxu0
      %v1897 = vadd.f32 0.0, %v1896
      %v1898 = vpop.f32.mrb[0].mxu0
      %1899 = vmatprep.mubr.bf16.mxu0 0
      %1900 = vmatmul.mubr.bf16.gmra.mrb[0].mxu0 %v1758
      %v1901 = vpop.f32.mrb[0].mxu0
      %v1902 = vadd.f32 0.0, %v1901
      %v1903 = vpop.f32.mrb[0].mxu0
      %v1904 = vpop.f32.mrb[0].mxu0
      %v1905 = vadd.f32 0.0, %v1904
      %v1906 = vpop.f32.mrb[0].mxu0
      %1907 = vmatprep.mubr.bf16.mxu0 0
      %1908 = vmatmul.mubr.bf16.gmra.mrb[0].mxu0 %v1759
      %v1909 = vpop.f32.mrb[0].mxu0
      %v1910 = vadd.f32 0.0, %v1909
      %v1911 = vpop.f32.mrb[0].mxu0
      %v1912 = vpop.f32.mrb[0].mxu0
      %v1913 = vadd.f32 0.0, %v1912
      %v1914 = vpop.f32.mrb[0].mxu0
      %1915 = vmatprep.mubr.bf16.mxu0 0
      %1916 = vmatmul.mubr.bf16.gmra.mrb[0].mxu0 %v1760
      %v1917 = vpop.f32.mrb[0].mxu0
      %v1918 = vadd.f32 0.0, %v1917
      %v1919 = vpop.f32.mrb[0].mxu0
      %v1920 = vpop.f32.mrb[0].mxu0
      %v1921 = vadd.f32 0.0, %v1920
      %v1922 = vpop.f32.mrb[0].mxu0
      %1923 = vmatprep.mubr.bf16.mxu0 0
      %1924 = vmatmul.mubr.bf16.gmra.mrb[0].mxu0 %v1761
      %v1925 = vpop.f32.mrb[0].mxu0
      %v1926 = vadd.f32 0.0, %v1925
      %v1927 = vpop.f32.mrb[0].mxu0
      %v1928 = vpop.f32.mrb[0].mxu0
      %v1929 = vadd.f32 0.0, %v1928
      %v1930 = vpop.f32.mrb[0].mxu0
      %1931 = vmatprep.mubr.bf16.mxu0 0
      %1932 = vmatmul.mubr.bf16.gmra.mrb[0].mxu0 %v1762
      %v1933 = vpop.f32.mrb[0].mxu0
      %v1934 = vadd.f32 0.0, %v1933
      %v1935 = vpop.f32.mrb[0].mxu0
      %v1936 = vpop.f32.mrb[0].mxu0
      %v1937 = vadd.f32 0.0, %v1936
      %v1938 = vpop.f32.mrb[0].mxu0
      %1939 = vmatprep.mubr.bf16.mxu0 0
      %1940 = vmatmul.mubr.bf16.gmra.mrb[0].mxu0 %v1763
      %v1941 = vpop.f32.mrb[0].mxu0
      %v1942 = vadd.f32 0.0, %v1941
      %v1943 = vpop.f32.mrb[0].mxu0
      %v1944 = vpop.f32.mrb[0].mxu0
      %v1945 = vadd.f32 0.0, %v1944
      %v1946 = vpop.f32.mrb[0].mxu0
      %1947 = vmatprep.mubr.bf16.mxu0 0
      %1948 = vmatmul.mubr.bf16.gmra.mrb[0].mxu0 %v1764
      %v1949 = vpop.f32.mrb[0].mxu0
      %v1950 = vadd.f32 0.0, %v1949
      %v1951 = vpop.f32.mrb[0].mxu0
      %v1952 = vpop.f32.mrb[0].mxu0
      %v1953 = vadd.f32 0.0, %v1952
      %v1954 = vpop.f32.mrb[0].mxu0
      %1955 = vmatprep.mubr.bf16.mxu0 0
      %1956 = vmatmul.mubr.bf16.gmra.mrb[0].mxu0 %v1765
      %v1957 = vpop.f32.mrb[0].mxu0
      %v1958 = vadd.f32 0.0, %v1957
      %v1959 = vpop.f32.mrb[0].mxu0
      %v1960 = vpop.f32.mrb[0].mxu0
      %v1961 = vadd.f32 0.0, %v1960
      %v1962 = vpop.f32.mrb[0].mxu0
      %1963 = vmatprep.mubr.bf16.mxu0 0
      %1964 = vmatmul.mubr.bf16.gmra.mrb[0].mxu0 %v1766
      %v1965 = vpop.f32.mrb[0].mxu0
      %v1966 = vadd.f32 0.0, %v1965
      %v1967 = vpop.f32.mrb[0].mxu0
      %v1968 = vpop.f32.mrb[0].mxu0
      %v1969 = vadd.f32 0.0, %v1968
      %v1970 = vpop.f32.mrb[0].mxu0
      %1971 = vmatprep.mubr.bf16.mxu0 0
      %1972 = vmatmul.mubr.bf16.gmra.mrb[0].mxu0 %v1767
      %v1973 = vpop.f32.mrb[0].mxu0
      %v1974 = vadd.f32 0.0, %v1973
      %v1975 = vpop.f32.mrb[0].mxu0
      %v1976 = vpop.f32.mrb[0].mxu0
      %v1977 = vadd.f32 0.0, %v1976
      %v1978 = vpop.f32.mrb[0].mxu0
      %1979 = vmatprep.mubr.bf16.mxu0 0
      %1980 = vmatmul.mubr.bf16.gmra.mrb[0].mxu0 %v1768
      %v1981 = vpop.f32.mrb[0].mxu0
      %v1982 = vadd.f32 0.0, %v1981
      %v1983 = vpop.f32.mrb[0].mxu0
      %v1984 = vpop.f32.mrb[0].mxu0
      %v1985 = vadd.f32 0.0, %v1984
      %v1986 = vpop.f32.mrb[0].mxu0
      %1987 = vmatprep.mubr.bf16.mxu0 0
      %1988 = vmatmul.mubr.bf16.gmra.mrb[0].mxu0 %v1769
      %v1989 = vpop.f32.mrb[0].mxu0
      %v1990 = vadd.f32 0.0, %v1989
      %v1991 = vpop.f32.mrb[0].mxu0
      %v1992 = vpop.f32.mrb[0].mxu0
      %v1993 = vadd.f32 0.0, %v1992
      %v1994 = vpop.f32.mrb[0].mxu0
      %1995 = vdwg.mxu0
      %v1996 = vadd.f32 %v1690, %v1870
      %v1997 = vadd.f32 %v1691, %v1873
      %v1998 = vadd.f32 %v1692, %v1878
      %v1999 = vadd.f32 %v1693, %v1881
      %v2000 = vadd.f32 %v1694, %v1886
      %v2001 = vadd.f32 %v1695, %v1889
      %v2002 = vadd.f32 %v1696, %v1894
      %v2003 = vadd.f32 %v1697, %v1897
      %v2004 = vadd.f32 %v1698, %v1902
      %v2005 = vadd.f32 %v1699, %v1905
      %v2006 = vadd.f32 %v1700, %v1910
      %v2007 = vadd.f32 %v1701, %v1913
      %v2008 = vadd.f32 %v1702, %v1918
      %v2009 = vadd.f32 %v1703, %v1921
      %v2010 = vadd.f32 %v1704, %v1926
      %v2011 = vadd.f32 %v1705, %v1929
      %v2012 = vadd.f32 %v1706, %v1934
      %v2013 = vadd.f32 %v1707, %v1937
      %v2014 = vadd.f32 %v1708, %v1942
      %v2015 = vadd.f32 %v1709, %v1945
      %v2016 = vadd.f32 %v1710, %v1950
      %v2017 = vadd.f32 %v1711, %v1953
      %v2018 = vadd.f32 %v1712, %v1958
      %v2019 = vadd.f32 %v1713, %v1961
      %v2020 = vadd.f32 %v1714, %v1966
      %v2021 = vadd.f32 %v1715, %v1969
      %v2022 = vadd.f32 %v1716, %v1974
      %v2023 = vadd.f32 %v1717, %v1977
      %v2024 = vadd.f32 %v1718, %v1982
      %v2025 = vadd.f32 %v1719, %v1985
      %v2026 = vadd.f32 %v1720, %v1990
      %v2027 = vadd.f32 %v1721, %v1993
      %v2028 = vld [vmem:[%s530 + $0x2] sm:$0xff]
      %v2029 = vld [vmem:[%s530 + $0xa] sm:$0xff]
      %v2030 = vld [vmem:[%s530 + $0x1a] sm:$0xff]
      %v2031 = vld [vmem:[%s530 + $0x22] sm:$0xff]
      %v2032 = vld [vmem:[%s530 + $0x32] sm:$0xff]
      %v2033 = vld [vmem:[%s530 + $0x3a] sm:$0xff]
      %v2034 = vld [vmem:[%s530 + $0x4a] sm:$0xff]
      %v2035 = vld [vmem:[%s530 + $0x52] sm:$0xff]
      %v2036 = vld [vmem:[%s530 + $0x62] sm:$0xff]
      %v2037 = vld [vmem:[%s530 + $0x6a] sm:$0xff]
      %v2038 = vld [vmem:[%s530 + $0x7a] sm:$0xff]
      %v2039 = vld [vmem:[%s530 + $0x82] sm:$0xff]
      %v2040 = vld [vmem:[%s530 + $0x92] sm:$0xff]
      %v2041 = vld [vmem:[%s530 + $0x9a] sm:$0xff]
      %v2042 = vld [vmem:[%s530 + $0xaa] sm:$0xff]
      %v2043 = vld [vmem:[%s530 + $0xb2] sm:$0xff]
      %v2044 = vld [vmem:[%s530 + $0xc2] sm:$0xff]
      %v2045 = vld [vmem:[%s530 + $0xca] sm:$0xff]
      %v2046 = vld [vmem:[%s530 + $0xda] sm:$0xff]
      %v2047 = vld [vmem:[%s530 + $0xe2] sm:$0xff]
      %v2048 = vld [vmem:[%s530 + $0xf2] sm:$0xff]
      %v2049 = vld [vmem:[%s530 + $0xfa] sm:$0xff]
      %v2050 = vld [vmem:[%s530 + $0x10a] sm:$0xff]
      %v2051 = vld [vmem:[%s530 + $0x112] sm:$0xff]
      %v2052 = vld [vmem:[%s530 + $0x122] sm:$0xff]
      %v2053 = vld [vmem:[%s530 + $0x12a] sm:$0xff]
      %v2054 = vld [vmem:[%s530 + $0x13a] sm:$0xff]
      %v2055 = vld [vmem:[%s530 + $0x142] sm:$0xff]
      %v2056 = vld [vmem:[%s530 + $0x152] sm:$0xff]
      %v2057 = vld [vmem:[%s530 + $0x15a] sm:$0xff]
      %v2058 = vld [vmem:[%s530 + $0x16a] sm:$0xff]
      %v2059 = vld [vmem:[%s530 + $0x172] sm:$0xff]
      %v2060 = vpack.c.bf16 %v2029, %v2028
      %v2061 = vpack.c.bf16 %v2031, %v2030
      %v2062 = vpack.c.bf16 %v2033, %v2032
      %v2063 = vpack.c.bf16 %v2035, %v2034
      %v2064 = vpack.c.bf16 %v2037, %v2036
      %v2065 = vpack.c.bf16 %v2039, %v2038
      %v2066 = vpack.c.bf16 %v2041, %v2040
      %v2067 = vpack.c.bf16 %v2043, %v2042
      %v2068 = vpack.c.bf16 %v2045, %v2044
      %v2069 = vpack.c.bf16 %v2047, %v2046
      %v2070 = vpack.c.bf16 %v2049, %v2048
      %v2071 = vpack.c.bf16 %v2051, %v2050
      %v2072 = vpack.c.bf16 %v2053, %v2052
      %v2073 = vpack.c.bf16 %v2055, %v2054
      %v2074 = vpack.c.bf16 %v2057, %v2056
      %v2075 = vpack.c.bf16 %v2059, %v2058
      %s2076 = scalar_lea.vmem %s3, 320
      %v2077 = vld [vmem:[%s2076] sm:$0xf]
      %v2078 = vld [vmem:[%s2076 + $0x4] sm:$0xf]
      %v2079 = vld [vmem:[%s2076 + $0x8] sm:$0xf]
      %v2080 = vld [vmem:[%s2076 + $0xc] sm:$0xf]
      %v2081 = vld [vmem:[%s2076 + $0x10] sm:$0xf]
      %v2082 = vld [vmem:[%s2076 + $0x14] sm:$0xf]
      %v2083 = vld [vmem:[%s2076 + $0x18] sm:$0xf]
      %v2084 = vld [vmem:[%s2076 + $0x1c] sm:$0xf]
      %v2085 = vld [vmem:[%s2076 + $0x20] sm:$0xf]
      %v2086 = vld [vmem:[%s2076 + $0x24] sm:$0xf]
      %v2087 = vld [vmem:[%s2076 + $0x28] sm:$0xf]
      %v2088 = vld [vmem:[%s2076 + $0x2c] sm:$0xf]
      %v2089 = vld [vmem:[%s2076 + $0x30] sm:$0xf]
      %v2090 = vld [vmem:[%s2076 + $0x34] sm:$0xf]
      %v2091 = vld [vmem:[%s2076 + $0x38] sm:$0xf]
      %v2092 = vld [vmem:[%s2076 + $0x3c] sm:$0xf]
      %v2109 = vunpack.c.l.b16 %v2077
      %v2110 = vunpack.c.l.b16 %v2078
      %v2111 = vunpack.c.l.b16 %v2079
      %v2112 = vunpack.c.l.b16 %v2080
      %v2113 = vunpack.c.l.b16 %v2081
      %v2114 = vunpack.c.l.b16 %v2082
      %v2115 = vunpack.c.l.b16 %v2083
      %v2116 = vunpack.c.l.b16 %v2084
      %v2117 = vunpack.c.l.b16 %v2085
      %v2118 = vunpack.c.l.b16 %v2086
      %v2119 = vunpack.c.l.b16 %v2087
      %v2120 = vunpack.c.l.b16 %v2088
      %v2121 = vunpack.c.l.b16 %v2089
      %v2122 = vunpack.c.l.b16 %v2090
      %v2123 = vunpack.c.l.b16 %v2091
      %v2124 = vunpack.c.l.b16 %v2092
      %v2125 = vpack.c.b16 %v2110, %v2109
      %v2126 = vpack.c.b16 %v2112, %v2111
      %v2127 = vpack.c.b16 %v2114, %v2113
      %v2128 = vpack.c.b16 %v2116, %v2115
      %v2129 = vpack.c.b16 %v2118, %v2117
      %v2130 = vpack.c.b16 %v2120, %v2119
      %v2131 = vpack.c.b16 %v2122, %v2121
      %v2132 = vpack.c.b16 %v2124, %v2123
      %2141 = vmatprep.subr.bf16.mxu0 0
      %2142 = vmatpush1.bf16.msra.mxu0 %v2125
      %2143 = vmatprep.subr.bf16.mxu0 0
      %2144 = vmatpush1.bf16.msra.mxu0 %v2126
      %2145 = vmatprep.subr.bf16.mxu0 0
      %2146 = vmatpush1.bf16.msra.mxu0 %v2127
      %2147 = vmatprep.subr.bf16.mxu0 0
      %2148 = vmatpush1.bf16.msra.mxu0 %v2128
      %2149 = vmatprep.subr.bf16.mxu0 0
      %2150 = vmatpush1.bf16.msra.mxu0 %v2129
      %2151 = vmatprep.subr.bf16.mxu0 0
      %2152 = vmatpush1.bf16.msra.mxu0 %v2130
      %2153 = vmatprep.subr.bf16.mxu0 0
      %2154 = vmatpush1.bf16.msra.mxu0 %v2131
      %2155 = vmatprep.subr.bf16.mxu0 0
      %2156 = vmatpush1.bf16.msra.mxu0 %v2132
      %2157 = vmatprep.subr.bf16.mxu0 0
      %2158 = vmatpush1.bf16.msra.mxu0 0
      %2159 = vmatprep.subr.bf16.mxu0 0
      %2160 = vmatpush1.bf16.msra.mxu0 0
      %2161 = vmatprep.subr.bf16.mxu0 0
      %2162 = vmatpush1.bf16.msra.mxu0 0
      %2163 = vmatprep.subr.bf16.mxu0 0
      %2164 = vmatpush1.bf16.msra.mxu0 0
      %2165 = vmatprep.subr.bf16.mxu0 0
      %2166 = vmatpush1.bf16.msra.mxu0 0
      %2167 = vmatprep.subr.bf16.mxu0 0
      %2168 = vmatpush1.bf16.msra.mxu0 0
      %2169 = vmatprep.subr.bf16.mxu0 0
      %2170 = vmatpush1.bf16.msra.mxu0 0
      %2171 = vmatprep.subr.bf16.mxu0 0
      %2172 = vmatpush1.bf16.msra.mxu0 0
      %2173 = vmatprep.mubr.bf16.mxu0 0
      %2174 = vmatmul.mubr.bf16.gmra.mrb[0].mxu0 %v2060
      %v2175 = vpop.f32.mrb[0].mxu0
      %v2176 = vadd.f32 0.0, %v2175
      %v2177 = vpop.f32.mrb[0].mxu0
      %v2178 = vpop.f32.mrb[0].mxu0
      %v2179 = vadd.f32 0.0, %v2178
      %v2180 = vpop.f32.mrb[0].mxu0
      %2181 = vmatprep.mubr.bf16.mxu0 0
      %2182 = vmatmul.mubr.bf16.gmra.mrb[0].mxu0 %v2061
      %v2183 = vpop.f32.mrb[0].mxu0
      %v2184 = vadd.f32 0.0, %v2183
      %v2185 = vpop.f32.mrb[0].mxu0
      %v2186 = vpop.f32.mrb[0].mxu0
      %v2187 = vadd.f32 0.0, %v2186
      %v2188 = vpop.f32.mrb[0].mxu0
      %2189 = vmatprep.mubr.bf16.mxu0 0
      %2190 = vmatmul.mubr.bf16.gmra.mrb[0].mxu0 %v2062
      %v2191 = vpop.f32.mrb[0].mxu0
      %v2192 = vadd.f32 0.0, %v2191
      %v2193 = vpop.f32.mrb[0].mxu0
      %v2194 = vpop.f32.mrb[0].mxu0
      %v2195 = vadd.f32 0.0, %v2194
      %v2196 = vpop.f32.mrb[0].mxu0
      %2197 = vmatprep.mubr.bf16.mxu0 0
      %2198 = vmatmul.mubr.bf16.gmra.mrb[0].mxu0 %v2063
      %v2199 = vpop.f32.mrb[0].mxu0
      %v2200 = vadd.f32 0.0, %v2199
      %v2201 = vpop.f32.mrb[0].mxu0
      %v2202 = vpop.f32.mrb[0].mxu0
      %v2203 = vadd.f32 0.0, %v2202
      %v2204 = vpop.f32.mrb[0].mxu0
      %2205 = vmatprep.mubr.bf16.mxu0 0
      %2206 = vmatmul.mubr.bf16.gmra.mrb[0].mxu0 %v2064
      %v2207 = vpop.f32.mrb[0].mxu0
      %v2208 = vadd.f32 0.0, %v2207
      %v2209 = vpop.f32.mrb[0].mxu0
      %v2210 = vpop.f32.mrb[0].mxu0
      %v2211 = vadd.f32 0.0, %v2210
      %v2212 = vpop.f32.mrb[0].mxu0
      %2213 = vmatprep.mubr.bf16.mxu0 0
      %2214 = vmatmul.mubr.bf16.gmra.mrb[0].mxu0 %v2065
      %v2215 = vpop.f32.mrb[0].mxu0
      %v2216 = vadd.f32 0.0, %v2215
      %v2217 = vpop.f32.mrb[0].mxu0
      %v2218 = vpop.f32.mrb[0].mxu0
      %v2219 = vadd.f32 0.0, %v2218
      %v2220 = vpop.f32.mrb[0].mxu0
      %2221 = vmatprep.mubr.bf16.mxu0 0
      %2222 = vmatmul.mubr.bf16.gmra.mrb[0].mxu0 %v2066
      %v2223 = vpop.f32.mrb[0].mxu0
      %v2224 = vadd.f32 0.0, %v2223
      %v2225 = vpop.f32.mrb[0].mxu0
      %v2226 = vpop.f32.mrb[0].mxu0
      %v2227 = vadd.f32 0.0, %v2226
      %v2228 = vpop.f32.mrb[0].mxu0
      %2229 = vmatprep.mubr.bf16.mxu0 0
      %2230 = vmatmul.mubr.bf16.gmra.mrb[0].mxu0 %v2067
      %v2231 = vpop.f32.mrb[0].mxu0
      %v2232 = vadd.f32 0.0, %v2231
      %v2233 = vpop.f32.mrb[0].mxu0
      %v2234 = vpop.f32.mrb[0].mxu0
      %v2235 = vadd.f32 0.0, %v2234
      %v2236 = vpop.f32.mrb[0].mxu0
      %2237 = vmatprep.mubr.bf16.mxu0 0
      %2238 = vmatmul.mubr.bf16.gmra.mrb[0].mxu0 %v2068
      %v2239 = vpop.f32.mrb[0].mxu0
      %v2240 = vadd.f32 0.0, %v2239
      %v2241 = vpop.f32.mrb[0].mxu0
      %v2242 = vpop.f32.mrb[0].mxu0
      %v2243 = vadd.f32 0.0, %v2242
      %v2244 = vpop.f32.mrb[0].mxu0
      %2245 = vmatprep.mubr.bf16.mxu0 0
      %2246 = vmatmul.mubr.bf16.gmra.mrb[0].mxu0 %v2069
      %v2247 = vpop.f32.mrb[0].mxu0
      %v2248 = vadd.f32 0.0, %v2247
      %v2249 = vpop.f32.mrb[0].mxu0
      %v2250 = vpop.f32.mrb[0].mxu0
      %v2251 = vadd.f32 0.0, %v2250
      %v2252 = vpop.f32.mrb[0].mxu0
      %2253 = vmatprep.mubr.bf16.mxu0 0
      %2254 = vmatmul.mubr.bf16.gmra.mrb[0].mxu0 %v2070
      %v2255 = vpop.f32.mrb[0].mxu0
      %v2256 = vadd.f32 0.0, %v2255
      %v2257 = vpop.f32.mrb[0].mxu0
      %v2258 = vpop.f32.mrb[0].mxu0
      %v2259 = vadd.f32 0.0, %v2258
      %v2260 = vpop.f32.mrb[0].mxu0
      %2261 = vmatprep.mubr.bf16.mxu0 0
      %2262 = vmatmul.mubr.bf16.gmra.mrb[0].mxu0 %v2071
      %v2263 = vpop.f32.mrb[0].mxu0
      %v2264 = vadd.f32 0.0, %v2263
      %v2265 = vpop.f32.mrb[0].mxu0
      %v2266 = vpop.f32.mrb[0].mxu0
      %v2267 = vadd.f32 0.0, %v2266
      %v2268 = vpop.f32.mrb[0].mxu0
      %2269 = vmatprep.mubr.bf16.mxu0 0
      %2270 = vmatmul.mubr.bf16.gmra.mrb[0].mxu0 %v2072
      %v2271 = vpop.f32.mrb[0].mxu0
      %v2272 = vadd.f32 0.0, %v2271
      %v2273 = vpop.f32.mrb[0].mxu0
      %v2274 = vpop.f32.mrb[0].mxu0
      %v2275 = vadd.f32 0.0, %v2274
      %v2276 = vpop.f32.mrb[0].mxu0
      %2277 = vmatprep.mubr.bf16.mxu0 0
      %2278 = vmatmul.mubr.bf16.gmra.mrb[0].mxu0 %v2073
      %v2279 = vpop.f32.mrb[0].mxu0
      %v2280 = vadd.f32 0.0, %v2279
      %v2281 = vpop.f32.mrb[0].mxu0
      %v2282 = vpop.f32.mrb[0].mxu0
      %v2283 = vadd.f32 0.0, %v2282
      %v2284 = vpop.f32.mrb[0].mxu0
      %2285 = vmatprep.mubr.bf16.mxu0 0
      %2286 = vmatmul.mubr.bf16.gmra.mrb[0].mxu0 %v2074
      %v2287 = vpop.f32.mrb[0].mxu0
      %v2288 = vadd.f32 0.0, %v2287
      %v2289 = vpop.f32.mrb[0].mxu0
      %v2290 = vpop.f32.mrb[0].mxu0
      %v2291 = vadd.f32 0.0, %v2290
      %v2292 = vpop.f32.mrb[0].mxu0
      %2293 = vmatprep.mubr.bf16.mxu0 0
      %2294 = vmatmul.mubr.bf16.gmra.mrb[0].mxu0 %v2075
      %v2295 = vpop.f32.mrb[0].mxu0
      %v2296 = vadd.f32 0.0, %v2295
      %v2297 = vpop.f32.mrb[0].mxu0
      %v2298 = vpop.f32.mrb[0].mxu0
      %v2299 = vadd.f32 0.0, %v2298
      %v2300 = vpop.f32.mrb[0].mxu0
      %2301 = vdwg.mxu0
      %v2302 = vadd.f32 %v1996, %v2176
      %v2303 = vadd.f32 %v1997, %v2179
      %v2304 = vadd.f32 %v1998, %v2184
      %v2305 = vadd.f32 %v1999, %v2187
      %v2306 = vadd.f32 %v2000, %v2192
      %v2307 = vadd.f32 %v2001, %v2195
      %v2308 = vadd.f32 %v2002, %v2200
      %v2309 = vadd.f32 %v2003, %v2203
      %v2310 = vadd.f32 %v2004, %v2208
      %v2311 = vadd.f32 %v2005, %v2211
      %v2312 = vadd.f32 %v2006, %v2216
      %v2313 = vadd.f32 %v2007, %v2219
      %v2314 = vadd.f32 %v2008, %v2224
      %v2315 = vadd.f32 %v2009, %v2227
      %v2316 = vadd.f32 %v2010, %v2232
      %v2317 = vadd.f32 %v2011, %v2235
      %v2318 = vadd.f32 %v2012, %v2240
      %v2319 = vadd.f32 %v2013, %v2243
      %v2320 = vadd.f32 %v2014, %v2248
      %v2321 = vadd.f32 %v2015, %v2251
      %v2322 = vadd.f32 %v2016, %v2256
      %v2323 = vadd.f32 %v2017, %v2259
      %v2324 = vadd.f32 %v2018, %v2264
      %v2325 = vadd.f32 %v2019, %v2267
      %v2326 = vadd.f32 %v2020, %v2272
      %v2327 = vadd.f32 %v2021, %v2275
      %v2328 = vadd.f32 %v2022, %v2280
      %v2329 = vadd.f32 %v2023, %v2283
      %v2330 = vadd.f32 %v2024, %v2288
      %v2331 = vadd.f32 %v2025, %v2291
      %v2332 = vadd.f32 %v2026, %v2296
      %v2333 = vadd.f32 %v2027, %v2299
      %s2334 = scalar_lea.vmem [#allocation2], 48
      %v2335 = vld [vmem:[%s2334] sm:$0xff]
      %v2336 = vld [vmem:[%s2334 + $0x8] sm:$0xff]
      %v2337 = vld [vmem:[%s2334 + $0x18] sm:$0xff]
      %v2338 = vld [vmem:[%s2334 + $0x20] sm:$0xff]
      %v2339 = vld [vmem:[%s2334 + $0x30] sm:$0xff]
      %v2340 = vld [vmem:[%s2334 + $0x38] sm:$0xff]
      %v2341 = vld [vmem:[%s2334 + $0x48] sm:$0xff]
      %v2342 = vld [vmem:[%s2334 + $0x50] sm:$0xff]
      %v2343 = vld [vmem:[%s2334 + $0x60] sm:$0xff]
      %v2344 = vld [vmem:[%s2334 + $0x68] sm:$0xff]
      %v2345 = vld [vmem:[%s2334 + $0x78] sm:$0xff]
      %v2346 = vld [vmem:[%s2334 + $0x80] sm:$0xff]
      %v2347 = vld [vmem:[%s2334 + $0x90] sm:$0xff]
      %v2348 = vld [vmem:[%s2334 + $0x98] sm:$0xff]
      %v2349 = vld [vmem:[%s2334 + $0xa8] sm:$0xff]
      %v2350 = vld [vmem:[%s2334 + $0xb0] sm:$0xff]
      %v2351 = vld [vmem:[%s2334 + $0xc0] sm:$0xff]
      %v2352 = vld [vmem:[%s2334 + $0xc8] sm:$0xff]
      %v2353 = vld [vmem:[%s2334 + $0xd8] sm:$0xff]
      %v2354 = vld [vmem:[%s2334 + $0xe0] sm:$0xff]
      %v2355 = vld [vmem:[%s2334 + $0xf0] sm:$0xff]
      %v2356 = vld [vmem:[%s2334 + $0xf8] sm:$0xff]
      %v2357 = vld [vmem:[%s2334 + $0x108] sm:$0xff]
      %v2358 = vld [vmem:[%s2334 + $0x110] sm:$0xff]
      %v2359 = vld [vmem:[%s2334 + $0x120] sm:$0xff]
      %v2360 = vld [vmem:[%s2334 + $0x128] sm:$0xff]
      %v2361 = vld [vmem:[%s2334 + $0x138] sm:$0xff]
      %v2362 = vld [vmem:[%s2334 + $0x140] sm:$0xff]
      %v2363 = vld [vmem:[%s2334 + $0x150] sm:$0xff]
      %v2364 = vld [vmem:[%s2334 + $0x158] sm:$0xff]
      %v2365 = vld [vmem:[%s2334 + $0x168] sm:$0xff]
      %v2366 = vld [vmem:[%s2334 + $0x170] sm:$0xff]
      %v2367 = vpack.c.bf16 %v2336, %v2335
      %v2368 = vpack.c.bf16 %v2338, %v2337
      %v2369 = vpack.c.bf16 %v2340, %v2339
      %v2370 = vpack.c.bf16 %v2342, %v2341
      %v2371 = vpack.c.bf16 %v2344, %v2343
      %v2372 = vpack.c.bf16 %v2346, %v2345
      %v2373 = vpack.c.bf16 %v2348, %v2347
      %v2374 = vpack.c.bf16 %v2350, %v2349
      %v2375 = vpack.c.bf16 %v2352, %v2351
      %v2376 = vpack.c.bf16 %v2354, %v2353
      %v2377 = vpack.c.bf16 %v2356, %v2355
      %v2378 = vpack.c.bf16 %v2358, %v2357
      %v2379 = vpack.c.bf16 %v2360, %v2359
      %v2380 = vpack.c.bf16 %v2362, %v2361
      %v2381 = vpack.c.bf16 %v2364, %v2363
      %v2382 = vpack.c.bf16 %v2366, %v2365
      %s2383 = scalar_lea.vmem %s3, 384
      %v2384 = vld [vmem:[%s2383] sm:$0xf]
      %v2385 = vld [vmem:[%s2383 + $0x4] sm:$0xf]
      %v2386 = vld [vmem:[%s2383 + $0x8] sm:$0xf]
      %v2387 = vld [vmem:[%s2383 + $0xc] sm:$0xf]
      %v2388 = vld [vmem:[%s2383 + $0x10] sm:$0xf]
      %v2389 = vld [vmem:[%s2383 + $0x14] sm:$0xf]
      %v2390 = vld [vmem:[%s2383 + $0x18] sm:$0xf]
      %v2391 = vld [vmem:[%s2383 + $0x1c] sm:$0xf]
      %v2392 = vld [vmem:[%s2383 + $0x20] sm:$0xf]
      %v2393 = vld [vmem:[%s2383 + $0x24] sm:$0xf]
      %v2394 = vld [vmem:[%s2383 + $0x28] sm:$0xf]
      %v2395 = vld [vmem:[%s2383 + $0x2c] sm:$0xf]
      %v2396 = vld [vmem:[%s2383 + $0x30] sm:$0xf]
      %v2397 = vld [vmem:[%s2383 + $0x34] sm:$0xf]
      %v2398 = vld [vmem:[%s2383 + $0x38] sm:$0xf]
      %v2399 = vld [vmem:[%s2383 + $0x3c] sm:$0xf]
      %v2416 = vunpack.c.l.b16 %v2384
      %v2417 = vunpack.c.l.b16 %v2385
      %v2418 = vunpack.c.l.b16 %v2386
      %v2419 = vunpack.c.l.b16 %v2387
      %v2420 = vunpack.c.l.b16 %v2388
      %v2421 = vunpack.c.l.b16 %v2389
      %v2422 = vunpack.c.l.b16 %v2390
      %v2423 = vunpack.c.l.b16 %v2391
      %v2424 = vunpack.c.l.b16 %v2392
      %v2425 = vunpack.c.l.b16 %v2393
      %v2426 = vunpack.c.l.b16 %v2394
      %v2427 = vunpack.c.l.b16 %v2395
      %v2428 = vunpack.c.l.b16 %v2396
      %v2429 = vunpack.c.l.b16 %v2397
      %v2430 = vunpack.c.l.b16 %v2398
      %v2431 = vunpack.c.l.b16 %v2399
      %v2432 = vpack.c.b16 %v2417, %v2416
      %v2433 = vpack.c.b16 %v2419, %v2418
      %v2434 = vpack.c.b16 %v2421, %v2420
      %v2435 = vpack.c.b16 %v2423, %v2422
      %v2436 = vpack.c.b16 %v2425, %v2424
      %v2437 = vpack.c.b16 %v2427, %v2426
      %v2438 = vpack.c.b16 %v2429, %v2428
      %v2439 = vpack.c.b16 %v2431, %v2430
      %2448 = vmatprep.subr.bf16.mxu0 0
      %2449 = vmatpush1.bf16.msra.mxu0 %v2432
      %2450 = vmatprep.subr.bf16.mxu0 0
      %2451 = vmatpush1.bf16.msra.mxu0 %v2433
      %2452 = vmatprep.subr.bf16.mxu0 0
      %2453 = vmatpush1.bf16.msra.mxu0 %v2434
      %2454 = vmatprep.subr.bf16.mxu0 0
      %2455 = vmatpush1.bf16.msra.mxu0 %v2435
      %2456 = vmatprep.subr.bf16.mxu0 0
      %2457 = vmatpush1.bf16.msra.mxu0 %v2436
      %2458 = vmatprep.subr.bf16.mxu0 0
      %2459 = vmatpush1.bf16.msra.mxu0 %v2437
      %2460 = vmatprep.subr.bf16.mxu0 0
      %2461 = vmatpush1.bf16.msra.mxu0 %v2438
      %2462 = vmatprep.subr.bf16.mxu0 0
      %2463 = vmatpush1.bf16.msra.mxu0 %v2439
      %2464 = vmatprep.subr.bf16.mxu0 0
      %2465 = vmatpush1.bf16.msra.mxu0 0
      %2466 = vmatprep.subr.bf16.mxu0 0
      %2467 = vmatpush1.bf16.msra.mxu0 0
      %2468 = vmatprep.subr.bf16.mxu0 0
      %2469 = vmatpush1.bf16.msra.mxu0 0
      %2470 = vmatprep.subr.bf16.mxu0 0
      %2471 = vmatpush1.bf16.msra.mxu0 0
      %2472 = vmatprep.subr.bf16.mxu0 0
      %2473 = vmatpush1.bf16.msra.mxu0 0
      %2474 = vmatprep.subr.bf16.mxu0 0
      %2475 = vmatpush1.bf16.msra.mxu0 0
      %2476 = vmatprep.subr.bf16.mxu0 0
      %2477 = vmatpush1.bf16.msra.mxu0 0
      %2478 = vmatprep.subr.bf16.mxu0 0
      %2479 = vmatpush1.bf16.msra.mxu0 0
      %2480 = vmatprep.mubr.bf16.mxu0 0
      %2481 = vmatmul.mubr.bf16.gmra.mrb[0].mxu0 %v2367
      %v2482 = vpop.f32.mrb[0].mxu0
      %v2483 = vadd.f32 0.0, %v2482
      %v2484 = vpop.f32.mrb[0].mxu0
      %v2485 = vpop.f32.mrb[0].mxu0
      %v2486 = vadd.f32 0.0, %v2485
      %v2487 = vpop.f32.mrb[0].mxu0
      %2488 = vmatprep.mubr.bf16.mxu0 0
      %2489 = vmatmul.mubr.bf16.gmra.mrb[0].mxu0 %v2368
      %v2490 = vpop.f32.mrb[0].mxu0
      %v2491 = vadd.f32 0.0, %v2490
      %v2492 = vpop.f32.mrb[0].mxu0
      %v2493 = vpop.f32.mrb[0].mxu0
      %v2494 = vadd.f32 0.0, %v2493
      %v2495 = vpop.f32.mrb[0].mxu0
      %2496 = vmatprep.mubr.bf16.mxu0 0
      %2497 = vmatmul.mubr.bf16.gmra.mrb[0].mxu0 %v2369
      %v2498 = vpop.f32.mrb[0].mxu0
      %v2499 = vadd.f32 0.0, %v2498
      %v2500 = vpop.f32.mrb[0].mxu0
      %v2501 = vpop.f32.mrb[0].mxu0
      %v2502 = vadd.f32 0.0, %v2501
      %v2503 = vpop.f32.mrb[0].mxu0
      %2504 = vmatprep.mubr.bf16.mxu0 0
      %2505 = vmatmul.mubr.bf16.gmra.mrb[0].mxu0 %v2370
      %v2506 = vpop.f32.mrb[0].mxu0
      %v2507 = vadd.f32 0.0, %v2506
      %v2508 = vpop.f32.mrb[0].mxu0
      %v2509 = vpop.f32.mrb[0].mxu0
      %v2510 = vadd.f32 0.0, %v2509
      %v2511 = vpop.f32.mrb[0].mxu0
      %2512 = vmatprep.mubr.bf16.mxu0 0
      %2513 = vmatmul.mubr.bf16.gmra.mrb[0].mxu0 %v2371
      %v2514 = vpop.f32.mrb[0].mxu0
      %v2515 = vadd.f32 0.0, %v2514
      %v2516 = vpop.f32.mrb[0].mxu0
      %v2517 = vpop.f32.mrb[0].mxu0
      %v2518 = vadd.f32 0.0, %v2517
      %v2519 = vpop.f32.mrb[0].mxu0
      %2520 = vmatprep.mubr.bf16.mxu0 0
      %2521 = vmatmul.mubr.bf16.gmra.mrb[0].mxu0 %v2372
      %v2522 = vpop.f32.mrb[0].mxu0
      %v2523 = vadd.f32 0.0, %v2522
      %v2524 = vpop.f32.mrb[0].mxu0
      %v2525 = vpop.f32.mrb[0].mxu0
      %v2526 = vadd.f32 0.0, %v2525
      %v2527 = vpop.f32.mrb[0].mxu0
      %2528 = vmatprep.mubr.bf16.mxu0 0
      %2529 = vmatmul.mubr.bf16.gmra.mrb[0].mxu0 %v2373
      %v2530 = vpop.f32.mrb[0].mxu0
      %v2531 = vadd.f32 0.0, %v2530
      %v2532 = vpop.f32.mrb[0].mxu0
      %v2533 = vpop.f32.mrb[0].mxu0
      %v2534 = vadd.f32 0.0, %v2533
      %v2535 = vpop.f32.mrb[0].mxu0
      %2536 = vmatprep.mubr.bf16.mxu0 0
      %2537 = vmatmul.mubr.bf16.gmra.mrb[0].mxu0 %v2374
      %v2538 = vpop.f32.mrb[0].mxu0
      %v2539 = vadd.f32 0.0, %v2538
      %v2540 = vpop.f32.mrb[0].mxu0
      %v2541 = vpop.f32.mrb[0].mxu0
      %v2542 = vadd.f32 0.0, %v2541
      %v2543 = vpop.f32.mrb[0].mxu0
      %2544 = vmatprep.mubr.bf16.mxu0 0
      %2545 = vmatmul.mubr.bf16.gmra.mrb[0].mxu0 %v2375
      %v2546 = vpop.f32.mrb[0].mxu0
      %v2547 = vadd.f32 0.0, %v2546
      %v2548 = vpop.f32.mrb[0].mxu0
      %v2549 = vpop.f32.mrb[0].mxu0
      %v2550 = vadd.f32 0.0, %v2549
      %v2551 = vpop.f32.mrb[0].mxu0
      %2552 = vmatprep.mubr.bf16.mxu0 0
      %2553 = vmatmul.mubr.bf16.gmra.mrb[0].mxu0 %v2376
      %v2554 = vpop.f32.mrb[0].mxu0
      %v2555 = vadd.f32 0.0, %v2554
      %v2556 = vpop.f32.mrb[0].mxu0
      %v2557 = vpop.f32.mrb[0].mxu0
      %v2558 = vadd.f32 0.0, %v2557
      %v2559 = vpop.f32.mrb[0].mxu0
      %2560 = vmatprep.mubr.bf16.mxu0 0
      %2561 = vmatmul.mubr.bf16.gmra.mrb[0].mxu0 %v2377
      %v2562 = vpop.f32.mrb[0].mxu0
      %v2563 = vadd.f32 0.0, %v2562
      %v2564 = vpop.f32.mrb[0].mxu0
      %v2565 = vpop.f32.mrb[0].mxu0
      %v2566 = vadd.f32 0.0, %v2565
      %v2567 = vpop.f32.mrb[0].mxu0
      %2568 = vmatprep.mubr.bf16.mxu0 0
      %2569 = vmatmul.mubr.bf16.gmra.mrb[0].mxu0 %v2378
      %v2570 = vpop.f32.mrb[0].mxu0
      %v2571 = vadd.f32 0.0, %v2570
      %v2572 = vpop.f32.mrb[0].mxu0
      %v2573 = vpop.f32.mrb[0].mxu0
      %v2574 = vadd.f32 0.0, %v2573
      %v2575 = vpop.f32.mrb[0].mxu0
      %2576 = vmatprep.mubr.bf16.mxu0 0
      %2577 = vmatmul.mubr.bf16.gmra.mrb[0].mxu0 %v2379
      %v2578 = vpop.f32.mrb[0].mxu0
      %v2579 = vadd.f32 0.0, %v2578
      %v2580 = vpop.f32.mrb[0].mxu0
      %v2581 = vpop.f32.mrb[0].mxu0
      %v2582 = vadd.f32 0.0, %v2581
      %v2583 = vpop.f32.mrb[0].mxu0
      %2584 = vmatprep.mubr.bf16.mxu0 0
      %2585 = vmatmul.mubr.bf16.gmra.mrb[0].mxu0 %v2380
      %v2586 = vpop.f32.mrb[0].mxu0
      %v2587 = vadd.f32 0.0, %v2586
      %v2588 = vpop.f32.mrb[0].mxu0
      %v2589 = vpop.f32.mrb[0].mxu0
      %v2590 = vadd.f32 0.0, %v2589
      %v2591 = vpop.f32.mrb[0].mxu0
      %2592 = vmatprep.mubr.bf16.mxu0 0
      %2593 = vmatmul.mubr.bf16.gmra.mrb[0].mxu0 %v2381
      %v2594 = vpop.f32.mrb[0].mxu0
      %v2595 = vadd.f32 0.0, %v2594
      %v2596 = vpop.f32.mrb[0].mxu0
      %v2597 = vpop.f32.mrb[0].mxu0
      %v2598 = vadd.f32 0.0, %v2597
      %v2599 = vpop.f32.mrb[0].mxu0
      %2600 = vmatprep.mubr.bf16.mxu0 0
      %2601 = vmatmul.mubr.bf16.gmra.mrb[0].mxu0 %v2382
      %v2602 = vpop.f32.mrb[0].mxu0
      %v2603 = vadd.f32 0.0, %v2602
      %v2604 = vpop.f32.mrb[0].mxu0
      %v2605 = vpop.f32.mrb[0].mxu0
      %v2606 = vadd.f32 0.0, %v2605
      %v2607 = vpop.f32.mrb[0].mxu0
      %2608 = vdwg.mxu0
      %v2609 = vadd.f32 %v2302, %v2483
      %v2610 = vadd.f32 %v2303, %v2486
      %v2611 = vadd.f32 %v2304, %v2491
      %v2612 = vadd.f32 %v2305, %v2494
      %v2613 = vadd.f32 %v2306, %v2499
      %v2614 = vadd.f32 %v2307, %v2502
      %v2615 = vadd.f32 %v2308, %v2507
      %v2616 = vadd.f32 %v2309, %v2510
      %v2617 = vadd.f32 %v2310, %v2515
      %v2618 = vadd.f32 %v2311, %v2518
      %v2619 = vadd.f32 %v2312, %v2523
      %v2620 = vadd.f32 %v2313, %v2526
      %v2621 = vadd.f32 %v2314, %v2531
      %v2622 = vadd.f32 %v2315, %v2534
      %v2623 = vadd.f32 %v2316, %v2539
      %v2624 = vadd.f32 %v2317, %v2542
      %v2625 = vadd.f32 %v2318, %v2547
      %v2626 = vadd.f32 %v2319, %v2550
      %v2627 = vadd.f32 %v2320, %v2555
      %v2628 = vadd.f32 %v2321, %v2558
      %v2629 = vadd.f32 %v2322, %v2563
      %v2630 = vadd.f32 %v2323, %v2566
      %v2631 = vadd.f32 %v2324, %v2571
      %v2632 = vadd.f32 %v2325, %v2574
      %v2633 = vadd.f32 %v2326, %v2579
      %v2634 = vadd.f32 %v2327, %v2582
      %v2635 = vadd.f32 %v2328, %v2587
      %v2636 = vadd.f32 %v2329, %v2590
      %v2637 = vadd.f32 %v2330, %v2595
      %v2638 = vadd.f32 %v2331, %v2598
      %v2639 = vadd.f32 %v2332, %v2603
      %v2640 = vadd.f32 %v2333, %v2606
      %v2641 = vld [vmem:[%s2334 + $0x1] sm:$0xff]
      %v2642 = vld [vmem:[%s2334 + $0x9] sm:$0xff]
      %v2643 = vld [vmem:[%s2334 + $0x19] sm:$0xff]
      %v2644 = vld [vmem:[%s2334 + $0x21] sm:$0xff]
      %v2645 = vld [vmem:[%s2334 + $0x31] sm:$0xff]
      %v2646 = vld [vmem:[%s2334 + $0x39] sm:$0xff]
      %v2647 = vld [vmem:[%s2334 + $0x49] sm:$0xff]
      %v2648 = vld [vmem:[%s2334 + $0x51] sm:$0xff]
      %v2649 = vld [vmem:[%s2334 + $0x61] sm:$0xff]
      %v2650 = vld [vmem:[%s2334 + $0x69] sm:$0xff]
      %v2651 = vld [vmem:[%s2334 + $0x79] sm:$0xff]
      %v2652 = vld [vmem:[%s2334 + $0x81] sm:$0xff]
      %v2653 = vld [vmem:[%s2334 + $0x91] sm:$0xff]
      %v2654 = vld [vmem:[%s2334 + $0x99] sm:$0xff]
      %v2655 = vld [vmem:[%s2334 + $0xa9] sm:$0xff]
      %v2656 = vld [vmem:[%s2334 + $0xb1] sm:$0xff]
      %v2657 = vld [vmem:[%s2334 + $0xc1] sm:$0xff]
      %v2658 = vld [vmem:[%s2334 + $0xc9] sm:$0xff]
      %v2659 = vld [vmem:[%s2334 + $0xd9] sm:$0xff]
      %v2660 = vld [vmem:[%s2334 + $0xe1] sm:$0xff]
      %v2661 = vld [vmem:[%s2334 + $0xf1] sm:$0xff]
      %v2662 = vld [vmem:[%s2334 + $0xf9] sm:$0xff]
      %v2663 = vld [vmem:[%s2334 + $0x109] sm:$0xff]
      %v2664 = vld [vmem:[%s2334 + $0x111] sm:$0xff]
      %v2665 = vld [vmem:[%s2334 + $0x121] sm:$0xff]
      %v2666 = vld [vmem:[%s2334 + $0x129] sm:$0xff]
      %v2667 = vld [vmem:[%s2334 + $0x139] sm:$0xff]
      %v2668 = vld [vmem:[%s2334 + $0x141] sm:$0xff]
      %v2669 = vld [vmem:[%s2334 + $0x151] sm:$0xff]
      %v2670 = vld [vmem:[%s2334 + $0x159] sm:$0xff]
      %v2671 = vld [vmem:[%s2334 + $0x169] sm:$0xff]
      %v2672 = vld [vmem:[%s2334 + $0x171] sm:$0xff]
      %v2673 = vpack.c.bf16 %v2642, %v2641
      %v2674 = vpack.c.bf16 %v2644, %v2643
      %v2675 = vpack.c.bf16 %v2646, %v2645
      %v2676 = vpack.c.bf16 %v2648, %v2647
      %v2677 = vpack.c.bf16 %v2650, %v2649
      %v2678 = vpack.c.bf16 %v2652, %v2651
      %v2679 = vpack.c.bf16 %v2654, %v2653
      %v2680 = vpack.c.bf16 %v2656, %v2655
      %v2681 = vpack.c.bf16 %v2658, %v2657
      %v2682 = vpack.c.bf16 %v2660, %v2659
      %v2683 = vpack.c.bf16 %v2662, %v2661
      %v2684 = vpack.c.bf16 %v2664, %v2663
      %v2685 = vpack.c.bf16 %v2666, %v2665
      %v2686 = vpack.c.bf16 %v2668, %v2667
      %v2687 = vpack.c.bf16 %v2670, %v2669
      %v2688 = vpack.c.bf16 %v2672, %v2671
      %s2689 = scalar_lea.vmem %s3, 448
      %v2690 = vld [vmem:[%s2689] sm:$0xf]
      %v2691 = vld [vmem:[%s2689 + $0x4] sm:$0xf]
      %v2692 = vld [vmem:[%s2689 + $0x8] sm:$0xf]
      %v2693 = vld [vmem:[%s2689 + $0xc] sm:$0xf]
      %v2694 = vld [vmem:[%s2689 + $0x10] sm:$0xf]
      %v2695 = vld [vmem:[%s2689 + $0x14] sm:$0xf]
      %v2696 = vld [vmem:[%s2689 + $0x18] sm:$0xf]
      %v2697 = vld [vmem:[%s2689 + $0x1c] sm:$0xf]
      %v2698 = vld [vmem:[%s2689 + $0x20] sm:$0xf]
      %v2699 = vld [vmem:[%s2689 + $0x24] sm:$0xf]
      %v2700 = vld [vmem:[%s2689 + $0x28] sm:$0xf]
      %v2701 = vld [vmem:[%s2689 + $0x2c] sm:$0xf]
      %v2702 = vld [vmem:[%s2689 + $0x30] sm:$0xf]
      %v2703 = vld [vmem:[%s2689 + $0x34] sm:$0xf]
      %v2704 = vld [vmem:[%s2689 + $0x38] sm:$0xf]
      %v2705 = vld [vmem:[%s2689 + $0x3c] sm:$0xf]
      %v2722 = vunpack.c.l.b16 %v2690
      %v2723 = vunpack.c.l.b16 %v2691
      %v2724 = vunpack.c.l.b16 %v2692
      %v2725 = vunpack.c.l.b16 %v2693
      %v2726 = vunpack.c.l.b16 %v2694
      %v2727 = vunpack.c.l.b16 %v2695
      %v2728 = vunpack.c.l.b16 %v2696
      %v2729 = vunpack.c.l.b16 %v2697
      %v2730 = vunpack.c.l.b16 %v2698
      %v2731 = vunpack.c.l.b16 %v2699
      %v2732 = vunpack.c.l.b16 %v2700
      %v2733 = vunpack.c.l.b16 %v2701
      %v2734 = vunpack.c.l.b16 %v2702
      %v2735 = vunpack.c.l.b16 %v2703
      %v2736 = vunpack.c.l.b16 %v2704
      %v2737 = vunpack.c.l.b16 %v2705
      %v2738 = vpack.c.b16 %v2723, %v2722
      %v2739 = vpack.c.b16 %v2725, %v2724
      %v2740 = vpack.c.b16 %v2727, %v2726
      %v2741 = vpack.c.b16 %v2729, %v2728
      %v2742 = vpack.c.b16 %v2731, %v2730
      %v2743 = vpack.c.b16 %v2733, %v2732
      %v2744 = vpack.c.b16 %v2735, %v2734
      %v2745 = vpack.c.b16 %v2737, %v2736
      %2754 = vmatprep.subr.bf16.mxu0 0
      %2755 = vmatpush1.bf16.msra.mxu0 %v2738
      %2756 = vmatprep.subr.bf16.mxu0 0
      %2757 = vmatpush1.bf16.msra.mxu0 %v2739
      %2758 = vmatprep.subr.bf16.mxu0 0
      %2759 = vmatpush1.bf16.msra.mxu0 %v2740
      %2760 = vmatprep.subr.bf16.mxu0 0
      %2761 = vmatpush1.bf16.msra.mxu0 %v2741
      %2762 = vmatprep.subr.bf16.mxu0 0
      %2763 = vmatpush1.bf16.msra.mxu0 %v2742
      %2764 = vmatprep.subr.bf16.mxu0 0
      %2765 = vmatpush1.bf16.msra.mxu0 %v2743
      %2766 = vmatprep.subr.bf16.mxu0 0
      %2767 = vmatpush1.bf16.msra.mxu0 %v2744
      %2768 = vmatprep.subr.bf16.mxu0 0
      %2769 = vmatpush1.bf16.msra.mxu0 %v2745
      %2770 = vmatprep.subr.bf16.mxu0 0
      %2771 = vmatpush1.bf16.msra.mxu0 0
      %2772 = vmatprep.subr.bf16.mxu0 0
      %2773 = vmatpush1.bf16.msra.mxu0 0
      %2774 = vmatprep.subr.bf16.mxu0 0
      %2775 = vmatpush1.bf16.msra.mxu0 0
      %2776 = vmatprep.subr.bf16.mxu0 0
      %2777 = vmatpush1.bf16.msra.mxu0 0
      %2778 = vmatprep.subr.bf16.mxu0 0
      %2779 = vmatpush1.bf16.msra.mxu0 0
      %2780 = vmatprep.subr.bf16.mxu0 0
      %2781 = vmatpush1.bf16.msra.mxu0 0
      %2782 = vmatprep.subr.bf16.mxu0 0
      %2783 = vmatpush1.bf16.msra.mxu0 0
      %2784 = vmatprep.subr.bf16.mxu0 0
      %2785 = vmatpush1.bf16.msra.mxu0 0
      %2786 = vmatprep.mubr.bf16.mxu0 0
      %2787 = vmatmul.mubr.bf16.gmra.mrb[0].mxu0 %v2673
      %v2788 = vpop.f32.mrb[0].mxu0
      %v2789 = vadd.f32 0.0, %v2788
      %v2790 = vpop.f32.mrb[0].mxu0
      %v2791 = vpop.f32.mrb[0].mxu0
      %v2792 = vadd.f32 0.0, %v2791
      %v2793 = vpop.f32.mrb[0].mxu0
      %2794 = vmatprep.mubr.bf16.mxu0 0
      %2795 = vmatmul.mubr.bf16.gmra.mrb[0].mxu0 %v2674
      %v2796 = vpop.f32.mrb[0].mxu0
      %v2797 = vadd.f32 0.0, %v2796
      %v2798 = vpop.f32.mrb[0].mxu0
      %v2799 = vpop.f32.mrb[0].mxu0
      %v2800 = vadd.f32 0.0, %v2799
      %v2801 = vpop.f32.mrb[0].mxu0
      %2802 = vmatprep.mubr.bf16.mxu0 0
      %2803 = vmatmul.mubr.bf16.gmra.mrb[0].mxu0 %v2675
      %v2804 = vpop.f32.mrb[0].mxu0
      %v2805 = vadd.f32 0.0, %v2804
      %v2806 = vpop.f32.mrb[0].mxu0
      %v2807 = vpop.f32.mrb[0].mxu0
      %v2808 = vadd.f32 0.0, %v2807
      %v2809 = vpop.f32.mrb[0].mxu0
      %2810 = vmatprep.mubr.bf16.mxu0 0
      %2811 = vmatmul.mubr.bf16.gmra.mrb[0].mxu0 %v2676
      %v2812 = vpop.f32.mrb[0].mxu0
      %v2813 = vadd.f32 0.0, %v2812
      %v2814 = vpop.f32.mrb[0].mxu0
      %v2815 = vpop.f32.mrb[0].mxu0
      %v2816 = vadd.f32 0.0, %v2815
      %v2817 = vpop.f32.mrb[0].mxu0
      %2818 = vmatprep.mubr.bf16.mxu0 0
      %2819 = vmatmul.mubr.bf16.gmra.mrb[0].mxu0 %v2677
      %v2820 = vpop.f32.mrb[0].mxu0
      %v2821 = vadd.f32 0.0, %v2820
      %v2822 = vpop.f32.mrb[0].mxu0
      %v2823 = vpop.f32.mrb[0].mxu0
      %v2824 = vadd.f32 0.0, %v2823
      %v2825 = vpop.f32.mrb[0].mxu0
      %2826 = vmatprep.mubr.bf16.mxu0 0
      %2827 = vmatmul.mubr.bf16.gmra.mrb[0].mxu0 %v2678
      %v2828 = vpop.f32.mrb[0].mxu0
      %v2829 = vadd.f32 0.0, %v2828
      %v2830 = vpop.f32.mrb[0].mxu0
      %v2831 = vpop.f32.mrb[0].mxu0
      %v2832 = vadd.f32 0.0, %v2831
      %v2833 = vpop.f32.mrb[0].mxu0
      %2834 = vmatprep.mubr.bf16.mxu0 0
      %2835 = vmatmul.mubr.bf16.gmra.mrb[0].mxu0 %v2679
      %v2836 = vpop.f32.mrb[0].mxu0
      %v2837 = vadd.f32 0.0, %v2836
      %v2838 = vpop.f32.mrb[0].mxu0
      %v2839 = vpop.f32.mrb[0].mxu0
      %v2840 = vadd.f32 0.0, %v2839
      %v2841 = vpop.f32.mrb[0].mxu0
      %2842 = vmatprep.mubr.bf16.mxu0 0
      %2843 = vmatmul.mubr.bf16.gmra.mrb[0].mxu0 %v2680
      %v2844 = vpop.f32.mrb[0].mxu0
      %v2845 = vadd.f32 0.0, %v2844
      %v2846 = vpop.f32.mrb[0].mxu0
      %v2847 = vpop.f32.mrb[0].mxu0
      %v2848 = vadd.f32 0.0, %v2847
      %v2849 = vpop.f32.mrb[0].mxu0
      %2850 = vmatprep.mubr.bf16.mxu0 0
      %2851 = vmatmul.mubr.bf16.gmra.mrb[0].mxu0 %v2681
      %v2852 = vpop.f32.mrb[0].mxu0
      %v2853 = vadd.f32 0.0, %v2852
      %v2854 = vpop.f32.mrb[0].mxu0
      %v2855 = vpop.f32.mrb[0].mxu0
      %v2856 = vadd.f32 0.0, %v2855
      %v2857 = vpop.f32.mrb[0].mxu0
      %2858 = vmatprep.mubr.bf16.mxu0 0
      %2859 = vmatmul.mubr.bf16.gmra.mrb[0].mxu0 %v2682
      %v2860 = vpop.f32.mrb[0].mxu0
      %v2861 = vadd.f32 0.0, %v2860
      %v2862 = vpop.f32.mrb[0].mxu0
      %v2863 = vpop.f32.mrb[0].mxu0
      %v2864 = vadd.f32 0.0, %v2863
      %v2865 = vpop.f32.mrb[0].mxu0
      %2866 = vmatprep.mubr.bf16.mxu0 0
      %2867 = vmatmul.mubr.bf16.gmra.mrb[0].mxu0 %v2683
      %v2868 = vpop.f32.mrb[0].mxu0
      %v2869 = vadd.f32 0.0, %v2868
      %v2870 = vpop.f32.mrb[0].mxu0
      %v2871 = vpop.f32.mrb[0].mxu0
      %v2872 = vadd.f32 0.0, %v2871
      %v2873 = vpop.f32.mrb[0].mxu0
      %2874 = vmatprep.mubr.bf16.mxu0 0
      %2875 = vmatmul.mubr.bf16.gmra.mrb[0].mxu0 %v2684
      %v2876 = vpop.f32.mrb[0].mxu0
      %v2877 = vadd.f32 0.0, %v2876
      %v2878 = vpop.f32.mrb[0].mxu0
      %v2879 = vpop.f32.mrb[0].mxu0
      %v2880 = vadd.f32 0.0, %v2879
      %v2881 = vpop.f32.mrb[0].mxu0
      %2882 = vmatprep.mubr.bf16.mxu0 0
      %2883 = vmatmul.mubr.bf16.gmra.mrb[0].mxu0 %v2685
      %v2884 = vpop.f32.mrb[0].mxu0
      %v2885 = vadd.f32 0.0, %v2884
      %v2886 = vpop.f32.mrb[0].mxu0
      %v2887 = vpop.f32.mrb[0].mxu0
      %v2888 = vadd.f32 0.0, %v2887
      %v2889 = vpop.f32.mrb[0].mxu0
      %2890 = vmatprep.mubr.bf16.mxu0 0
      %2891 = vmatmul.mubr.bf16.gmra.mrb[0].mxu0 %v2686
      %v2892 = vpop.f32.mrb[0].mxu0
      %v2893 = vadd.f32 0.0, %v2892
      %v2894 = vpop.f32.mrb[0].mxu0
      %v2895 = vpop.f32.mrb[0].mxu0
      %v2896 = vadd.f32 0.0, %v2895
      %v2897 = vpop.f32.mrb[0].mxu0
      %2898 = vmatprep.mubr.bf16.mxu0 0
      %2899 = vmatmul.mubr.bf16.gmra.mrb[0].mxu0 %v2687
      %v2900 = vpop.f32.mrb[0].mxu0
      %v2901 = vadd.f32 0.0, %v2900
      %v2902 = vpop.f32.mrb[0].mxu0
      %v2903 = vpop.f32.mrb[0].mxu0
      %v2904 = vadd.f32 0.0, %v2903
      %v2905 = vpop.f32.mrb[0].mxu0
      %2906 = vmatprep.mubr.bf16.mxu0 0
      %2907 = vmatmul.mubr.bf16.gmra.mrb[0].mxu0 %v2688
      %v2908 = vpop.f32.mrb[0].mxu0
      %v2909 = vadd.f32 0.0, %v2908
      %v2910 = vpop.f32.mrb[0].mxu0
      %v2911 = vpop.f32.mrb[0].mxu0
      %v2912 = vadd.f32 0.0, %v2911
      %v2913 = vpop.f32.mrb[0].mxu0
      %2914 = vdwg.mxu0
      %v2915 = vadd.f32 %v2609, %v2789
      %v2916 = vadd.f32 %v2610, %v2792
      %v2917 = vadd.f32 %v2611, %v2797
      %v2918 = vadd.f32 %v2612, %v2800
      %v2919 = vadd.f32 %v2613, %v2805
      %v2920 = vadd.f32 %v2614, %v2808
      %v2921 = vadd.f32 %v2615, %v2813
      %v2922 = vadd.f32 %v2616, %v2816
      %v2923 = vadd.f32 %v2617, %v2821
      %v2924 = vadd.f32 %v2618, %v2824
      %v2925 = vadd.f32 %v2619, %v2829
      %v2926 = vadd.f32 %v2620, %v2832
      %v2927 = vadd.f32 %v2621, %v2837
      %v2928 = vadd.f32 %v2622, %v2840
      %v2929 = vadd.f32 %v2623, %v2845
      %v2930 = vadd.f32 %v2624, %v2848
      %v2931 = vadd.f32 %v2625, %v2853
      %v2932 = vadd.f32 %v2626, %v2856
      %v2933 = vadd.f32 %v2627, %v2861
      %v2934 = vadd.f32 %v2628, %v2864
      %v2935 = vadd.f32 %v2629, %v2869
      %v2936 = vadd.f32 %v2630, %v2872
      %v2937 = vadd.f32 %v2631, %v2877
      %v2938 = vadd.f32 %v2632, %v2880
      %v2939 = vadd.f32 %v2633, %v2885
      %v2940 = vadd.f32 %v2634, %v2888
      %v2941 = vadd.f32 %v2635, %v2893
      %v2942 = vadd.f32 %v2636, %v2896
      %v2943 = vadd.f32 %v2637, %v2901
      %v2944 = vadd.f32 %v2638, %v2904
      %v2945 = vadd.f32 %v2639, %v2909
      %v2946 = vadd.f32 %v2640, %v2912
      %v2947 = vld [vmem:[%s2334 + $0x2] sm:$0xff]
      %v2948 = vld [vmem:[%s2334 + $0xa] sm:$0xff]
      %v2949 = vld [vmem:[%s2334 + $0x1a] sm:$0xff]
      %v2950 = vld [vmem:[%s2334 + $0x22] sm:$0xff]
      %v2951 = vld [vmem:[%s2334 + $0x32] sm:$0xff]
      %v2952 = vld [vmem:[%s2334 + $0x3a] sm:$0xff]
      %v2953 = vld [vmem:[%s2334 + $0x4a] sm:$0xff]
      %v2954 = vld [vmem:[%s2334 + $0x52] sm:$0xff]
      %v2955 = vld [vmem:[%s2334 + $0x62] sm:$0xff]
      %v2956 = vld [vmem:[%s2334 + $0x6a] sm:$0xff]
      %v2957 = vld [vmem:[%s2334 + $0x7a] sm:$0xff]
      %v2958 = vld [vmem:[%s2334 + $0x82] sm:$0xff]
      %v2959 = vld [vmem:[%s2334 + $0x92] sm:$0xff]
      %v2960 = vld [vmem:[%s2334 + $0x9a] sm:$0xff]
      %v2961 = vld [vmem:[%s2334 + $0xaa] sm:$0xff]
      %v2962 = vld [vmem:[%s2334 + $0xb2] sm:$0xff]
      %v2963 = vld [vmem:[%s2334 + $0xc2] sm:$0xff]
      %v2964 = vld [vmem:[%s2334 + $0xca] sm:$0xff]
      %v2965 = vld [vmem:[%s2334 + $0xda] sm:$0xff]
      %v2966 = vld [vmem:[%s2334 + $0xe2] sm:$0xff]
      %v2967 = vld [vmem:[%s2334 + $0xf2] sm:$0xff]
      %v2968 = vld [vmem:[%s2334 + $0xfa] sm:$0xff]
      %v2969 = vld [vmem:[%s2334 + $0x10a] sm:$0xff]
      %v2970 = vld [vmem:[%s2334 + $0x112] sm:$0xff]
      %v2971 = vld [vmem:[%s2334 + $0x122] sm:$0xff]
      %v2972 = vld [vmem:[%s2334 + $0x12a] sm:$0xff]
      %v2973 = vld [vmem:[%s2334 + $0x13a] sm:$0xff]
      %v2974 = vld [vmem:[%s2334 + $0x142] sm:$0xff]
      %v2975 = vld [vmem:[%s2334 + $0x152] sm:$0xff]
      %v2976 = vld [vmem:[%s2334 + $0x15a] sm:$0xff]
      %v2977 = vld [vmem:[%s2334 + $0x16a] sm:$0xff]
      %v2978 = vld [vmem:[%s2334 + $0x172] sm:$0xff]
      %v2979 = vpack.c.bf16 %v2948, %v2947
      %v2980 = vpack.c.bf16 %v2950, %v2949
      %v2981 = vpack.c.bf16 %v2952, %v2951
      %v2982 = vpack.c.bf16 %v2954, %v2953
      %v2983 = vpack.c.bf16 %v2956, %v2955
      %v2984 = vpack.c.bf16 %v2958, %v2957
      %v2985 = vpack.c.bf16 %v2960, %v2959
      %v2986 = vpack.c.bf16 %v2962, %v2961
      %v2987 = vpack.c.bf16 %v2964, %v2963
      %v2988 = vpack.c.bf16 %v2966, %v2965
      %v2989 = vpack.c.bf16 %v2968, %v2967
      %v2990 = vpack.c.bf16 %v2970, %v2969
      %v2991 = vpack.c.bf16 %v2972, %v2971
      %v2992 = vpack.c.bf16 %v2974, %v2973
      %v2993 = vpack.c.bf16 %v2976, %v2975
      %v2994 = vpack.c.bf16 %v2978, %v2977
      %s2995 = scalar_lea.vmem %s3, 512
      %v2996 = vld [vmem:[%s2995] sm:$0xf]
      %v2997 = vld [vmem:[%s2995 + $0x4] sm:$0xf]
      %v2998 = vld [vmem:[%s2995 + $0x8] sm:$0xf]
      %v2999 = vld [vmem:[%s2995 + $0xc] sm:$0xf]
      %v3000 = vld [vmem:[%s2995 + $0x10] sm:$0xf]
      %v3001 = vld [vmem:[%s2995 + $0x14] sm:$0xf]
      %v3002 = vld [vmem:[%s2995 + $0x18] sm:$0xf]
      %v3003 = vld [vmem:[%s2995 + $0x1c] sm:$0xf]
      %v3004 = vld [vmem:[%s2995 + $0x20] sm:$0xf]
      %v3005 = vld [vmem:[%s2995 + $0x24] sm:$0xf]
      %v3006 = vld [vmem:[%s2995 + $0x28] sm:$0xf]
      %v3007 = vld [vmem:[%s2995 + $0x2c] sm:$0xf]
      %v3008 = vld [vmem:[%s2995 + $0x30] sm:$0xf]
      %v3009 = vld [vmem:[%s2995 + $0x34] sm:$0xf]
      %v3010 = vld [vmem:[%s2995 + $0x38] sm:$0xf]
      %v3011 = vld [vmem:[%s2995 + $0x3c] sm:$0xf]
      %v3028 = vunpack.c.l.b16 %v2996
      %v3029 = vunpack.c.l.b16 %v2997
      %v3030 = vunpack.c.l.b16 %v2998
      %v3031 = vunpack.c.l.b16 %v2999
      %v3032 = vunpack.c.l.b16 %v3000
      %v3033 = vunpack.c.l.b16 %v3001
      %v3034 = vunpack.c.l.b16 %v3002
      %v3035 = vunpack.c.l.b16 %v3003
      %v3036 = vunpack.c.l.b16 %v3004
      %v3037 = vunpack.c.l.b16 %v3005
      %v3038 = vunpack.c.l.b16 %v3006
      %v3039 = vunpack.c.l.b16 %v3007
      %v3040 = vunpack.c.l.b16 %v3008
      %v3041 = vunpack.c.l.b16 %v3009
      %v3042 = vunpack.c.l.b16 %v3010
      %v3043 = vunpack.c.l.b16 %v3011
      %v3044 = vpack.c.b16 %v3029, %v3028
      %v3045 = vpack.c.b16 %v3031, %v3030
      %v3046 = vpack.c.b16 %v3033, %v3032
      %v3047 = vpack.c.b16 %v3035, %v3034
      %v3048 = vpack.c.b16 %v3037, %v3036
      %v3049 = vpack.c.b16 %v3039, %v3038
      %v3050 = vpack.c.b16 %v3041, %v3040
      %v3051 = vpack.c.b16 %v3043, %v3042
      %3060 = vmatprep.subr.bf16.mxu0 0
      %3061 = vmatpush1.bf16.msra.mxu0 %v3044
      %3062 = vmatprep.subr.bf16.mxu0 0
      %3063 = vmatpush1.bf16.msra.mxu0 %v3045
      %3064 = vmatprep.subr.bf16.mxu0 0
      %3065 = vmatpush1.bf16.msra.mxu0 %v3046
      %3066 = vmatprep.subr.bf16.mxu0 0
      %3067 = vmatpush1.bf16.msra.mxu0 %v3047
      %3068 = vmatprep.subr.bf16.mxu0 0
      %3069 = vmatpush1.bf16.msra.mxu0 %v3048
      %3070 = vmatprep.subr.bf16.mxu0 0
      %3071 = vmatpush1.bf16.msra.mxu0 %v3049
      %3072 = vmatprep.subr.bf16.mxu0 0
      %3073 = vmatpush1.bf16.msra.mxu0 %v3050
      %3074 = vmatprep.subr.bf16.mxu0 0
      %3075 = vmatpush1.bf16.msra.mxu0 %v3051
      %3076 = vmatprep.subr.bf16.mxu0 0
      %3077 = vmatpush1.bf16.msra.mxu0 0
      %3078 = vmatprep.subr.bf16.mxu0 0
      %3079 = vmatpush1.bf16.msra.mxu0 0
      %3080 = vmatprep.subr.bf16.mxu0 0
      %3081 = vmatpush1.bf16.msra.mxu0 0
      %3082 = vmatprep.subr.bf16.mxu0 0
      %3083 = vmatpush1.bf16.msra.mxu0 0
      %3084 = vmatprep.subr.bf16.mxu0 0
      %3085 = vmatpush1.bf16.msra.mxu0 0
      %3086 = vmatprep.subr.bf16.mxu0 0
      %3087 = vmatpush1.bf16.msra.mxu0 0
      %3088 = vmatprep.subr.bf16.mxu0 0
      %3089 = vmatpush1.bf16.msra.mxu0 0
      %3090 = vmatprep.subr.bf16.mxu0 0
      %3091 = vmatpush1.bf16.msra.mxu0 0
      %3092 = vmatprep.mubr.bf16.mxu0 0
      %3093 = vmatmul.mubr.bf16.gmra.mrb[0].mxu0 %v2979
      %v3094 = vpop.f32.mrb[0].mxu0
      %v3095 = vadd.f32 0.0, %v3094
      %v3096 = vpop.f32.mrb[0].mxu0
      %v3097 = vpop.f32.mrb[0].mxu0
      %v3098 = vadd.f32 0.0, %v3097
      %v3099 = vpop.f32.mrb[0].mxu0
      %3100 = vmatprep.mubr.bf16.mxu0 0
      %3101 = vmatmul.mubr.bf16.gmra.mrb[0].mxu0 %v2980
      %v3102 = vpop.f32.mrb[0].mxu0
      %v3103 = vadd.f32 0.0, %v3102
      %v3104 = vpop.f32.mrb[0].mxu0
      %v3105 = vpop.f32.mrb[0].mxu0
      %v3106 = vadd.f32 0.0, %v3105
      %v3107 = vpop.f32.mrb[0].mxu0
      %3108 = vmatprep.mubr.bf16.mxu0 0
      %3109 = vmatmul.mubr.bf16.gmra.mrb[0].mxu0 %v2981
      %v3110 = vpop.f32.mrb[0].mxu0
      %v3111 = vadd.f32 0.0, %v3110
      %v3112 = vpop.f32.mrb[0].mxu0
      %v3113 = vpop.f32.mrb[0].mxu0
      %v3114 = vadd.f32 0.0, %v3113
      %v3115 = vpop.f32.mrb[0].mxu0
      %3116 = vmatprep.mubr.bf16.mxu0 0
      %3117 = vmatmul.mubr.bf16.gmra.mrb[0].mxu0 %v2982
      %v3118 = vpop.f32.mrb[0].mxu0
      %v3119 = vadd.f32 0.0, %v3118
      %v3120 = vpop.f32.mrb[0].mxu0
      %v3121 = vpop.f32.mrb[0].mxu0
      %v3122 = vadd.f32 0.0, %v3121
      %v3123 = vpop.f32.mrb[0].mxu0
      %3124 = vmatprep.mubr.bf16.mxu0 0
      %3125 = vmatmul.mubr.bf16.gmra.mrb[0].mxu0 %v2983
      %v3126 = vpop.f32.mrb[0].mxu0
      %v3127 = vadd.f32 0.0, %v3126
      %v3128 = vpop.f32.mrb[0].mxu0
      %v3129 = vpop.f32.mrb[0].mxu0
      %v3130 = vadd.f32 0.0, %v3129
      %v3131 = vpop.f32.mrb[0].mxu0
      %3132 = vmatprep.mubr.bf16.mxu0 0
      %3133 = vmatmul.mubr.bf16.gmra.mrb[0].mxu0 %v2984
      %v3134 = vpop.f32.mrb[0].mxu0
      %v3135 = vadd.f32 0.0, %v3134
      %v3136 = vpop.f32.mrb[0].mxu0
      %v3137 = vpop.f32.mrb[0].mxu0
      %v3138 = vadd.f32 0.0, %v3137
      %v3139 = vpop.f32.mrb[0].mxu0
      %3140 = vmatprep.mubr.bf16.mxu0 0
      %3141 = vmatmul.mubr.bf16.gmra.mrb[0].mxu0 %v2985
      %v3142 = vpop.f32.mrb[0].mxu0
      %v3143 = vadd.f32 0.0, %v3142
      %v3144 = vpop.f32.mrb[0].mxu0
      %v3145 = vpop.f32.mrb[0].mxu0
      %v3146 = vadd.f32 0.0, %v3145
      %v3147 = vpop.f32.mrb[0].mxu0
      %3148 = vmatprep.mubr.bf16.mxu0 0
      %3149 = vmatmul.mubr.bf16.gmra.mrb[0].mxu0 %v2986
      %v3150 = vpop.f32.mrb[0].mxu0
      %v3151 = vadd.f32 0.0, %v3150
      %v3152 = vpop.f32.mrb[0].mxu0
      %v3153 = vpop.f32.mrb[0].mxu0
      %v3154 = vadd.f32 0.0, %v3153
      %v3155 = vpop.f32.mrb[0].mxu0
      %3156 = vmatprep.mubr.bf16.mxu0 0
      %3157 = vmatmul.mubr.bf16.gmra.mrb[0].mxu0 %v2987
      %v3158 = vpop.f32.mrb[0].mxu0
      %v3159 = vadd.f32 0.0, %v3158
      %v3160 = vpop.f32.mrb[0].mxu0
      %v3161 = vpop.f32.mrb[0].mxu0
      %v3162 = vadd.f32 0.0, %v3161
      %v3163 = vpop.f32.mrb[0].mxu0
      %3164 = vmatprep.mubr.bf16.mxu0 0
      %3165 = vmatmul.mubr.bf16.gmra.mrb[0].mxu0 %v2988
      %v3166 = vpop.f32.mrb[0].mxu0
      %v3167 = vadd.f32 0.0, %v3166
      %v3168 = vpop.f32.mrb[0].mxu0
      %v3169 = vpop.f32.mrb[0].mxu0
      %v3170 = vadd.f32 0.0, %v3169
      %v3171 = vpop.f32.mrb[0].mxu0
      %3172 = vmatprep.mubr.bf16.mxu0 0
      %3173 = vmatmul.mubr.bf16.gmra.mrb[0].mxu0 %v2989
      %v3174 = vpop.f32.mrb[0].mxu0
      %v3175 = vadd.f32 0.0, %v3174
      %v3176 = vpop.f32.mrb[0].mxu0
      %v3177 = vpop.f32.mrb[0].mxu0
      %v3178 = vadd.f32 0.0, %v3177
      %v3179 = vpop.f32.mrb[0].mxu0
      %3180 = vmatprep.mubr.bf16.mxu0 0
      %3181 = vmatmul.mubr.bf16.gmra.mrb[0].mxu0 %v2990
      %v3182 = vpop.f32.mrb[0].mxu0
      %v3183 = vadd.f32 0.0, %v3182
      %v3184 = vpop.f32.mrb[0].mxu0
      %v3185 = vpop.f32.mrb[0].mxu0
      %v3186 = vadd.f32 0.0, %v3185
      %v3187 = vpop.f32.mrb[0].mxu0
      %3188 = vmatprep.mubr.bf16.mxu0 0
      %3189 = vmatmul.mubr.bf16.gmra.mrb[0].mxu0 %v2991
      %v3190 = vpop.f32.mrb[0].mxu0
      %v3191 = vadd.f32 0.0, %v3190
      %v3192 = vpop.f32.mrb[0].mxu0
      %v3193 = vpop.f32.mrb[0].mxu0
      %v3194 = vadd.f32 0.0, %v3193
      %v3195 = vpop.f32.mrb[0].mxu0
      %3196 = vmatprep.mubr.bf16.mxu0 0
      %3197 = vmatmul.mubr.bf16.gmra.mrb[0].mxu0 %v2992
      %v3198 = vpop.f32.mrb[0].mxu0
      %v3199 = vadd.f32 0.0, %v3198
      %v3200 = vpop.f32.mrb[0].mxu0
      %v3201 = vpop.f32.mrb[0].mxu0
      %v3202 = vadd.f32 0.0, %v3201
      %v3203 = vpop.f32.mrb[0].mxu0
      %3204 = vmatprep.mubr.bf16.mxu0 0
      %3205 = vmatmul.mubr.bf16.gmra.mrb[0].mxu0 %v2993
      %v3206 = vpop.f32.mrb[0].mxu0
      %v3207 = vadd.f32 0.0, %v3206
      %v3208 = vpop.f32.mrb[0].mxu0
      %v3209 = vpop.f32.mrb[0].mxu0
      %v3210 = vadd.f32 0.0, %v3209
      %v3211 = vpop.f32.mrb[0].mxu0
      %3212 = vmatprep.mubr.bf16.mxu0 0
      %3213 = vmatmul.mubr.bf16.gmra.mrb[0].mxu0 %v2994
      %v3214 = vpop.f32.mrb[0].mxu0
      %v3215 = vadd.f32 0.0, %v3214
      %v3216 = vpop.f32.mrb[0].mxu0
      %v3217 = vpop.f32.mrb[0].mxu0
      %v3218 = vadd.f32 0.0, %v3217
      %v3219 = vpop.f32.mrb[0].mxu0
      %3220 = vdwg.mxu0
      %v3221 = vadd.f32 %v2915, %v3095
      %v3222 = vadd.f32 %v2916, %v3098
      %v3223 = vadd.f32 %v2917, %v3103
      %v3224 = vadd.f32 %v2918, %v3106
      %v3225 = vadd.f32 %v2919, %v3111
      %v3226 = vadd.f32 %v2920, %v3114
      %v3227 = vadd.f32 %v2921, %v3119
      %v3228 = vadd.f32 %v2922, %v3122
      %v3229 = vadd.f32 %v2923, %v3127
      %v3230 = vadd.f32 %v2924, %v3130
      %v3231 = vadd.f32 %v2925, %v3135
      %v3232 = vadd.f32 %v2926, %v3138
      %v3233 = vadd.f32 %v2927, %v3143
      %v3234 = vadd.f32 %v2928, %v3146
      %v3235 = vadd.f32 %v2929, %v3151
      %v3236 = vadd.f32 %v2930, %v3154
      %v3237 = vadd.f32 %v2931, %v3159
      %v3238 = vadd.f32 %v2932, %v3162
      %v3239 = vadd.f32 %v2933, %v3167
      %v3240 = vadd.f32 %v2934, %v3170
      %v3241 = vadd.f32 %v2935, %v3175
      %v3242 = vadd.f32 %v2936, %v3178
      %v3243 = vadd.f32 %v2937, %v3183
      %v3244 = vadd.f32 %v2938, %v3186
      %v3245 = vadd.f32 %v2939, %v3191
      %v3246 = vadd.f32 %v2940, %v3194
      %v3247 = vadd.f32 %v2941, %v3199
      %v3248 = vadd.f32 %v2942, %v3202
      %v3249 = vadd.f32 %v2943, %v3207
      %v3250 = vadd.f32 %v2944, %v3210
      %v3251 = vadd.f32 %v2945, %v3215
      %v3252 = vadd.f32 %v2946, %v3218
      %v3253 = vld [vmem:[%s4] sm:$0x1]
      %v3255 = vlaneseq
      %v3256 = vshrl.u32 %v3255, 7
      %v3257 = vsub.s32 0, %v3256
      %v3258 = vrot.slane %v3253, %v3257
      %v3260 = vmul.f32 %v3221, %v3258
      %v3261 = vmul.f32 %v3222, %v3258
      %v3262 = vmul.f32 %v3223, %v3258
      %v3263 = vmul.f32 %v3224, %v3258
      %v3264 = vmul.f32 %v3225, %v3258
      %v3265 = vmul.f32 %v3226, %v3258
      %v3266 = vmul.f32 %v3227, %v3258
      %v3267 = vmul.f32 %v3228, %v3258
      %v3268 = vmul.f32 %v3229, %v3258
      %v3269 = vmul.f32 %v3230, %v3258
      %v3270 = vmul.f32 %v3231, %v3258
      %v3271 = vmul.f32 %v3232, %v3258
      %v3272 = vmul.f32 %v3233, %v3258
      %v3273 = vmul.f32 %v3234, %v3258
      %v3274 = vmul.f32 %v3235, %v3258
      %v3275 = vmul.f32 %v3236, %v3258
      %v3276 = vmul.f32 %v3237, %v3258
      %v3277 = vmul.f32 %v3238, %v3258
      %v3278 = vmul.f32 %v3239, %v3258
      %v3279 = vmul.f32 %v3240, %v3258
      %v3280 = vmul.f32 %v3241, %v3258
      %v3281 = vmul.f32 %v3242, %v3258
      %v3282 = vmul.f32 %v3243, %v3258
      %v3283 = vmul.f32 %v3244, %v3258
      %v3284 = vmul.f32 %v3245, %v3258
      %v3285 = vmul.f32 %v3246, %v3258
      %v3286 = vmul.f32 %v3247, %v3258
      %v3287 = vmul.f32 %v3248, %v3258
      %v3288 = vmul.f32 %v3249, %v3258
      %v3289 = vmul.f32 %v3250, %v3258
      %v3290 = vmul.f32 %v3251, %v3258
      %v3291 = vmul.f32 %v3252, %v3258
      %v3292 = vld [vmem:[%s5] sm:$0x1]
      %v3294 = vlaneseq
      %v3295 = vshrl.u32 %v3294, 7
      %v3296 = vsub.s32 0, %v3295
      %v3297 = vrot.slane %v3292, %v3296
      %v3299 = vadd.f32 %v3260, %v3297
      %v3300 = vadd.f32 %v3261, %v3297
      %v3301 = vadd.f32 %v3262, %v3297
      %v3302 = vadd.f32 %v3263, %v3297
      %v3303 = vadd.f32 %v3264, %v3297
      %v3304 = vadd.f32 %v3265, %v3297
      %v3305 = vadd.f32 %v3266, %v3297
      %v3306 = vadd.f32 %v3267, %v3297
      %v3307 = vadd.f32 %v3268, %v3297
      %v3308 = vadd.f32 %v3269, %v3297
      %v3309 = vadd.f32 %v3270, %v3297
      %v3310 = vadd.f32 %v3271, %v3297
      %v3311 = vadd.f32 %v3272, %v3297
      %v3312 = vadd.f32 %v3273, %v3297
      %v3313 = vadd.f32 %v3274, %v3297
      %v3314 = vadd.f32 %v3275, %v3297
      %v3315 = vadd.f32 %v3276, %v3297
      %v3316 = vadd.f32 %v3277, %v3297
      %v3317 = vadd.f32 %v3278, %v3297
      %v3318 = vadd.f32 %v3279, %v3297
      %v3319 = vadd.f32 %v3280, %v3297
      %v3320 = vadd.f32 %v3281, %v3297
      %v3321 = vadd.f32 %v3282, %v3297
      %v3322 = vadd.f32 %v3283, %v3297
      %v3323 = vadd.f32 %v3284, %v3297
      %v3324 = vadd.f32 %v3285, %v3297
      %v3325 = vadd.f32 %v3286, %v3297
      %v3326 = vadd.f32 %v3287, %v3297
      %v3327 = vadd.f32 %v3288, %v3297
      %v3328 = vadd.f32 %v3289, %v3297
      %v3329 = vadd.f32 %v3290, %v3297
      %v3330 = vadd.f32 %v3291, %v3297
      %v3331 = vmax.f32 %v3299, 0.0
      %v3332 = vmax.f32 %v3300, 0.0
      %v3333 = vmax.f32 %v3301, 0.0
      %v3334 = vmax.f32 %v3302, 0.0
      %v3335 = vmax.f32 %v3303, 0.0
      %v3336 = vmax.f32 %v3304, 0.0
      %v3337 = vmax.f32 %v3305, 0.0
      %v3338 = vmax.f32 %v3306, 0.0
      %v3339 = vmax.f32 %v3307, 0.0
      %v3340 = vmax.f32 %v3308, 0.0
      %v3341 = vmax.f32 %v3309, 0.0
      %v3342 = vmax.f32 %v3310, 0.0
      %v3343 = vmax.f32 %v3311, 0.0
      %v3344 = vmax.f32 %v3312, 0.0
      %v3345 = vmax.f32 %v3313, 0.0
      %v3346 = vmax.f32 %v3314, 0.0
      %v3347 = vmax.f32 %v3315, 0.0
      %v3348 = vmax.f32 %v3316, 0.0
      %v3349 = vmax.f32 %v3317, 0.0
      %v3350 = vmax.f32 %v3318, 0.0
      %v3351 = vmax.f32 %v3319, 0.0
      %v3352 = vmax.f32 %v3320, 0.0
      %v3353 = vmax.f32 %v3321, 0.0
      %v3354 = vmax.f32 %v3322, 0.0
      %v3355 = vmax.f32 %v3323, 0.0
      %v3356 = vmax.f32 %v3324, 0.0
      %v3357 = vmax.f32 %v3325, 0.0
      %v3358 = vmax.f32 %v3326, 0.0
      %v3359 = vmax.f32 %v3327, 0.0
      %v3360 = vmax.f32 %v3328, 0.0
      %v3361 = vmax.f32 %v3329, 0.0
      %v3362 = vmax.f32 %v3330, 0.0
      %3363 = vst [vmem:[#allocation3] sm:$0xff] 0.0
      %3364 = vst [vmem:[#allocation3 + $0x8] sm:$0xff] 0.0
      %3365 = vst [vmem:[#allocation3 + $0x10] sm:$0x3] 0.0
      %3366 = vst [vmem:[#allocation3 + $0x18] sm:$0xff] 0.0
      %3367 = vst [vmem:[#allocation3 + $0x20] sm:$0xff] 0.0
      %3368 = vst [vmem:[#allocation3 + $0x28] sm:$0x3] 0.0
      %3369 = vst [vmem:[#allocation3 + $0x30] sm:$0xff] 0.0
      %3370 = vst [vmem:[#allocation3 + $0x38] sm:$0xff] 0.0
      %3371 = vst [vmem:[#allocation3 + $0x40] sm:$0x3] 0.0
      %3372 = vst [vmem:[#allocation3 + $0x48] sm:$0xff] 0.0
      %3373 = vst [vmem:[#allocation3 + $0x50] sm:$0xff] 0.0
      %3374 = vst [vmem:[#allocation3 + $0x58] sm:$0x3] 0.0
      %3375 = vst [vmem:[#allocation3 + $0x60] sm:$0xff] 0.0
      %3376 = vst [vmem:[#allocation3 + $0x68] sm:$0xff] 0.0
      %3377 = vst [vmem:[#allocation3 + $0x70] sm:$0x3] 0.0
      %3378 = vst [vmem:[#allocation3 + $0x78] sm:$0xff] 0.0
      %3379 = vst [vmem:[#allocation3 + $0x80] sm:$0xff] 0.0
      %3380 = vst [vmem:[#allocation3 + $0x88] sm:$0x3] 0.0
      %3381 = vst [vmem:[#allocation3 + $0x90] sm:$0xff] 0.0
      %3382 = vst [vmem:[#allocation3 + $0x98] sm:$0xff] 0.0
      %3383 = vst [vmem:[#allocation3 + $0xa0] sm:$0x3] 0.0
      %3384 = vst [vmem:[#allocation3 + $0xa8] sm:$0xff] 0.0
      %3385 = vst [vmem:[#allocation3 + $0xb0] sm:$0xff] 0.0
      %3386 = vst [vmem:[#allocation3 + $0xb8] sm:$0x3] 0.0
      %3387 = vst [vmem:[#allocation3 + $0xc0] sm:$0xff] 0.0
      %3388 = vst [vmem:[#allocation3 + $0xc8] sm:$0xff] 0.0
      %3389 = vst [vmem:[#allocation3 + $0xd0] sm:$0x3] 0.0
      %3390 = vst [vmem:[#allocation3 + $0xd8] sm:$0xff] 0.0
      %3391 = vst [vmem:[#allocation3 + $0xe0] sm:$0xff] 0.0
      %3392 = vst [vmem:[#allocation3 + $0xe8] sm:$0x3] 0.0
      %3393 = vst [vmem:[#allocation3 + $0xf0] sm:$0xff] 0.0
      %3394 = vst [vmem:[#allocation3 + $0xf8] sm:$0xff] 0.0
      %3395 = vst [vmem:[#allocation3 + $0x100] sm:$0x3] 0.0
      %3396 = vst [vmem:[#allocation3 + $0x108] sm:$0xff] 0.0
      %3397 = vst [vmem:[#allocation3 + $0x110] sm:$0xff] 0.0
      %3398 = vst [vmem:[#allocation3 + $0x118] sm:$0x3] 0.0
      %3399 = vst [vmem:[#allocation3 + $0x120] sm:$0xff] 0.0
      %3400 = vst [vmem:[#allocation3 + $0x128] sm:$0xff] 0.0
      %3401 = vst [vmem:[#allocation3 + $0x130] sm:$0x3] 0.0
      %3402 = vst [vmem:[#allocation3 + $0x138] sm:$0xff] 0.0
      %3403 = vst [vmem:[#allocation3 + $0x140] sm:$0xff] 0.0
      %3404 = vst [vmem:[#allocation3 + $0x148] sm:$0x3] 0.0
      %3405 = vst [vmem:[#allocation3 + $0x150] sm:$0xff] 0.0
      %3406 = vst [vmem:[#allocation3 + $0x158] sm:$0xff] 0.0
      %3407 = vst [vmem:[#allocation3 + $0x160] sm:$0x3] 0.0
      %3408 = vst [vmem:[#allocation3 + $0x168] sm:$0xff] 0.0
      %3409 = vst [vmem:[#allocation3 + $0x170] sm:$0xff] 0.0
      %3410 = vst [vmem:[#allocation3 + $0x178] sm:$0x3] 0.0
      %3411 = vst [vmem:[#allocation3 + $0x180] sm:$0xff] 0.0
      %3412 = vst [vmem:[#allocation3 + $0x188] sm:$0xff] 0.0
      %3413 = vst [vmem:[#allocation3 + $0x190] sm:$0x3] 0.0
      %3414 = vst [vmem:[#allocation3 + $0x198] sm:$0xff] 0.0
      %3415 = vst [vmem:[#allocation3 + $0x1a0] sm:$0xff] 0.0
      %3416 = vst [vmem:[#allocation3 + $0x1a8] sm:$0x3] 0.0
      %s3417 = scalar_lea.vmem [#allocation3], 24
      %3418 = vst [vmem:[%s3417 + $0x1] sm:$0xff] %v3331
      %3419 = vst [vmem:[%s3417 + $0x9] sm:$0xff] %v3332
      %3420 = vst [vmem:[%s3417 + $0x19] sm:$0xff] %v3333
      %3421 = vst [vmem:[%s3417 + $0x21] sm:$0xff] %v3334
      %3422 = vst [vmem:[%s3417 + $0x31] sm:$0xff] %v3335
      %3423 = vst [vmem:[%s3417 + $0x39] sm:$0xff] %v3336
      %3424 = vst [vmem:[%s3417 + $0x49] sm:$0xff] %v3337
      %3425 = vst [vmem:[%s3417 + $0x51] sm:$0xff] %v3338
      %3426 = vst [vmem:[%s3417 + $0x61] sm:$0xff] %v3339
      %3427 = vst [vmem:[%s3417 + $0x69] sm:$0xff] %v3340
      %3428 = vst [vmem:[%s3417 + $0x79] sm:$0xff] %v3341
      %3429 = vst [vmem:[%s3417 + $0x81] sm:$0xff] %v3342
      %3430 = vst [vmem:[%s3417 + $0x91] sm:$0xff] %v3343
      %3431 = vst [vmem:[%s3417 + $0x99] sm:$0xff] %v3344
      %3432 = vst [vmem:[%s3417 + $0xa9] sm:$0xff] %v3345
      %3433 = vst [vmem:[%s3417 + $0xb1] sm:$0xff] %v3346
      %3434 = vst [vmem:[%s3417 + $0xc1] sm:$0xff] %v3347
      %3435 = vst [vmem:[%s3417 + $0xc9] sm:$0xff] %v3348
      %3436 = vst [vmem:[%s3417 + $0xd9] sm:$0xff] %v3349
      %3437 = vst [vmem:[%s3417 + $0xe1] sm:$0xff] %v3350
      %3438 = vst [vmem:[%s3417 + $0xf1] sm:$0xff] %v3351
      %3439 = vst [vmem:[%s3417 + $0xf9] sm:$0xff] %v3352
      %3440 = vst [vmem:[%s3417 + $0x109] sm:$0xff] %v3353
      %3441 = vst [vmem:[%s3417 + $0x111] sm:$0xff] %v3354
      %3442 = vst [vmem:[%s3417 + $0x121] sm:$0xff] %v3355
      %3443 = vst [vmem:[%s3417 + $0x129] sm:$0xff] %v3356
      %3444 = vst [vmem:[%s3417 + $0x139] sm:$0xff] %v3357
      %3445 = vst [vmem:[%s3417 + $0x141] sm:$0xff] %v3358
      %3446 = vst [vmem:[%s3417 + $0x151] sm:$0xff] %v3359
      %3447 = vst [vmem:[%s3417 + $0x159] sm:$0xff] %v3360
      %3448 = vst [vmem:[%s3417 + $0x169] sm:$0xff] %v3361
      %3449 = vst [vmem:[%s3417 + $0x171] sm:$0xff] %v3362
      %v3450 = vld [vmem:[#allocation3] sm:$0xff]
      %v3451 = vld [vmem:[#allocation3 + $0x8] sm:$0xff]
      %v3452 = vld [vmem:[#allocation3 + $0x18] sm:$0xff]
      %v3453 = vld [vmem:[#allocation3 + $0x20] sm:$0xff]
      %v3454 = vld [vmem:[#allocation3 + $0x30] sm:$0xff]
      %v3455 = vld [vmem:[#allocation3 + $0x38] sm:$0xff]
      %v3456 = vld [vmem:[#allocation3 + $0x48] sm:$0xff]
      %v3457 = vld [vmem:[#allocation3 + $0x50] sm:$0xff]
      %v3458 = vld [vmem:[#allocation3 + $0x60] sm:$0xff]
      %v3459 = vld [vmem:[#allocation3 + $0x68] sm:$0xff]
      %v3460 = vld [vmem:[#allocation3 + $0x78] sm:$0xff]
      %v3461 = vld [vmem:[#allocation3 + $0x80] sm:$0xff]
      %v3462 = vld [vmem:[#allocation3 + $0x90] sm:$0xff]
      %v3463 = vld [vmem:[#allocation3 + $0x98] sm:$0xff]
      %v3464 = vld [vmem:[#allocation3 + $0xa8] sm:$0xff]
      %v3465 = vld [vmem:[#allocation3 + $0xb0] sm:$0xff]
      %v3466 = vld [vmem:[#allocation3 + $0xc0] sm:$0xff]
      %v3467 = vld [vmem:[#allocation3 + $0xc8] sm:$0xff]
      %v3468 = vld [vmem:[#allocation3 + $0xd8] sm:$0xff]
      %v3469 = vld [vmem:[#allocation3 + $0xe0] sm:$0xff]
      %v3470 = vld [vmem:[#allocation3 + $0xf0] sm:$0xff]
      %v3471 = vld [vmem:[#allocation3 + $0xf8] sm:$0xff]
      %v3472 = vld [vmem:[#allocation3 + $0x108] sm:$0xff]
      %v3473 = vld [vmem:[#allocation3 + $0x110] sm:$0xff]
      %v3474 = vld [vmem:[#allocation3 + $0x120] sm:$0xff]
      %v3475 = vld [vmem:[#allocation3 + $0x128] sm:$0xff]
      %v3476 = vld [vmem:[#allocation3 + $0x138] sm:$0xff]
      %v3477 = vld [vmem:[#allocation3 + $0x140] sm:$0xff]
      %v3478 = vld [vmem:[#allocation3 + $0x150] sm:$0xff]
      %v3479 = vld [vmem:[#allocation3 + $0x158] sm:$0xff]
      %v3480 = vld [vmem:[#allocation3 + $0x168] sm:$0xff]
      %v3481 = vld [vmem:[#allocation3 + $0x170] sm:$0xff]
      %v3482 = vpack.c.bf16 %v3451, %v3450
      %v3483 = vpack.c.bf16 %v3453, %v3452
      %v3484 = vpack.c.bf16 %v3455, %v3454
      %v3485 = vpack.c.bf16 %v3457, %v3456
      %v3486 = vpack.c.bf16 %v3459, %v3458
      %v3487 = vpack.c.bf16 %v3461, %v3460
      %v3488 = vpack.c.bf16 %v3463, %v3462
      %v3489 = vpack.c.bf16 %v3465, %v3464
      %v3490 = vpack.c.bf16 %v3467, %v3466
      %v3491 = vpack.c.bf16 %v3469, %v3468
      %v3492 = vpack.c.bf16 %v3471, %v3470
      %v3493 = vpack.c.bf16 %v3473, %v3472
      %v3494 = vpack.c.bf16 %v3475, %v3474
      %v3495 = vpack.c.bf16 %v3477, %v3476
      %v3496 = vpack.c.bf16 %v3479, %v3478
      %v3497 = vpack.c.bf16 %v3481, %v3480
      %v3498 = vld [vmem:[%s6] sm:$0xf]
      %v3499 = vld [vmem:[%s6 + $0x4] sm:$0xf]
      %v3500 = vld [vmem:[%s6 + $0x8] sm:$0xf]
      %v3501 = vld [vmem:[%s6 + $0xc] sm:$0xf]
      %v3502 = vld [vmem:[%s6 + $0x10] sm:$0xf]
      %v3503 = vld [vmem:[%s6 + $0x14] sm:$0xf]
      %v3504 = vld [vmem:[%s6 + $0x18] sm:$0xf]
      %v3505 = vld [vmem:[%s6 + $0x1c] sm:$0xf]
      %v3506 = vld [vmem:[%s6 + $0x20] sm:$0xf]
      %v3507 = vld [vmem:[%s6 + $0x24] sm:$0xf]
      %v3508 = vld [vmem:[%s6 + $0x28] sm:$0xf]
      %v3509 = vld [vmem:[%s6 + $0x2c] sm:$0xf]
      %v3510 = vld [vmem:[%s6 + $0x30] sm:$0xf]
      %v3511 = vld [vmem:[%s6 + $0x34] sm:$0xf]
      %v3512 = vld [vmem:[%s6 + $0x38] sm:$0xf]
      %v3513 = vld [vmem:[%s6 + $0x3c] sm:$0xf]
      %v3514 = vld [vmem:[#allocation3 + $0x1] sm:$0xff]
      %v3515 = vld [vmem:[#allocation3 + $0x9] sm:$0xff]
      %v3516 = vld [vmem:[#allocation3 + $0x19] sm:$0xff]
      %v3517 = vld [vmem:[#allocation3 + $0x21] sm:$0xff]
      %v3518 = vld [vmem:[#allocation3 + $0x31] sm:$0xff]
      %v3519 = vld [vmem:[#allocation3 + $0x39] sm:$0xff]
      %v3520 = vld [vmem:[#allocation3 + $0x49] sm:$0xff]
      %v3521 = vld [vmem:[#allocation3 + $0x51] sm:$0xff]
      %v3522 = vld [vmem:[#allocation3 + $0x61] sm:$0xff]
      %v3523 = vld [vmem:[#allocation3 + $0x69] sm:$0xff]
      %v3524 = vld [vmem:[#allocation3 + $0x79] sm:$0xff]
      %v3525 = vld [vmem:[#allocation3 + $0x81] sm:$0xff]
      %v3526 = vld [vmem:[#allocation3 + $0x91] sm:$0xff]
      %v3527 = vld [vmem:[#allocation3 + $0x99] sm:$0xff]
      %v3528 = vld [vmem:[#allocation3 + $0xa9] sm:$0xff]
      %v3529 = vld [vmem:[#allocation3 + $0xb1] sm:$0xff]
      %v3530 = vld [vmem:[#allocation3 + $0xc1] sm:$0xff]
      %v3531 = vld [vmem:[#allocation3 + $0xc9] sm:$0xff]
      %v3532 = vld [vmem:[#allocation3 + $0xd9] sm:$0xff]
      %v3533 = vld [vmem:[#allocation3 + $0xe1] sm:$0xff]
      %v3534 = vld [vmem:[#allocation3 + $0xf1] sm:$0xff]
      %v3535 = vld [vmem:[#allocation3 + $0xf9] sm:$0xff]
      %v3536 = vld [vmem:[#allocation3 + $0x109] sm:$0xff]
      %v3537 = vld [vmem:[#allocation3 + $0x111] sm:$0xff]
      %v3538 = vld [vmem:[#allocation3 + $0x121] sm:$0xff]
      %v3539 = vld [vmem:[#allocation3 + $0x129] sm:$0xff]
      %v3540 = vld [vmem:[#allocation3 + $0x139] sm:$0xff]
      %v3541 = vld [vmem:[#allocation3 + $0x141] sm:$0xff]
      %v3542 = vld [vmem:[#allocation3 + $0x151] sm:$0xff]
      %v3543 = vld [vmem:[#allocation3 + $0x159] sm:$0xff]
      %v3544 = vld [vmem:[#allocation3 + $0x169] sm:$0xff]
      %v3545 = vld [vmem:[#allocation3 + $0x171] sm:$0xff]
      %v3546 = vpack.c.bf16 %v3515, %v3514
      %v3547 = vpack.c.bf16 %v3517, %v3516
      %v3548 = vpack.c.bf16 %v3519, %v3518
      %v3549 = vpack.c.bf16 %v3521, %v3520
      %v3550 = vpack.c.bf16 %v3523, %v3522
      %v3551 = vpack.c.bf16 %v3525, %v3524
      %v3552 = vpack.c.bf16 %v3527, %v3526
      %v3553 = vpack.c.bf16 %v3529, %v3528
      %v3554 = vpack.c.bf16 %v3531, %v3530
      %v3555 = vpack.c.bf16 %v3533, %v3532
      %v3556 = vpack.c.bf16 %v3535, %v3534
      %v3557 = vpack.c.bf16 %v3537, %v3536
      %v3558 = vpack.c.bf16 %v3539, %v3538
      %v3559 = vpack.c.bf16 %v3541, %v3540
      %v3560 = vpack.c.bf16 %v3543, %v3542
      %v3561 = vpack.c.bf16 %v3545, %v3544
      %s3562 = scalar_lea.vmem %s6, 64
      %v3563 = vld [vmem:[%s3562] sm:$0xf]
      %v3564 = vld [vmem:[%s3562 + $0x4] sm:$0xf]
      %v3565 = vld [vmem:[%s3562 + $0x8] sm:$0xf]
      %v3566 = vld [vmem:[%s3562 + $0xc] sm:$0xf]
      %v3567 = vld [vmem:[%s3562 + $0x10] sm:$0xf]
      %v3568 = vld [vmem:[%s3562 + $0x14] sm:$0xf]
      %v3569 = vld [vmem:[%s3562 + $0x18] sm:$0xf]
      %v3570 = vld [vmem:[%s3562 + $0x1c] sm:$0xf]
      %v3571 = vld [vmem:[%s3562 + $0x20] sm:$0xf]
      %v3572 = vld [vmem:[%s3562 + $0x24] sm:$0xf]
      %v3573 = vld [vmem:[%s3562 + $0x28] sm:$0xf]
      %v3574 = vld [vmem:[%s3562 + $0x2c] sm:$0xf]
      %v3575 = vld [vmem:[%s3562 + $0x30] sm:$0xf]
      %v3576 = vld [vmem:[%s3562 + $0x34] sm:$0xf]
      %v3577 = vld [vmem:[%s3562 + $0x38] sm:$0xf]
      %v3578 = vld [vmem:[%s3562 + $0x3c] sm:$0xf]
      %v3595 = vunpack.c.l.b16 %v3563
      %v3596 = vunpack.c.l.b16 %v3564
      %v3597 = vunpack.c.l.b16 %v3565
      %v3598 = vunpack.c.l.b16 %v3566
      %v3599 = vunpack.c.l.b16 %v3567
      %v3600 = vunpack.c.l.b16 %v3568
      %v3601 = vunpack.c.l.b16 %v3569
      %v3602 = vunpack.c.l.b16 %v3570
      %v3603 = vunpack.c.l.b16 %v3571
      %v3604 = vunpack.c.l.b16 %v3572
      %v3605 = vunpack.c.l.b16 %v3573
      %v3606 = vunpack.c.l.b16 %v3574
      %v3607 = vunpack.c.l.b16 %v3575
      %v3608 = vunpack.c.l.b16 %v3576
      %v3609 = vunpack.c.l.b16 %v3577
      %v3610 = vunpack.c.l.b16 %v3578
      %v3611 = vpack.c.b16 %v3596, %v3595
      %v3612 = vpack.c.b16 %v3598, %v3597
      %v3613 = vpack.c.b16 %v3600, %v3599
      %v3614 = vpack.c.b16 %v3602, %v3601
      %v3615 = vpack.c.b16 %v3604, %v3603
      %v3616 = vpack.c.b16 %v3606, %v3605
      %v3617 = vpack.c.b16 %v3608, %v3607
      %v3618 = vpack.c.b16 %v3610, %v3609
      %3627 = vmatprep.subr.bf16.mxu0 0
      %3628 = vmatpush1.bf16.msra.mxu0 %v3611
      %3629 = vmatprep.subr.bf16.mxu0 0
      %3630 = vmatpush1.bf16.msra.mxu0 %v3612
      %3631 = vmatprep.subr.bf16.mxu0 0
      %3632 = vmatpush1.bf16.msra.mxu0 %v3613
      %3633 = vmatprep.subr.bf16.mxu0 0
      %3634 = vmatpush1.bf16.msra.mxu0 %v3614
      %3635 = vmatprep.subr.bf16.mxu0 0
      %3636 = vmatpush1.bf16.msra.mxu0 %v3615
      %3637 = vmatprep.subr.bf16.mxu0 0
      %3638 = vmatpush1.bf16.msra.mxu0 %v3616
      %3639 = vmatprep.subr.bf16.mxu0 0
      %3640 = vmatpush1.bf16.msra.mxu0 %v3617
      %3641 = vmatprep.subr.bf16.mxu0 0
      %3642 = vmatpush1.bf16.msra.mxu0 %v3618
      %3643 = vmatprep.subr.bf16.mxu0 0
      %3644 = vmatpush1.bf16.msra.mxu0 0
      %3645 = vmatprep.subr.bf16.mxu0 0
      %3646 = vmatpush1.bf16.msra.mxu0 0
      %3647 = vmatprep.subr.bf16.mxu0 0
      %3648 = vmatpush1.bf16.msra.mxu0 0
      %3649 = vmatprep.subr.bf16.mxu0 0
      %3650 = vmatpush1.bf16.msra.mxu0 0
      %3651 = vmatprep.subr.bf16.mxu0 0
      %3652 = vmatpush1.bf16.msra.mxu0 0
      %3653 = vmatprep.subr.bf16.mxu0 0
      %3654 = vmatpush1.bf16.msra.mxu0 0
      %3655 = vmatprep.subr.bf16.mxu0 0
      %3656 = vmatpush1.bf16.msra.mxu0 0
      %3657 = vmatprep.subr.bf16.mxu0 0
      %3658 = vmatpush1.bf16.msra.mxu0 0
      %3659 = vmatprep.mubr.bf16.mxu0 0
      %3660 = vmatmul.mubr.bf16.gmra.mrb[0].mxu0 %v3546
      %v3661 = vpop.f32.mrb[0].mxu0
      %v3662 = vadd.f32 0.0, %v3661
      %v3663 = vpop.f32.mrb[0].mxu0
      %v3664 = vpop.f32.mrb[0].mxu0
      %v3665 = vadd.f32 0.0, %v3664
      %v3666 = vpop.f32.mrb[0].mxu0
      %3667 = vmatprep.mubr.bf16.mxu0 0
      %3668 = vmatmul.mubr.bf16.gmra.mrb[0].mxu0 %v3547
      %v3669 = vpop.f32.mrb[0].mxu0
      %v3670 = vadd.f32 0.0, %v3669
      %v3671 = vpop.f32.mrb[0].mxu0
      %v3672 = vpop.f32.mrb[0].mxu0
      %v3673 = vadd.f32 0.0, %v3672
      %v3674 = vpop.f32.mrb[0].mxu0
      %3675 = vmatprep.mubr.bf16.mxu0 0
      %3676 = vmatmul.mubr.bf16.gmra.mrb[0].mxu0 %v3548
      %v3677 = vpop.f32.mrb[0].mxu0
      %v3678 = vadd.f32 0.0, %v3677
      %v3679 = vpop.f32.mrb[0].mxu0
      %v3680 = vpop.f32.mrb[0].mxu0
      %v3681 = vadd.f32 0.0, %v3680
      %v3682 = vpop.f32.mrb[0].mxu0
      %3683 = vmatprep.mubr.bf16.mxu0 0
      %3684 = vmatmul.mubr.bf16.gmra.mrb[0].mxu0 %v3549
      %v3685 = vpop.f32.mrb[0].mxu0
      %v3686 = vadd.f32 0.0, %v3685
      %v3687 = vpop.f32.mrb[0].mxu0
      %v3688 = vpop.f32.mrb[0].mxu0
      %v3689 = vadd.f32 0.0, %v3688
      %v3690 = vpop.f32.mrb[0].mxu0
      %3691 = vmatprep.mubr.bf16.mxu0 0
      %3692 = vmatmul.mubr.bf16.gmra.mrb[0].mxu0 %v3550
      %v3693 = vpop.f32.mrb[0].mxu0
      %v3694 = vadd.f32 0.0, %v3693
      %v3695 = vpop.f32.mrb[0].mxu0
      %v3696 = vpop.f32.mrb[0].mxu0
      %v3697 = vadd.f32 0.0, %v3696
      %v3698 = vpop.f32.mrb[0].mxu0
      %3699 = vmatprep.mubr.bf16.mxu0 0
      %3700 = vmatmul.mubr.bf16.gmra.mrb[0].mxu0 %v3551
      %v3701 = vpop.f32.mrb[0].mxu0
      %v3702 = vadd.f32 0.0, %v3701
      %v3703 = vpop.f32.mrb[0].mxu0
      %v3704 = vpop.f32.mrb[0].mxu0
      %v3705 = vadd.f32 0.0, %v3704
      %v3706 = vpop.f32.mrb[0].mxu0
      %3707 = vmatprep.mubr.bf16.mxu0 0
      %3708 = vmatmul.mubr.bf16.gmra.mrb[0].mxu0 %v3552
      %v3709 = vpop.f32.mrb[0].mxu0
      %v3710 = vadd.f32 0.0, %v3709
      %v3711 = vpop.f32.mrb[0].mxu0
      %v3712 = vpop.f32.mrb[0].mxu0
      %v3713 = vadd.f32 0.0, %v3712
      %v3714 = vpop.f32.mrb[0].mxu0
      %3715 = vmatprep.mubr.bf16.mxu0 0
      %3716 = vmatmul.mubr.bf16.gmra.mrb[0].mxu0 %v3553
      %v3717 = vpop.f32.mrb[0].mxu0
      %v3718 = vadd.f32 0.0, %v3717
      %v3719 = vpop.f32.mrb[0].mxu0
      %v3720 = vpop.f32.mrb[0].mxu0
      %v3721 = vadd.f32 0.0, %v3720
      %v3722 = vpop.f32.mrb[0].mxu0
      %3723 = vmatprep.mubr.bf16.mxu0 0
      %3724 = vmatmul.mubr.bf16.gmra.mrb[0].mxu0 %v3554
      %v3725 = vpop.f32.mrb[0].mxu0
      %v3726 = vadd.f32 0.0, %v3725
      %v3727 = vpop.f32.mrb[0].mxu0
      %v3728 = vpop.f32.mrb[0].mxu0
      %v3729 = vadd.f32 0.0, %v3728
      %v3730 = vpop.f32.mrb[0].mxu0
      %3731 = vmatprep.mubr.bf16.mxu0 0
      %3732 = vmatmul.mubr.bf16.gmra.mrb[0].mxu0 %v3555
      %v3733 = vpop.f32.mrb[0].mxu0
      %v3734 = vadd.f32 0.0, %v3733
      %v3735 = vpop.f32.mrb[0].mxu0
      %v3736 = vpop.f32.mrb[0].mxu0
      %v3737 = vadd.f32 0.0, %v3736
      %v3738 = vpop.f32.mrb[0].mxu0
      %3739 = vmatprep.mubr.bf16.mxu0 0
      %3740 = vmatmul.mubr.bf16.gmra.mrb[0].mxu0 %v3556
      %v3741 = vpop.f32.mrb[0].mxu0
      %v3742 = vadd.f32 0.0, %v3741
      %v3743 = vpop.f32.mrb[0].mxu0
      %v3744 = vpop.f32.mrb[0].mxu0
      %v3745 = vadd.f32 0.0, %v3744
      %v3746 = vpop.f32.mrb[0].mxu0
      %3747 = vmatprep.mubr.bf16.mxu0 0
      %3748 = vmatmul.mubr.bf16.gmra.mrb[0].mxu0 %v3557
      %v3749 = vpop.f32.mrb[0].mxu0
      %v3750 = vadd.f32 0.0, %v3749
      %v3751 = vpop.f32.mrb[0].mxu0
      %v3752 = vpop.f32.mrb[0].mxu0
      %v3753 = vadd.f32 0.0, %v3752
      %v3754 = vpop.f32.mrb[0].mxu0
      %3755 = vmatprep.mubr.bf16.mxu0 0
      %3756 = vmatmul.mubr.bf16.gmra.mrb[0].mxu0 %v3558
      %v3757 = vpop.f32.mrb[0].mxu0
      %v3758 = vadd.f32 0.0, %v3757
      %v3759 = vpop.f32.mrb[0].mxu0
      %v3760 = vpop.f32.mrb[0].mxu0
      %v3761 = vadd.f32 0.0, %v3760
      %v3762 = vpop.f32.mrb[0].mxu0
      %3763 = vmatprep.mubr.bf16.mxu0 0
      %3764 = vmatmul.mubr.bf16.gmra.mrb[0].mxu0 %v3559
      %v3765 = vpop.f32.mrb[0].mxu0
      %v3766 = vadd.f32 0.0, %v3765
      %v3767 = vpop.f32.mrb[0].mxu0
      %v3768 = vpop.f32.mrb[0].mxu0
      %v3769 = vadd.f32 0.0, %v3768
      %v3770 = vpop.f32.mrb[0].mxu0
      %3771 = vmatprep.mubr.bf16.mxu0 0
      %3772 = vmatmul.mubr.bf16.gmra.mrb[0].mxu0 %v3560
      %v3773 = vpop.f32.mrb[0].mxu0
      %v3774 = vadd.f32 0.0, %v3773
      %v3775 = vpop.f32.mrb[0].mxu0
      %v3776 = vpop.f32.mrb[0].mxu0
      %v3777 = vadd.f32 0.0, %v3776
      %v3778 = vpop.f32.mrb[0].mxu0
      %3779 = vmatprep.mubr.bf16.mxu0 0
      %3780 = vmatmul.mubr.bf16.gmra.mrb[0].mxu0 %v3561
      %v3781 = vpop.f32.mrb[0].mxu0
      %v3782 = vadd.f32 0.0, %v3781
      %v3783 = vpop.f32.mrb[0].mxu0
      %v3784 = vpop.f32.mrb[0].mxu0
      %v3785 = vadd.f32 0.0, %v3784
      %v3786 = vpop.f32.mrb[0].mxu0
      %3787 = vdwg.mxu0
      %v3804 = vunpack.c.l.b16 %v3498
      %v3805 = vunpack.c.l.b16 %v3499
      %v3806 = vunpack.c.l.b16 %v3500
      %v3807 = vunpack.c.l.b16 %v3501
      %v3808 = vunpack.c.l.b16 %v3502
      %v3809 = vunpack.c.l.b16 %v3503
      %v3810 = vunpack.c.l.b16 %v3504
      %v3811 = vunpack.c.l.b16 %v3505
      %v3812 = vunpack.c.l.b16 %v3506
      %v3813 = vunpack.c.l.b16 %v3507
      %v3814 = vunpack.c.l.b16 %v3508
      %v3815 = vunpack.c.l.b16 %v3509
      %v3816 = vunpack.c.l.b16 %v3510
      %v3817 = vunpack.c.l.b16 %v3511
      %v3818 = vunpack.c.l.b16 %v3512
      %v3819 = vunpack.c.l.b16 %v3513
      %v3820 = vpack.c.b16 %v3805, %v3804
      %v3821 = vpack.c.b16 %v3807, %v3806
      %v3822 = vpack.c.b16 %v3809, %v3808
      %v3823 = vpack.c.b16 %v3811, %v3810
      %v3824 = vpack.c.b16 %v3813, %v3812
      %v3825 = vpack.c.b16 %v3815, %v3814
      %v3826 = vpack.c.b16 %v3817, %v3816
      %v3827 = vpack.c.b16 %v3819, %v3818
      %3836 = vmatprep.subr.bf16.mxu0 0
      %3837 = vmatpush1.bf16.msra.mxu0 %v3820
      %3838 = vmatprep.subr.bf16.mxu0 0
      %3839 = vmatpush1.bf16.msra.mxu0 %v3821
      %3840 = vmatprep.subr.bf16.mxu0 0
      %3841 = vmatpush1.bf16.msra.mxu0 %v3822
      %3842 = vmatprep.subr.bf16.mxu0 0
      %3843 = vmatpush1.bf16.msra.mxu0 %v3823
      %3844 = vmatprep.subr.bf16.mxu0 0
      %3845 = vmatpush1.bf16.msra.mxu0 %v3824
      %3846 = vmatprep.subr.bf16.mxu0 0
      %3847 = vmatpush1.bf16.msra.mxu0 %v3825
      %3848 = vmatprep.subr.bf16.mxu0 0
      %3849 = vmatpush1.bf16.msra.mxu0 %v3826
      %3850 = vmatprep.subr.bf16.mxu0 0
      %3851 = vmatpush1.bf16.msra.mxu0 %v3827
      %3852 = vmatprep.subr.bf16.mxu0 0
      %3853 = vmatpush1.bf16.msra.mxu0 0
      %3854 = vmatprep.subr.bf16.mxu0 0
      %3855 = vmatpush1.bf16.msra.mxu0 0
      %3856 = vmatprep.subr.bf16.mxu0 0
      %3857 = vmatpush1.bf16.msra.mxu0 0
      %3858 = vmatprep.subr.bf16.mxu0 0
      %3859 = vmatpush1.bf16.msra.mxu0 0
      %3860 = vmatprep.subr.bf16.mxu0 0
      %3861 = vmatpush1.bf16.msra.mxu0 0
      %3862 = vmatprep.subr.bf16.mxu0 0
      %3863 = vmatpush1.bf16.msra.mxu0 0
      %3864 = vmatprep.subr.bf16.mxu0 0
      %3865 = vmatpush1.bf16.msra.mxu0 0
      %3866 = vmatprep.subr.bf16.mxu0 0
      %3867 = vmatpush1.bf16.msra.mxu0 0
      %3868 = vmatprep.mubr.bf16.mxu0 0
      %3869 = vmatmul.mubr.bf16.gmra.mrb[0].mxu0 %v3482
      %v3870 = vpop.f32.mrb[0].mxu0
      %v3871 = vadd.f32 %v3662, %v3870
      %v3872 = vpop.f32.mrb[0].mxu0
      %v3873 = vpop.f32.mrb[0].mxu0
      %v3874 = vadd.f32 %v3665, %v3873
      %v3875 = vpop.f32.mrb[0].mxu0
      %3876 = vmatprep.mubr.bf16.mxu0 0
      %3877 = vmatmul.mubr.bf16.gmra.mrb[0].mxu0 %v3483
      %v3878 = vpop.f32.mrb[0].mxu0
      %v3879 = vadd.f32 %v3670, %v3878
      %v3880 = vpop.f32.mrb[0].mxu0
      %v3881 = vpop.f32.mrb[0].mxu0
      %v3882 = vadd.f32 %v3673, %v3881
      %v3883 = vpop.f32.mrb[0].mxu0
      %3884 = vmatprep.mubr.bf16.mxu0 0
      %3885 = vmatmul.mubr.bf16.gmra.mrb[0].mxu0 %v3484
      %v3886 = vpop.f32.mrb[0].mxu0
      %v3887 = vadd.f32 %v3678, %v3886
      %v3888 = vpop.f32.mrb[0].mxu0
      %v3889 = vpop.f32.mrb[0].mxu0
      %v3890 = vadd.f32 %v3681, %v3889
      %v3891 = vpop.f32.mrb[0].mxu0
      %3892 = vmatprep.mubr.bf16.mxu0 0
      %3893 = vmatmul.mubr.bf16.gmra.mrb[0].mxu0 %v3485
      %v3894 = vpop.f32.mrb[0].mxu0
      %v3895 = vadd.f32 %v3686, %v3894
      %v3896 = vpop.f32.mrb[0].mxu0
      %v3897 = vpop.f32.mrb[0].mxu0
      %v3898 = vadd.f32 %v3689, %v3897
      %v3899 = vpop.f32.mrb[0].mxu0
      %3900 = vmatprep.mubr.bf16.mxu0 0
      %3901 = vmatmul.mubr.bf16.gmra.mrb[0].mxu0 %v3486
      %v3902 = vpop.f32.mrb[0].mxu0
      %v3903 = vadd.f32 %v3694, %v3902
      %v3904 = vpop.f32.mrb[0].mxu0
      %v3905 = vpop.f32.mrb[0].mxu0
      %v3906 = vadd.f32 %v3697, %v3905
      %v3907 = vpop.f32.mrb[0].mxu0
      %3908 = vmatprep.mubr.bf16.mxu0 0
      %3909 = vmatmul.mubr.bf16.gmra.mrb[0].mxu0 %v3487
      %v3910 = vpop.f32.mrb[0].mxu0
      %v3911 = vadd.f32 %v3702, %v3910
      %v3912 = vpop.f32.mrb[0].mxu0
      %v3913 = vpop.f32.mrb[0].mxu0
      %v3914 = vadd.f32 %v3705, %v3913
      %v3915 = vpop.f32.mrb[0].mxu0
      %3916 = vmatprep.mubr.bf16.mxu0 0
      %3917 = vmatmul.mubr.bf16.gmra.mrb[0].mxu0 %v3488
      %v3918 = vpop.f32.mrb[0].mxu0
      %v3919 = vadd.f32 %v3710, %v3918
      %v3920 = vpop.f32.mrb[0].mxu0
      %v3921 = vpop.f32.mrb[0].mxu0
      %v3922 = vadd.f32 %v3713, %v3921
      %v3923 = vpop.f32.mrb[0].mxu0
      %3924 = vmatprep.mubr.bf16.mxu0 0
      %3925 = vmatmul.mubr.bf16.gmra.mrb[0].mxu0 %v3489
      %v3926 = vpop.f32.mrb[0].mxu0
      %v3927 = vadd.f32 %v3718, %v3926
      %v3928 = vpop.f32.mrb[0].mxu0
      %v3929 = vpop.f32.mrb[0].mxu0
      %v3930 = vadd.f32 %v3721, %v3929
      %v3931 = vpop.f32.mrb[0].mxu0
      %3932 = vmatprep.mubr.bf16.mxu0 0
      %3933 = vmatmul.mubr.bf16.gmra.mrb[0].mxu0 %v3490
      %v3934 = vpop.f32.mrb[0].mxu0
      %v3935 = vadd.f32 %v3726, %v3934
      %v3936 = vpop.f32.mrb[0].mxu0
      %v3937 = vpop.f32.mrb[0].mxu0
      %v3938 = vadd.f32 %v3729, %v3937
      %v3939 = vpop.f32.mrb[0].mxu0
      %3940 = vmatprep.mubr.bf16.mxu0 0
      %3941 = vmatmul.mubr.bf16.gmra.mrb[0].mxu0 %v3491
      %v3942 = vpop.f32.mrb[0].mxu0
      %v3943 = vadd.f32 %v3734, %v3942
      %v3944 = vpop.f32.mrb[0].mxu0
      %v3945 = vpop.f32.mrb[0].mxu0
      %v3946 = vadd.f32 %v3737, %v3945
      %v3947 = vpop.f32.mrb[0].mxu0
      %3948 = vmatprep.mubr.bf16.mxu0 0
      %3949 = vmatmul.mubr.bf16.gmra.mrb[0].mxu0 %v3492
      %v3950 = vpop.f32.mrb[0].mxu0
      %v3951 = vadd.f32 %v3742, %v3950
      %v3952 = vpop.f32.mrb[0].mxu0
      %v3953 = vpop.f32.mrb[0].mxu0
      %v3954 = vadd.f32 %v3745, %v3953
      %v3955 = vpop.f32.mrb[0].mxu0
      %3956 = vmatprep.mubr.bf16.mxu0 0
      %3957 = vmatmul.mubr.bf16.gmra.mrb[0].mxu0 %v3493
      %v3958 = vpop.f32.mrb[0].mxu0
      %v3959 = vadd.f32 %v3750, %v3958
      %v3960 = vpop.f32.mrb[0].mxu0
      %v3961 = vpop.f32.mrb[0].mxu0
      %v3962 = vadd.f32 %v3753, %v3961
      %v3963 = vpop.f32.mrb[0].mxu0
      %3964 = vmatprep.mubr.bf16.mxu0 0
      %3965 = vmatmul.mubr.bf16.gmra.mrb[0].mxu0 %v3494
      %v3966 = vpop.f32.mrb[0].mxu0
      %v3967 = vadd.f32 %v3758, %v3966
      %v3968 = vpop.f32.mrb[0].mxu0
      %v3969 = vpop.f32.mrb[0].mxu0
      %v3970 = vadd.f32 %v3761, %v3969
      %v3971 = vpop.f32.mrb[0].mxu0
      %3972 = vmatprep.mubr.bf16.mxu0 0
      %3973 = vmatmul.mubr.bf16.gmra.mrb[0].mxu0 %v3495
      %v3974 = vpop.f32.mrb[0].mxu0
      %v3975 = vadd.f32 %v3766, %v3974
      %v3976 = vpop.f32.mrb[0].mxu0
      %v3977 = vpop.f32.mrb[0].mxu0
      %v3978 = vadd.f32 %v3769, %v3977
      %v3979 = vpop.f32.mrb[0].mxu0
      %3980 = vmatprep.mubr.bf16.mxu0 0
      %3981 = vmatmul.mubr.bf16.gmra.mrb[0].mxu0 %v3496
      %v3982 = vpop.f32.mrb[0].mxu0
      %v3983 = vadd.f32 %v3774, %v3982
      %v3984 = vpop.f32.mrb[0].mxu0
      %v3985 = vpop.f32.mrb[0].mxu0
      %v3986 = vadd.f32 %v3777, %v3985
      %v3987 = vpop.f32.mrb[0].mxu0
      %3988 = vmatprep.mubr.bf16.mxu0 0
      %3989 = vmatmul.mubr.bf16.gmra.mrb[0].mxu0 %v3497
      %v3990 = vpop.f32.mrb[0].mxu0
      %v3991 = vadd.f32 %v3782, %v3990
      %v3992 = vpop.f32.mrb[0].mxu0
      %v3993 = vpop.f32.mrb[0].mxu0
      %v3994 = vadd.f32 %v3785, %v3993
      %v3995 = vpop.f32.mrb[0].mxu0
      %3996 = vdwg.mxu0
      %v3997 = vld [vmem:[#allocation3 + $0x2] sm:$0xff]
      %v3998 = vld [vmem:[#allocation3 + $0xa] sm:$0xff]
      %v3999 = vld [vmem:[#allocation3 + $0x1a] sm:$0xff]
      %v4000 = vld [vmem:[#allocation3 + $0x22] sm:$0xff]
      %v4001 = vld [vmem:[#allocation3 + $0x32] sm:$0xff]
      %v4002 = vld [vmem:[#allocation3 + $0x3a] sm:$0xff]
      %v4003 = vld [vmem:[#allocation3 + $0x4a] sm:$0xff]
      %v4004 = vld [vmem:[#allocation3 + $0x52] sm:$0xff]
      %v4005 = vld [vmem:[#allocation3 + $0x62] sm:$0xff]
      %v4006 = vld [vmem:[#allocation3 + $0x6a] sm:$0xff]
      %v4007 = vld [vmem:[#allocation3 + $0x7a] sm:$0xff]
      %v4008 = vld [vmem:[#allocation3 + $0x82] sm:$0xff]
      %v4009 = vld [vmem:[#allocation3 + $0x92] sm:$0xff]
      %v4010 = vld [vmem:[#allocation3 + $0x9a] sm:$0xff]
      %v4011 = vld [vmem:[#allocation3 + $0xaa] sm:$0xff]
      %v4012 = vld [vmem:[#allocation3 + $0xb2] sm:$0xff]
      %v4013 = vld [vmem:[#allocation3 + $0xc2] sm:$0xff]
      %v4014 = vld [vmem:[#allocation3 + $0xca] sm:$0xff]
      %v4015 = vld [vmem:[#allocation3 + $0xda] sm:$0xff]
      %v4016 = vld [vmem:[#allocation3 + $0xe2] sm:$0xff]
      %v4017 = vld [vmem:[#allocation3 + $0xf2] sm:$0xff]
      %v4018 = vld [vmem:[#allocation3 + $0xfa] sm:$0xff]
      %v4019 = vld [vmem:[#allocation3 + $0x10a] sm:$0xff]
      %v4020 = vld [vmem:[#allocation3 + $0x112] sm:$0xff]
      %v4021 = vld [vmem:[#allocation3 + $0x122] sm:$0xff]
      %v4022 = vld [vmem:[#allocation3 + $0x12a] sm:$0xff]
      %v4023 = vld [vmem:[#allocation3 + $0x13a] sm:$0xff]
      %v4024 = vld [vmem:[#allocation3 + $0x142] sm:$0xff]
      %v4025 = vld [vmem:[#allocation3 + $0x152] sm:$0xff]
      %v4026 = vld [vmem:[#allocation3 + $0x15a] sm:$0xff]
      %v4027 = vld [vmem:[#allocation3 + $0x16a] sm:$0xff]
      %v4028 = vld [vmem:[#allocation3 + $0x172] sm:$0xff]
      %v4029 = vpack.c.bf16 %v3998, %v3997
      %v4030 = vpack.c.bf16 %v4000, %v3999
      %v4031 = vpack.c.bf16 %v4002, %v4001
      %v4032 = vpack.c.bf16 %v4004, %v4003
      %v4033 = vpack.c.bf16 %v4006, %v4005
      %v4034 = vpack.c.bf16 %v4008, %v4007
      %v4035 = vpack.c.bf16 %v4010, %v4009
      %v4036 = vpack.c.bf16 %v4012, %v4011
      %v4037 = vpack.c.bf16 %v4014, %v4013
      %v4038 = vpack.c.bf16 %v4016, %v4015
      %v4039 = vpack.c.bf16 %v4018, %v4017
      %v4040 = vpack.c.bf16 %v4020, %v4019
      %v4041 = vpack.c.bf16 %v4022, %v4021
      %v4042 = vpack.c.bf16 %v4024, %v4023
      %v4043 = vpack.c.bf16 %v4026, %v4025
      %v4044 = vpack.c.bf16 %v4028, %v4027
      %s4045 = scalar_lea.vmem %s6, 128
      %v4046 = vld [vmem:[%s4045] sm:$0xf]
      %v4047 = vld [vmem:[%s4045 + $0x4] sm:$0xf]
      %v4048 = vld [vmem:[%s4045 + $0x8] sm:$0xf]
      %v4049 = vld [vmem:[%s4045 + $0xc] sm:$0xf]
      %v4050 = vld [vmem:[%s4045 + $0x10] sm:$0xf]
      %v4051 = vld [vmem:[%s4045 + $0x14] sm:$0xf]
      %v4052 = vld [vmem:[%s4045 + $0x18] sm:$0xf]
      %v4053 = vld [vmem:[%s4045 + $0x1c] sm:$0xf]
      %v4054 = vld [vmem:[%s4045 + $0x20] sm:$0xf]
      %v4055 = vld [vmem:[%s4045 + $0x24] sm:$0xf]
      %v4056 = vld [vmem:[%s4045 + $0x28] sm:$0xf]
      %v4057 = vld [vmem:[%s4045 + $0x2c] sm:$0xf]
      %v4058 = vld [vmem:[%s4045 + $0x30] sm:$0xf]
      %v4059 = vld [vmem:[%s4045 + $0x34] sm:$0xf]
      %v4060 = vld [vmem:[%s4045 + $0x38] sm:$0xf]
      %v4061 = vld [vmem:[%s4045 + $0x3c] sm:$0xf]
      %v4078 = vunpack.c.l.b16 %v4046
      %v4079 = vunpack.c.l.b16 %v4047
      %v4080 = vunpack.c.l.b16 %v4048
      %v4081 = vunpack.c.l.b16 %v4049
      %v4082 = vunpack.c.l.b16 %v4050
      %v4083 = vunpack.c.l.b16 %v4051
      %v4084 = vunpack.c.l.b16 %v4052
      %v4085 = vunpack.c.l.b16 %v4053
      %v4086 = vunpack.c.l.b16 %v4054
      %v4087 = vunpack.c.l.b16 %v4055
      %v4088 = vunpack.c.l.b16 %v4056
      %v4089 = vunpack.c.l.b16 %v4057
      %v4090 = vunpack.c.l.b16 %v4058
      %v4091 = vunpack.c.l.b16 %v4059
      %v4092 = vunpack.c.l.b16 %v4060
      %v4093 = vunpack.c.l.b16 %v4061
      %v4094 = vpack.c.b16 %v4079, %v4078
      %v4095 = vpack.c.b16 %v4081, %v4080
      %v4096 = vpack.c.b16 %v4083, %v4082
      %v4097 = vpack.c.b16 %v4085, %v4084
      %v4098 = vpack.c.b16 %v4087, %v4086
      %v4099 = vpack.c.b16 %v4089, %v4088
      %v4100 = vpack.c.b16 %v4091, %v4090
      %v4101 = vpack.c.b16 %v4093, %v4092
      %4110 = vmatprep.subr.bf16.mxu0 0
      %4111 = vmatpush1.bf16.msra.mxu0 %v4094
      %4112 = vmatprep.subr.bf16.mxu0 0
      %4113 = vmatpush1.bf16.msra.mxu0 %v4095
      %4114 = vmatprep.subr.bf16.mxu0 0
      %4115 = vmatpush1.bf16.msra.mxu0 %v4096
      %4116 = vmatprep.subr.bf16.mxu0 0
      %4117 = vmatpush1.bf16.msra.mxu0 %v4097
      %4118 = vmatprep.subr.bf16.mxu0 0
      %4119 = vmatpush1.bf16.msra.mxu0 %v4098
      %4120 = vmatprep.subr.bf16.mxu0 0
      %4121 = vmatpush1.bf16.msra.mxu0 %v4099
      %4122 = vmatprep.subr.bf16.mxu0 0
      %4123 = vmatpush1.bf16.msra.mxu0 %v4100
      %4124 = vmatprep.subr.bf16.mxu0 0
      %4125 = vmatpush1.bf16.msra.mxu0 %v4101
      %4126 = vmatprep.subr.bf16.mxu0 0
      %4127 = vmatpush1.bf16.msra.mxu0 0
      %4128 = vmatprep.subr.bf16.mxu0 0
      %4129 = vmatpush1.bf16.msra.mxu0 0
      %4130 = vmatprep.subr.bf16.mxu0 0
      %4131 = vmatpush1.bf16.msra.mxu0 0
      %4132 = vmatprep.subr.bf16.mxu0 0
      %4133 = vmatpush1.bf16.msra.mxu0 0
      %4134 = vmatprep.subr.bf16.mxu0 0
      %4135 = vmatpush1.bf16.msra.mxu0 0
      %4136 = vmatprep.subr.bf16.mxu0 0
      %4137 = vmatpush1.bf16.msra.mxu0 0
      %4138 = vmatprep.subr.bf16.mxu0 0
      %4139 = vmatpush1.bf16.msra.mxu0 0
      %4140 = vmatprep.subr.bf16.mxu0 0
      %4141 = vmatpush1.bf16.msra.mxu0 0
      %4142 = vmatprep.mubr.bf16.mxu0 0
      %4143 = vmatmul.mubr.bf16.gmra.mrb[0].mxu0 %v4029
      %v4144 = vpop.f32.mrb[0].mxu0
      %v4145 = vadd.f32 0.0, %v4144
      %v4146 = vpop.f32.mrb[0].mxu0
      %v4147 = vpop.f32.mrb[0].mxu0
      %v4148 = vadd.f32 0.0, %v4147
      %v4149 = vpop.f32.mrb[0].mxu0
      %4150 = vmatprep.mubr.bf16.mxu0 0
      %4151 = vmatmul.mubr.bf16.gmra.mrb[0].mxu0 %v4030
      %v4152 = vpop.f32.mrb[0].mxu0
      %v4153 = vadd.f32 0.0, %v4152
      %v4154 = vpop.f32.mrb[0].mxu0
      %v4155 = vpop.f32.mrb[0].mxu0
      %v4156 = vadd.f32 0.0, %v4155
      %v4157 = vpop.f32.mrb[0].mxu0
      %4158 = vmatprep.mubr.bf16.mxu0 0
      %4159 = vmatmul.mubr.bf16.gmra.mrb[0].mxu0 %v4031
      %v4160 = vpop.f32.mrb[0].mxu0
      %v4161 = vadd.f32 0.0, %v4160
      %v4162 = vpop.f32.mrb[0].mxu0
      %v4163 = vpop.f32.mrb[0].mxu0
      %v4164 = vadd.f32 0.0, %v4163
      %v4165 = vpop.f32.mrb[0].mxu0
      %4166 = vmatprep.mubr.bf16.mxu0 0
      %4167 = vmatmul.mubr.bf16.gmra.mrb[0].mxu0 %v4032
      %v4168 = vpop.f32.mrb[0].mxu0
      %v4169 = vadd.f32 0.0, %v4168
      %v4170 = vpop.f32.mrb[0].mxu0
      %v4171 = vpop.f32.mrb[0].mxu0
      %v4172 = vadd.f32 0.0, %v4171
      %v4173 = vpop.f32.mrb[0].mxu0
      %4174 = vmatprep.mubr.bf16.mxu0 0
      %4175 = vmatmul.mubr.bf16.gmra.mrb[0].mxu0 %v4033
      %v4176 = vpop.f32.mrb[0].mxu0
      %v4177 = vadd.f32 0.0, %v4176
      %v4178 = vpop.f32.mrb[0].mxu0
      %v4179 = vpop.f32.mrb[0].mxu0
      %v4180 = vadd.f32 0.0, %v4179
      %v4181 = vpop.f32.mrb[0].mxu0
      %4182 = vmatprep.mubr.bf16.mxu0 0
      %4183 = vmatmul.mubr.bf16.gmra.mrb[0].mxu0 %v4034
      %v4184 = vpop.f32.mrb[0].mxu0
      %v4185 = vadd.f32 0.0, %v4184
      %v4186 = vpop.f32.mrb[0].mxu0
      %v4187 = vpop.f32.mrb[0].mxu0
      %v4188 = vadd.f32 0.0, %v4187
      %v4189 = vpop.f32.mrb[0].mxu0
      %4190 = vmatprep.mubr.bf16.mxu0 0
      %4191 = vmatmul.mubr.bf16.gmra.mrb[0].mxu0 %v4035
      %v4192 = vpop.f32.mrb[0].mxu0
      %v4193 = vadd.f32 0.0, %v4192
      %v4194 = vpop.f32.mrb[0].mxu0
      %v4195 = vpop.f32.mrb[0].mxu0
      %v4196 = vadd.f32 0.0, %v4195
      %v4197 = vpop.f32.mrb[0].mxu0
      %4198 = vmatprep.mubr.bf16.mxu0 0
      %4199 = vmatmul.mubr.bf16.gmra.mrb[0].mxu0 %v4036
      %v4200 = vpop.f32.mrb[0].mxu0
      %v4201 = vadd.f32 0.0, %v4200
      %v4202 = vpop.f32.mrb[0].mxu0
      %v4203 = vpop.f32.mrb[0].mxu0
      %v4204 = vadd.f32 0.0, %v4203
      %v4205 = vpop.f32.mrb[0].mxu0
      %4206 = vmatprep.mubr.bf16.mxu0 0
      %4207 = vmatmul.mubr.bf16.gmra.mrb[0].mxu0 %v4037
      %v4208 = vpop.f32.mrb[0].mxu0
      %v4209 = vadd.f32 0.0, %v4208
      %v4210 = vpop.f32.mrb[0].mxu0
      %v4211 = vpop.f32.mrb[0].mxu0
      %v4212 = vadd.f32 0.0, %v4211
      %v4213 = vpop.f32.mrb[0].mxu0
      %4214 = vmatprep.mubr.bf16.mxu0 0
      %4215 = vmatmul.mubr.bf16.gmra.mrb[0].mxu0 %v4038
      %v4216 = vpop.f32.mrb[0].mxu0
      %v4217 = vadd.f32 0.0, %v4216
      %v4218 = vpop.f32.mrb[0].mxu0
      %v4219 = vpop.f32.mrb[0].mxu0
      %v4220 = vadd.f32 0.0, %v4219
      %v4221 = vpop.f32.mrb[0].mxu0
      %4222 = vmatprep.mubr.bf16.mxu0 0
      %4223 = vmatmul.mubr.bf16.gmra.mrb[0].mxu0 %v4039
      %v4224 = vpop.f32.mrb[0].mxu0
      %v4225 = vadd.f32 0.0, %v4224
      %v4226 = vpop.f32.mrb[0].mxu0
      %v4227 = vpop.f32.mrb[0].mxu0
      %v4228 = vadd.f32 0.0, %v4227
      %v4229 = vpop.f32.mrb[0].mxu0
      %4230 = vmatprep.mubr.bf16.mxu0 0
      %4231 = vmatmul.mubr.bf16.gmra.mrb[0].mxu0 %v4040
      %v4232 = vpop.f32.mrb[0].mxu0
      %v4233 = vadd.f32 0.0, %v4232
      %v4234 = vpop.f32.mrb[0].mxu0
      %v4235 = vpop.f32.mrb[0].mxu0
      %v4236 = vadd.f32 0.0, %v4235
      %v4237 = vpop.f32.mrb[0].mxu0
      %4238 = vmatprep.mubr.bf16.mxu0 0
      %4239 = vmatmul.mubr.bf16.gmra.mrb[0].mxu0 %v4041
      %v4240 = vpop.f32.mrb[0].mxu0
      %v4241 = vadd.f32 0.0, %v4240
      %v4242 = vpop.f32.mrb[0].mxu0
      %v4243 = vpop.f32.mrb[0].mxu0
      %v4244 = vadd.f32 0.0, %v4243
      %v4245 = vpop.f32.mrb[0].mxu0
      %4246 = vmatprep.mubr.bf16.mxu0 0
      %4247 = vmatmul.mubr.bf16.gmra.mrb[0].mxu0 %v4042
      %v4248 = vpop.f32.mrb[0].mxu0
      %v4249 = vadd.f32 0.0, %v4248
      %v4250 = vpop.f32.mrb[0].mxu0
      %v4251 = vpop.f32.mrb[0].mxu0
      %v4252 = vadd.f32 0.0, %v4251
      %v4253 = vpop.f32.mrb[0].mxu0
      %4254 = vmatprep.mubr.bf16.mxu0 0
      %4255 = vmatmul.mubr.bf16.gmra.mrb[0].mxu0 %v4043
      %v4256 = vpop.f32.mrb[0].mxu0
      %v4257 = vadd.f32 0.0, %v4256
      %v4258 = vpop.f32.mrb[0].mxu0
      %v4259 = vpop.f32.mrb[0].mxu0
      %v4260 = vadd.f32 0.0, %v4259
      %v4261 = vpop.f32.mrb[0].mxu0
      %4262 = vmatprep.mubr.bf16.mxu0 0
      %4263 = vmatmul.mubr.bf16.gmra.mrb[0].mxu0 %v4044
      %v4264 = vpop.f32.mrb[0].mxu0
      %v4265 = vadd.f32 0.0, %v4264
      %v4266 = vpop.f32.mrb[0].mxu0
      %v4267 = vpop.f32.mrb[0].mxu0
      %v4268 = vadd.f32 0.0, %v4267
      %v4269 = vpop.f32.mrb[0].mxu0
      %4270 = vdwg.mxu0
      %v4271 = vadd.f32 %v3871, %v4145
      %v4272 = vadd.f32 %v3874, %v4148
      %v4273 = vadd.f32 %v3879, %v4153
      %v4274 = vadd.f32 %v3882, %v4156
      %v4275 = vadd.f32 %v3887, %v4161
      %v4276 = vadd.f32 %v3890, %v4164
      %v4277 = vadd.f32 %v3895, %v4169
      %v4278 = vadd.f32 %v3898, %v4172
      %v4279 = vadd.f32 %v3903, %v4177
      %v4280 = vadd.f32 %v3906, %v4180
      %v4281 = vadd.f32 %v3911, %v4185
      %v4282 = vadd.f32 %v3914, %v4188
      %v4283 = vadd.f32 %v3919, %v4193
      %v4284 = vadd.f32 %v3922, %v4196
      %v4285 = vadd.f32 %v3927, %v4201
      %v4286 = vadd.f32 %v3930, %v4204
      %v4287 = vadd.f32 %v3935, %v4209
      %v4288 = vadd.f32 %v3938, %v4212
      %v4289 = vadd.f32 %v3943, %v4217
      %v4290 = vadd.f32 %v3946, %v4220
      %v4291 = vadd.f32 %v3951, %v4225
      %v4292 = vadd.f32 %v3954, %v4228
      %v4293 = vadd.f32 %v3959, %v4233
      %v4294 = vadd.f32 %v3962, %v4236
      %v4295 = vadd.f32 %v3967, %v4241
      %v4296 = vadd.f32 %v3970, %v4244
      %v4297 = vadd.f32 %v3975, %v4249
      %v4298 = vadd.f32 %v3978, %v4252
      %v4299 = vadd.f32 %v3983, %v4257
      %v4300 = vadd.f32 %v3986, %v4260
      %v4301 = vadd.f32 %v3991, %v4265
      %v4302 = vadd.f32 %v3994, %v4268
      %v4303 = vld [vmem:[%s3417] sm:$0xff]
      %v4304 = vld [vmem:[%s3417 + $0x8] sm:$0xff]
      %v4305 = vld [vmem:[%s3417 + $0x18] sm:$0xff]
      %v4306 = vld [vmem:[%s3417 + $0x20] sm:$0xff]
      %v4307 = vld [vmem:[%s3417 + $0x30] sm:$0xff]
      %v4308 = vld [vmem:[%s3417 + $0x38] sm:$0xff]
      %v4309 = vld [vmem:[%s3417 + $0x48] sm:$0xff]
      %v4310 = vld [vmem:[%s3417 + $0x50] sm:$0xff]
      %v4311 = vld [vmem:[%s3417 + $0x60] sm:$0xff]
      %v4312 = vld [vmem:[%s3417 + $0x68] sm:$0xff]
      %v4313 = vld [vmem:[%s3417 + $0x78] sm:$0xff]
      %v4314 = vld [vmem:[%s3417 + $0x80] sm:$0xff]
      %v4315 = vld [vmem:[%s3417 + $0x90] sm:$0xff]
      %v4316 = vld [vmem:[%s3417 + $0x98] sm:$0xff]
      %v4317 = vld [vmem:[%s3417 + $0xa8] sm:$0xff]
      %v4318 = vld [vmem:[%s3417 + $0xb0] sm:$0xff]
      %v4319 = vld [vmem:[%s3417 + $0xc0] sm:$0xff]
      %v4320 = vld [vmem:[%s3417 + $0xc8] sm:$0xff]
      %v4321 = vld [vmem:[%s3417 + $0xd8] sm:$0xff]
      %v4322 = vld [vmem:[%s3417 + $0xe0] sm:$0xff]
      %v4323 = vld [vmem:[%s3417 + $0xf0] sm:$0xff]
      %v4324 = vld [vmem:[%s3417 + $0xf8] sm:$0xff]
      %v4325 = vld [vmem:[%s3417 + $0x108] sm:$0xff]
      %v4326 = vld [vmem:[%s3417 + $0x110] sm:$0xff]
      %v4327 = vld [vmem:[%s3417 + $0x120] sm:$0xff]
      %v4328 = vld [vmem:[%s3417 + $0x128] sm:$0xff]
      %v4329 = vld [vmem:[%s3417 + $0x138] sm:$0xff]
      %v4330 = vld [vmem:[%s3417 + $0x140] sm:$0xff]
      %v4331 = vld [vmem:[%s3417 + $0x150] sm:$0xff]
      %v4332 = vld [vmem:[%s3417 + $0x158] sm:$0xff]
      %v4333 = vld [vmem:[%s3417 + $0x168] sm:$0xff]
      %v4334 = vld [vmem:[%s3417 + $0x170] sm:$0xff]
      %v4335 = vpack.c.bf16 %v4304, %v4303
      %v4336 = vpack.c.bf16 %v4306, %v4305
      %v4337 = vpack.c.bf16 %v4308, %v4307
      %v4338 = vpack.c.bf16 %v4310, %v4309
      %v4339 = vpack.c.bf16 %v4312, %v4311
      %v4340 = vpack.c.bf16 %v4314, %v4313
      %v4341 = vpack.c.bf16 %v4316, %v4315
      %v4342 = vpack.c.bf16 %v4318, %v4317
      %v4343 = vpack.c.bf16 %v4320, %v4319
      %v4344 = vpack.c.bf16 %v4322, %v4321
      %v4345 = vpack.c.bf16 %v4324, %v4323
      %v4346 = vpack.c.bf16 %v4326, %v4325
      %v4347 = vpack.c.bf16 %v4328, %v4327
      %v4348 = vpack.c.bf16 %v4330, %v4329
      %v4349 = vpack.c.bf16 %v4332, %v4331
      %v4350 = vpack.c.bf16 %v4334, %v4333
      %s4351 = scalar_lea.vmem %s6, 192
      %v4352 = vld [vmem:[%s4351] sm:$0xf]
      %v4353 = vld [vmem:[%s4351 + $0x4] sm:$0xf]
      %v4354 = vld [vmem:[%s4351 + $0x8] sm:$0xf]
      %v4355 = vld [vmem:[%s4351 + $0xc] sm:$0xf]
      %v4356 = vld [vmem:[%s4351 + $0x10] sm:$0xf]
      %v4357 = vld [vmem:[%s4351 + $0x14] sm:$0xf]
      %v4358 = vld [vmem:[%s4351 + $0x18] sm:$0xf]
      %v4359 = vld [vmem:[%s4351 + $0x1c] sm:$0xf]
      %v4360 = vld [vmem:[%s4351 + $0x20] sm:$0xf]
      %v4361 = vld [vmem:[%s4351 + $0x24] sm:$0xf]
      %v4362 = vld [vmem:[%s4351 + $0x28] sm:$0xf]
      %v4363 = vld [vmem:[%s4351 + $0x2c] sm:$0xf]
      %v4364 = vld [vmem:[%s4351 + $0x30] sm:$0xf]
      %v4365 = vld [vmem:[%s4351 + $0x34] sm:$0xf]
      %v4366 = vld [vmem:[%s4351 + $0x38] sm:$0xf]
      %v4367 = vld [vmem:[%s4351 + $0x3c] sm:$0xf]
      %v4384 = vunpack.c.l.b16 %v4352
      %v4385 = vunpack.c.l.b16 %v4353
      %v4386 = vunpack.c.l.b16 %v4354
      %v4387 = vunpack.c.l.b16 %v4355
      %v4388 = vunpack.c.l.b16 %v4356
      %v4389 = vunpack.c.l.b16 %v4357
      %v4390 = vunpack.c.l.b16 %v4358
      %v4391 = vunpack.c.l.b16 %v4359
      %v4392 = vunpack.c.l.b16 %v4360
      %v4393 = vunpack.c.l.b16 %v4361
      %v4394 = vunpack.c.l.b16 %v4362
      %v4395 = vunpack.c.l.b16 %v4363
      %v4396 = vunpack.c.l.b16 %v4364
      %v4397 = vunpack.c.l.b16 %v4365
      %v4398 = vunpack.c.l.b16 %v4366
      %v4399 = vunpack.c.l.b16 %v4367
      %v4400 = vpack.c.b16 %v4385, %v4384
      %v4401 = vpack.c.b16 %v4387, %v4386
      %v4402 = vpack.c.b16 %v4389, %v4388
      %v4403 = vpack.c.b16 %v4391, %v4390
      %v4404 = vpack.c.b16 %v4393, %v4392
      %v4405 = vpack.c.b16 %v4395, %v4394
      %v4406 = vpack.c.b16 %v4397, %v4396
      %v4407 = vpack.c.b16 %v4399, %v4398
      %4416 = vmatprep.subr.bf16.mxu0 0
      %4417 = vmatpush1.bf16.msra.mxu0 %v4400
      %4418 = vmatprep.subr.bf16.mxu0 0
      %4419 = vmatpush1.bf16.msra.mxu0 %v4401
      %4420 = vmatprep.subr.bf16.mxu0 0
      %4421 = vmatpush1.bf16.msra.mxu0 %v4402
      %4422 = vmatprep.subr.bf16.mxu0 0
      %4423 = vmatpush1.bf16.msra.mxu0 %v4403
      %4424 = vmatprep.subr.bf16.mxu0 0
      %4425 = vmatpush1.bf16.msra.mxu0 %v4404
      %4426 = vmatprep.subr.bf16.mxu0 0
      %4427 = vmatpush1.bf16.msra.mxu0 %v4405
      %4428 = vmatprep.subr.bf16.mxu0 0
      %4429 = vmatpush1.bf16.msra.mxu0 %v4406
      %4430 = vmatprep.subr.bf16.mxu0 0
      %4431 = vmatpush1.bf16.msra.mxu0 %v4407
      %4432 = vmatprep.subr.bf16.mxu0 0
      %4433 = vmatpush1.bf16.msra.mxu0 0
      %4434 = vmatprep.subr.bf16.mxu0 0
      %4435 = vmatpush1.bf16.msra.mxu0 0
      %4436 = vmatprep.subr.bf16.mxu0 0
      %4437 = vmatpush1.bf16.msra.mxu0 0
      %4438 = vmatprep.subr.bf16.mxu0 0
      %4439 = vmatpush1.bf16.msra.mxu0 0
      %4440 = vmatprep.subr.bf16.mxu0 0
      %4441 = vmatpush1.bf16.msra.mxu0 0
      %4442 = vmatprep.subr.bf16.mxu0 0
      %4443 = vmatpush1.bf16.msra.mxu0 0
      %4444 = vmatprep.subr.bf16.mxu0 0
      %4445 = vmatpush1.bf16.msra.mxu0 0
      %4446 = vmatprep.subr.bf16.mxu0 0
      %4447 = vmatpush1.bf16.msra.mxu0 0
      %4448 = vmatprep.mubr.bf16.mxu0 0
      %4449 = vmatmul.mubr.bf16.gmra.mrb[0].mxu0 %v4335
      %v4450 = vpop.f32.mrb[0].mxu0
      %v4451 = vadd.f32 0.0, %v4450
      %v4452 = vpop.f32.mrb[0].mxu0
      %v4453 = vpop.f32.mrb[0].mxu0
      %v4454 = vadd.f32 0.0, %v4453
      %v4455 = vpop.f32.mrb[0].mxu0
      %4456 = vmatprep.mubr.bf16.mxu0 0
      %4457 = vmatmul.mubr.bf16.gmra.mrb[0].mxu0 %v4336
      %v4458 = vpop.f32.mrb[0].mxu0
      %v4459 = vadd.f32 0.0, %v4458
      %v4460 = vpop.f32.mrb[0].mxu0
      %v4461 = vpop.f32.mrb[0].mxu0
      %v4462 = vadd.f32 0.0, %v4461
      %v4463 = vpop.f32.mrb[0].mxu0
      %4464 = vmatprep.mubr.bf16.mxu0 0
      %4465 = vmatmul.mubr.bf16.gmra.mrb[0].mxu0 %v4337
      %v4466 = vpop.f32.mrb[0].mxu0
      %v4467 = vadd.f32 0.0, %v4466
      %v4468 = vpop.f32.mrb[0].mxu0
      %v4469 = vpop.f32.mrb[0].mxu0
      %v4470 = vadd.f32 0.0, %v4469
      %v4471 = vpop.f32.mrb[0].mxu0
      %4472 = vmatprep.mubr.bf16.mxu0 0
      %4473 = vmatmul.mubr.bf16.gmra.mrb[0].mxu0 %v4338
      %v4474 = vpop.f32.mrb[0].mxu0
      %v4475 = vadd.f32 0.0, %v4474
      %v4476 = vpop.f32.mrb[0].mxu0
      %v4477 = vpop.f32.mrb[0].mxu0
      %v4478 = vadd.f32 0.0, %v4477
      %v4479 = vpop.f32.mrb[0].mxu0
      %4480 = vmatprep.mubr.bf16.mxu0 0
      %4481 = vmatmul.mubr.bf16.gmra.mrb[0].mxu0 %v4339
      %v4482 = vpop.f32.mrb[0].mxu0
      %v4483 = vadd.f32 0.0, %v4482
      %v4484 = vpop.f32.mrb[0].mxu0
      %v4485 = vpop.f32.mrb[0].mxu0
      %v4486 = vadd.f32 0.0, %v4485
      %v4487 = vpop.f32.mrb[0].mxu0
      %4488 = vmatprep.mubr.bf16.mxu0 0
      %4489 = vmatmul.mubr.bf16.gmra.mrb[0].mxu0 %v4340
      %v4490 = vpop.f32.mrb[0].mxu0
      %v4491 = vadd.f32 0.0, %v4490
      %v4492 = vpop.f32.mrb[0].mxu0
      %v4493 = vpop.f32.mrb[0].mxu0
      %v4494 = vadd.f32 0.0, %v4493
      %v4495 = vpop.f32.mrb[0].mxu0
      %4496 = vmatprep.mubr.bf16.mxu0 0
      %4497 = vmatmul.mubr.bf16.gmra.mrb[0].mxu0 %v4341
      %v4498 = vpop.f32.mrb[0].mxu0
      %v4499 = vadd.f32 0.0, %v4498
      %v4500 = vpop.f32.mrb[0].mxu0
      %v4501 = vpop.f32.mrb[0].mxu0
      %v4502 = vadd.f32 0.0, %v4501
      %v4503 = vpop.f32.mrb[0].mxu0
      %4504 = vmatprep.mubr.bf16.mxu0 0
      %4505 = vmatmul.mubr.bf16.gmra.mrb[0].mxu0 %v4342
      %v4506 = vpop.f32.mrb[0].mxu0
      %v4507 = vadd.f32 0.0, %v4506
      %v4508 = vpop.f32.mrb[0].mxu0
      %v4509 = vpop.f32.mrb[0].mxu0
      %v4510 = vadd.f32 0.0, %v4509
      %v4511 = vpop.f32.mrb[0].mxu0
      %4512 = vmatprep.mubr.bf16.mxu0 0
      %4513 = vmatmul.mubr.bf16.gmra.mrb[0].mxu0 %v4343
      %v4514 = vpop.f32.mrb[0].mxu0
      %v4515 = vadd.f32 0.0, %v4514
      %v4516 = vpop.f32.mrb[0].mxu0
      %v4517 = vpop.f32.mrb[0].mxu0
      %v4518 = vadd.f32 0.0, %v4517
      %v4519 = vpop.f32.mrb[0].mxu0
      %4520 = vmatprep.mubr.bf16.mxu0 0
      %4521 = vmatmul.mubr.bf16.gmra.mrb[0].mxu0 %v4344
      %v4522 = vpop.f32.mrb[0].mxu0
      %v4523 = vadd.f32 0.0, %v4522
      %v4524 = vpop.f32.mrb[0].mxu0
      %v4525 = vpop.f32.mrb[0].mxu0
      %v4526 = vadd.f32 0.0, %v4525
      %v4527 = vpop.f32.mrb[0].mxu0
      %4528 = vmatprep.mubr.bf16.mxu0 0
      %4529 = vmatmul.mubr.bf16.gmra.mrb[0].mxu0 %v4345
      %v4530 = vpop.f32.mrb[0].mxu0
      %v4531 = vadd.f32 0.0, %v4530
      %v4532 = vpop.f32.mrb[0].mxu0
      %v4533 = vpop.f32.mrb[0].mxu0
      %v4534 = vadd.f32 0.0, %v4533
      %v4535 = vpop.f32.mrb[0].mxu0
      %4536 = vmatprep.mubr.bf16.mxu0 0
      %4537 = vmatmul.mubr.bf16.gmra.mrb[0].mxu0 %v4346
      %v4538 = vpop.f32.mrb[0].mxu0
      %v4539 = vadd.f32 0.0, %v4538
      %v4540 = vpop.f32.mrb[0].mxu0
      %v4541 = vpop.f32.mrb[0].mxu0
      %v4542 = vadd.f32 0.0, %v4541
      %v4543 = vpop.f32.mrb[0].mxu0
      %4544 = vmatprep.mubr.bf16.mxu0 0
      %4545 = vmatmul.mubr.bf16.gmra.mrb[0].mxu0 %v4347
      %v4546 = vpop.f32.mrb[0].mxu0
      %v4547 = vadd.f32 0.0, %v4546
      %v4548 = vpop.f32.mrb[0].mxu0
      %v4549 = vpop.f32.mrb[0].mxu0
      %v4550 = vadd.f32 0.0, %v4549
      %v4551 = vpop.f32.mrb[0].mxu0
      %4552 = vmatprep.mubr.bf16.mxu0 0
      %4553 = vmatmul.mubr.bf16.gmra.mrb[0].mxu0 %v4348
      %v4554 = vpop.f32.mrb[0].mxu0
      %v4555 = vadd.f32 0.0, %v4554
      %v4556 = vpop.f32.mrb[0].mxu0
      %v4557 = vpop.f32.mrb[0].mxu0
      %v4558 = vadd.f32 0.0, %v4557
      %v4559 = vpop.f32.mrb[0].mxu0
      %4560 = vmatprep.mubr.bf16.mxu0 0
      %4561 = vmatmul.mubr.bf16.gmra.mrb[0].mxu0 %v4349
      %v4562 = vpop.f32.mrb[0].mxu0
      %v4563 = vadd.f32 0.0, %v4562
      %v4564 = vpop.f32.mrb[0].mxu0
      %v4565 = vpop.f32.mrb[0].mxu0
      %v4566 = vadd.f32 0.0, %v4565
      %v4567 = vpop.f32.mrb[0].mxu0
      %4568 = vmatprep.mubr.bf16.mxu0 0
      %4569 = vmatmul.mubr.bf16.gmra.mrb[0].mxu0 %v4350
      %v4570 = vpop.f32.mrb[0].mxu0
      %v4571 = vadd.f32 0.0, %v4570
      %v4572 = vpop.f32.mrb[0].mxu0
      %v4573 = vpop.f32.mrb[0].mxu0
      %v4574 = vadd.f32 0.0, %v4573
      %v4575 = vpop.f32.mrb[0].mxu0
      %4576 = vdwg.mxu0
      %v4577 = vadd.f32 %v4271, %v4451
      %v4578 = vadd.f32 %v4272, %v4454
      %v4579 = vadd.f32 %v4273, %v4459
      %v4580 = vadd.f32 %v4274, %v4462
      %v4581 = vadd.f32 %v4275, %v4467
      %v4582 = vadd.f32 %v4276, %v4470
      %v4583 = vadd.f32 %v4277, %v4475
      %v4584 = vadd.f32 %v4278, %v4478
      %v4585 = vadd.f32 %v4279, %v4483
      %v4586 = vadd.f32 %v4280, %v4486
      %v4587 = vadd.f32 %v4281, %v4491
      %v4588 = vadd.f32 %v4282, %v4494
      %v4589 = vadd.f32 %v4283, %v4499
      %v4590 = vadd.f32 %v4284, %v4502
      %v4591 = vadd.f32 %v4285, %v4507
      %v4592 = vadd.f32 %v4286, %v4510
      %v4593 = vadd.f32 %v4287, %v4515
      %v4594 = vadd.f32 %v4288, %v4518
      %v4595 = vadd.f32 %v4289, %v4523
      %v4596 = vadd.f32 %v4290, %v4526
      %v4597 = vadd.f32 %v4291, %v4531
      %v4598 = vadd.f32 %v4292, %v4534
      %v4599 = vadd.f32 %v4293, %v4539
      %v4600 = vadd.f32 %v4294, %v4542
      %v4601 = vadd.f32 %v4295, %v4547
      %v4602 = vadd.f32 %v4296, %v4550
      %v4603 = vadd.f32 %v4297, %v4555
      %v4604 = vadd.f32 %v4298, %v4558
      %v4605 = vadd.f32 %v4299, %v4563
      %v4606 = vadd.f32 %v4300, %v4566
      %v4607 = vadd.f32 %v4301, %v4571
      %v4608 = vadd.f32 %v4302, %v4574
      %v4609 = vld [vmem:[%s3417 + $0x1] sm:$0xff]
      %v4610 = vld [vmem:[%s3417 + $0x9] sm:$0xff]
      %v4611 = vld [vmem:[%s3417 + $0x19] sm:$0xff]
      %v4612 = vld [vmem:[%s3417 + $0x21] sm:$0xff]
      %v4613 = vld [vmem:[%s3417 + $0x31] sm:$0xff]
      %v4614 = vld [vmem:[%s3417 + $0x39] sm:$0xff]
      %v4615 = vld [vmem:[%s3417 + $0x49] sm:$0xff]
      %v4616 = vld [vmem:[%s3417 + $0x51] sm:$0xff]
      %v4617 = vld [vmem:[%s3417 + $0x61] sm:$0xff]
      %v4618 = vld [vmem:[%s3417 + $0x69] sm:$0xff]
      %v4619 = vld [vmem:[%s3417 + $0x79] sm:$0xff]
      %v4620 = vld [vmem:[%s3417 + $0x81] sm:$0xff]
      %v4621 = vld [vmem:[%s3417 + $0x91] sm:$0xff]
      %v4622 = vld [vmem:[%s3417 + $0x99] sm:$0xff]
      %v4623 = vld [vmem:[%s3417 + $0xa9] sm:$0xff]
      %v4624 = vld [vmem:[%s3417 + $0xb1] sm:$0xff]
      %v4625 = vld [vmem:[%s3417 + $0xc1] sm:$0xff]
      %v4626 = vld [vmem:[%s3417 + $0xc9] sm:$0xff]
      %v4627 = vld [vmem:[%s3417 + $0xd9] sm:$0xff]
      %v4628 = vld [vmem:[%s3417 + $0xe1] sm:$0xff]
      %v4629 = vld [vmem:[%s3417 + $0xf1] sm:$0xff]
      %v4630 = vld [vmem:[%s3417 + $0xf9] sm:$0xff]
      %v4631 = vld [vmem:[%s3417 + $0x109] sm:$0xff]
      %v4632 = vld [vmem:[%s3417 + $0x111] sm:$0xff]
      %v4633 = vld [vmem:[%s3417 + $0x121] sm:$0xff]
      %v4634 = vld [vmem:[%s3417 + $0x129] sm:$0xff]
      %v4635 = vld [vmem:[%s3417 + $0x139] sm:$0xff]
      %v4636 = vld [vmem:[%s3417 + $0x141] sm:$0xff]
      %v4637 = vld [vmem:[%s3417 + $0x151] sm:$0xff]
      %v4638 = vld [vmem:[%s3417 + $0x159] sm:$0xff]
      %v4639 = vld [vmem:[%s3417 + $0x169] sm:$0xff]
      %v4640 = vld [vmem:[%s3417 + $0x171] sm:$0xff]
      %v4641 = vpack.c.bf16 %v4610, %v4609
      %v4642 = vpack.c.bf16 %v4612, %v4611
      %v4643 = vpack.c.bf16 %v4614, %v4613
      %v4644 = vpack.c.bf16 %v4616, %v4615
      %v4645 = vpack.c.bf16 %v4618, %v4617
      %v4646 = vpack.c.bf16 %v4620, %v4619
      %v4647 = vpack.c.bf16 %v4622, %v4621
      %v4648 = vpack.c.bf16 %v4624, %v4623
      %v4649 = vpack.c.bf16 %v4626, %v4625
      %v4650 = vpack.c.bf16 %v4628, %v4627
      %v4651 = vpack.c.bf16 %v4630, %v4629
      %v4652 = vpack.c.bf16 %v4632, %v4631
      %v4653 = vpack.c.bf16 %v4634, %v4633
      %v4654 = vpack.c.bf16 %v4636, %v4635
      %v4655 = vpack.c.bf16 %v4638, %v4637
      %v4656 = vpack.c.bf16 %v4640, %v4639
      %s4657 = scalar_lea.vmem %s6, 256
      %v4658 = vld [vmem:[%s4657] sm:$0xf]
      %v4659 = vld [vmem:[%s4657 + $0x4] sm:$0xf]
      %v4660 = vld [vmem:[%s4657 + $0x8] sm:$0xf]
      %v4661 = vld [vmem:[%s4657 + $0xc] sm:$0xf]
      %v4662 = vld [vmem:[%s4657 + $0x10] sm:$0xf]
      %v4663 = vld [vmem:[%s4657 + $0x14] sm:$0xf]
      %v4664 = vld [vmem:[%s4657 + $0x18] sm:$0xf]
      %v4665 = vld [vmem:[%s4657 + $0x1c] sm:$0xf]
      %v4666 = vld [vmem:[%s4657 + $0x20] sm:$0xf]
      %v4667 = vld [vmem:[%s4657 + $0x24] sm:$0xf]
      %v4668 = vld [vmem:[%s4657 + $0x28] sm:$0xf]
      %v4669 = vld [vmem:[%s4657 + $0x2c] sm:$0xf]
      %v4670 = vld [vmem:[%s4657 + $0x30] sm:$0xf]
      %v4671 = vld [vmem:[%s4657 + $0x34] sm:$0xf]
      %v4672 = vld [vmem:[%s4657 + $0x38] sm:$0xf]
      %v4673 = vld [vmem:[%s4657 + $0x3c] sm:$0xf]
      %v4690 = vunpack.c.l.b16 %v4658
      %v4691 = vunpack.c.l.b16 %v4659
      %v4692 = vunpack.c.l.b16 %v4660
      %v4693 = vunpack.c.l.b16 %v4661
      %v4694 = vunpack.c.l.b16 %v4662
      %v4695 = vunpack.c.l.b16 %v4663
      %v4696 = vunpack.c.l.b16 %v4664
      %v4697 = vunpack.c.l.b16 %v4665
      %v4698 = vunpack.c.l.b16 %v4666
      %v4699 = vunpack.c.l.b16 %v4667
      %v4700 = vunpack.c.l.b16 %v4668
      %v4701 = vunpack.c.l.b16 %v4669
      %v4702 = vunpack.c.l.b16 %v4670
      %v4703 = vunpack.c.l.b16 %v4671
      %v4704 = vunpack.c.l.b16 %v4672
      %v4705 = vunpack.c.l.b16 %v4673
      %v4706 = vpack.c.b16 %v4691, %v4690
      %v4707 = vpack.c.b16 %v4693, %v4692
      %v4708 = vpack.c.b16 %v4695, %v4694
      %v4709 = vpack.c.b16 %v4697, %v4696
      %v4710 = vpack.c.b16 %v4699, %v4698
      %v4711 = vpack.c.b16 %v4701, %v4700
      %v4712 = vpack.c.b16 %v4703, %v4702
      %v4713 = vpack.c.b16 %v4705, %v4704
      %4722 = vmatprep.subr.bf16.mxu0 0
      %4723 = vmatpush1.bf16.msra.mxu0 %v4706
      %4724 = vmatprep.subr.bf16.mxu0 0
      %4725 = vmatpush1.bf16.msra.mxu0 %v4707
      %4726 = vmatprep.subr.bf16.mxu0 0
      %4727 = vmatpush1.bf16.msra.mxu0 %v4708
      %4728 = vmatprep.subr.bf16.mxu0 0
      %4729 = vmatpush1.bf16.msra.mxu0 %v4709
      %4730 = vmatprep.subr.bf16.mxu0 0
      %4731 = vmatpush1.bf16.msra.mxu0 %v4710
      %4732 = vmatprep.subr.bf16.mxu0 0
      %4733 = vmatpush1.bf16.msra.mxu0 %v4711
      %4734 = vmatprep.subr.bf16.mxu0 0
      %4735 = vmatpush1.bf16.msra.mxu0 %v4712
      %4736 = vmatprep.subr.bf16.mxu0 0
      %4737 = vmatpush1.bf16.msra.mxu0 %v4713
      %4738 = vmatprep.subr.bf16.mxu0 0
      %4739 = vmatpush1.bf16.msra.mxu0 0
      %4740 = vmatprep.subr.bf16.mxu0 0
      %4741 = vmatpush1.bf16.msra.mxu0 0
      %4742 = vmatprep.subr.bf16.mxu0 0
      %4743 = vmatpush1.bf16.msra.mxu0 0
      %4744 = vmatprep.subr.bf16.mxu0 0
      %4745 = vmatpush1.bf16.msra.mxu0 0
      %4746 = vmatprep.subr.bf16.mxu0 0
      %4747 = vmatpush1.bf16.msra.mxu0 0
      %4748 = vmatprep.subr.bf16.mxu0 0
      %4749 = vmatpush1.bf16.msra.mxu0 0
      %4750 = vmatprep.subr.bf16.mxu0 0
      %4751 = vmatpush1.bf16.msra.mxu0 0
      %4752 = vmatprep.subr.bf16.mxu0 0
      %4753 = vmatpush1.bf16.msra.mxu0 0
      %4754 = vmatprep.mubr.bf16.mxu0 0
      %4755 = vmatmul.mubr.bf16.gmra.mrb[0].mxu0 %v4641
      %v4756 = vpop.f32.mrb[0].mxu0
      %v4757 = vadd.f32 0.0, %v4756
      %v4758 = vpop.f32.mrb[0].mxu0
      %v4759 = vpop.f32.mrb[0].mxu0
      %v4760 = vadd.f32 0.0, %v4759
      %v4761 = vpop.f32.mrb[0].mxu0
      %4762 = vmatprep.mubr.bf16.mxu0 0
      %4763 = vmatmul.mubr.bf16.gmra.mrb[0].mxu0 %v4642
      %v4764 = vpop.f32.mrb[0].mxu0
      %v4765 = vadd.f32 0.0, %v4764
      %v4766 = vpop.f32.mrb[0].mxu0
      %v4767 = vpop.f32.mrb[0].mxu0
      %v4768 = vadd.f32 0.0, %v4767
      %v4769 = vpop.f32.mrb[0].mxu0
      %4770 = vmatprep.mubr.bf16.mxu0 0
      %4771 = vmatmul.mubr.bf16.gmra.mrb[0].mxu0 %v4643
      %v4772 = vpop.f32.mrb[0].mxu0
      %v4773 = vadd.f32 0.0, %v4772
      %v4774 = vpop.f32.mrb[0].mxu0
      %v4775 = vpop.f32.mrb[0].mxu0
      %v4776 = vadd.f32 0.0, %v4775
      %v4777 = vpop.f32.mrb[0].mxu0
      %4778 = vmatprep.mubr.bf16.mxu0 0
      %4779 = vmatmul.mubr.bf16.gmra.mrb[0].mxu0 %v4644
      %v4780 = vpop.f32.mrb[0].mxu0
      %v4781 = vadd.f32 0.0, %v4780
      %v4782 = vpop.f32.mrb[0].mxu0
      %v4783 = vpop.f32.mrb[0].mxu0
      %v4784 = vadd.f32 0.0, %v4783
      %v4785 = vpop.f32.mrb[0].mxu0
      %4786 = vmatprep.mubr.bf16.mxu0 0
      %4787 = vmatmul.mubr.bf16.gmra.mrb[0].mxu0 %v4645
      %v4788 = vpop.f32.mrb[0].mxu0
      %v4789 = vadd.f32 0.0, %v4788
      %v4790 = vpop.f32.mrb[0].mxu0
      %v4791 = vpop.f32.mrb[0].mxu0
      %v4792 = vadd.f32 0.0, %v4791
      %v4793 = vpop.f32.mrb[0].mxu0
      %4794 = vmatprep.mubr.bf16.mxu0 0
      %4795 = vmatmul.mubr.bf16.gmra.mrb[0].mxu0 %v4646
      %v4796 = vpop.f32.mrb[0].mxu0
      %v4797 = vadd.f32 0.0, %v4796
      %v4798 = vpop.f32.mrb[0].mxu0
      %v4799 = vpop.f32.mrb[0].mxu0
      %v4800 = vadd.f32 0.0, %v4799
      %v4801 = vpop.f32.mrb[0].mxu0
      %4802 = vmatprep.mubr.bf16.mxu0 0
      %4803 = vmatmul.mubr.bf16.gmra.mrb[0].mxu0 %v4647
      %v4804 = vpop.f32.mrb[0].mxu0
      %v4805 = vadd.f32 0.0, %v4804
      %v4806 = vpop.f32.mrb[0].mxu0
      %v4807 = vpop.f32.mrb[0].mxu0
      %v4808 = vadd.f32 0.0, %v4807
      %v4809 = vpop.f32.mrb[0].mxu0
      %4810 = vmatprep.mubr.bf16.mxu0 0
      %4811 = vmatmul.mubr.bf16.gmra.mrb[0].mxu0 %v4648
      %v4812 = vpop.f32.mrb[0].mxu0
      %v4813 = vadd.f32 0.0, %v4812
      %v4814 = vpop.f32.mrb[0].mxu0
      %v4815 = vpop.f32.mrb[0].mxu0
      %v4816 = vadd.f32 0.0, %v4815
      %v4817 = vpop.f32.mrb[0].mxu0
      %4818 = vmatprep.mubr.bf16.mxu0 0
      %4819 = vmatmul.mubr.bf16.gmra.mrb[0].mxu0 %v4649
      %v4820 = vpop.f32.mrb[0].mxu0
      %v4821 = vadd.f32 0.0, %v4820
      %v4822 = vpop.f32.mrb[0].mxu0
      %v4823 = vpop.f32.mrb[0].mxu0
      %v4824 = vadd.f32 0.0, %v4823
      %v4825 = vpop.f32.mrb[0].mxu0
      %4826 = vmatprep.mubr.bf16.mxu0 0
      %4827 = vmatmul.mubr.bf16.gmra.mrb[0].mxu0 %v4650
      %v4828 = vpop.f32.mrb[0].mxu0
      %v4829 = vadd.f32 0.0, %v4828
      %v4830 = vpop.f32.mrb[0].mxu0
      %v4831 = vpop.f32.mrb[0].mxu0
      %v4832 = vadd.f32 0.0, %v4831
      %v4833 = vpop.f32.mrb[0].mxu0
      %4834 = vmatprep.mubr.bf16.mxu0 0
      %4835 = vmatmul.mubr.bf16.gmra.mrb[0].mxu0 %v4651
      %v4836 = vpop.f32.mrb[0].mxu0
      %v4837 = vadd.f32 0.0, %v4836
      %v4838 = vpop.f32.mrb[0].mxu0
      %v4839 = vpop.f32.mrb[0].mxu0
      %v4840 = vadd.f32 0.0, %v4839
      %v4841 = vpop.f32.mrb[0].mxu0
      %4842 = vmatprep.mubr.bf16.mxu0 0
      %4843 = vmatmul.mubr.bf16.gmra.mrb[0].mxu0 %v4652
      %v4844 = vpop.f32.mrb[0].mxu0
      %v4845 = vadd.f32 0.0, %v4844
      %v4846 = vpop.f32.mrb[0].mxu0
      %v4847 = vpop.f32.mrb[0].mxu0
      %v4848 = vadd.f32 0.0, %v4847
      %v4849 = vpop.f32.mrb[0].mxu0
      %4850 = vmatprep.mubr.bf16.mxu0 0
      %4851 = vmatmul.mubr.bf16.gmra.mrb[0].mxu0 %v4653
      %v4852 = vpop.f32.mrb[0].mxu0
      %v4853 = vadd.f32 0.0, %v4852
      %v4854 = vpop.f32.mrb[0].mxu0
      %v4855 = vpop.f32.mrb[0].mxu0
      %v4856 = vadd.f32 0.0, %v4855
      %v4857 = vpop.f32.mrb[0].mxu0
      %4858 = vmatprep.mubr.bf16.mxu0 0
      %4859 = vmatmul.mubr.bf16.gmra.mrb[0].mxu0 %v4654
      %v4860 = vpop.f32.mrb[0].mxu0
      %v4861 = vadd.f32 0.0, %v4860
      %v4862 = vpop.f32.mrb[0].mxu0
      %v4863 = vpop.f32.mrb[0].mxu0
      %v4864 = vadd.f32 0.0, %v4863
      %v4865 = vpop.f32.mrb[0].mxu0
      %4866 = vmatprep.mubr.bf16.mxu0 0
      %4867 = vmatmul.mubr.bf16.gmra.mrb[0].mxu0 %v4655
      %v4868 = vpop.f32.mrb[0].mxu0
      %v4869 = vadd.f32 0.0, %v4868
      %v4870 = vpop.f32.mrb[0].mxu0
      %v4871 = vpop.f32.mrb[0].mxu0
      %v4872 = vadd.f32 0.0, %v4871
      %v4873 = vpop.f32.mrb[0].mxu0
      %4874 = vmatprep.mubr.bf16.mxu0 0
      %4875 = vmatmul.mubr.bf16.gmra.mrb[0].mxu0 %v4656
      %v4876 = vpop.f32.mrb[0].mxu0
      %v4877 = vadd.f32 0.0, %v4876
      %v4878 = vpop.f32.mrb[0].mxu0
      %v4879 = vpop.f32.mrb[0].mxu0
      %v4880 = vadd.f32 0.0, %v4879
      %v4881 = vpop.f32.mrb[0].mxu0
      %4882 = vdwg.mxu0
      %v4883 = vadd.f32 %v4577, %v4757
      %v4884 = vadd.f32 %v4578, %v4760
      %v4885 = vadd.f32 %v4579, %v4765
      %v4886 = vadd.f32 %v4580, %v4768
      %v4887 = vadd.f32 %v4581, %v4773
      %v4888 = vadd.f32 %v4582, %v4776
      %v4889 = vadd.f32 %v4583, %v4781
      %v4890 = vadd.f32 %v4584, %v4784
      %v4891 = vadd.f32 %v4585, %v4789
      %v4892 = vadd.f32 %v4586, %v4792
      %v4893 = vadd.f32 %v4587, %v4797
      %v4894 = vadd.f32 %v4588, %v4800
      %v4895 = vadd.f32 %v4589, %v4805
      %v4896 = vadd.f32 %v4590, %v4808
      %v4897 = vadd.f32 %v4591, %v4813
      %v4898 = vadd.f32 %v4592, %v4816
      %v4899 = vadd.f32 %v4593, %v4821
      %v4900 = vadd.f32 %v4594, %v4824
      %v4901 = vadd.f32 %v4595, %v4829
      %v4902 = vadd.f32 %v4596, %v4832
      %v4903 = vadd.f32 %v4597, %v4837
      %v4904 = vadd.f32 %v4598, %v4840
      %v4905 = vadd.f32 %v4599, %v4845
      %v4906 = vadd.f32 %v4600, %v4848
      %v4907 = vadd.f32 %v4601, %v4853
      %v4908 = vadd.f32 %v4602, %v4856
      %v4909 = vadd.f32 %v4603, %v4861
      %v4910 = vadd.f32 %v4604, %v4864
      %v4911 = vadd.f32 %v4605, %v4869
      %v4912 = vadd.f32 %v4606, %v4872
      %v4913 = vadd.f32 %v4607, %v4877
      %v4914 = vadd.f32 %v4608, %v4880
      %v4915 = vld [vmem:[%s3417 + $0x2] sm:$0xff]
      %v4916 = vld [vmem:[%s3417 + $0xa] sm:$0xff]
      %v4917 = vld [vmem:[%s3417 + $0x1a] sm:$0xff]
      %v4918 = vld [vmem:[%s3417 + $0x22] sm:$0xff]
      %v4919 = vld [vmem:[%s3417 + $0x32] sm:$0xff]
      %v4920 = vld [vmem:[%s3417 + $0x3a] sm:$0xff]
      %v4921 = vld [vmem:[%s3417 + $0x4a] sm:$0xff]
      %v4922 = vld [vmem:[%s3417 + $0x52] sm:$0xff]
      %v4923 = vld [vmem:[%s3417 + $0x62] sm:$0xff]
      %v4924 = vld [vmem:[%s3417 + $0x6a] sm:$0xff]
      %v4925 = vld [vmem:[%s3417 + $0x7a] sm:$0xff]
      %v4926 = vld [vmem:[%s3417 + $0x82] sm:$0xff]
      %v4927 = vld [vmem:[%s3417 + $0x92] sm:$0xff]
      %v4928 = vld [vmem:[%s3417 + $0x9a] sm:$0xff]
      %v4929 = vld [vmem:[%s3417 + $0xaa] sm:$0xff]
      %v4930 = vld [vmem:[%s3417 + $0xb2] sm:$0xff]
      %v4931 = vld [vmem:[%s3417 + $0xc2] sm:$0xff]
      %v4932 = vld [vmem:[%s3417 + $0xca] sm:$0xff]
      %v4933 = vld [vmem:[%s3417 + $0xda] sm:$0xff]
      %v4934 = vld [vmem:[%s3417 + $0xe2] sm:$0xff]
      %v4935 = vld [vmem:[%s3417 + $0xf2] sm:$0xff]
      %v4936 = vld [vmem:[%s3417 + $0xfa] sm:$0xff]
      %v4937 = vld [vmem:[%s3417 + $0x10a] sm:$0xff]
      %v4938 = vld [vmem:[%s3417 + $0x112] sm:$0xff]
      %v4939 = vld [vmem:[%s3417 + $0x122] sm:$0xff]
      %v4940 = vld [vmem:[%s3417 + $0x12a] sm:$0xff]
      %v4941 = vld [vmem:[%s3417 + $0x13a] sm:$0xff]
      %v4942 = vld [vmem:[%s3417 + $0x142] sm:$0xff]
      %v4943 = vld [vmem:[%s3417 + $0x152] sm:$0xff]
      %v4944 = vld [vmem:[%s3417 + $0x15a] sm:$0xff]
      %v4945 = vld [vmem:[%s3417 + $0x16a] sm:$0xff]
      %v4946 = vld [vmem:[%s3417 + $0x172] sm:$0xff]
      %v4947 = vpack.c.bf16 %v4916, %v4915
      %v4948 = vpack.c.bf16 %v4918, %v4917
      %v4949 = vpack.c.bf16 %v4920, %v4919
      %v4950 = vpack.c.bf16 %v4922, %v4921
      %v4951 = vpack.c.bf16 %v4924, %v4923
      %v4952 = vpack.c.bf16 %v4926, %v4925
      %v4953 = vpack.c.bf16 %v4928, %v4927
      %v4954 = vpack.c.bf16 %v4930, %v4929
      %v4955 = vpack.c.bf16 %v4932, %v4931
      %v4956 = vpack.c.bf16 %v4934, %v4933
      %v4957 = vpack.c.bf16 %v4936, %v4935
      %v4958 = vpack.c.bf16 %v4938, %v4937
      %v4959 = vpack.c.bf16 %v4940, %v4939
      %v4960 = vpack.c.bf16 %v4942, %v4941
      %v4961 = vpack.c.bf16 %v4944, %v4943
      %v4962 = vpack.c.bf16 %v4946, %v4945
      %s4963 = scalar_lea.vmem %s6, 320
      %v4964 = vld [vmem:[%s4963] sm:$0xf]
      %v4965 = vld [vmem:[%s4963 + $0x4] sm:$0xf]
      %v4966 = vld [vmem:[%s4963 + $0x8] sm:$0xf]
      %v4967 = vld [vmem:[%s4963 + $0xc] sm:$0xf]
      %v4968 = vld [vmem:[%s4963 + $0x10] sm:$0xf]
      %v4969 = vld [vmem:[%s4963 + $0x14] sm:$0xf]
      %v4970 = vld [vmem:[%s4963 + $0x18] sm:$0xf]
      %v4971 = vld [vmem:[%s4963 + $0x1c] sm:$0xf]
      %v4972 = vld [vmem:[%s4963 + $0x20] sm:$0xf]
      %v4973 = vld [vmem:[%s4963 + $0x24] sm:$0xf]
      %v4974 = vld [vmem:[%s4963 + $0x28] sm:$0xf]
      %v4975 = vld [vmem:[%s4963 + $0x2c] sm:$0xf]
      %v4976 = vld [vmem:[%s4963 + $0x30] sm:$0xf]
      %v4977 = vld [vmem:[%s4963 + $0x34] sm:$0xf]
      %v4978 = vld [vmem:[%s4963 + $0x38] sm:$0xf]
      %v4979 = vld [vmem:[%s4963 + $0x3c] sm:$0xf]
      %v4996 = vunpack.c.l.b16 %v4964
      %v4997 = vunpack.c.l.b16 %v4965
      %v4998 = vunpack.c.l.b16 %v4966
      %v4999 = vunpack.c.l.b16 %v4967
      %v5000 = vunpack.c.l.b16 %v4968
      %v5001 = vunpack.c.l.b16 %v4969
      %v5002 = vunpack.c.l.b16 %v4970
      %v5003 = vunpack.c.l.b16 %v4971
      %v5004 = vunpack.c.l.b16 %v4972
      %v5005 = vunpack.c.l.b16 %v4973
      %v5006 = vunpack.c.l.b16 %v4974
      %v5007 = vunpack.c.l.b16 %v4975
      %v5008 = vunpack.c.l.b16 %v4976
      %v5009 = vunpack.c.l.b16 %v4977
      %v5010 = vunpack.c.l.b16 %v4978
      %v5011 = vunpack.c.l.b16 %v4979
      %v5012 = vpack.c.b16 %v4997, %v4996
      %v5013 = vpack.c.b16 %v4999, %v4998
      %v5014 = vpack.c.b16 %v5001, %v5000
      %v5015 = vpack.c.b16 %v5003, %v5002
      %v5016 = vpack.c.b16 %v5005, %v5004
      %v5017 = vpack.c.b16 %v5007, %v5006
      %v5018 = vpack.c.b16 %v5009, %v5008
      %v5019 = vpack.c.b16 %v5011, %v5010
      %5028 = vmatprep.subr.bf16.mxu0 0
      %5029 = vmatpush1.bf16.msra.mxu0 %v5012
      %5030 = vmatprep.subr.bf16.mxu0 0
      %5031 = vmatpush1.bf16.msra.mxu0 %v5013
      %5032 = vmatprep.subr.bf16.mxu0 0
      %5033 = vmatpush1.bf16.msra.mxu0 %v5014
      %5034 = vmatprep.subr.bf16.mxu0 0
      %5035 = vmatpush1.bf16.msra.mxu0 %v5015
      %5036 = vmatprep.subr.bf16.mxu0 0
      %5037 = vmatpush1.bf16.msra.mxu0 %v5016
      %5038 = vmatprep.subr.bf16.mxu0 0
      %5039 = vmatpush1.bf16.msra.mxu0 %v5017
      %5040 = vmatprep.subr.bf16.mxu0 0
      %5041 = vmatpush1.bf16.msra.mxu0 %v5018
      %5042 = vmatprep.subr.bf16.mxu0 0
      %5043 = vmatpush1.bf16.msra.mxu0 %v5019
      %5044 = vmatprep.subr.bf16.mxu0 0
      %5045 = vmatpush1.bf16.msra.mxu0 0
      %5046 = vmatprep.subr.bf16.mxu0 0
      %5047 = vmatpush1.bf16.msra.mxu0 0
      %5048 = vmatprep.subr.bf16.mxu0 0
      %5049 = vmatpush1.bf16.msra.mxu0 0
      %5050 = vmatprep.subr.bf16.mxu0 0
      %5051 = vmatpush1.bf16.msra.mxu0 0
      %5052 = vmatprep.subr.bf16.mxu0 0
      %5053 = vmatpush1.bf16.msra.mxu0 0
      %5054 = vmatprep.subr.bf16.mxu0 0
      %5055 = vmatpush1.bf16.msra.mxu0 0
      %5056 = vmatprep.subr.bf16.mxu0 0
      %5057 = vmatpush1.bf16.msra.mxu0 0
      %5058 = vmatprep.subr.bf16.mxu0 0
      %5059 = vmatpush1.bf16.msra.mxu0 0
      %5060 = vmatprep.mubr.bf16.mxu0 0
      %5061 = vmatmul.mubr.bf16.gmra.mrb[0].mxu0 %v4947
      %v5062 = vpop.f32.mrb[0].mxu0
      %v5063 = vadd.f32 0.0, %v5062
      %v5064 = vpop.f32.mrb[0].mxu0
      %v5065 = vpop.f32.mrb[0].mxu0
      %v5066 = vadd.f32 0.0, %v5065
      %v5067 = vpop.f32.mrb[0].mxu0
      %5068 = vmatprep.mubr.bf16.mxu0 0
      %5069 = vmatmul.mubr.bf16.gmra.mrb[0].mxu0 %v4948
      %v5070 = vpop.f32.mrb[0].mxu0
      %v5071 = vadd.f32 0.0, %v5070
      %v5072 = vpop.f32.mrb[0].mxu0
      %v5073 = vpop.f32.mrb[0].mxu0
      %v5074 = vadd.f32 0.0, %v5073
      %v5075 = vpop.f32.mrb[0].mxu0
      %5076 = vmatprep.mubr.bf16.mxu0 0
      %5077 = vmatmul.mubr.bf16.gmra.mrb[0].mxu0 %v4949
      %v5078 = vpop.f32.mrb[0].mxu0
      %v5079 = vadd.f32 0.0, %v5078
      %v5080 = vpop.f32.mrb[0].mxu0
      %v5081 = vpop.f32.mrb[0].mxu0
      %v5082 = vadd.f32 0.0, %v5081
      %v5083 = vpop.f32.mrb[0].mxu0
      %5084 = vmatprep.mubr.bf16.mxu0 0
      %5085 = vmatmul.mubr.bf16.gmra.mrb[0].mxu0 %v4950
      %v5086 = vpop.f32.mrb[0].mxu0
      %v5087 = vadd.f32 0.0, %v5086
      %v5088 = vpop.f32.mrb[0].mxu0
      %v5089 = vpop.f32.mrb[0].mxu0
      %v5090 = vadd.f32 0.0, %v5089
      %v5091 = vpop.f32.mrb[0].mxu0
      %5092 = vmatprep.mubr.bf16.mxu0 0
      %5093 = vmatmul.mubr.bf16.gmra.mrb[0].mxu0 %v4951
      %v5094 = vpop.f32.mrb[0].mxu0
      %v5095 = vadd.f32 0.0, %v5094
      %v5096 = vpop.f32.mrb[0].mxu0
      %v5097 = vpop.f32.mrb[0].mxu0
      %v5098 = vadd.f32 0.0, %v5097
      %v5099 = vpop.f32.mrb[0].mxu0
      %5100 = vmatprep.mubr.bf16.mxu0 0
      %5101 = vmatmul.mubr.bf16.gmra.mrb[0].mxu0 %v4952
      %v5102 = vpop.f32.mrb[0].mxu0
      %v5103 = vadd.f32 0.0, %v5102
      %v5104 = vpop.f32.mrb[0].mxu0
      %v5105 = vpop.f32.mrb[0].mxu0
      %v5106 = vadd.f32 0.0, %v5105
      %v5107 = vpop.f32.mrb[0].mxu0
      %5108 = vmatprep.mubr.bf16.mxu0 0
      %5109 = vmatmul.mubr.bf16.gmra.mrb[0].mxu0 %v4953
      %v5110 = vpop.f32.mrb[0].mxu0
      %v5111 = vadd.f32 0.0, %v5110
      %v5112 = vpop.f32.mrb[0].mxu0
      %v5113 = vpop.f32.mrb[0].mxu0
      %v5114 = vadd.f32 0.0, %v5113
      %v5115 = vpop.f32.mrb[0].mxu0
      %5116 = vmatprep.mubr.bf16.mxu0 0
      %5117 = vmatmul.mubr.bf16.gmra.mrb[0].mxu0 %v4954
      %v5118 = vpop.f32.mrb[0].mxu0
      %v5119 = vadd.f32 0.0, %v5118
      %v5120 = vpop.f32.mrb[0].mxu0
      %v5121 = vpop.f32.mrb[0].mxu0
      %v5122 = vadd.f32 0.0, %v5121
      %v5123 = vpop.f32.mrb[0].mxu0
      %5124 = vmatprep.mubr.bf16.mxu0 0
      %5125 = vmatmul.mubr.bf16.gmra.mrb[0].mxu0 %v4955
      %v5126 = vpop.f32.mrb[0].mxu0
      %v5127 = vadd.f32 0.0, %v5126
      %v5128 = vpop.f32.mrb[0].mxu0
      %v5129 = vpop.f32.mrb[0].mxu0
      %v5130 = vadd.f32 0.0, %v5129
      %v5131 = vpop.f32.mrb[0].mxu0
      %5132 = vmatprep.mubr.bf16.mxu0 0
      %5133 = vmatmul.mubr.bf16.gmra.mrb[0].mxu0 %v4956
      %v5134 = vpop.f32.mrb[0].mxu0
      %v5135 = vadd.f32 0.0, %v5134
      %v5136 = vpop.f32.mrb[0].mxu0
      %v5137 = vpop.f32.mrb[0].mxu0
      %v5138 = vadd.f32 0.0, %v5137
      %v5139 = vpop.f32.mrb[0].mxu0
      %5140 = vmatprep.mubr.bf16.mxu0 0
      %5141 = vmatmul.mubr.bf16.gmra.mrb[0].mxu0 %v4957
      %v5142 = vpop.f32.mrb[0].mxu0
      %v5143 = vadd.f32 0.0, %v5142
      %v5144 = vpop.f32.mrb[0].mxu0
      %v5145 = vpop.f32.mrb[0].mxu0
      %v5146 = vadd.f32 0.0, %v5145
      %v5147 = vpop.f32.mrb[0].mxu0
      %5148 = vmatprep.mubr.bf16.mxu0 0
      %5149 = vmatmul.mubr.bf16.gmra.mrb[0].mxu0 %v4958
      %v5150 = vpop.f32.mrb[0].mxu0
      %v5151 = vadd.f32 0.0, %v5150
      %v5152 = vpop.f32.mrb[0].mxu0
      %v5153 = vpop.f32.mrb[0].mxu0
      %v5154 = vadd.f32 0.0, %v5153
      %v5155 = vpop.f32.mrb[0].mxu0
      %5156 = vmatprep.mubr.bf16.mxu0 0
      %5157 = vmatmul.mubr.bf16.gmra.mrb[0].mxu0 %v4959
      %v5158 = vpop.f32.mrb[0].mxu0
      %v5159 = vadd.f32 0.0, %v5158
      %v5160 = vpop.f32.mrb[0].mxu0
      %v5161 = vpop.f32.mrb[0].mxu0
      %v5162 = vadd.f32 0.0, %v5161
      %v5163 = vpop.f32.mrb[0].mxu0
      %5164 = vmatprep.mubr.bf16.mxu0 0
      %5165 = vmatmul.mubr.bf16.gmra.mrb[0].mxu0 %v4960
      %v5166 = vpop.f32.mrb[0].mxu0
      %v5167 = vadd.f32 0.0, %v5166
      %v5168 = vpop.f32.mrb[0].mxu0
      %v5169 = vpop.f32.mrb[0].mxu0
      %v5170 = vadd.f32 0.0, %v5169
      %v5171 = vpop.f32.mrb[0].mxu0
      %5172 = vmatprep.mubr.bf16.mxu0 0
      %5173 = vmatmul.mubr.bf16.gmra.mrb[0].mxu0 %v4961
      %v5174 = vpop.f32.mrb[0].mxu0
      %v5175 = vadd.f32 0.0, %v5174
      %v5176 = vpop.f32.mrb[0].mxu0
      %v5177 = vpop.f32.mrb[0].mxu0
      %v5178 = vadd.f32 0.0, %v5177
      %v5179 = vpop.f32.mrb[0].mxu0
      %5180 = vmatprep.mubr.bf16.mxu0 0
      %5181 = vmatmul.mubr.bf16.gmra.mrb[0].mxu0 %v4962
      %v5182 = vpop.f32.mrb[0].mxu0
      %v5183 = vadd.f32 0.0, %v5182
      %v5184 = vpop.f32.mrb[0].mxu0
      %v5185 = vpop.f32.mrb[0].mxu0
      %v5186 = vadd.f32 0.0, %v5185
      %v5187 = vpop.f32.mrb[0].mxu0
      %5188 = vdwg.mxu0
      %v5189 = vadd.f32 %v4883, %v5063
      %v5190 = vadd.f32 %v4884, %v5066
      %v5191 = vadd.f32 %v4885, %v5071
      %v5192 = vadd.f32 %v4886, %v5074
      %v5193 = vadd.f32 %v4887, %v5079
      %v5194 = vadd.f32 %v4888, %v5082
      %v5195 = vadd.f32 %v4889, %v5087
      %v5196 = vadd.f32 %v4890, %v5090
      %v5197 = vadd.f32 %v4891, %v5095
      %v5198 = vadd.f32 %v4892, %v5098
      %v5199 = vadd.f32 %v4893, %v5103
      %v5200 = vadd.f32 %v4894, %v5106
      %v5201 = vadd.f32 %v4895, %v5111
      %v5202 = vadd.f32 %v4896, %v5114
      %v5203 = vadd.f32 %v4897, %v5119
      %v5204 = vadd.f32 %v4898, %v5122
      %v5205 = vadd.f32 %v4899, %v5127
      %v5206 = vadd.f32 %v4900, %v5130
      %v5207 = vadd.f32 %v4901, %v5135
      %v5208 = vadd.f32 %v4902, %v5138
      %v5209 = vadd.f32 %v4903, %v5143
      %v5210 = vadd.f32 %v4904, %v5146
      %v5211 = vadd.f32 %v4905, %v5151
      %v5212 = vadd.f32 %v4906, %v5154
      %v5213 = vadd.f32 %v4907, %v5159
      %v5214 = vadd.f32 %v4908, %v5162
      %v5215 = vadd.f32 %v4909, %v5167
      %v5216 = vadd.f32 %v4910, %v5170
      %v5217 = vadd.f32 %v4911, %v5175
      %v5218 = vadd.f32 %v4912, %v5178
      %v5219 = vadd.f32 %v4913, %v5183
      %v5220 = vadd.f32 %v4914, %v5186
      %s5221 = scalar_lea.vmem [#allocation3], 48
      %v5222 = vld [vmem:[%s5221] sm:$0xff]
      %v5223 = vld [vmem:[%s5221 + $0x8] sm:$0xff]
      %v5224 = vld [vmem:[%s5221 + $0x18] sm:$0xff]
      %v5225 = vld [vmem:[%s5221 + $0x20] sm:$0xff]
      %v5226 = vld [vmem:[%s5221 + $0x30] sm:$0xff]
      %v5227 = vld [vmem:[%s5221 + $0x38] sm:$0xff]
      %v5228 = vld [vmem:[%s5221 + $0x48] sm:$0xff]
      %v5229 = vld [vmem:[%s5221 + $0x50] sm:$0xff]
      %v5230 = vld [vmem:[%s5221 + $0x60] sm:$0xff]
      %v5231 = vld [vmem:[%s5221 + $0x68] sm:$0xff]
      %v5232 = vld [vmem:[%s5221 + $0x78] sm:$0xff]
      %v5233 = vld [vmem:[%s5221 + $0x80] sm:$0xff]
      %v5234 = vld [vmem:[%s5221 + $0x90] sm:$0xff]
      %v5235 = vld [vmem:[%s5221 + $0x98] sm:$0xff]
      %v5236 = vld [vmem:[%s5221 + $0xa8] sm:$0xff]
      %v5237 = vld [vmem:[%s5221 + $0xb0] sm:$0xff]
      %v5238 = vld [vmem:[%s5221 + $0xc0] sm:$0xff]
      %v5239 = vld [vmem:[%s5221 + $0xc8] sm:$0xff]
      %v5240 = vld [vmem:[%s5221 + $0xd8] sm:$0xff]
      %v5241 = vld [vmem:[%s5221 + $0xe0] sm:$0xff]
      %v5242 = vld [vmem:[%s5221 + $0xf0] sm:$0xff]
      %v5243 = vld [vmem:[%s5221 + $0xf8] sm:$0xff]
      %v5244 = vld [vmem:[%s5221 + $0x108] sm:$0xff]
      %v5245 = vld [vmem:[%s5221 + $0x110] sm:$0xff]
      %v5246 = vld [vmem:[%s5221 + $0x120] sm:$0xff]
      %v5247 = vld [vmem:[%s5221 + $0x128] sm:$0xff]
      %v5248 = vld [vmem:[%s5221 + $0x138] sm:$0xff]
      %v5249 = vld [vmem:[%s5221 + $0x140] sm:$0xff]
      %v5250 = vld [vmem:[%s5221 + $0x150] sm:$0xff]
      %v5251 = vld [vmem:[%s5221 + $0x158] sm:$0xff]
      %v5252 = vld [vmem:[%s5221 + $0x168] sm:$0xff]
      %v5253 = vld [vmem:[%s5221 + $0x170] sm:$0xff]
      %v5254 = vpack.c.bf16 %v5223, %v5222
      %v5255 = vpack.c.bf16 %v5225, %v5224
      %v5256 = vpack.c.bf16 %v5227, %v5226
      %v5257 = vpack.c.bf16 %v5229, %v5228
      %v5258 = vpack.c.bf16 %v5231, %v5230
      %v5259 = vpack.c.bf16 %v5233, %v5232
      %v5260 = vpack.c.bf16 %v5235, %v5234
      %v5261 = vpack.c.bf16 %v5237, %v5236
      %v5262 = vpack.c.bf16 %v5239, %v5238
      %v5263 = vpack.c.bf16 %v5241, %v5240
      %v5264 = vpack.c.bf16 %v5243, %v5242
      %v5265 = vpack.c.bf16 %v5245, %v5244
      %v5266 = vpack.c.bf16 %v5247, %v5246
      %v5267 = vpack.c.bf16 %v5249, %v5248
      %v5268 = vpack.c.bf16 %v5251, %v5250
      %v5269 = vpack.c.bf16 %v5253, %v5252
      %s5270 = scalar_lea.vmem %s6, 384
      %v5271 = vld [vmem:[%s5270] sm:$0xf]
      %v5272 = vld [vmem:[%s5270 + $0x4] sm:$0xf]
      %v5273 = vld [vmem:[%s5270 + $0x8] sm:$0xf]
      %v5274 = vld [vmem:[%s5270 + $0xc] sm:$0xf]
      %v5275 = vld [vmem:[%s5270 + $0x10] sm:$0xf]
      %v5276 = vld [vmem:[%s5270 + $0x14] sm:$0xf]
      %v5277 = vld [vmem:[%s5270 + $0x18] sm:$0xf]
      %v5278 = vld [vmem:[%s5270 + $0x1c] sm:$0xf]
      %v5279 = vld [vmem:[%s5270 + $0x20] sm:$0xf]
      %v5280 = vld [vmem:[%s5270 + $0x24] sm:$0xf]
      %v5281 = vld [vmem:[%s5270 + $0x28] sm:$0xf]
      %v5282 = vld [vmem:[%s5270 + $0x2c] sm:$0xf]
      %v5283 = vld [vmem:[%s5270 + $0x30] sm:$0xf]
      %v5284 = vld [vmem:[%s5270 + $0x34] sm:$0xf]
      %v5285 = vld [vmem:[%s5270 + $0x38] sm:$0xf]
      %v5286 = vld [vmem:[%s5270 + $0x3c] sm:$0xf]
      %v5303 = vunpack.c.l.b16 %v5271
      %v5304 = vunpack.c.l.b16 %v5272
      %v5305 = vunpack.c.l.b16 %v5273
      %v5306 = vunpack.c.l.b16 %v5274
      %v5307 = vunpack.c.l.b16 %v5275
      %v5308 = vunpack.c.l.b16 %v5276
      %v5309 = vunpack.c.l.b16 %v5277
      %v5310 = vunpack.c.l.b16 %v5278
      %v5311 = vunpack.c.l.b16 %v5279
      %v5312 = vunpack.c.l.b16 %v5280
      %v5313 = vunpack.c.l.b16 %v5281
      %v5314 = vunpack.c.l.b16 %v5282
      %v5315 = vunpack.c.l.b16 %v5283
      %v5316 = vunpack.c.l.b16 %v5284
      %v5317 = vunpack.c.l.b16 %v5285
      %v5318 = vunpack.c.l.b16 %v5286
      %v5319 = vpack.c.b16 %v5304, %v5303
      %v5320 = vpack.c.b16 %v5306, %v5305
      %v5321 = vpack.c.b16 %v5308, %v5307
      %v5322 = vpack.c.b16 %v5310, %v5309
      %v5323 = vpack.c.b16 %v5312, %v5311
      %v5324 = vpack.c.b16 %v5314, %v5313
      %v5325 = vpack.c.b16 %v5316, %v5315
      %v5326 = vpack.c.b16 %v5318, %v5317
      %5335 = vmatprep.subr.bf16.mxu0 0
      %5336 = vmatpush1.bf16.msra.mxu0 %v5319
      %5337 = vmatprep.subr.bf16.mxu0 0
      %5338 = vmatpush1.bf16.msra.mxu0 %v5320
      %5339 = vmatprep.subr.bf16.mxu0 0
      %5340 = vmatpush1.bf16.msra.mxu0 %v5321
      %5341 = vmatprep.subr.bf16.mxu0 0
      %5342 = vmatpush1.bf16.msra.mxu0 %v5322
      %5343 = vmatprep.subr.bf16.mxu0 0
      %5344 = vmatpush1.bf16.msra.mxu0 %v5323
      %5345 = vmatprep.subr.bf16.mxu0 0
      %5346 = vmatpush1.bf16.msra.mxu0 %v5324
      %5347 = vmatprep.subr.bf16.mxu0 0
      %5348 = vmatpush1.bf16.msra.mxu0 %v5325
      %5349 = vmatprep.subr.bf16.mxu0 0
      %5350 = vmatpush1.bf16.msra.mxu0 %v5326
      %5351 = vmatprep.subr.bf16.mxu0 0
      %5352 = vmatpush1.bf16.msra.mxu0 0
      %5353 = vmatprep.subr.bf16.mxu0 0
      %5354 = vmatpush1.bf16.msra.mxu0 0
      %5355 = vmatprep.subr.bf16.mxu0 0
      %5356 = vmatpush1.bf16.msra.mxu0 0
      %5357 = vmatprep.subr.bf16.mxu0 0
      %5358 = vmatpush1.bf16.msra.mxu0 0
      %5359 = vmatprep.subr.bf16.mxu0 0
      %5360 = vmatpush1.bf16.msra.mxu0 0
      %5361 = vmatprep.subr.bf16.mxu0 0
      %5362 = vmatpush1.bf16.msra.mxu0 0
      %5363 = vmatprep.subr.bf16.mxu0 0
      %5364 = vmatpush1.bf16.msra.mxu0 0
      %5365 = vmatprep.subr.bf16.mxu0 0
      %5366 = vmatpush1.bf16.msra.mxu0 0
      %5367 = vmatprep.mubr.bf16.mxu0 0
      %5368 = vmatmul.mubr.bf16.gmra.mrb[0].mxu0 %v5254
      %v5369 = vpop.f32.mrb[0].mxu0
      %v5370 = vadd.f32 0.0, %v5369
      %v5371 = vpop.f32.mrb[0].mxu0
      %v5372 = vpop.f32.mrb[0].mxu0
      %v5373 = vadd.f32 0.0, %v5372
      %v5374 = vpop.f32.mrb[0].mxu0
      %5375 = vmatprep.mubr.bf16.mxu0 0
      %5376 = vmatmul.mubr.bf16.gmra.mrb[0].mxu0 %v5255
      %v5377 = vpop.f32.mrb[0].mxu0
      %v5378 = vadd.f32 0.0, %v5377
      %v5379 = vpop.f32.mrb[0].mxu0
      %v5380 = vpop.f32.mrb[0].mxu0
      %v5381 = vadd.f32 0.0, %v5380
      %v5382 = vpop.f32.mrb[0].mxu0
      %5383 = vmatprep.mubr.bf16.mxu0 0
      %5384 = vmatmul.mubr.bf16.gmra.mrb[0].mxu0 %v5256
      %v5385 = vpop.f32.mrb[0].mxu0
      %v5386 = vadd.f32 0.0, %v5385
      %v5387 = vpop.f32.mrb[0].mxu0
      %v5388 = vpop.f32.mrb[0].mxu0
      %v5389 = vadd.f32 0.0, %v5388
      %v5390 = vpop.f32.mrb[0].mxu0
      %5391 = vmatprep.mubr.bf16.mxu0 0
      %5392 = vmatmul.mubr.bf16.gmra.mrb[0].mxu0 %v5257
      %v5393 = vpop.f32.mrb[0].mxu0
      %v5394 = vadd.f32 0.0, %v5393
      %v5395 = vpop.f32.mrb[0].mxu0
      %v5396 = vpop.f32.mrb[0].mxu0
      %v5397 = vadd.f32 0.0, %v5396
      %v5398 = vpop.f32.mrb[0].mxu0
      %5399 = vmatprep.mubr.bf16.mxu0 0
      %5400 = vmatmul.mubr.bf16.gmra.mrb[0].mxu0 %v5258
      %v5401 = vpop.f32.mrb[0].mxu0
      %v5402 = vadd.f32 0.0, %v5401
      %v5403 = vpop.f32.mrb[0].mxu0
      %v5404 = vpop.f32.mrb[0].mxu0
      %v5405 = vadd.f32 0.0, %v5404
      %v5406 = vpop.f32.mrb[0].mxu0
      %5407 = vmatprep.mubr.bf16.mxu0 0
      %5408 = vmatmul.mubr.bf16.gmra.mrb[0].mxu0 %v5259
      %v5409 = vpop.f32.mrb[0].mxu0
      %v5410 = vadd.f32 0.0, %v5409
      %v5411 = vpop.f32.mrb[0].mxu0
      %v5412 = vpop.f32.mrb[0].mxu0
      %v5413 = vadd.f32 0.0, %v5412
      %v5414 = vpop.f32.mrb[0].mxu0
      %5415 = vmatprep.mubr.bf16.mxu0 0
      %5416 = vmatmul.mubr.bf16.gmra.mrb[0].mxu0 %v5260
      %v5417 = vpop.f32.mrb[0].mxu0
      %v5418 = vadd.f32 0.0, %v5417
      %v5419 = vpop.f32.mrb[0].mxu0
      %v5420 = vpop.f32.mrb[0].mxu0
      %v5421 = vadd.f32 0.0, %v5420
      %v5422 = vpop.f32.mrb[0].mxu0
      %5423 = vmatprep.mubr.bf16.mxu0 0
      %5424 = vmatmul.mubr.bf16.gmra.mrb[0].mxu0 %v5261
      %v5425 = vpop.f32.mrb[0].mxu0
      %v5426 = vadd.f32 0.0, %v5425
      %v5427 = vpop.f32.mrb[0].mxu0
      %v5428 = vpop.f32.mrb[0].mxu0
      %v5429 = vadd.f32 0.0, %v5428
      %v5430 = vpop.f32.mrb[0].mxu0
      %5431 = vmatprep.mubr.bf16.mxu0 0
      %5432 = vmatmul.mubr.bf16.gmra.mrb[0].mxu0 %v5262
      %v5433 = vpop.f32.mrb[0].mxu0
      %v5434 = vadd.f32 0.0, %v5433
      %v5435 = vpop.f32.mrb[0].mxu0
      %v5436 = vpop.f32.mrb[0].mxu0
      %v5437 = vadd.f32 0.0, %v5436
      %v5438 = vpop.f32.mrb[0].mxu0
      %5439 = vmatprep.mubr.bf16.mxu0 0
      %5440 = vmatmul.mubr.bf16.gmra.mrb[0].mxu0 %v5263
      %v5441 = vpop.f32.mrb[0].mxu0
      %v5442 = vadd.f32 0.0, %v5441
      %v5443 = vpop.f32.mrb[0].mxu0
      %v5444 = vpop.f32.mrb[0].mxu0
      %v5445 = vadd.f32 0.0, %v5444
      %v5446 = vpop.f32.mrb[0].mxu0
      %5447 = vmatprep.mubr.bf16.mxu0 0
      %5448 = vmatmul.mubr.bf16.gmra.mrb[0].mxu0 %v5264
      %v5449 = vpop.f32.mrb[0].mxu0
      %v5450 = vadd.f32 0.0, %v5449
      %v5451 = vpop.f32.mrb[0].mxu0
      %v5452 = vpop.f32.mrb[0].mxu0
      %v5453 = vadd.f32 0.0, %v5452
      %v5454 = vpop.f32.mrb[0].mxu0
      %5455 = vmatprep.mubr.bf16.mxu0 0
      %5456 = vmatmul.mubr.bf16.gmra.mrb[0].mxu0 %v5265
      %v5457 = vpop.f32.mrb[0].mxu0
      %v5458 = vadd.f32 0.0, %v5457
      %v5459 = vpop.f32.mrb[0].mxu0
      %v5460 = vpop.f32.mrb[0].mxu0
      %v5461 = vadd.f32 0.0, %v5460
      %v5462 = vpop.f32.mrb[0].mxu0
      %5463 = vmatprep.mubr.bf16.mxu0 0
      %5464 = vmatmul.mubr.bf16.gmra.mrb[0].mxu0 %v5266
      %v5465 = vpop.f32.mrb[0].mxu0
      %v5466 = vadd.f32 0.0, %v5465
      %v5467 = vpop.f32.mrb[0].mxu0
      %v5468 = vpop.f32.mrb[0].mxu0
      %v5469 = vadd.f32 0.0, %v5468
      %v5470 = vpop.f32.mrb[0].mxu0
      %5471 = vmatprep.mubr.bf16.mxu0 0
      %5472 = vmatmul.mubr.bf16.gmra.mrb[0].mxu0 %v5267
      %v5473 = vpop.f32.mrb[0].mxu0
      %v5474 = vadd.f32 0.0, %v5473
      %v5475 = vpop.f32.mrb[0].mxu0
      %v5476 = vpop.f32.mrb[0].mxu0
      %v5477 = vadd.f32 0.0, %v5476
      %v5478 = vpop.f32.mrb[0].mxu0
      %5479 = vmatprep.mubr.bf16.mxu0 0
      %5480 = vmatmul.mubr.bf16.gmra.mrb[0].mxu0 %v5268
      %v5481 = vpop.f32.mrb[0].mxu0
      %v5482 = vadd.f32 0.0, %v5481
      %v5483 = vpop.f32.mrb[0].mxu0
      %v5484 = vpop.f32.mrb[0].mxu0
      %v5485 = vadd.f32 0.0, %v5484
      %v5486 = vpop.f32.mrb[0].mxu0
      %5487 = vmatprep.mubr.bf16.mxu0 0
      %5488 = vmatmul.mubr.bf16.gmra.mrb[0].mxu0 %v5269
      %v5489 = vpop.f32.mrb[0].mxu0
      %v5490 = vadd.f32 0.0, %v5489
      %v5491 = vpop.f32.mrb[0].mxu0
      %v5492 = vpop.f32.mrb[0].mxu0
      %v5493 = vadd.f32 0.0, %v5492
      %v5494 = vpop.f32.mrb[0].mxu0
      %5495 = vdwg.mxu0
      %v5496 = vadd.f32 %v5189, %v5370
      %v5497 = vadd.f32 %v5190, %v5373
      %v5498 = vadd.f32 %v5191, %v5378
      %v5499 = vadd.f32 %v5192, %v5381
      %v5500 = vadd.f32 %v5193, %v5386
      %v5501 = vadd.f32 %v5194, %v5389
      %v5502 = vadd.f32 %v5195, %v5394
      %v5503 = vadd.f32 %v5196, %v5397
      %v5504 = vadd.f32 %v5197, %v5402
      %v5505 = vadd.f32 %v5198, %v5405
      %v5506 = vadd.f32 %v5199, %v5410
      %v5507 = vadd.f32 %v5200, %v5413
      %v5508 = vadd.f32 %v5201, %v5418
      %v5509 = vadd.f32 %v5202, %v5421
      %v5510 = vadd.f32 %v5203, %v5426
      %v5511 = vadd.f32 %v5204, %v5429
      %v5512 = vadd.f32 %v5205, %v5434
      %v5513 = vadd.f32 %v5206, %v5437
      %v5514 = vadd.f32 %v5207, %v5442
      %v5515 = vadd.f32 %v5208, %v5445
      %v5516 = vadd.f32 %v5209, %v5450
      %v5517 = vadd.f32 %v5210, %v5453
      %v5518 = vadd.f32 %v5211, %v5458
      %v5519 = vadd.f32 %v5212, %v5461
      %v5520 = vadd.f32 %v5213, %v5466
      %v5521 = vadd.f32 %v5214, %v5469
      %v5522 = vadd.f32 %v5215, %v5474
      %v5523 = vadd.f32 %v5216, %v5477
      %v5524 = vadd.f32 %v5217, %v5482
      %v5525 = vadd.f32 %v5218, %v5485
      %v5526 = vadd.f32 %v5219, %v5490
      %v5527 = vadd.f32 %v5220, %v5493
      %v5528 = vld [vmem:[%s5221 + $0x1] sm:$0xff]
      %v5529 = vld [vmem:[%s5221 + $0x9] sm:$0xff]
      %v5530 = vld [vmem:[%s5221 + $0x19] sm:$0xff]
      %v5531 = vld [vmem:[%s5221 + $0x21] sm:$0xff]
      %v5532 = vld [vmem:[%s5221 + $0x31] sm:$0xff]
      %v5533 = vld [vmem:[%s5221 + $0x39] sm:$0xff]
      %v5534 = vld [vmem:[%s5221 + $0x49] sm:$0xff]
      %v5535 = vld [vmem:[%s5221 + $0x51] sm:$0xff]
      %v5536 = vld [vmem:[%s5221 + $0x61] sm:$0xff]
      %v5537 = vld [vmem:[%s5221 + $0x69] sm:$0xff]
      %v5538 = vld [vmem:[%s5221 + $0x79] sm:$0xff]
      %v5539 = vld [vmem:[%s5221 + $0x81] sm:$0xff]
      %v5540 = vld [vmem:[%s5221 + $0x91] sm:$0xff]
      %v5541 = vld [vmem:[%s5221 + $0x99] sm:$0xff]
      %v5542 = vld [vmem:[%s5221 + $0xa9] sm:$0xff]
      %v5543 = vld [vmem:[%s5221 + $0xb1] sm:$0xff]
      %v5544 = vld [vmem:[%s5221 + $0xc1] sm:$0xff]
      %v5545 = vld [vmem:[%s5221 + $0xc9] sm:$0xff]
      %v5546 = vld [vmem:[%s5221 + $0xd9] sm:$0xff]
      %v5547 = vld [vmem:[%s5221 + $0xe1] sm:$0xff]
      %v5548 = vld [vmem:[%s5221 + $0xf1] sm:$0xff]
      %v5549 = vld [vmem:[%s5221 + $0xf9] sm:$0xff]
      %v5550 = vld [vmem:[%s5221 + $0x109] sm:$0xff]
      %v5551 = vld [vmem:[%s5221 + $0x111] sm:$0xff]
      %v5552 = vld [vmem:[%s5221 + $0x121] sm:$0xff]
      %v5553 = vld [vmem:[%s5221 + $0x129] sm:$0xff]
      %v5554 = vld [vmem:[%s5221 + $0x139] sm:$0xff]
      %v5555 = vld [vmem:[%s5221 + $0x141] sm:$0xff]
      %v5556 = vld [vmem:[%s5221 + $0x151] sm:$0xff]
      %v5557 = vld [vmem:[%s5221 + $0x159] sm:$0xff]
      %v5558 = vld [vmem:[%s5221 + $0x169] sm:$0xff]
      %v5559 = vld [vmem:[%s5221 + $0x171] sm:$0xff]
      %v5560 = vpack.c.bf16 %v5529, %v5528
      %v5561 = vpack.c.bf16 %v5531, %v5530
      %v5562 = vpack.c.bf16 %v5533, %v5532
      %v5563 = vpack.c.bf16 %v5535, %v5534
      %v5564 = vpack.c.bf16 %v5537, %v5536
      %v5565 = vpack.c.bf16 %v5539, %v5538
      %v5566 = vpack.c.bf16 %v5541, %v5540
      %v5567 = vpack.c.bf16 %v5543, %v5542
      %v5568 = vpack.c.bf16 %v5545, %v5544
      %v5569 = vpack.c.bf16 %v5547, %v5546
      %v5570 = vpack.c.bf16 %v5549, %v5548
      %v5571 = vpack.c.bf16 %v5551, %v5550
      %v5572 = vpack.c.bf16 %v5553, %v5552
      %v5573 = vpack.c.bf16 %v5555, %v5554
      %v5574 = vpack.c.bf16 %v5557, %v5556
      %v5575 = vpack.c.bf16 %v5559, %v5558
      %s5576 = scalar_lea.vmem %s6, 448
      %v5577 = vld [vmem:[%s5576] sm:$0xf]
      %v5578 = vld [vmem:[%s5576 + $0x4] sm:$0xf]
      %v5579 = vld [vmem:[%s5576 + $0x8] sm:$0xf]
      %v5580 = vld [vmem:[%s5576 + $0xc] sm:$0xf]
      %v5581 = vld [vmem:[%s5576 + $0x10] sm:$0xf]
      %v5582 = vld [vmem:[%s5576 + $0x14] sm:$0xf]
      %v5583 = vld [vmem:[%s5576 + $0x18] sm:$0xf]
      %v5584 = vld [vmem:[%s5576 + $0x1c] sm:$0xf]
      %v5585 = vld [vmem:[%s5576 + $0x20] sm:$0xf]
      %v5586 = vld [vmem:[%s5576 + $0x24] sm:$0xf]
      %v5587 = vld [vmem:[%s5576 + $0x28] sm:$0xf]
      %v5588 = vld [vmem:[%s5576 + $0x2c] sm:$0xf]
      %v5589 = vld [vmem:[%s5576 + $0x30] sm:$0xf]
      %v5590 = vld [vmem:[%s5576 + $0x34] sm:$0xf]
      %v5591 = vld [vmem:[%s5576 + $0x38] sm:$0xf]
      %v5592 = vld [vmem:[%s5576 + $0x3c] sm:$0xf]
      %v5609 = vunpack.c.l.b16 %v5577
      %v5610 = vunpack.c.l.b16 %v5578
      %v5611 = vunpack.c.l.b16 %v5579
      %v5612 = vunpack.c.l.b16 %v5580
      %v5613 = vunpack.c.l.b16 %v5581
      %v5614 = vunpack.c.l.b16 %v5582
      %v5615 = vunpack.c.l.b16 %v5583
      %v5616 = vunpack.c.l.b16 %v5584
      %v5617 = vunpack.c.l.b16 %v5585
      %v5618 = vunpack.c.l.b16 %v5586
      %v5619 = vunpack.c.l.b16 %v5587
      %v5620 = vunpack.c.l.b16 %v5588
      %v5621 = vunpack.c.l.b16 %v5589
      %v5622 = vunpack.c.l.b16 %v5590
      %v5623 = vunpack.c.l.b16 %v5591
      %v5624 = vunpack.c.l.b16 %v5592
      %v5625 = vpack.c.b16 %v5610, %v5609
      %v5626 = vpack.c.b16 %v5612, %v5611
      %v5627 = vpack.c.b16 %v5614, %v5613
      %v5628 = vpack.c.b16 %v5616, %v5615
      %v5629 = vpack.c.b16 %v5618, %v5617
      %v5630 = vpack.c.b16 %v5620, %v5619
      %v5631 = vpack.c.b16 %v5622, %v5621
      %v5632 = vpack.c.b16 %v5624, %v5623
      %5641 = vmatprep.subr.bf16.mxu0 0
      %5642 = vmatpush1.bf16.msra.mxu0 %v5625
      %5643 = vmatprep.subr.bf16.mxu0 0
      %5644 = vmatpush1.bf16.msra.mxu0 %v5626
      %5645 = vmatprep.subr.bf16.mxu0 0
      %5646 = vmatpush1.bf16.msra.mxu0 %v5627
      %5647 = vmatprep.subr.bf16.mxu0 0
      %5648 = vmatpush1.bf16.msra.mxu0 %v5628
      %5649 = vmatprep.subr.bf16.mxu0 0
      %5650 = vmatpush1.bf16.msra.mxu0 %v5629
      %5651 = vmatprep.subr.bf16.mxu0 0
      %5652 = vmatpush1.bf16.msra.mxu0 %v5630
      %5653 = vmatprep.subr.bf16.mxu0 0
      %5654 = vmatpush1.bf16.msra.mxu0 %v5631
      %5655 = vmatprep.subr.bf16.mxu0 0
      %5656 = vmatpush1.bf16.msra.mxu0 %v5632
      %5657 = vmatprep.subr.bf16.mxu0 0
      %5658 = vmatpush1.bf16.msra.mxu0 0
      %5659 = vmatprep.subr.bf16.mxu0 0
      %5660 = vmatpush1.bf16.msra.mxu0 0
      %5661 = vmatprep.subr.bf16.mxu0 0
      %5662 = vmatpush1.bf16.msra.mxu0 0
      %5663 = vmatprep.subr.bf16.mxu0 0
      %5664 = vmatpush1.bf16.msra.mxu0 0
      %5665 = vmatprep.subr.bf16.mxu0 0
      %5666 = vmatpush1.bf16.msra.mxu0 0
      %5667 = vmatprep.subr.bf16.mxu0 0
      %5668 = vmatpush1.bf16.msra.mxu0 0
      %5669 = vmatprep.subr.bf16.mxu0 0
      %5670 = vmatpush1.bf16.msra.mxu0 0
      %5671 = vmatprep.subr.bf16.mxu0 0
      %5672 = vmatpush1.bf16.msra.mxu0 0
      %5673 = vmatprep.mubr.bf16.mxu0 0
      %5674 = vmatmul.mubr.bf16.gmra.mrb[0].mxu0 %v5560
      %v5675 = vpop.f32.mrb[0].mxu0
      %v5676 = vadd.f32 0.0, %v5675
      %v5677 = vpop.f32.mrb[0].mxu0
      %v5678 = vpop.f32.mrb[0].mxu0
      %v5679 = vadd.f32 0.0, %v5678
      %v5680 = vpop.f32.mrb[0].mxu0
      %5681 = vmatprep.mubr.bf16.mxu0 0
      %5682 = vmatmul.mubr.bf16.gmra.mrb[0].mxu0 %v5561
      %v5683 = vpop.f32.mrb[0].mxu0
      %v5684 = vadd.f32 0.0, %v5683
      %v5685 = vpop.f32.mrb[0].mxu0
      %v5686 = vpop.f32.mrb[0].mxu0
      %v5687 = vadd.f32 0.0, %v5686
      %v5688 = vpop.f32.mrb[0].mxu0
      %5689 = vmatprep.mubr.bf16.mxu0 0
      %5690 = vmatmul.mubr.bf16.gmra.mrb[0].mxu0 %v5562
      %v5691 = vpop.f32.mrb[0].mxu0
      %v5692 = vadd.f32 0.0, %v5691
      %v5693 = vpop.f32.mrb[0].mxu0
      %v5694 = vpop.f32.mrb[0].mxu0
      %v5695 = vadd.f32 0.0, %v5694
      %v5696 = vpop.f32.mrb[0].mxu0
      %5697 = vmatprep.mubr.bf16.mxu0 0
      %5698 = vmatmul.mubr.bf16.gmra.mrb[0].mxu0 %v5563
      %v5699 = vpop.f32.mrb[0].mxu0
      %v5700 = vadd.f32 0.0, %v5699
      %v5701 = vpop.f32.mrb[0].mxu0
      %v5702 = vpop.f32.mrb[0].mxu0
      %v5703 = vadd.f32 0.0, %v5702
      %v5704 = vpop.f32.mrb[0].mxu0
      %5705 = vmatprep.mubr.bf16.mxu0 0
      %5706 = vmatmul.mubr.bf16.gmra.mrb[0].mxu0 %v5564
      %v5707 = vpop.f32.mrb[0].mxu0
      %v5708 = vadd.f32 0.0, %v5707
      %v5709 = vpop.f32.mrb[0].mxu0
      %v5710 = vpop.f32.mrb[0].mxu0
      %v5711 = vadd.f32 0.0, %v5710
      %v5712 = vpop.f32.mrb[0].mxu0
      %5713 = vmatprep.mubr.bf16.mxu0 0
      %5714 = vmatmul.mubr.bf16.gmra.mrb[0].mxu0 %v5565
      %v5715 = vpop.f32.mrb[0].mxu0
      %v5716 = vadd.f32 0.0, %v5715
      %v5717 = vpop.f32.mrb[0].mxu0
      %v5718 = vpop.f32.mrb[0].mxu0
      %v5719 = vadd.f32 0.0, %v5718
      %v5720 = vpop.f32.mrb[0].mxu0
      %5721 = vmatprep.mubr.bf16.mxu0 0
      %5722 = vmatmul.mubr.bf16.gmra.mrb[0].mxu0 %v5566
      %v5723 = vpop.f32.mrb[0].mxu0
      %v5724 = vadd.f32 0.0, %v5723
      %v5725 = vpop.f32.mrb[0].mxu0
      %v5726 = vpop.f32.mrb[0].mxu0
      %v5727 = vadd.f32 0.0, %v5726
      %v5728 = vpop.f32.mrb[0].mxu0
      %5729 = vmatprep.mubr.bf16.mxu0 0
      %5730 = vmatmul.mubr.bf16.gmra.mrb[0].mxu0 %v5567
      %v5731 = vpop.f32.mrb[0].mxu0
      %v5732 = vadd.f32 0.0, %v5731
      %v5733 = vpop.f32.mrb[0].mxu0
      %v5734 = vpop.f32.mrb[0].mxu0
      %v5735 = vadd.f32 0.0, %v5734
      %v5736 = vpop.f32.mrb[0].mxu0
      %5737 = vmatprep.mubr.bf16.mxu0 0
      %5738 = vmatmul.mubr.bf16.gmra.mrb[0].mxu0 %v5568
      %v5739 = vpop.f32.mrb[0].mxu0
      %v5740 = vadd.f32 0.0, %v5739
      %v5741 = vpop.f32.mrb[0].mxu0
      %v5742 = vpop.f32.mrb[0].mxu0
      %v5743 = vadd.f32 0.0, %v5742
      %v5744 = vpop.f32.mrb[0].mxu0
      %5745 = vmatprep.mubr.bf16.mxu0 0
      %5746 = vmatmul.mubr.bf16.gmra.mrb[0].mxu0 %v5569
      %v5747 = vpop.f32.mrb[0].mxu0
      %v5748 = vadd.f32 0.0, %v5747
      %v5749 = vpop.f32.mrb[0].mxu0
      %v5750 = vpop.f32.mrb[0].mxu0
      %v5751 = vadd.f32 0.0, %v5750
      %v5752 = vpop.f32.mrb[0].mxu0
      %5753 = vmatprep.mubr.bf16.mxu0 0
      %5754 = vmatmul.mubr.bf16.gmra.mrb[0].mxu0 %v5570
      %v5755 = vpop.f32.mrb[0].mxu0
      %v5756 = vadd.f32 0.0, %v5755
      %v5757 = vpop.f32.mrb[0].mxu0
      %v5758 = vpop.f32.mrb[0].mxu0
      %v5759 = vadd.f32 0.0, %v5758
      %v5760 = vpop.f32.mrb[0].mxu0
      %5761 = vmatprep.mubr.bf16.mxu0 0
      %5762 = vmatmul.mubr.bf16.gmra.mrb[0].mxu0 %v5571
      %v5763 = vpop.f32.mrb[0].mxu0
      %v5764 = vadd.f32 0.0, %v5763
      %v5765 = vpop.f32.mrb[0].mxu0
      %v5766 = vpop.f32.mrb[0].mxu0
      %v5767 = vadd.f32 0.0, %v5766
      %v5768 = vpop.f32.mrb[0].mxu0
      %5769 = vmatprep.mubr.bf16.mxu0 0
      %5770 = vmatmul.mubr.bf16.gmra.mrb[0].mxu0 %v5572
      %v5771 = vpop.f32.mrb[0].mxu0
      %v5772 = vadd.f32 0.0, %v5771
      %v5773 = vpop.f32.mrb[0].mxu0
      %v5774 = vpop.f32.mrb[0].mxu0
      %v5775 = vadd.f32 0.0, %v5774
      %v5776 = vpop.f32.mrb[0].mxu0
      %5777 = vmatprep.mubr.bf16.mxu0 0
      %5778 = vmatmul.mubr.bf16.gmra.mrb[0].mxu0 %v5573
      %v5779 = vpop.f32.mrb[0].mxu0
      %v5780 = vadd.f32 0.0, %v5779
      %v5781 = vpop.f32.mrb[0].mxu0
      %v5782 = vpop.f32.mrb[0].mxu0
      %v5783 = vadd.f32 0.0, %v5782
      %v5784 = vpop.f32.mrb[0].mxu0
      %5785 = vmatprep.mubr.bf16.mxu0 0
      %5786 = vmatmul.mubr.bf16.gmra.mrb[0].mxu0 %v5574
      %v5787 = vpop.f32.mrb[0].mxu0
      %v5788 = vadd.f32 0.0, %v5787
      %v5789 = vpop.f32.mrb[0].mxu0
      %v5790 = vpop.f32.mrb[0].mxu0
      %v5791 = vadd.f32 0.0, %v5790
      %v5792 = vpop.f32.mrb[0].mxu0
      %5793 = vmatprep.mubr.bf16.mxu0 0
      %5794 = vmatmul.mubr.bf16.gmra.mrb[0].mxu0 %v5575
      %v5795 = vpop.f32.mrb[0].mxu0
      %v5796 = vadd.f32 0.0, %v5795
      %v5797 = vpop.f32.mrb[0].mxu0
      %v5798 = vpop.f32.mrb[0].mxu0
      %v5799 = vadd.f32 0.0, %v5798
      %v5800 = vpop.f32.mrb[0].mxu0
      %5801 = vdwg.mxu0
      %v5802 = vadd.f32 %v5496, %v5676
      %v5803 = vadd.f32 %v5497, %v5679
      %v5804 = vadd.f32 %v5498, %v5684
      %v5805 = vadd.f32 %v5499, %v5687
      %v5806 = vadd.f32 %v5500, %v5692
      %v5807 = vadd.f32 %v5501, %v5695
      %v5808 = vadd.f32 %v5502, %v5700
      %v5809 = vadd.f32 %v5503, %v5703
      %v5810 = vadd.f32 %v5504, %v5708
      %v5811 = vadd.f32 %v5505, %v5711
      %v5812 = vadd.f32 %v5506, %v5716
      %v5813 = vadd.f32 %v5507, %v5719
      %v5814 = vadd.f32 %v5508, %v5724
      %v5815 = vadd.f32 %v5509, %v5727
      %v5816 = vadd.f32 %v5510, %v5732
      %v5817 = vadd.f32 %v5511, %v5735
      %v5818 = vadd.f32 %v5512, %v5740
      %v5819 = vadd.f32 %v5513, %v5743
      %v5820 = vadd.f32 %v5514, %v5748
      %v5821 = vadd.f32 %v5515, %v5751
      %v5822 = vadd.f32 %v5516, %v5756
      %v5823 = vadd.f32 %v5517, %v5759
      %v5824 = vadd.f32 %v5518, %v5764
      %v5825 = vadd.f32 %v5519, %v5767
      %v5826 = vadd.f32 %v5520, %v5772
      %v5827 = vadd.f32 %v5521, %v5775
      %v5828 = vadd.f32 %v5522, %v5780
      %v5829 = vadd.f32 %v5523, %v5783
      %v5830 = vadd.f32 %v5524, %v5788
      %v5831 = vadd.f32 %v5525, %v5791
      %v5832 = vadd.f32 %v5526, %v5796
      %v5833 = vadd.f32 %v5527, %v5799
      %v5834 = vld [vmem:[%s5221 + $0x2] sm:$0xff]
      %v5835 = vld [vmem:[%s5221 + $0xa] sm:$0xff]
      %v5836 = vld [vmem:[%s5221 + $0x1a] sm:$0xff]
      %v5837 = vld [vmem:[%s5221 + $0x22] sm:$0xff]
      %v5838 = vld [vmem:[%s5221 + $0x32] sm:$0xff]
      %v5839 = vld [vmem:[%s5221 + $0x3a] sm:$0xff]
      %v5840 = vld [vmem:[%s5221 + $0x4a] sm:$0xff]
      %v5841 = vld [vmem:[%s5221 + $0x52] sm:$0xff]
      %v5842 = vld [vmem:[%s5221 + $0x62] sm:$0xff]
      %v5843 = vld [vmem:[%s5221 + $0x6a] sm:$0xff]
      %v5844 = vld [vmem:[%s5221 + $0x7a] sm:$0xff]
      %v5845 = vld [vmem:[%s5221 + $0x82] sm:$0xff]
      %v5846 = vld [vmem:[%s5221 + $0x92] sm:$0xff]
      %v5847 = vld [vmem:[%s5221 + $0x9a] sm:$0xff]
      %v5848 = vld [vmem:[%s5221 + $0xaa] sm:$0xff]
      %v5849 = vld [vmem:[%s5221 + $0xb2] sm:$0xff]
      %v5850 = vld [vmem:[%s5221 + $0xc2] sm:$0xff]
      %v5851 = vld [vmem:[%s5221 + $0xca] sm:$0xff]
      %v5852 = vld [vmem:[%s5221 + $0xda] sm:$0xff]
      %v5853 = vld [vmem:[%s5221 + $0xe2] sm:$0xff]
      %v5854 = vld [vmem:[%s5221 + $0xf2] sm:$0xff]
      %v5855 = vld [vmem:[%s5221 + $0xfa] sm:$0xff]
      %v5856 = vld [vmem:[%s5221 + $0x10a] sm:$0xff]
      %v5857 = vld [vmem:[%s5221 + $0x112] sm:$0xff]
      %v5858 = vld [vmem:[%s5221 + $0x122] sm:$0xff]
      %v5859 = vld [vmem:[%s5221 + $0x12a] sm:$0xff]
      %v5860 = vld [vmem:[%s5221 + $0x13a] sm:$0xff]
      %v5861 = vld [vmem:[%s5221 + $0x142] sm:$0xff]
      %v5862 = vld [vmem:[%s5221 + $0x152] sm:$0xff]
      %v5863 = vld [vmem:[%s5221 + $0x15a] sm:$0xff]
      %v5864 = vld [vmem:[%s5221 + $0x16a] sm:$0xff]
      %v5865 = vld [vmem:[%s5221 + $0x172] sm:$0xff]
      %v5866 = vpack.c.bf16 %v5835, %v5834
      %v5867 = vpack.c.bf16 %v5837, %v5836
      %v5868 = vpack.c.bf16 %v5839, %v5838
      %v5869 = vpack.c.bf16 %v5841, %v5840
      %v5870 = vpack.c.bf16 %v5843, %v5842
      %v5871 = vpack.c.bf16 %v5845, %v5844
      %v5872 = vpack.c.bf16 %v5847, %v5846
      %v5873 = vpack.c.bf16 %v5849, %v5848
      %v5874 = vpack.c.bf16 %v5851, %v5850
      %v5875 = vpack.c.bf16 %v5853, %v5852
      %v5876 = vpack.c.bf16 %v5855, %v5854
      %v5877 = vpack.c.bf16 %v5857, %v5856
      %v5878 = vpack.c.bf16 %v5859, %v5858
      %v5879 = vpack.c.bf16 %v5861, %v5860
      %v5880 = vpack.c.bf16 %v5863, %v5862
      %v5881 = vpack.c.bf16 %v5865, %v5864
      %s5882 = scalar_lea.vmem %s6, 512
      %v5883 = vld [vmem:[%s5882] sm:$0xf]
      %v5884 = vld [vmem:[%s5882 + $0x4] sm:$0xf]
      %v5885 = vld [vmem:[%s5882 + $0x8] sm:$0xf]
      %v5886 = vld [vmem:[%s5882 + $0xc] sm:$0xf]
      %v5887 = vld [vmem:[%s5882 + $0x10] sm:$0xf]
      %v5888 = vld [vmem:[%s5882 + $0x14] sm:$0xf]
      %v5889 = vld [vmem:[%s5882 + $0x18] sm:$0xf]
      %v5890 = vld [vmem:[%s5882 + $0x1c] sm:$0xf]
      %v5891 = vld [vmem:[%s5882 + $0x20] sm:$0xf]
      %v5892 = vld [vmem:[%s5882 + $0x24] sm:$0xf]
      %v5893 = vld [vmem:[%s5882 + $0x28] sm:$0xf]
      %v5894 = vld [vmem:[%s5882 + $0x2c] sm:$0xf]
      %v5895 = vld [vmem:[%s5882 + $0x30] sm:$0xf]
      %v5896 = vld [vmem:[%s5882 + $0x34] sm:$0xf]
      %v5897 = vld [vmem:[%s5882 + $0x38] sm:$0xf]
      %v5898 = vld [vmem:[%s5882 + $0x3c] sm:$0xf]
      %v5915 = vunpack.c.l.b16 %v5883
      %v5916 = vunpack.c.l.b16 %v5884
      %v5917 = vunpack.c.l.b16 %v5885
      %v5918 = vunpack.c.l.b16 %v5886
      %v5919 = vunpack.c.l.b16 %v5887
      %v5920 = vunpack.c.l.b16 %v5888
      %v5921 = vunpack.c.l.b16 %v5889
      %v5922 = vunpack.c.l.b16 %v5890
      %v5923 = vunpack.c.l.b16 %v5891
      %v5924 = vunpack.c.l.b16 %v5892
      %v5925 = vunpack.c.l.b16 %v5893
      %v5926 = vunpack.c.l.b16 %v5894
      %v5927 = vunpack.c.l.b16 %v5895
      %v5928 = vunpack.c.l.b16 %v5896
      %v5929 = vunpack.c.l.b16 %v5897
      %v5930 = vunpack.c.l.b16 %v5898
      %v5931 = vpack.c.b16 %v5916, %v5915
      %v5932 = vpack.c.b16 %v5918, %v5917
      %v5933 = vpack.c.b16 %v5920, %v5919
      %v5934 = vpack.c.b16 %v5922, %v5921
      %v5935 = vpack.c.b16 %v5924, %v5923
      %v5936 = vpack.c.b16 %v5926, %v5925
      %v5937 = vpack.c.b16 %v5928, %v5927
      %v5938 = vpack.c.b16 %v5930, %v5929
      %5947 = vmatprep.subr.bf16.mxu0 0
      %5948 = vmatpush1.bf16.msra.mxu0 %v5931
      %5949 = vmatprep.subr.bf16.mxu0 0
      %5950 = vmatpush1.bf16.msra.mxu0 %v5932
      %5951 = vmatprep.subr.bf16.mxu0 0
      %5952 = vmatpush1.bf16.msra.mxu0 %v5933
      %5953 = vmatprep.subr.bf16.mxu0 0
      %5954 = vmatpush1.bf16.msra.mxu0 %v5934
      %5955 = vmatprep.subr.bf16.mxu0 0
      %5956 = vmatpush1.bf16.msra.mxu0 %v5935
      %5957 = vmatprep.subr.bf16.mxu0 0
      %5958 = vmatpush1.bf16.msra.mxu0 %v5936
      %5959 = vmatprep.subr.bf16.mxu0 0
      %5960 = vmatpush1.bf16.msra.mxu0 %v5937
      %5961 = vmatprep.subr.bf16.mxu0 0
      %5962 = vmatpush1.bf16.msra.mxu0 %v5938
      %5963 = vmatprep.subr.bf16.mxu0 0
      %5964 = vmatpush1.bf16.msra.mxu0 0
      %5965 = vmatprep.subr.bf16.mxu0 0
      %5966 = vmatpush1.bf16.msra.mxu0 0
      %5967 = vmatprep.subr.bf16.mxu0 0
      %5968 = vmatpush1.bf16.msra.mxu0 0
      %5969 = vmatprep.subr.bf16.mxu0 0
      %5970 = vmatpush1.bf16.msra.mxu0 0
      %5971 = vmatprep.subr.bf16.mxu0 0
      %5972 = vmatpush1.bf16.msra.mxu0 0
      %5973 = vmatprep.subr.bf16.mxu0 0
      %5974 = vmatpush1.bf16.msra.mxu0 0
      %5975 = vmatprep.subr.bf16.mxu0 0
      %5976 = vmatpush1.bf16.msra.mxu0 0
      %5977 = vmatprep.subr.bf16.mxu0 0
      %5978 = vmatpush1.bf16.msra.mxu0 0
      %5979 = vmatprep.mubr.bf16.mxu0 0
      %5980 = vmatmul.mubr.bf16.gmra.mrb[0].mxu0 %v5866
      %v5981 = vpop.f32.mrb[0].mxu0
      %v5982 = vadd.f32 0.0, %v5981
      %v5983 = vpop.f32.mrb[0].mxu0
      %v5984 = vpop.f32.mrb[0].mxu0
      %v5985 = vadd.f32 0.0, %v5984
      %v5986 = vpop.f32.mrb[0].mxu0
      %5987 = vmatprep.mubr.bf16.mxu0 0
      %5988 = vmatmul.mubr.bf16.gmra.mrb[0].mxu0 %v5867
      %v5989 = vpop.f32.mrb[0].mxu0
      %v5990 = vadd.f32 0.0, %v5989
      %v5991 = vpop.f32.mrb[0].mxu0
      %v5992 = vpop.f32.mrb[0].mxu0
      %v5993 = vadd.f32 0.0, %v5992
      %v5994 = vpop.f32.mrb[0].mxu0
      %5995 = vmatprep.mubr.bf16.mxu0 0
      %5996 = vmatmul.mubr.bf16.gmra.mrb[0].mxu0 %v5868
      %v5997 = vpop.f32.mrb[0].mxu0
      %v5998 = vadd.f32 0.0, %v5997
      %v5999 = vpop.f32.mrb[0].mxu0
      %v6000 = vpop.f32.mrb[0].mxu0
      %v6001 = vadd.f32 0.0, %v6000
      %v6002 = vpop.f32.mrb[0].mxu0
      %6003 = vmatprep.mubr.bf16.mxu0 0
      %6004 = vmatmul.mubr.bf16.gmra.mrb[0].mxu0 %v5869
      %v6005 = vpop.f32.mrb[0].mxu0
      %v6006 = vadd.f32 0.0, %v6005
      %v6007 = vpop.f32.mrb[0].mxu0
      %v6008 = vpop.f32.mrb[0].mxu0
      %v6009 = vadd.f32 0.0, %v6008
      %v6010 = vpop.f32.mrb[0].mxu0
      %6011 = vmatprep.mubr.bf16.mxu0 0
      %6012 = vmatmul.mubr.bf16.gmra.mrb[0].mxu0 %v5870
      %v6013 = vpop.f32.mrb[0].mxu0
      %v6014 = vadd.f32 0.0, %v6013
      %v6015 = vpop.f32.mrb[0].mxu0
      %v6016 = vpop.f32.mrb[0].mxu0
      %v6017 = vadd.f32 0.0, %v6016
      %v6018 = vpop.f32.mrb[0].mxu0
      %6019 = vmatprep.mubr.bf16.mxu0 0
      %6020 = vmatmul.mubr.bf16.gmra.mrb[0].mxu0 %v5871
      %v6021 = vpop.f32.mrb[0].mxu0
      %v6022 = vadd.f32 0.0, %v6021
      %v6023 = vpop.f32.mrb[0].mxu0
      %v6024 = vpop.f32.mrb[0].mxu0
      %v6025 = vadd.f32 0.0, %v6024
      %v6026 = vpop.f32.mrb[0].mxu0
      %6027 = vmatprep.mubr.bf16.mxu0 0
      %6028 = vmatmul.mubr.bf16.gmra.mrb[0].mxu0 %v5872
      %v6029 = vpop.f32.mrb[0].mxu0
      %v6030 = vadd.f32 0.0, %v6029
      %v6031 = vpop.f32.mrb[0].mxu0
      %v6032 = vpop.f32.mrb[0].mxu0
      %v6033 = vadd.f32 0.0, %v6032
      %v6034 = vpop.f32.mrb[0].mxu0
      %6035 = vmatprep.mubr.bf16.mxu0 0
      %6036 = vmatmul.mubr.bf16.gmra.mrb[0].mxu0 %v5873
      %v6037 = vpop.f32.mrb[0].mxu0
      %v6038 = vadd.f32 0.0, %v6037
      %v6039 = vpop.f32.mrb[0].mxu0
      %v6040 = vpop.f32.mrb[0].mxu0
      %v6041 = vadd.f32 0.0, %v6040
      %v6042 = vpop.f32.mrb[0].mxu0
      %6043 = vmatprep.mubr.bf16.mxu0 0
      %6044 = vmatmul.mubr.bf16.gmra.mrb[0].mxu0 %v5874
      %v6045 = vpop.f32.mrb[0].mxu0
      %v6046 = vadd.f32 0.0, %v6045
      %v6047 = vpop.f32.mrb[0].mxu0
      %v6048 = vpop.f32.mrb[0].mxu0
      %v6049 = vadd.f32 0.0, %v6048
      %v6050 = vpop.f32.mrb[0].mxu0
      %6051 = vmatprep.mubr.bf16.mxu0 0
      %6052 = vmatmul.mubr.bf16.gmra.mrb[0].mxu0 %v5875
      %v6053 = vpop.f32.mrb[0].mxu0
      %v6054 = vadd.f32 0.0, %v6053
      %v6055 = vpop.f32.mrb[0].mxu0
      %v6056 = vpop.f32.mrb[0].mxu0
      %v6057 = vadd.f32 0.0, %v6056
      %v6058 = vpop.f32.mrb[0].mxu0
      %6059 = vmatprep.mubr.bf16.mxu0 0
      %6060 = vmatmul.mubr.bf16.gmra.mrb[0].mxu0 %v5876
      %v6061 = vpop.f32.mrb[0].mxu0
      %v6062 = vadd.f32 0.0, %v6061
      %v6063 = vpop.f32.mrb[0].mxu0
      %v6064 = vpop.f32.mrb[0].mxu0
      %v6065 = vadd.f32 0.0, %v6064
      %v6066 = vpop.f32.mrb[0].mxu0
      %6067 = vmatprep.mubr.bf16.mxu0 0
      %6068 = vmatmul.mubr.bf16.gmra.mrb[0].mxu0 %v5877
      %v6069 = vpop.f32.mrb[0].mxu0
      %v6070 = vadd.f32 0.0, %v6069
      %v6071 = vpop.f32.mrb[0].mxu0
      %v6072 = vpop.f32.mrb[0].mxu0
      %v6073 = vadd.f32 0.0, %v6072
      %v6074 = vpop.f32.mrb[0].mxu0
      %6075 = vmatprep.mubr.bf16.mxu0 0
      %6076 = vmatmul.mubr.bf16.gmra.mrb[0].mxu0 %v5878
      %v6077 = vpop.f32.mrb[0].mxu0
      %v6078 = vadd.f32 0.0, %v6077
      %v6079 = vpop.f32.mrb[0].mxu0
      %v6080 = vpop.f32.mrb[0].mxu0
      %v6081 = vadd.f32 0.0, %v6080
      %v6082 = vpop.f32.mrb[0].mxu0
      %6083 = vmatprep.mubr.bf16.mxu0 0
      %6084 = vmatmul.mubr.bf16.gmra.mrb[0].mxu0 %v5879
      %v6085 = vpop.f32.mrb[0].mxu0
      %v6086 = vadd.f32 0.0, %v6085
      %v6087 = vpop.f32.mrb[0].mxu0
      %v6088 = vpop.f32.mrb[0].mxu0
      %v6089 = vadd.f32 0.0, %v6088
      %v6090 = vpop.f32.mrb[0].mxu0
      %6091 = vmatprep.mubr.bf16.mxu0 0
      %6092 = vmatmul.mubr.bf16.gmra.mrb[0].mxu0 %v5880
      %v6093 = vpop.f32.mrb[0].mxu0
      %v6094 = vadd.f32 0.0, %v6093
      %v6095 = vpop.f32.mrb[0].mxu0
      %v6096 = vpop.f32.mrb[0].mxu0
      %v6097 = vadd.f32 0.0, %v6096
      %v6098 = vpop.f32.mrb[0].mxu0
      %6099 = vmatprep.mubr.bf16.mxu0 0
      %6100 = vmatmul.mubr.bf16.gmra.mrb[0].mxu0 %v5881
      %v6101 = vpop.f32.mrb[0].mxu0
      %v6102 = vadd.f32 0.0, %v6101
      %v6103 = vpop.f32.mrb[0].mxu0
      %v6104 = vpop.f32.mrb[0].mxu0
      %v6105 = vadd.f32 0.0, %v6104
      %v6106 = vpop.f32.mrb[0].mxu0
      %6107 = vdwg.mxu0
      %v6108 = vadd.f32 %v5802, %v5982
      %v6109 = vadd.f32 %v5803, %v5985
      %v6110 = vadd.f32 %v5804, %v5990
      %v6111 = vadd.f32 %v5805, %v5993
      %v6112 = vadd.f32 %v5806, %v5998
      %v6113 = vadd.f32 %v5807, %v6001
      %v6114 = vadd.f32 %v5808, %v6006
      %v6115 = vadd.f32 %v5809, %v6009
      %v6116 = vadd.f32 %v5810, %v6014
      %v6117 = vadd.f32 %v5811, %v6017
      %v6118 = vadd.f32 %v5812, %v6022
      %v6119 = vadd.f32 %v5813, %v6025
      %v6120 = vadd.f32 %v5814, %v6030
      %v6121 = vadd.f32 %v5815, %v6033
      %v6122 = vadd.f32 %v5816, %v6038
      %v6123 = vadd.f32 %v5817, %v6041
      %v6124 = vadd.f32 %v5818, %v6046
      %v6125 = vadd.f32 %v5819, %v6049
      %v6126 = vadd.f32 %v5820, %v6054
      %v6127 = vadd.f32 %v5821, %v6057
      %v6128 = vadd.f32 %v5822, %v6062
      %v6129 = vadd.f32 %v5823, %v6065
      %v6130 = vadd.f32 %v5824, %v6070
      %v6131 = vadd.f32 %v5825, %v6073
      %v6132 = vadd.f32 %v5826, %v6078
      %v6133 = vadd.f32 %v5827, %v6081
      %v6134 = vadd.f32 %v5828, %v6086
      %v6135 = vadd.f32 %v5829, %v6089
      %v6136 = vadd.f32 %v5830, %v6094
      %v6137 = vadd.f32 %v5831, %v6097
      %v6138 = vadd.f32 %v5832, %v6102
      %v6139 = vadd.f32 %v5833, %v6105
      %v6140 = vld [vmem:[%s530 + $0x1] sm:$0xff]
      %v6141 = vld [vmem:[%s530 + $0x9] sm:$0xff]
      %v6142 = vld [vmem:[%s530 + $0x19] sm:$0xff]
      %v6143 = vld [vmem:[%s530 + $0x21] sm:$0xff]
      %v6144 = vld [vmem:[%s530 + $0x31] sm:$0xff]
      %v6145 = vld [vmem:[%s530 + $0x39] sm:$0xff]
      %v6146 = vld [vmem:[%s530 + $0x49] sm:$0xff]
      %v6147 = vld [vmem:[%s530 + $0x51] sm:$0xff]
      %v6148 = vld [vmem:[%s530 + $0x61] sm:$0xff]
      %v6149 = vld [vmem:[%s530 + $0x69] sm:$0xff]
      %v6150 = vld [vmem:[%s530 + $0x79] sm:$0xff]
      %v6151 = vld [vmem:[%s530 + $0x81] sm:$0xff]
      %v6152 = vld [vmem:[%s530 + $0x91] sm:$0xff]
      %v6153 = vld [vmem:[%s530 + $0x99] sm:$0xff]
      %v6154 = vld [vmem:[%s530 + $0xa9] sm:$0xff]
      %v6155 = vld [vmem:[%s530 + $0xb1] sm:$0xff]
      %v6156 = vld [vmem:[%s530 + $0xc1] sm:$0xff]
      %v6157 = vld [vmem:[%s530 + $0xc9] sm:$0xff]
      %v6158 = vld [vmem:[%s530 + $0xd9] sm:$0xff]
      %v6159 = vld [vmem:[%s530 + $0xe1] sm:$0xff]
      %v6160 = vld [vmem:[%s530 + $0xf1] sm:$0xff]
      %v6161 = vld [vmem:[%s530 + $0xf9] sm:$0xff]
      %v6162 = vld [vmem:[%s530 + $0x109] sm:$0xff]
      %v6163 = vld [vmem:[%s530 + $0x111] sm:$0xff]
      %v6164 = vld [vmem:[%s530 + $0x121] sm:$0xff]
      %v6165 = vld [vmem:[%s530 + $0x129] sm:$0xff]
      %v6166 = vld [vmem:[%s530 + $0x139] sm:$0xff]
      %v6167 = vld [vmem:[%s530 + $0x141] sm:$0xff]
      %v6168 = vld [vmem:[%s530 + $0x151] sm:$0xff]
      %v6169 = vld [vmem:[%s530 + $0x159] sm:$0xff]
      %v6170 = vld [vmem:[%s530 + $0x169] sm:$0xff]
      %v6171 = vld [vmem:[%s530 + $0x171] sm:$0xff]
      %v6172 = vld [vmem:[%s7] sm:$0x1]
      %v6174 = vlaneseq
      %v6175 = vshrl.u32 %v6174, 7
      %v6176 = vsub.s32 0, %v6175
      %v6177 = vrot.slane %v6172, %v6176
      %v6179 = vmul.f32 %v6108, %v6177
      %v6180 = vmul.f32 %v6109, %v6177
      %v6181 = vmul.f32 %v6110, %v6177
      %v6182 = vmul.f32 %v6111, %v6177
      %v6183 = vmul.f32 %v6112, %v6177
      %v6184 = vmul.f32 %v6113, %v6177
      %v6185 = vmul.f32 %v6114, %v6177
      %v6186 = vmul.f32 %v6115, %v6177
      %v6187 = vmul.f32 %v6116, %v6177
      %v6188 = vmul.f32 %v6117, %v6177
      %v6189 = vmul.f32 %v6118, %v6177
      %v6190 = vmul.f32 %v6119, %v6177
      %v6191 = vmul.f32 %v6120, %v6177
      %v6192 = vmul.f32 %v6121, %v6177
      %v6193 = vmul.f32 %v6122, %v6177
      %v6194 = vmul.f32 %v6123, %v6177
      %v6195 = vmul.f32 %v6124, %v6177
      %v6196 = vmul.f32 %v6125, %v6177
      %v6197 = vmul.f32 %v6126, %v6177
      %v6198 = vmul.f32 %v6127, %v6177
      %v6199 = vmul.f32 %v6128, %v6177
      %v6200 = vmul.f32 %v6129, %v6177
      %v6201 = vmul.f32 %v6130, %v6177
      %v6202 = vmul.f32 %v6131, %v6177
      %v6203 = vmul.f32 %v6132, %v6177
      %v6204 = vmul.f32 %v6133, %v6177
      %v6205 = vmul.f32 %v6134, %v6177
      %v6206 = vmul.f32 %v6135, %v6177
      %v6207 = vmul.f32 %v6136, %v6177
      %v6208 = vmul.f32 %v6137, %v6177
      %v6209 = vmul.f32 %v6138, %v6177
      %v6210 = vmul.f32 %v6139, %v6177
      %v6211 = vld [vmem:[%s8] sm:$0x1]
      %v6213 = vlaneseq
      %v6214 = vshrl.u32 %v6213, 7
      %v6215 = vsub.s32 0, %v6214
      %v6216 = vrot.slane %v6211, %v6215
      %v6218 = vadd.f32 %v6179, %v6216
      %v6219 = vadd.f32 %v6180, %v6216
      %v6220 = vadd.f32 %v6181, %v6216
      %v6221 = vadd.f32 %v6182, %v6216
      %v6222 = vadd.f32 %v6183, %v6216
      %v6223 = vadd.f32 %v6184, %v6216
      %v6224 = vadd.f32 %v6185, %v6216
      %v6225 = vadd.f32 %v6186, %v6216
      %v6226 = vadd.f32 %v6187, %v6216
      %v6227 = vadd.f32 %v6188, %v6216
      %v6228 = vadd.f32 %v6189, %v6216
      %v6229 = vadd.f32 %v6190, %v6216
      %v6230 = vadd.f32 %v6191, %v6216
      %v6231 = vadd.f32 %v6192, %v6216
      %v6232 = vadd.f32 %v6193, %v6216
      %v6233 = vadd.f32 %v6194, %v6216
      %v6234 = vadd.f32 %v6195, %v6216
      %v6235 = vadd.f32 %v6196, %v6216
      %v6236 = vadd.f32 %v6197, %v6216
      %v6237 = vadd.f32 %v6198, %v6216
      %v6238 = vadd.f32 %v6199, %v6216
      %v6239 = vadd.f32 %v6200, %v6216
      %v6240 = vadd.f32 %v6201, %v6216
      %v6241 = vadd.f32 %v6202, %v6216
      %v6242 = vadd.f32 %v6203, %v6216
      %v6243 = vadd.f32 %v6204, %v6216
      %v6244 = vadd.f32 %v6205, %v6216
      %v6245 = vadd.f32 %v6206, %v6216
      %v6246 = vadd.f32 %v6207, %v6216
      %v6247 = vadd.f32 %v6208, %v6216
      %v6248 = vadd.f32 %v6209, %v6216
      %v6249 = vadd.f32 %v6210, %v6216
      %v6250 = vadd.f32 %v6218, %v6140
      %v6251 = vadd.f32 %v6219, %v6141
      %v6252 = vadd.f32 %v6220, %v6142
      %v6253 = vadd.f32 %v6221, %v6143
      %v6254 = vadd.f32 %v6222, %v6144
      %v6255 = vadd.f32 %v6223, %v6145
      %v6256 = vadd.f32 %v6224, %v6146
      %v6257 = vadd.f32 %v6225, %v6147
      %v6258 = vadd.f32 %v6226, %v6148
      %v6259 = vadd.f32 %v6227, %v6149
      %v6260 = vadd.f32 %v6228, %v6150
      %v6261 = vadd.f32 %v6229, %v6151
      %v6262 = vadd.f32 %v6230, %v6152
      %v6263 = vadd.f32 %v6231, %v6153
      %v6264 = vadd.f32 %v6232, %v6154
      %v6265 = vadd.f32 %v6233, %v6155
      %v6266 = vadd.f32 %v6234, %v6156
      %v6267 = vadd.f32 %v6235, %v6157
      %v6268 = vadd.f32 %v6236, %v6158
      %v6269 = vadd.f32 %v6237, %v6159
      %v6270 = vadd.f32 %v6238, %v6160
      %v6271 = vadd.f32 %v6239, %v6161
      %v6272 = vadd.f32 %v6240, %v6162
      %v6273 = vadd.f32 %v6241, %v6163
      %v6274 = vadd.f32 %v6242, %v6164
      %v6275 = vadd.f32 %v6243, %v6165
      %v6276 = vadd.f32 %v6244, %v6166
      %v6277 = vadd.f32 %v6245, %v6167
      %v6278 = vadd.f32 %v6246, %v6168
      %v6279 = vadd.f32 %v6247, %v6169
      %v6280 = vadd.f32 %v6248, %v6170
      %v6281 = vadd.f32 %v6249, %v6171
      %v6282 = vmax.f32 %v6250, 0.0
      %v6283 = vmax.f32 %v6251, 0.0
      %v6284 = vmax.f32 %v6252, 0.0
      %v6285 = vmax.f32 %v6253, 0.0
      %v6286 = vmax.f32 %v6254, 0.0
      %v6287 = vmax.f32 %v6255, 0.0
      %v6288 = vmax.f32 %v6256, 0.0
      %v6289 = vmax.f32 %v6257, 0.0
      %v6290 = vmax.f32 %v6258, 0.0
      %v6291 = vmax.f32 %v6259, 0.0
      %v6292 = vmax.f32 %v6260, 0.0
      %v6293 = vmax.f32 %v6261, 0.0
      %v6294 = vmax.f32 %v6262, 0.0
      %v6295 = vmax.f32 %v6263, 0.0
      %v6296 = vmax.f32 %v6264, 0.0
      %v6297 = vmax.f32 %v6265, 0.0
      %v6298 = vmax.f32 %v6266, 0.0
      %v6299 = vmax.f32 %v6267, 0.0
      %v6300 = vmax.f32 %v6268, 0.0
      %v6301 = vmax.f32 %v6269, 0.0
      %v6302 = vmax.f32 %v6270, 0.0
      %v6303 = vmax.f32 %v6271, 0.0
      %v6304 = vmax.f32 %v6272, 0.0
      %v6305 = vmax.f32 %v6273, 0.0
      %v6306 = vmax.f32 %v6274, 0.0
      %v6307 = vmax.f32 %v6275, 0.0
      %v6308 = vmax.f32 %v6276, 0.0
      %v6309 = vmax.f32 %v6277, 0.0
      %v6310 = vmax.f32 %v6278, 0.0
      %v6311 = vmax.f32 %v6279, 0.0
      %v6312 = vmax.f32 %v6280, 0.0
      %v6313 = vmax.f32 %v6281, 0.0
      %v6314 = vpack.c.bf16 %v6283, %v6282
      %v6315 = vpack.c.bf16 %v6285, %v6284
      %v6316 = vpack.c.bf16 %v6287, %v6286
      %v6317 = vpack.c.bf16 %v6289, %v6288
      %v6318 = vpack.c.bf16 %v6291, %v6290
      %v6319 = vpack.c.bf16 %v6293, %v6292
      %v6320 = vpack.c.bf16 %v6295, %v6294
      %v6321 = vpack.c.bf16 %v6297, %v6296
      %v6322 = vpack.c.bf16 %v6299, %v6298
      %v6323 = vpack.c.bf16 %v6301, %v6300
      %v6324 = vpack.c.bf16 %v6303, %v6302
      %v6325 = vpack.c.bf16 %v6305, %v6304
      %v6326 = vpack.c.bf16 %v6307, %v6306
      %v6327 = vpack.c.bf16 %v6309, %v6308
      %v6328 = vpack.c.bf16 %v6311, %v6310
      %v6329 = vpack.c.bf16 %v6313, %v6312
      %v6346 = vunpack.c.l.b16 %v6314
      %v6347 = vunpack.c.h.b16 %v6314
      %v6348 = vunpack.c.l.b16 %v6315
      %v6349 = vunpack.c.h.b16 %v6315
      %v6350 = vunpack.c.l.b16 %v6316
      %v6351 = vunpack.c.h.b16 %v6316
      %v6352 = vunpack.c.l.b16 %v6317
      %v6353 = vunpack.c.h.b16 %v6317
      %v6354 = vunpack.c.l.b16 %v6318
      %v6355 = vunpack.c.h.b16 %v6318
      %v6356 = vunpack.c.l.b16 %v6319
      %v6357 = vunpack.c.h.b16 %v6319
      %v6358 = vunpack.c.l.b16 %v6320
      %v6359 = vunpack.c.h.b16 %v6320
      %v6360 = vunpack.c.l.b16 %v6321
      %v6361 = vunpack.c.h.b16 %v6321
      %v6362 = vunpack.c.l.b16 %v6322
      %v6363 = vunpack.c.h.b16 %v6322
      %v6364 = vunpack.c.l.b16 %v6323
      %v6365 = vunpack.c.h.b16 %v6323
      %v6366 = vunpack.c.l.b16 %v6324
      %v6367 = vunpack.c.h.b16 %v6324
      %v6368 = vunpack.c.l.b16 %v6325
      %v6369 = vunpack.c.h.b16 %v6325
      %v6370 = vunpack.c.l.b16 %v6326
      %v6371 = vunpack.c.h.b16 %v6326
      %v6372 = vunpack.c.l.b16 %v6327
      %v6373 = vunpack.c.h.b16 %v6327
      %v6374 = vunpack.c.l.b16 %v6328
      %v6375 = vunpack.c.h.b16 %v6328
      %v6376 = vunpack.c.l.b16 %v6329
      %v6377 = vunpack.c.h.b16 %v6329
      %v6378 = vpack.c.b16 %v6346, %v6346
      %v6379 = vpack.c.b16 %v6347, %v6347
      %v6380 = vpack.c.b16 %v6348, %v6348
      %v6381 = vpack.c.b16 %v6349, %v6349
      %v6382 = vpack.c.b16 %v6350, %v6350
      %v6383 = vpack.c.b16 %v6351, %v6351
      %v6384 = vpack.c.b16 %v6352, %v6352
      %v6385 = vpack.c.b16 %v6353, %v6353
      %v6386 = vpack.c.b16 %v6354, %v6354
      %v6387 = vpack.c.b16 %v6355, %v6355
      %v6388 = vpack.c.b16 %v6356, %v6356
      %v6389 = vpack.c.b16 %v6357, %v6357
      %v6390 = vpack.c.b16 %v6358, %v6358
      %v6391 = vpack.c.b16 %v6359, %v6359
      %v6392 = vpack.c.b16 %v6360, %v6360
      %v6393 = vpack.c.b16 %v6361, %v6361
      %v6394 = vpack.c.b16 %v6362, %v6362
      %v6395 = vpack.c.b16 %v6363, %v6363
      %v6396 = vpack.c.b16 %v6364, %v6364
      %v6397 = vpack.c.b16 %v6365, %v6365
      %v6398 = vpack.c.b16 %v6366, %v6366
      %v6399 = vpack.c.b16 %v6367, %v6367
      %v6400 = vpack.c.b16 %v6368, %v6368
      %v6401 = vpack.c.b16 %v6369, %v6369
      %v6402 = vpack.c.b16 %v6370, %v6370
      %v6403 = vpack.c.b16 %v6371, %v6371
      %v6404 = vpack.c.b16 %v6372, %v6372
      %v6405 = vpack.c.b16 %v6373, %v6373
      %v6406 = vpack.c.b16 %v6374, %v6374
      %v6407 = vpack.c.b16 %v6375, %v6375
      %v6408 = vpack.c.b16 %v6376, %v6376
      %v6409 = vpack.c.b16 %v6377, %v6377
      %6442 = vst [vmem:[%s332] sm:$0xf] %v6378
      %6443 = vst [vmem:[%s332 + $0x4] sm:$0xf] %v6379
      %6444 = vst [vmem:[%s332 + $0x8] sm:$0xf] %v6380
      %6445 = vst [vmem:[%s332 + $0xc] sm:$0xf] %v6381
      %6446 = vst [vmem:[%s332 + $0x10] sm:$0xf] %v6382
      %6447 = vst [vmem:[%s332 + $0x14] sm:$0xf] %v6383
      %6448 = vst [vmem:[%s332 + $0x18] sm:$0xf] %v6384
      %6449 = vst [vmem:[%s332 + $0x1c] sm:$0xf] %v6385
      %6450 = vst [vmem:[%s332 + $0x20] sm:$0xf] %v6386
      %6451 = vst [vmem:[%s332 + $0x24] sm:$0xf] %v6387
      %6452 = vst [vmem:[%s332 + $0x28] sm:$0xf] %v6388
      %6453 = vst [vmem:[%s332 + $0x2c] sm:$0xf] %v6389
      %6454 = vst [vmem:[%s332 + $0x30] sm:$0xf] %v6390
      %6455 = vst [vmem:[%s332 + $0x34] sm:$0xf] %v6391
      %6456 = vst [vmem:[%s332 + $0x38] sm:$0xf] %v6392
      %6457 = vst [vmem:[%s332 + $0x3c] sm:$0xf] %v6393
      %6458 = vst [vmem:[%s332 + $0x40] sm:$0xf] %v6394
      %6459 = vst [vmem:[%s332 + $0x44] sm:$0xf] %v6395
      %6460 = vst [vmem:[%s332 + $0x48] sm:$0xf] %v6396
      %6461 = vst [vmem:[%s332 + $0x4c] sm:$0xf] %v6397
      %6462 = vst [vmem:[%s332 + $0x50] sm:$0xf] %v6398
      %6463 = vst [vmem:[%s332 + $0x54] sm:$0xf] %v6399
      %6464 = vst [vmem:[%s332 + $0x58] sm:$0xf] %v6400
      %6465 = vst [vmem:[%s332 + $0x5c] sm:$0xf] %v6401
      %6466 = vst [vmem:[%s332 + $0x60] sm:$0xf] %v6402
      %6467 = vst [vmem:[%s332 + $0x64] sm:$0xf] %v6403
      %6468 = vst [vmem:[%s332 + $0x68] sm:$0xf] %v6404
      %6469 = vst [vmem:[%s332 + $0x6c] sm:$0xf] %v6405
      %6470 = vst [vmem:[%s332 + $0x70] sm:$0xf] %v6406
      %6471 = vst [vmem:[%s332 + $0x74] sm:$0xf] %v6407
      %6472 = vst [vmem:[%s332 + $0x78] sm:$0xf] %v6408
      %6473 = vst [vmem:[%s332 + $0x7c] sm:$0xf] %v6409
      %p6474 = scmp.lt.s32.totalorder %s20, 1
      %s6475 = scalar_select %p6474, %s20, 1
      %s6476 = smul.addr %s6475, 32
      %s6477 = smul.addr %s6476, 4
      %s6478 = scalar_lea.vmem %s9, %s6477
      // Predicated region
      $region57: #{image_encoder_forward.2} parent=55 // pred_check
        %p6479 = pneg %p232
      $region58: #{image_encoder_forward.2} parent=55 // pred_check_branch
        %6481 = sbr.rel (%p6479) target = $region60
      $region59: #{image_encoder_forward.2} parent=55 // pred_region
        _
      $region60: #{image_encoder_forward.2} parent=55 // pred_fallthru
        _
    $region56: #{image_encoder_forward.2} parent=5 // pred_fallthru
      _
    %p6482 = scmp.le.s32.totalorder 2, %s15
    // Predicated region
    $region61: #{image_encoder_forward.2} parent=5 // pred_check
      %p6483 = pneg %p6482
    $region62: #{image_encoder_forward.2} parent=5 // pred_check_branch
      %6485 = sbr.rel (%p6483) target = $region64
    $region63: #{image_encoder_forward.2} parent=5 // pred_region
      %s6486 = ssub.s32 %s15, 2
      // Predicated region
      $region65: #{image_encoder_forward.2} parent=63 // pred_check
        %p6487 = pneg %p238
      $region66: #{image_encoder_forward.2} parent=63 // pred_check_branch
        %6489 = sbr.rel (%p6487) target = $region68
      $region67: #{image_encoder_forward.2} parent=63 // pred_region
        %p6490 = scmp.lt.s32.totalorder %s21, 1
        %s6491 = scalar_select %p6490, %s21, 1
        %s6492 = smul.addr %s6491, 32
        %s6493 = smul.addr %s6492, 4
        %s6494 = scalar_lea.vmem %s9, %s6493
      $region68: #{image_encoder_forward.2} parent=63 // pred_fallthru
        _
    $region64: #{image_encoder_forward.2} parent=5 // pred_fallthru
      _
  $region6: #{image_encoder_forward.2} parent=0 // loop_footer
    %s19 = sadd.s32 1, %s15
  $region7: #{image_encoder_forward.2} parent=0 // loop_footer_branch
    %14 = sbr.rel target = $region3
  $region8: #{image_encoder_forward.2} parent=0 // loop_exit
    _

</llo_original>
